<compile_context>
chip_gen: v5e
topology: v5e:2x2
jax: 0.10.0
libtpu: 0.0.40
codegen_flags: <defaults>
</compile_context>

<pallas_src>
import jax
import jax.numpy as jnp
from jax import lax
from jax.experimental import pallas as pl
from jax.experimental.pallas import tpu as pltpu

FEATURE_SIZE = 576   # config.arch.backbone_pose == 'mobilenet' branch
NUM_OUT = 6
OUT_PAD = 128        # lane-dense output slab width; sliced back to NUM_OUT in the wrapper


def pose_head_kernel(feat_ref, w_ref, b_ref, out_ref):
    # feat_ref: [TB, C*HW]    fully lane-dense contiguous view of the NCHW feature map
    # w_ref:    [6, C*HW]     pool folded in: W_rep[o, c*HW + k] = W[o, c] / HW
    # b_ref:    [1, 6]        f32 bias
    # out_ref:  [TB, OUT_PAD] lane-dense output slab (columns >= 6 are zero)
    #
    # Single MXU contraction performs pooling + Linear. bf16 features feed the MXU
    # directly (no full-tile f32 upcast); accumulation is f32 via preferred_element_type.
    out = lax.dot_general(
        feat_ref[...], w_ref[...],
        dimension_numbers=(((1,), (1,)), ((), ())),
        preferred_element_type=jnp.float32,
    ) + b_ref[...]                                               # [TB, 6] f32
    pad = jnp.zeros((out.shape[0], OUT_PAD - NUM_OUT), jnp.float32)
    out_ref[...] = jnp.concatenate([out, pad], axis=-1).astype(out_ref.dtype)


def _pick_batch_tile(batch, bytes_per_row):
    """Largest sublane-aligned batch tile that keeps the double-buffered feature
    stream under ~24 MiB (fits the 32 MiB scoped VMEM we request on every chip,
    leaving room for weight/bias/output buffers) while keeping >=2 grid tiles for
    v7x's two TensorCores."""
    if batch <= 8:
        return batch
    vmem_cap = (24 * 1024 * 1024) // (2 * bytes_per_row)   # 2x for double buffering
    tb = min(64, vmem_cap, pl.cdiv(batch, 2))
    return max(8, (tb // 8) * 8)


def pose_encoder_head(features_nchw, weight, bias):
    """features_nchw: [B, C, H, W] (f32 or bf16); weight: [6, C]; bias: [6].

    Returns {'pose_params': [B, 3], 'cam': [B, 3]} — same as PoseEncoder.forward.
    """
    B, C, H, W = features_nchw.shape
    HW = H * W
    CHW = C * HW
    # Free reshape of the contiguous NCHW feature map — no transpose, no extra HBM pass.
    feat = features_nchw.reshape(B, CHW)

    # Fold adaptive_avg_pool2d into the Linear:
    #   out[b, o] = sum_{c,hw} (W[o, c] / HW) * feat[b, c*HW + hw] + bias[o]
    # W_rep is tiny ([6, C*HW]) and computed once on the wrapper side; cast to the
    # feature dtype so bf16 features hit the MXU without an in-kernel upcast.
    w_rep = (jnp.repeat(weight, HW, axis=1) * (1.0 / HW)).astype(feat.dtype)
    b2d = bias.reshape(1, NUM_OUT).astype(jnp.float32)

    TB = _pick_batch_tile(B, CHW * feat.dtype.itemsize)
    grid = (pl.cdiv(B, TB),)

    out_padded = pl.pallas_call(
        pose_head_kernel,
        out_shape=jax.ShapeDtypeStruct((B, OUT_PAD), jnp.float32),
        grid=grid,
        in_specs=[
            pl.BlockSpec((TB, CHW), lambda b: (b, 0)),        # feature tile per batch block
            pl.BlockSpec((NUM_OUT, CHW), lambda b: (0, 0)),   # folded weight, resident
            pl.BlockSpec((1, NUM_OUT), lambda b: (0, 0)),     # bias, resident
        ],
        out_specs=pl.BlockSpec((TB, OUT_PAD), lambda b: (b, 0)),
        compiler_params=pltpu.CompilerParams(
            dimension_semantics=("parallel",),                # shard batch tiles across TCs (v7x)
            vmem_limit_bytes=32 * 1024 * 1024,                # raise v5e's 16 MiB scoped default
        ),
    )(feat, w_rep, b2d)

    pose_cam = out_padded[:, :NUM_OUT].reshape(B, -1)  # pose_cam_layers(features).reshape(B, -1)
    return {"pose_params": pose_cam[..., :3], "cam": pose_cam[..., 3:]}


def init_pose_cam_params(key, feature_size=FEATURE_SIZE):
    # nn.Linear default init: U(-1/sqrt(fan_in), 1/sqrt(fan_in)) for weight and bias.
    kw, kb = jax.random.split(key)
    bound = 1.0 / jnp.sqrt(float(feature_size))
    weight = jax.random.uniform(kw, (NUM_OUT, feature_size), jnp.float32, -bound, bound)
    bias = jax.random.uniform(kb, (NUM_OUT,), jnp.float32, -bound, bound)
    # PoseEncoder.init_weights(), matching the literal PyTorch code:
    #   weight.data[..., 3] = 0  -> zero input-feature column 3 for all 6 outputs
    #   bias.data[..., 3]   = 7  -> bias of output index 3
    weight = weight * 0.001
    bias = bias * 0.001
    weight = weight.at[..., 3].set(0.0)
    bias = bias.at[3].set(7.0)
    return weight, bias                   # [6, C] (PyTorch layout), [6]


if __name__ == "__main__":
    key = jax.random.PRNGKey(0)
    k_feat, k_param, k_feat2 = jax.random.split(key, 3)

    # TODO(synk): the pretrained backbone (self.encoder) is not translated; a synthetic
    # feature map stands in for `self.encoder(img_)[-1]`.
    B, C, H, W = 2, FEATURE_SIZE, 8, 8
    features = jax.random.normal(k_feat, (B, C, H, W), dtype=jnp.float32)
    weight, bias = init_pose_cam_params(k_param)

    outputs = pose_encoder_head(features, weight, bias)
    jax.block_until_ready(outputs)

    # Pure-JAX reference for correctness.
    pooled_ref = jnp.mean(features, axis=(2, 3))           # [B, C]
    pose_cam_ref = pooled_ref @ weight.T + bias            # [B, 6]
    assert outputs["pose_params"].shape == (B, 3)
    assert outputs["cam"].shape == (B, 3)
    assert jnp.allclose(outputs["pose_params"], pose_cam_ref[:, :3], atol=2e-5)
    assert jnp.allclose(outputs["cam"], pose_cam_ref[:, 3:], atol=2e-5)

    # Second check: larger batch exercising the tiled grid (multiple tiles + a
    # partial final tile, masked output rows).
    B2 = 20
    features2 = jax.random.normal(k_feat2, (B2, C, H, W), dtype=jnp.float32)
    outputs2 = pose_encoder_head(features2, weight, bias)
    jax.block_until_ready(outputs2)
    pose_cam_ref2 = jnp.mean(features2, axis=(2, 3)) @ weight.T + bias
    assert jnp.allclose(outputs2["pose_params"], pose_cam_ref2[:, :3], atol=2e-5)
    assert jnp.allclose(outputs2["cam"], pose_cam_ref2[:, 3:], atol=2e-5)

    print("KERNEL_OK")
</pallas_src>

<mosaic_0001>
module attributes {stable_mosaic.version = 11 : i64} {
  func.func @pose_head_kernel(%arg0: i32, %arg1: memref<2x36864xf32, #tpu.memory_space<vmem>>, %arg2: memref<6x36864xf32, #tpu.memory_space<vmem>>, %arg3: memref<1x6xf32, #tpu.memory_space<vmem>>, %arg4: memref<2x128xf32, #tpu.memory_space<vmem>>) attributes {dimension_semantics = [#tpu.dimension_semantics<parallel>], iteration_bounds = array<i64: 1>, scalar_prefetch = 0 : i64, scratch_operands = 0 : i64, tpu.core_type = #tpu.core_type<tc>, window_params = [{transform_indices = @transform_0, window_bounds = array<i64: 2, 36864>}, {pipeline_mode = #tpu.pipeline_mode<synchronous>, transform_indices = @transform_1, window_bounds = array<i64: 6, 36864>}, {pipeline_mode = #tpu.pipeline_mode<synchronous>, transform_indices = @transform_2, window_bounds = array<i64: 1, 6>}, {transform_indices = @transform_3, window_bounds = array<i64: 2, 128>}]} {
    %c0 = arith.constant 0 : index
    %c0_0 = arith.constant 0 : index
    %0 = vector.load %arg1[%c0, %c0_0] : memref<2x36864xf32, #tpu.memory_space<vmem>>, vector<2x36864xf32>
    %c0_1 = arith.constant 0 : index
    %c0_2 = arith.constant 0 : index
    %1 = vector.load %arg2[%c0_1, %c0_2] : memref<6x36864xf32, #tpu.memory_space<vmem>>, vector<6x36864xf32>
    %cst = arith.constant dense<0.000000e+00> : vector<2x6xf32>
    %2 = tpu.matmul %0, %1, %cst {dimension_numbers = #tpu.dot_dimension_numbers<[1], [1], [0], [0], [0, 0, 1, 0], [], []>} : vector<2x36864xf32>, vector<6x36864xf32>, vector<2x6xf32> -> vector<2x6xf32>
    %c0_3 = arith.constant 0 : index
    %c0_4 = arith.constant 0 : index
    %3 = vector.load %arg3[%c0_3, %c0_4] : memref<1x6xf32, #tpu.memory_space<vmem>>, vector<1x6xf32>
    %4 = vector.broadcast %3 : vector<1x6xf32> to vector<2x6xf32>
    %5 = arith.addf %2, %4 : vector<2x6xf32>
    %cst_5 = arith.constant 0.000000e+00 : f32
    %6 = vector.broadcast %cst_5 : f32 to vector<2x122xf32>
    %7 = tpu.concatenate %5, %6 in 1 : vector<2x6xf32>, vector<2x122xf32> -> vector<2x128xf32>
    %c0_6 = arith.constant 0 : index
    %c0_7 = arith.constant 0 : index
    %8 = vector.load %arg4[%c0_6, %c0_7] : memref<2x128xf32, #tpu.memory_space<vmem>>, vector<2x128xf32>
    tpu.vector_store %arg4[%c0_6, %c0_7], %7 {strides = array<i32>} : memref<2x128xf32, #tpu.memory_space<vmem>>, vector<2x128xf32>,
    return
  }
  func.func @transform_0(%arg0: i32) -> (i32, i32) {
    %c0_i32 = arith.constant 0 : i32
    %c0_i32_0 = arith.constant 0 : i32
    return %arg0, %c0_i32 : i32, i32
  }
  func.func @transform_1(%arg0: i32) -> (i32, i32) {
    %c0_i32 = arith.constant 0 : i32
    %c0_i32_0 = arith.constant 0 : i32
    %c0_i32_1 = arith.constant 0 : i32
    return %c0_i32, %c0_i32_0 : i32, i32
  }
  func.func @transform_2(%arg0: i32) -> (i32, i32) {
    %c0_i32 = arith.constant 0 : i32
    %c0_i32_0 = arith.constant 0 : i32
    %c0_i32_1 = arith.constant 0 : i32
    return %c0_i32, %c0_i32_0 : i32, i32
  }
  func.func @transform_3(%arg0: i32) -> (i32, i32) {
    %c0_i32 = arith.constant 0 : i32
    %c0_i32_0 = arith.constant 0 : i32
    return %arg0, %c0_i32 : i32, i32
  }
}

</mosaic_0001>

<llo_original>
// kernel: tpu_custom_call.1
$region0: #{tpu_custom_call.1}
  #allocation0 [shape = 'u32[]', space=smem, size = 0x4, offset = 0x4, fixed_abs, tag = 'smem constant byte address 0x4 - core index']
  #allocation1 [shape = 'u32[72,128]{1,0:T(1,128)}', space=vmem, size = 0x9000, scoped, tag = 'internal scratch']
  %s0 = inlined_call_operand.hbm [shape: f32[2,36864], index: 0, kind: input, shape index: {}]
  %s1 = inlined_call_operand.hbm [shape: f32[6,36864], index: 1, kind: input, shape index: {}]
  %s2 = inlined_call_operand.hbm [shape: f32[1,6], index: 2, kind: input, shape index: {}]
  %s3 = inlined_call_operand.hbm [shape: f32[2,128], index: 3, kind: output, shape index: {}]
  %s4 = sld [smem:[#allocation0]]
  $region34: #{tpu_custom_call.1} parent=0
    _
  %s6 = ssub.s32 1, %s4
  %s7 = scalar_select 0, %s6, %s4
  $region1: #{tpu_custom_call.1} parent=0
    #allocation2 [shape = 'u8[294912]{0}', space=vmem, size = 0x48000, scoped, tag = 'input window, operand 0, single buffered']
    #allocation3 [shape = 's32[1]{0}', space=sflag, size = 0x4, scoped, tag = 'scoped memory for tpu_custom_call.1']
    #allocation4 [shape = 's32[1]{0}', space=sflag, size = 0x4, scoped, tag = 'scoped memory for tpu_custom_call.1']
    #allocation5 [shape = 'u8[1179648]{0}', space=vmem, size = 0x120000, scoped, tag = 'input window, operand 1, single buffered']
    #allocation6 [shape = 's32[1]{0}', space=sflag, size = 0x4, scoped, tag = 'scoped memory for tpu_custom_call.1']
    #allocation7 [shape = 'u8[512]{0}', space=vmem, size = 0x400, scoped, tag = 'input window, operand 2, single buffered']
    #allocation8 [shape = 'u8[1024]{0}', space=vmem, size = 0x400, scoped, tag = 'output window, operand 0, single buffered']
    %8 = vsyncpa [#allocation3], 0
    %9 = vsyncpa [#allocation6], 0
    %10 = vsyncpa [#allocation4], 0
    // Predicated region
    $region2: #{tpu_custom_call.1} parent=1 // pred_check
      _
    $region3: #{tpu_custom_call.1} parent=1 // pred_check_branch
      %12 = sbr.rel (0) target = $region5
    $region4: #{tpu_custom_call.1} parent=1 // pred_region
      %14 = vsyncadd [#allocation3], 0
      %s16 = sshll.u32 %s0, 4
      %s17 = int_to_ptr.hbm [resolvable:$true] %s16
      %s18 = sshll.u32 [#allocation2], 4
      %s19 = int_to_ptr.vmem [resolvable:$true] %s18
      %21 = dma.hbm_to_vmem [thread:$0]  %s17, 9216, %s19, [#allocation3]
    $region5: #{tpu_custom_call.1} parent=1 // pred_fallthru
      _
    // Predicated region
    $region6: #{tpu_custom_call.1} parent=1 // pred_check
      _
    $region7: #{tpu_custom_call.1} parent=1 // pred_check_branch
      %23 = sbr.rel (0) target = $region9
    $region8: #{tpu_custom_call.1} parent=1 // pred_region
      %25 = vsyncadd [#allocation6], 0
      %s27 = sshll.u32 %s1, 4
      %s28 = int_to_ptr.hbm [resolvable:$true] %s27
      %s29 = sshll.u32 [#allocation5], 4
      %s30 = int_to_ptr.vmem [resolvable:$true] %s29
      %32 = dma.hbm_to_vmem [thread:$0]  %s28, 36864, %s30, [#allocation6]
    $region9: #{tpu_custom_call.1} parent=1 // pred_fallthru
      _
    // Predicated region
    $region10: #{tpu_custom_call.1} parent=1 // pred_check
      _
    $region11: #{tpu_custom_call.1} parent=1 // pred_check_branch
      %34 = sbr.rel (0) target = $region13
    $region12: #{tpu_custom_call.1} parent=1 // pred_region
      %36 = vsyncadd [#allocation6], 0
      %s38 = sshll.u32 %s2, 4
      %s39 = int_to_ptr.hbm [resolvable:$true] %s38
      %s40 = sshll.u32 [#allocation7], 4
      %s41 = int_to_ptr.vmem [resolvable:$true] %s40
      %43 = dma.hbm_to_vmem [thread:$0]  %s39, 16, %s41, [#allocation6]
    $region13: #{tpu_custom_call.1} parent=1 // pred_fallthru
      _
    // Predicated region
    $region14: #{tpu_custom_call.1} parent=1 // pred_check
      _
    $region15: #{tpu_custom_call.1} parent=1 // pred_check_branch
      %45 = sbr.rel (0) target = $region17
    $region16: #{tpu_custom_call.1} parent=1 // pred_region
      %47 = dma.done [#allocation3], 9216
    $region17: #{tpu_custom_call.1} parent=1 // pred_fallthru
      _
    // Predicated region
    $region18: #{tpu_custom_call.1} parent=1 // pred_check
      _
    $region19: #{tpu_custom_call.1} parent=1 // pred_check_branch
      %49 = sbr.rel (0) target = $region21
    $region20: #{tpu_custom_call.1} parent=1 // pred_region
      %51 = dma.done [#allocation6], 36864
    $region21: #{tpu_custom_call.1} parent=1 // pred_fallthru
      _
    // Predicated region
    $region22: #{tpu_custom_call.1} parent=1 // pred_check
      _
    $region23: #{tpu_custom_call.1} parent=1 // pred_check_branch
      %53 = sbr.rel (0) target = $region25
    $region24: #{tpu_custom_call.1} parent=1 // pred_region
      %55 = dma.done [#allocation6], 16
    $region25: #{tpu_custom_call.1} parent=1 // pred_fallthru
      _
    %v56 = vld [vmem:[#allocation2] sm:$0xff]
    %v57 = vld [vmem:[#allocation2 + $0x8] sm:$0xff]
    %v58 = vld [vmem:[#allocation2 + $0x10] sm:$0xff]
    %v59 = vld [vmem:[#allocation2 + $0x18] sm:$0xff]
    %v60 = vld [vmem:[#allocation2 + $0x20] sm:$0xff]
    %v61 = vld [vmem:[#allocation2 + $0x28] sm:$0xff]
    %v62 = vld [vmem:[#allocation2 + $0x30] sm:$0xff]
    %v63 = vld [vmem:[#allocation2 + $0x38] sm:$0xff]
    %v64 = vld [vmem:[#allocation2 + $0x40] sm:$0xff]
    %v65 = vld [vmem:[#allocation2 + $0x48] sm:$0xff]
    %v66 = vld [vmem:[#allocation2 + $0x50] sm:$0xff]
    %v67 = vld [vmem:[#allocation2 + $0x58] sm:$0xff]
    %v68 = vld [vmem:[#allocation2 + $0x60] sm:$0xff]
    %v69 = vld [vmem:[#allocation2 + $0x68] sm:$0xff]
    %v70 = vld [vmem:[#allocation2 + $0x70] sm:$0xff]
    %v71 = vld [vmem:[#allocation2 + $0x78] sm:$0xff]
    %v72 = vld [vmem:[#allocation2 + $0x80] sm:$0xff]
    %v73 = vld [vmem:[#allocation2 + $0x88] sm:$0xff]
    %v74 = vld [vmem:[#allocation2 + $0x90] sm:$0xff]
    %v75 = vld [vmem:[#allocation2 + $0x98] sm:$0xff]
    %v76 = vld [vmem:[#allocation2 + $0xa0] sm:$0xff]
    %v77 = vld [vmem:[#allocation2 + $0xa8] sm:$0xff]
    %v78 = vld [vmem:[#allocation2 + $0xb0] sm:$0xff]
    %v79 = vld [vmem:[#allocation2 + $0xb8] sm:$0xff]
    %v80 = vld [vmem:[#allocation2 + $0xc0] sm:$0xff]
    %v81 = vld [vmem:[#allocation2 + $0xc8] sm:$0xff]
    %v82 = vld [vmem:[#allocation2 + $0xd0] sm:$0xff]
    %v83 = vld [vmem:[#allocation2 + $0xd8] sm:$0xff]
    %v84 = vld [vmem:[#allocation2 + $0xe0] sm:$0xff]
    %v85 = vld [vmem:[#allocation2 + $0xe8] sm:$0xff]
    %v86 = vld [vmem:[#allocation2 + $0xf0] sm:$0xff]
    %v87 = vld [vmem:[#allocation2 + $0xf8] sm:$0xff]
    %v88 = vld [vmem:[#allocation2 + $0x100] sm:$0xff]
    %v89 = vld [vmem:[#allocation2 + $0x108] sm:$0xff]
    %v90 = vld [vmem:[#allocation2 + $0x110] sm:$0xff]
    %v91 = vld [vmem:[#allocation2 + $0x118] sm:$0xff]
    %v92 = vld [vmem:[#allocation2 + $0x120] sm:$0xff]
    %v93 = vld [vmem:[#allocation2 + $0x128] sm:$0xff]
    %v94 = vld [vmem:[#allocation2 + $0x130] sm:$0xff]
    %v95 = vld [vmem:[#allocation2 + $0x138] sm:$0xff]
    %v96 = vld [vmem:[#allocation2 + $0x140] sm:$0xff]
    %v97 = vld [vmem:[#allocation2 + $0x148] sm:$0xff]
    %v98 = vld [vmem:[#allocation2 + $0x150] sm:$0xff]
    %v99 = vld [vmem:[#allocation2 + $0x158] sm:$0xff]
    %v100 = vld [vmem:[#allocation2 + $0x160] sm:$0xff]
    %v101 = vld [vmem:[#allocation2 + $0x168] sm:$0xff]
    %v102 = vld [vmem:[#allocation2 + $0x170] sm:$0xff]
    %v103 = vld [vmem:[#allocation2 + $0x178] sm:$0xff]
    %v104 = vld [vmem:[#allocation2 + $0x180] sm:$0xff]
    %v105 = vld [vmem:[#allocation2 + $0x188] sm:$0xff]
    %v106 = vld [vmem:[#allocation2 + $0x190] sm:$0xff]
    %v107 = vld [vmem:[#allocation2 + $0x198] sm:$0xff]
    %v108 = vld [vmem:[#allocation2 + $0x1a0] sm:$0xff]
    %v109 = vld [vmem:[#allocation2 + $0x1a8] sm:$0xff]
    %v110 = vld [vmem:[#allocation2 + $0x1b0] sm:$0xff]
    %v111 = vld [vmem:[#allocation2 + $0x1b8] sm:$0xff]
    %v112 = vld [vmem:[#allocation2 + $0x1c0] sm:$0xff]
    %v113 = vld [vmem:[#allocation2 + $0x1c8] sm:$0xff]
    %v114 = vld [vmem:[#allocation2 + $0x1d0] sm:$0xff]
    %v115 = vld [vmem:[#allocation2 + $0x1d8] sm:$0xff]
    %v116 = vld [vmem:[#allocation2 + $0x1e0] sm:$0xff]
    %v117 = vld [vmem:[#allocation2 + $0x1e8] sm:$0xff]
    %v118 = vld [vmem:[#allocation2 + $0x1f0] sm:$0xff]
    %v119 = vld [vmem:[#allocation2 + $0x1f8] sm:$0xff]
    %v120 = vld [vmem:[#allocation2 + $0x200] sm:$0xff]
    %v121 = vld [vmem:[#allocation2 + $0x208] sm:$0xff]
    %v122 = vld [vmem:[#allocation2 + $0x210] sm:$0xff]
    %v123 = vld [vmem:[#allocation2 + $0x218] sm:$0xff]
    %v124 = vld [vmem:[#allocation2 + $0x220] sm:$0xff]
    %v125 = vld [vmem:[#allocation2 + $0x228] sm:$0xff]
    %v126 = vld [vmem:[#allocation2 + $0x230] sm:$0xff]
    %v127 = vld [vmem:[#allocation2 + $0x238] sm:$0xff]
    %v128 = vld [vmem:[#allocation5] sm:$0x3f]
    %v129 = vld [vmem:[#allocation5 + $0x8] sm:$0x3f]
    %v130 = vld [vmem:[#allocation5 + $0x10] sm:$0x3f]
    %v131 = vld [vmem:[#allocation5 + $0x18] sm:$0x3f]
    %v132 = vld [vmem:[#allocation5 + $0x20] sm:$0x3f]
    %v133 = vld [vmem:[#allocation5 + $0x28] sm:$0x3f]
    %v134 = vld [vmem:[#allocation5 + $0x30] sm:$0x3f]
    %v135 = vld [vmem:[#allocation5 + $0x38] sm:$0x3f]
    %v136 = vld [vmem:[#allocation5 + $0x40] sm:$0x3f]
    %v137 = vld [vmem:[#allocation5 + $0x48] sm:$0x3f]
    %v138 = vld [vmem:[#allocation5 + $0x50] sm:$0x3f]
    %v139 = vld [vmem:[#allocation5 + $0x58] sm:$0x3f]
    %v140 = vld [vmem:[#allocation5 + $0x60] sm:$0x3f]
    %v141 = vld [vmem:[#allocation5 + $0x68] sm:$0x3f]
    %v142 = vld [vmem:[#allocation5 + $0x70] sm:$0x3f]
    %v143 = vld [vmem:[#allocation5 + $0x78] sm:$0x3f]
    %v144 = vld [vmem:[#allocation5 + $0x80] sm:$0x3f]
    %v145 = vld [vmem:[#allocation5 + $0x88] sm:$0x3f]
    %v146 = vld [vmem:[#allocation5 + $0x90] sm:$0x3f]
    %v147 = vld [vmem:[#allocation5 + $0x98] sm:$0x3f]
    %v148 = vld [vmem:[#allocation5 + $0xa0] sm:$0x3f]
    %v149 = vld [vmem:[#allocation5 + $0xa8] sm:$0x3f]
    %v150 = vld [vmem:[#allocation5 + $0xb0] sm:$0x3f]
    %v151 = vld [vmem:[#allocation5 + $0xb8] sm:$0x3f]
    %v152 = vld [vmem:[#allocation5 + $0xc0] sm:$0x3f]
    %v153 = vld [vmem:[#allocation5 + $0xc8] sm:$0x3f]
    %v154 = vld [vmem:[#allocation5 + $0xd0] sm:$0x3f]
    %v155 = vld [vmem:[#allocation5 + $0xd8] sm:$0x3f]
    %v156 = vld [vmem:[#allocation5 + $0xe0] sm:$0x3f]
    %v157 = vld [vmem:[#allocation5 + $0xe8] sm:$0x3f]
    %v158 = vld [vmem:[#allocation5 + $0xf0] sm:$0x3f]
    %v159 = vld [vmem:[#allocation5 + $0xf8] sm:$0x3f]
    %v160 = vld [vmem:[#allocation5 + $0x100] sm:$0x3f]
    %v161 = vld [vmem:[#allocation5 + $0x108] sm:$0x3f]
    %v162 = vld [vmem:[#allocation5 + $0x110] sm:$0x3f]
    %v163 = vld [vmem:[#allocation5 + $0x118] sm:$0x3f]
    %v164 = vld [vmem:[#allocation5 + $0x120] sm:$0x3f]
    %v165 = vld [vmem:[#allocation5 + $0x128] sm:$0x3f]
    %v166 = vld [vmem:[#allocation5 + $0x130] sm:$0x3f]
    %v167 = vld [vmem:[#allocation5 + $0x138] sm:$0x3f]
    %v168 = vld [vmem:[#allocation5 + $0x140] sm:$0x3f]
    %v169 = vld [vmem:[#allocation5 + $0x148] sm:$0x3f]
    %v170 = vld [vmem:[#allocation5 + $0x150] sm:$0x3f]
    %v171 = vld [vmem:[#allocation5 + $0x158] sm:$0x3f]
    %v172 = vld [vmem:[#allocation5 + $0x160] sm:$0x3f]
    %v173 = vld [vmem:[#allocation5 + $0x168] sm:$0x3f]
    %v174 = vld [vmem:[#allocation5 + $0x170] sm:$0x3f]
    %v175 = vld [vmem:[#allocation5 + $0x178] sm:$0x3f]
    %v176 = vld [vmem:[#allocation5 + $0x180] sm:$0x3f]
    %v177 = vld [vmem:[#allocation5 + $0x188] sm:$0x3f]
    %v178 = vld [vmem:[#allocation5 + $0x190] sm:$0x3f]
    %v179 = vld [vmem:[#allocation5 + $0x198] sm:$0x3f]
    %v180 = vld [vmem:[#allocation5 + $0x1a0] sm:$0x3f]
    %v181 = vld [vmem:[#allocation5 + $0x1a8] sm:$0x3f]
    %v182 = vld [vmem:[#allocation5 + $0x1b0] sm:$0x3f]
    %v183 = vld [vmem:[#allocation5 + $0x1b8] sm:$0x3f]
    %v184 = vld [vmem:[#allocation5 + $0x1c0] sm:$0x3f]
    %v185 = vld [vmem:[#allocation5 + $0x1c8] sm:$0x3f]
    %v186 = vld [vmem:[#allocation5 + $0x1d0] sm:$0x3f]
    %v187 = vld [vmem:[#allocation5 + $0x1d8] sm:$0x3f]
    %v188 = vld [vmem:[#allocation5 + $0x1e0] sm:$0x3f]
    %v189 = vld [vmem:[#allocation5 + $0x1e8] sm:$0x3f]
    %v190 = vld [vmem:[#allocation5 + $0x1f0] sm:$0x3f]
    %v191 = vld [vmem:[#allocation5 + $0x1f8] sm:$0x3f]
    %v192 = vld [vmem:[#allocation5 + $0x200] sm:$0x3f]
    %v193 = vld [vmem:[#allocation5 + $0x208] sm:$0x3f]
    %v194 = vld [vmem:[#allocation5 + $0x210] sm:$0x3f]
    %v195 = vld [vmem:[#allocation5 + $0x218] sm:$0x3f]
    %v196 = vld [vmem:[#allocation5 + $0x220] sm:$0x3f]
    %v197 = vld [vmem:[#allocation5 + $0x228] sm:$0x3f]
    %v198 = vld [vmem:[#allocation5 + $0x230] sm:$0x3f]
    %v199 = vld [vmem:[#allocation5 + $0x238] sm:$0x3f]
    %v200 = vld [vmem:[#allocation5 + $0x240] sm:$0x3f]
    %v201 = vld [vmem:[#allocation5 + $0x248] sm:$0x3f]
    %v202 = vld [vmem:[#allocation5 + $0x250] sm:$0x3f]
    %v203 = vld [vmem:[#allocation5 + $0x258] sm:$0x3f]
    %v204 = vld [vmem:[#allocation5 + $0x260] sm:$0x3f]
    %v205 = vld [vmem:[#allocation5 + $0x268] sm:$0x3f]
    %v206 = vld [vmem:[#allocation5 + $0x270] sm:$0x3f]
    %v207 = vld [vmem:[#allocation5 + $0x278] sm:$0x3f]
    %v208 = vld [vmem:[#allocation5 + $0x280] sm:$0x3f]
    %v209 = vld [vmem:[#allocation5 + $0x288] sm:$0x3f]
    %v210 = vld [vmem:[#allocation5 + $0x290] sm:$0x3f]
    %v211 = vld [vmem:[#allocation5 + $0x298] sm:$0x3f]
    %v212 = vld [vmem:[#allocation5 + $0x2a0] sm:$0x3f]
    %v213 = vld [vmem:[#allocation5 + $0x2a8] sm:$0x3f]
    %v214 = vld [vmem:[#allocation5 + $0x2b0] sm:$0x3f]
    %v215 = vld [vmem:[#allocation5 + $0x2b8] sm:$0x3f]
    %v216 = vld [vmem:[#allocation5 + $0x2c0] sm:$0x3f]
    %v217 = vld [vmem:[#allocation5 + $0x2c8] sm:$0x3f]
    %v218 = vld [vmem:[#allocation5 + $0x2d0] sm:$0x3f]
    %v219 = vld [vmem:[#allocation5 + $0x2d8] sm:$0x3f]
    %v220 = vld [vmem:[#allocation5 + $0x2e0] sm:$0x3f]
    %v221 = vld [vmem:[#allocation5 + $0x2e8] sm:$0x3f]
    %v222 = vld [vmem:[#allocation5 + $0x2f0] sm:$0x3f]
    %v223 = vld [vmem:[#allocation5 + $0x2f8] sm:$0x3f]
    %v224 = vld [vmem:[#allocation5 + $0x300] sm:$0x3f]
    %v225 = vld [vmem:[#allocation5 + $0x308] sm:$0x3f]
    %v226 = vld [vmem:[#allocation5 + $0x310] sm:$0x3f]
    %v227 = vld [vmem:[#allocation5 + $0x318] sm:$0x3f]
    %v228 = vld [vmem:[#allocation5 + $0x320] sm:$0x3f]
    %v229 = vld [vmem:[#allocation5 + $0x328] sm:$0x3f]
    %v230 = vld [vmem:[#allocation5 + $0x330] sm:$0x3f]
    %v231 = vld [vmem:[#allocation5 + $0x338] sm:$0x3f]
    %v232 = vld [vmem:[#allocation5 + $0x340] sm:$0x3f]
    %v233 = vld [vmem:[#allocation5 + $0x348] sm:$0x3f]
    %v234 = vld [vmem:[#allocation5 + $0x350] sm:$0x3f]
    %v235 = vld [vmem:[#allocation5 + $0x358] sm:$0x3f]
    %v236 = vld [vmem:[#allocation5 + $0x360] sm:$0x3f]
    %v237 = vld [vmem:[#allocation5 + $0x368] sm:$0x3f]
    %v238 = vld [vmem:[#allocation5 + $0x370] sm:$0x3f]
    %v239 = vld [vmem:[#allocation5 + $0x378] sm:$0x3f]
    %v240 = vld [vmem:[#allocation5 + $0x380] sm:$0x3f]
    %v241 = vld [vmem:[#allocation5 + $0x388] sm:$0x3f]
    %v242 = vld [vmem:[#allocation5 + $0x390] sm:$0x3f]
    %v243 = vld [vmem:[#allocation5 + $0x398] sm:$0x3f]
    %v244 = vld [vmem:[#allocation5 + $0x3a0] sm:$0x3f]
    %v245 = vld [vmem:[#allocation5 + $0x3a8] sm:$0x3f]
    %v246 = vld [vmem:[#allocation5 + $0x3b0] sm:$0x3f]
    %v247 = vld [vmem:[#allocation5 + $0x3b8] sm:$0x3f]
    %v248 = vld [vmem:[#allocation5 + $0x3c0] sm:$0x3f]
    %v249 = vld [vmem:[#allocation5 + $0x3c8] sm:$0x3f]
    %v250 = vld [vmem:[#allocation5 + $0x3d0] sm:$0x3f]
    %v251 = vld [vmem:[#allocation5 + $0x3d8] sm:$0x3f]
    %v252 = vld [vmem:[#allocation5 + $0x3e0] sm:$0x3f]
    %v253 = vld [vmem:[#allocation5 + $0x3e8] sm:$0x3f]
    %v254 = vld [vmem:[#allocation5 + $0x3f0] sm:$0x3f]
    %v255 = vld [vmem:[#allocation5 + $0x3f8] sm:$0x3f]
    %v256 = vld [vmem:[#allocation5 + $0x400] sm:$0x3f]
    %v257 = vld [vmem:[#allocation5 + $0x408] sm:$0x3f]
    %v258 = vld [vmem:[#allocation5 + $0x410] sm:$0x3f]
    %v259 = vld [vmem:[#allocation5 + $0x418] sm:$0x3f]
    %v260 = vld [vmem:[#allocation5 + $0x420] sm:$0x3f]
    %v261 = vld [vmem:[#allocation5 + $0x428] sm:$0x3f]
    %v262 = vld [vmem:[#allocation5 + $0x430] sm:$0x3f]
    %v263 = vld [vmem:[#allocation5 + $0x438] sm:$0x3f]
    %v264 = vld [vmem:[#allocation5 + $0x440] sm:$0x3f]
    %v265 = vld [vmem:[#allocation5 + $0x448] sm:$0x3f]
    %v266 = vld [vmem:[#allocation5 + $0x450] sm:$0x3f]
    %v267 = vld [vmem:[#allocation5 + $0x458] sm:$0x3f]
    %v268 = vld [vmem:[#allocation5 + $0x460] sm:$0x3f]
    %v269 = vld [vmem:[#allocation5 + $0x468] sm:$0x3f]
    %v270 = vld [vmem:[#allocation5 + $0x470] sm:$0x3f]
    %v271 = vld [vmem:[#allocation5 + $0x478] sm:$0x3f]
    %v272 = vld [vmem:[#allocation5 + $0x480] sm:$0x3f]
    %v273 = vld [vmem:[#allocation5 + $0x488] sm:$0x3f]
    %v274 = vld [vmem:[#allocation5 + $0x490] sm:$0x3f]
    %v275 = vld [vmem:[#allocation5 + $0x498] sm:$0x3f]
    %v276 = vld [vmem:[#allocation5 + $0x4a0] sm:$0x3f]
    %v277 = vld [vmem:[#allocation5 + $0x4a8] sm:$0x3f]
    %v278 = vld [vmem:[#allocation5 + $0x4b0] sm:$0x3f]
    %v279 = vld [vmem:[#allocation5 + $0x4b8] sm:$0x3f]
    %v280 = vld [vmem:[#allocation5 + $0x4c0] sm:$0x3f]
    %v281 = vld [vmem:[#allocation5 + $0x4c8] sm:$0x3f]
    %v282 = vld [vmem:[#allocation5 + $0x4d0] sm:$0x3f]
    %v283 = vld [vmem:[#allocation5 + $0x4d8] sm:$0x3f]
    %v284 = vld [vmem:[#allocation5 + $0x4e0] sm:$0x3f]
    %v285 = vld [vmem:[#allocation5 + $0x4e8] sm:$0x3f]
    %v286 = vld [vmem:[#allocation5 + $0x4f0] sm:$0x3f]
    %v287 = vld [vmem:[#allocation5 + $0x4f8] sm:$0x3f]
    %v288 = vld [vmem:[#allocation5 + $0x500] sm:$0x3f]
    %v289 = vld [vmem:[#allocation5 + $0x508] sm:$0x3f]
    %v290 = vld [vmem:[#allocation5 + $0x510] sm:$0x3f]
    %v291 = vld [vmem:[#allocation5 + $0x518] sm:$0x3f]
    %v292 = vld [vmem:[#allocation5 + $0x520] sm:$0x3f]
    %v293 = vld [vmem:[#allocation5 + $0x528] sm:$0x3f]
    %v294 = vld [vmem:[#allocation5 + $0x530] sm:$0x3f]
    %v295 = vld [vmem:[#allocation5 + $0x538] sm:$0x3f]
    %v296 = vld [vmem:[#allocation5 + $0x540] sm:$0x3f]
    %v297 = vld [vmem:[#allocation5 + $0x548] sm:$0x3f]
    %v298 = vld [vmem:[#allocation5 + $0x550] sm:$0x3f]
    %v299 = vld [vmem:[#allocation5 + $0x558] sm:$0x3f]
    %v300 = vld [vmem:[#allocation5 + $0x560] sm:$0x3f]
    %v301 = vld [vmem:[#allocation5 + $0x568] sm:$0x3f]
    %v302 = vld [vmem:[#allocation5 + $0x570] sm:$0x3f]
    %v303 = vld [vmem:[#allocation5 + $0x578] sm:$0x3f]
    %v304 = vld [vmem:[#allocation5 + $0x580] sm:$0x3f]
    %v305 = vld [vmem:[#allocation5 + $0x588] sm:$0x3f]
    %v306 = vld [vmem:[#allocation5 + $0x590] sm:$0x3f]
    %v307 = vld [vmem:[#allocation5 + $0x598] sm:$0x3f]
    %v308 = vld [vmem:[#allocation5 + $0x5a0] sm:$0x3f]
    %v309 = vld [vmem:[#allocation5 + $0x5a8] sm:$0x3f]
    %v310 = vld [vmem:[#allocation5 + $0x5b0] sm:$0x3f]
    %v311 = vld [vmem:[#allocation5 + $0x5b8] sm:$0x3f]
    %v312 = vld [vmem:[#allocation5 + $0x5c0] sm:$0x3f]
    %v313 = vld [vmem:[#allocation5 + $0x5c8] sm:$0x3f]
    %v314 = vld [vmem:[#allocation5 + $0x5d0] sm:$0x3f]
    %v315 = vld [vmem:[#allocation5 + $0x5d8] sm:$0x3f]
    %v316 = vld [vmem:[#allocation5 + $0x5e0] sm:$0x3f]
    %v317 = vld [vmem:[#allocation5 + $0x5e8] sm:$0x3f]
    %v318 = vld [vmem:[#allocation5 + $0x5f0] sm:$0x3f]
    %v319 = vld [vmem:[#allocation5 + $0x5f8] sm:$0x3f]
    %v320 = vld [vmem:[#allocation5 + $0x600] sm:$0x3f]
    %v321 = vld [vmem:[#allocation5 + $0x608] sm:$0x3f]
    %v322 = vld [vmem:[#allocation5 + $0x610] sm:$0x3f]
    %v323 = vld [vmem:[#allocation5 + $0x618] sm:$0x3f]
    %v324 = vld [vmem:[#allocation5 + $0x620] sm:$0x3f]
    %v325 = vld [vmem:[#allocation5 + $0x628] sm:$0x3f]
    %v326 = vld [vmem:[#allocation5 + $0x630] sm:$0x3f]
    %v327 = vld [vmem:[#allocation5 + $0x638] sm:$0x3f]
    %v328 = vld [vmem:[#allocation5 + $0x640] sm:$0x3f]
    %v329 = vld [vmem:[#allocation5 + $0x648] sm:$0x3f]
    %v330 = vld [vmem:[#allocation5 + $0x650] sm:$0x3f]
    %v331 = vld [vmem:[#allocation5 + $0x658] sm:$0x3f]
    %v332 = vld [vmem:[#allocation5 + $0x660] sm:$0x3f]
    %v333 = vld [vmem:[#allocation5 + $0x668] sm:$0x3f]
    %v334 = vld [vmem:[#allocation5 + $0x670] sm:$0x3f]
    %v335 = vld [vmem:[#allocation5 + $0x678] sm:$0x3f]
    %v336 = vld [vmem:[#allocation5 + $0x680] sm:$0x3f]
    %v337 = vld [vmem:[#allocation5 + $0x688] sm:$0x3f]
    %v338 = vld [vmem:[#allocation5 + $0x690] sm:$0x3f]
    %v339 = vld [vmem:[#allocation5 + $0x698] sm:$0x3f]
    %v340 = vld [vmem:[#allocation5 + $0x6a0] sm:$0x3f]
    %v341 = vld [vmem:[#allocation5 + $0x6a8] sm:$0x3f]
    %v342 = vld [vmem:[#allocation5 + $0x6b0] sm:$0x3f]
    %v343 = vld [vmem:[#allocation5 + $0x6b8] sm:$0x3f]
    %v344 = vld [vmem:[#allocation5 + $0x6c0] sm:$0x3f]
    %v345 = vld [vmem:[#allocation5 + $0x6c8] sm:$0x3f]
    %v346 = vld [vmem:[#allocation5 + $0x6d0] sm:$0x3f]
    %v347 = vld [vmem:[#allocation5 + $0x6d8] sm:$0x3f]
    %v348 = vld [vmem:[#allocation5 + $0x6e0] sm:$0x3f]
    %v349 = vld [vmem:[#allocation5 + $0x6e8] sm:$0x3f]
    %v350 = vld [vmem:[#allocation5 + $0x6f0] sm:$0x3f]
    %v351 = vld [vmem:[#allocation5 + $0x6f8] sm:$0x3f]
    %v352 = vld [vmem:[#allocation5 + $0x700] sm:$0x3f]
    %v353 = vld [vmem:[#allocation5 + $0x708] sm:$0x3f]
    %v354 = vld [vmem:[#allocation5 + $0x710] sm:$0x3f]
    %v355 = vld [vmem:[#allocation5 + $0x718] sm:$0x3f]
    %v356 = vld [vmem:[#allocation5 + $0x720] sm:$0x3f]
    %v357 = vld [vmem:[#allocation5 + $0x728] sm:$0x3f]
    %v358 = vld [vmem:[#allocation5 + $0x730] sm:$0x3f]
    %v359 = vld [vmem:[#allocation5 + $0x738] sm:$0x3f]
    %v360 = vld [vmem:[#allocation5 + $0x740] sm:$0x3f]
    %v361 = vld [vmem:[#allocation5 + $0x748] sm:$0x3f]
    %v362 = vld [vmem:[#allocation5 + $0x750] sm:$0x3f]
    %v363 = vld [vmem:[#allocation5 + $0x758] sm:$0x3f]
    %v364 = vld [vmem:[#allocation5 + $0x760] sm:$0x3f]
    %v365 = vld [vmem:[#allocation5 + $0x768] sm:$0x3f]
    %v366 = vld [vmem:[#allocation5 + $0x770] sm:$0x3f]
    %v367 = vld [vmem:[#allocation5 + $0x778] sm:$0x3f]
    %v368 = vld [vmem:[#allocation5 + $0x780] sm:$0x3f]
    %v369 = vld [vmem:[#allocation5 + $0x788] sm:$0x3f]
    %v370 = vld [vmem:[#allocation5 + $0x790] sm:$0x3f]
    %v371 = vld [vmem:[#allocation5 + $0x798] sm:$0x3f]
    %v372 = vld [vmem:[#allocation5 + $0x7a0] sm:$0x3f]
    %v373 = vld [vmem:[#allocation5 + $0x7a8] sm:$0x3f]
    %v374 = vld [vmem:[#allocation5 + $0x7b0] sm:$0x3f]
    %v375 = vld [vmem:[#allocation5 + $0x7b8] sm:$0x3f]
    %v376 = vld [vmem:[#allocation5 + $0x7c0] sm:$0x3f]
    %v377 = vld [vmem:[#allocation5 + $0x7c8] sm:$0x3f]
    %v378 = vld [vmem:[#allocation5 + $0x7d0] sm:$0x3f]
    %v379 = vld [vmem:[#allocation5 + $0x7d8] sm:$0x3f]
    %v380 = vld [vmem:[#allocation5 + $0x7e0] sm:$0x3f]
    %v381 = vld [vmem:[#allocation5 + $0x7e8] sm:$0x3f]
    %v382 = vld [vmem:[#allocation5 + $0x7f0] sm:$0x3f]
    %v383 = vld [vmem:[#allocation5 + $0x7f8] sm:$0x3f]
    %v384 = vld [vmem:[#allocation5 + $0x800] sm:$0x3f]
    %v385 = vld [vmem:[#allocation5 + $0x808] sm:$0x3f]
    %v386 = vld [vmem:[#allocation5 + $0x810] sm:$0x3f]
    %v387 = vld [vmem:[#allocation5 + $0x818] sm:$0x3f]
    %v388 = vld [vmem:[#allocation5 + $0x820] sm:$0x3f]
    %v389 = vld [vmem:[#allocation5 + $0x828] sm:$0x3f]
    %v390 = vld [vmem:[#allocation5 + $0x830] sm:$0x3f]
    %v391 = vld [vmem:[#allocation5 + $0x838] sm:$0x3f]
    %v392 = vld [vmem:[#allocation5 + $0x840] sm:$0x3f]
    %v393 = vld [vmem:[#allocation5 + $0x848] sm:$0x3f]
    %v394 = vld [vmem:[#allocation5 + $0x850] sm:$0x3f]
    %v395 = vld [vmem:[#allocation5 + $0x858] sm:$0x3f]
    %v396 = vld [vmem:[#allocation5 + $0x860] sm:$0x3f]
    %v397 = vld [vmem:[#allocation5 + $0x868] sm:$0x3f]
    %v398 = vld [vmem:[#allocation5 + $0x870] sm:$0x3f]
    %v399 = vld [vmem:[#allocation5 + $0x878] sm:$0x3f]
    %v400 = vld [vmem:[#allocation5 + $0x880] sm:$0x3f]
    %v401 = vld [vmem:[#allocation5 + $0x888] sm:$0x3f]
    %v402 = vld [vmem:[#allocation5 + $0x890] sm:$0x3f]
    %v403 = vld [vmem:[#allocation5 + $0x898] sm:$0x3f]
    %v404 = vld [vmem:[#allocation5 + $0x8a0] sm:$0x3f]
    %v405 = vld [vmem:[#allocation5 + $0x8a8] sm:$0x3f]
    %v406 = vld [vmem:[#allocation5 + $0x8b0] sm:$0x3f]
    %v407 = vld [vmem:[#allocation5 + $0x8b8] sm:$0x3f]
    %v408 = vld [vmem:[#allocation5 + $0x8c0] sm:$0x3f]
    %v409 = vld [vmem:[#allocation5 + $0x8c8] sm:$0x3f]
    %v410 = vld [vmem:[#allocation5 + $0x8d0] sm:$0x3f]
    %v411 = vld [vmem:[#allocation5 + $0x8d8] sm:$0x3f]
    %v412 = vld [vmem:[#allocation5 + $0x8e0] sm:$0x3f]
    %v413 = vld [vmem:[#allocation5 + $0x8e8] sm:$0x3f]
    %v414 = vld [vmem:[#allocation5 + $0x8f0] sm:$0x3f]
    %v415 = vld [vmem:[#allocation5 + $0x8f8] sm:$0x3f]
    %v416 = vld [vmem:[#allocation7] sm:$0x1]
    %v418 = vperm.slane %v416, 0
    %492 = vst [vmem:[#allocation1] ss:$4 sm:$0xff] %v56
    %s493 = scalar_lea.vmem [#allocation1], 32
    %494 = vst [vmem:[%s493] ss:$4 sm:$0xff] %v57
    %v495 = vld.sshfl [vmem:[#allocation1] sm:$0xff pattern:$0x73625140]
    %v496 = vld.sshfl [vmem:[#allocation1 + $0x8] sm:$0xff pattern:$0x73625140]
    %v497 = vld.sshfl [vmem:[#allocation1 + $0x10] sm:$0xff pattern:$0x73625140]
    %v498 = vld.sshfl [vmem:[#allocation1 + $0x18] sm:$0xff pattern:$0x73625140]
    %v499 = vld.sshfl [vmem:[#allocation1 + $0x20] sm:$0xff pattern:$0x73625140]
    %v500 = vld.sshfl [vmem:[#allocation1 + $0x28] sm:$0xff pattern:$0x73625140]
    %v501 = vld.sshfl [vmem:[#allocation1 + $0x30] sm:$0xff pattern:$0x73625140]
    %v502 = vld.sshfl [vmem:[#allocation1 + $0x38] sm:$0xff pattern:$0x73625140]
    %503 = vst [vmem:[#allocation1] ss:$4 sm:$0xff] %v58
    %504 = vst [vmem:[%s493] ss:$4 sm:$0xff] %v59
    %v505 = vld.sshfl [vmem:[#allocation1] sm:$0xff pattern:$0x73625140]
    %v506 = vld.sshfl [vmem:[#allocation1 + $0x8] sm:$0xff pattern:$0x73625140]
    %v507 = vld.sshfl [vmem:[#allocation1 + $0x10] sm:$0xff pattern:$0x73625140]
    %v508 = vld.sshfl [vmem:[#allocation1 + $0x18] sm:$0xff pattern:$0x73625140]
    %v509 = vld.sshfl [vmem:[#allocation1 + $0x20] sm:$0xff pattern:$0x73625140]
    %v510 = vld.sshfl [vmem:[#allocation1 + $0x28] sm:$0xff pattern:$0x73625140]
    %v511 = vld.sshfl [vmem:[#allocation1 + $0x30] sm:$0xff pattern:$0x73625140]
    %v512 = vld.sshfl [vmem:[#allocation1 + $0x38] sm:$0xff pattern:$0x73625140]
    %513 = vst [vmem:[#allocation1] ss:$4 sm:$0xff] %v60
    %514 = vst [vmem:[%s493] ss:$4 sm:$0xff] %v61
    %v515 = vld.sshfl [vmem:[#allocation1] sm:$0xff pattern:$0x73625140]
    %v516 = vld.sshfl [vmem:[#allocation1 + $0x8] sm:$0xff pattern:$0x73625140]
    %v517 = vld.sshfl [vmem:[#allocation1 + $0x10] sm:$0xff pattern:$0x73625140]
    %v518 = vld.sshfl [vmem:[#allocation1 + $0x18] sm:$0xff pattern:$0x73625140]
    %v519 = vld.sshfl [vmem:[#allocation1 + $0x20] sm:$0xff pattern:$0x73625140]
    %v520 = vld.sshfl [vmem:[#allocation1 + $0x28] sm:$0xff pattern:$0x73625140]
    %v521 = vld.sshfl [vmem:[#allocation1 + $0x30] sm:$0xff pattern:$0x73625140]
    %v522 = vld.sshfl [vmem:[#allocation1 + $0x38] sm:$0xff pattern:$0x73625140]
    %523 = vst [vmem:[#allocation1] ss:$4 sm:$0xff] %v62
    %524 = vst [vmem:[%s493] ss:$4 sm:$0xff] %v63
    %v525 = vld.sshfl [vmem:[#allocation1] sm:$0xff pattern:$0x73625140]
    %v526 = vld.sshfl [vmem:[#allocation1 + $0x8] sm:$0xff pattern:$0x73625140]
    %v527 = vld.sshfl [vmem:[#allocation1 + $0x10] sm:$0xff pattern:$0x73625140]
    %v528 = vld.sshfl [vmem:[#allocation1 + $0x18] sm:$0xff pattern:$0x73625140]
    %v529 = vld.sshfl [vmem:[#allocation1 + $0x20] sm:$0xff pattern:$0x73625140]
    %v530 = vld.sshfl [vmem:[#allocation1 + $0x28] sm:$0xff pattern:$0x73625140]
    %v531 = vld.sshfl [vmem:[#allocation1 + $0x30] sm:$0xff pattern:$0x73625140]
    %v532 = vld.sshfl [vmem:[#allocation1 + $0x38] sm:$0xff pattern:$0x73625140]
    %533 = vst [vmem:[#allocation1] ss:$4 sm:$0xff] %v64
    %534 = vst [vmem:[%s493] ss:$4 sm:$0xff] %v65
    %v535 = vld.sshfl [vmem:[#allocation1] sm:$0xff pattern:$0x73625140]
    %v536 = vld.sshfl [vmem:[#allocation1 + $0x8] sm:$0xff pattern:$0x73625140]
    %v537 = vld.sshfl [vmem:[#allocation1 + $0x10] sm:$0xff pattern:$0x73625140]
    %v538 = vld.sshfl [vmem:[#allocation1 + $0x18] sm:$0xff pattern:$0x73625140]
    %v539 = vld.sshfl [vmem:[#allocation1 + $0x20] sm:$0xff pattern:$0x73625140]
    %v540 = vld.sshfl [vmem:[#allocation1 + $0x28] sm:$0xff pattern:$0x73625140]
    %v541 = vld.sshfl [vmem:[#allocation1 + $0x30] sm:$0xff pattern:$0x73625140]
    %v542 = vld.sshfl [vmem:[#allocation1 + $0x38] sm:$0xff pattern:$0x73625140]
    %543 = vst [vmem:[#allocation1] ss:$4 sm:$0xff] %v66
    %544 = vst [vmem:[%s493] ss:$4 sm:$0xff] %v67
    %v545 = vld.sshfl [vmem:[#allocation1] sm:$0xff pattern:$0x73625140]
    %v546 = vld.sshfl [vmem:[#allocation1 + $0x8] sm:$0xff pattern:$0x73625140]
    %v547 = vld.sshfl [vmem:[#allocation1 + $0x10] sm:$0xff pattern:$0x73625140]
    %v548 = vld.sshfl [vmem:[#allocation1 + $0x18] sm:$0xff pattern:$0x73625140]
    %v549 = vld.sshfl [vmem:[#allocation1 + $0x20] sm:$0xff pattern:$0x73625140]
    %v550 = vld.sshfl [vmem:[#allocation1 + $0x28] sm:$0xff pattern:$0x73625140]
    %v551 = vld.sshfl [vmem:[#allocation1 + $0x30] sm:$0xff pattern:$0x73625140]
    %v552 = vld.sshfl [vmem:[#allocation1 + $0x38] sm:$0xff pattern:$0x73625140]
    %553 = vst [vmem:[#allocation1] ss:$4 sm:$0xff] %v68
    %554 = vst [vmem:[%s493] ss:$4 sm:$0xff] %v69
    %v555 = vld.sshfl [vmem:[#allocation1] sm:$0xff pattern:$0x73625140]
    %v556 = vld.sshfl [vmem:[#allocation1 + $0x8] sm:$0xff pattern:$0x73625140]
    %v557 = vld.sshfl [vmem:[#allocation1 + $0x10] sm:$0xff pattern:$0x73625140]
    %v558 = vld.sshfl [vmem:[#allocation1 + $0x18] sm:$0xff pattern:$0x73625140]
    %v559 = vld.sshfl [vmem:[#allocation1 + $0x20] sm:$0xff pattern:$0x73625140]
    %v560 = vld.sshfl [vmem:[#allocation1 + $0x28] sm:$0xff pattern:$0x73625140]
    %v561 = vld.sshfl [vmem:[#allocation1 + $0x30] sm:$0xff pattern:$0x73625140]
    %v562 = vld.sshfl [vmem:[#allocation1 + $0x38] sm:$0xff pattern:$0x73625140]
    %563 = vst [vmem:[#allocation1] ss:$4 sm:$0xff] %v70
    %564 = vst [vmem:[%s493] ss:$4 sm:$0xff] %v71
    %v565 = vld.sshfl [vmem:[#allocation1] sm:$0xff pattern:$0x73625140]
    %v566 = vld.sshfl [vmem:[#allocation1 + $0x8] sm:$0xff pattern:$0x73625140]
    %v567 = vld.sshfl [vmem:[#allocation1 + $0x10] sm:$0xff pattern:$0x73625140]
    %v568 = vld.sshfl [vmem:[#allocation1 + $0x18] sm:$0xff pattern:$0x73625140]
    %v569 = vld.sshfl [vmem:[#allocation1 + $0x20] sm:$0xff pattern:$0x73625140]
    %v570 = vld.sshfl [vmem:[#allocation1 + $0x28] sm:$0xff pattern:$0x73625140]
    %v571 = vld.sshfl [vmem:[#allocation1 + $0x30] sm:$0xff pattern:$0x73625140]
    %v572 = vld.sshfl [vmem:[#allocation1 + $0x38] sm:$0xff pattern:$0x73625140]
    %573 = vst [vmem:[#allocation1] ss:$4 sm:$0xff] %v72
    %574 = vst [vmem:[%s493] ss:$4 sm:$0xff] %v73
    %v575 = vld.sshfl [vmem:[#allocation1] sm:$0xff pattern:$0x73625140]
    %v576 = vld.sshfl [vmem:[#allocation1 + $0x8] sm:$0xff pattern:$0x73625140]
    %v577 = vld.sshfl [vmem:[#allocation1 + $0x10] sm:$0xff pattern:$0x73625140]
    %v578 = vld.sshfl [vmem:[#allocation1 + $0x18] sm:$0xff pattern:$0x73625140]
    %v579 = vld.sshfl [vmem:[#allocation1 + $0x20] sm:$0xff pattern:$0x73625140]
    %v580 = vld.sshfl [vmem:[#allocation1 + $0x28] sm:$0xff pattern:$0x73625140]
    %v581 = vld.sshfl [vmem:[#allocation1 + $0x30] sm:$0xff pattern:$0x73625140]
    %v582 = vld.sshfl [vmem:[#allocation1 + $0x38] sm:$0xff pattern:$0x73625140]
    %583 = vst [vmem:[#allocation1] ss:$4 sm:$0xff] %v74
    %584 = vst [vmem:[%s493] ss:$4 sm:$0xff] %v75
    %v585 = vld.sshfl [vmem:[#allocation1] sm:$0xff pattern:$0x73625140]
    %v586 = vld.sshfl [vmem:[#allocation1 + $0x8] sm:$0xff pattern:$0x73625140]
    %v587 = vld.sshfl [vmem:[#allocation1 + $0x10] sm:$0xff pattern:$0x73625140]
    %v588 = vld.sshfl [vmem:[#allocation1 + $0x18] sm:$0xff pattern:$0x73625140]
    %v589 = vld.sshfl [vmem:[#allocation1 + $0x20] sm:$0xff pattern:$0x73625140]
    %v590 = vld.sshfl [vmem:[#allocation1 + $0x28] sm:$0xff pattern:$0x73625140]
    %v591 = vld.sshfl [vmem:[#allocation1 + $0x30] sm:$0xff pattern:$0x73625140]
    %v592 = vld.sshfl [vmem:[#allocation1 + $0x38] sm:$0xff pattern:$0x73625140]
    %593 = vst [vmem:[#allocation1] ss:$4 sm:$0xff] %v76
    %594 = vst [vmem:[%s493] ss:$4 sm:$0xff] %v77
    %v595 = vld.sshfl [vmem:[#allocation1] sm:$0xff pattern:$0x73625140]
    %v596 = vld.sshfl [vmem:[#allocation1 + $0x8] sm:$0xff pattern:$0x73625140]
    %v597 = vld.sshfl [vmem:[#allocation1 + $0x10] sm:$0xff pattern:$0x73625140]
    %v598 = vld.sshfl [vmem:[#allocation1 + $0x18] sm:$0xff pattern:$0x73625140]
    %v599 = vld.sshfl [vmem:[#allocation1 + $0x20] sm:$0xff pattern:$0x73625140]
    %v600 = vld.sshfl [vmem:[#allocation1 + $0x28] sm:$0xff pattern:$0x73625140]
    %v601 = vld.sshfl [vmem:[#allocation1 + $0x30] sm:$0xff pattern:$0x73625140]
    %v602 = vld.sshfl [vmem:[#allocation1 + $0x38] sm:$0xff pattern:$0x73625140]
    %603 = vst [vmem:[#allocation1] ss:$4 sm:$0xff] %v78
    %604 = vst [vmem:[%s493] ss:$4 sm:$0xff] %v79
    %v605 = vld.sshfl [vmem:[#allocation1] sm:$0xff pattern:$0x73625140]
    %v606 = vld.sshfl [vmem:[#allocation1 + $0x8] sm:$0xff pattern:$0x73625140]
    %v607 = vld.sshfl [vmem:[#allocation1 + $0x10] sm:$0xff pattern:$0x73625140]
    %v608 = vld.sshfl [vmem:[#allocation1 + $0x18] sm:$0xff pattern:$0x73625140]
    %v609 = vld.sshfl [vmem:[#allocation1 + $0x20] sm:$0xff pattern:$0x73625140]
    %v610 = vld.sshfl [vmem:[#allocation1 + $0x28] sm:$0xff pattern:$0x73625140]
    %v611 = vld.sshfl [vmem:[#allocation1 + $0x30] sm:$0xff pattern:$0x73625140]
    %v612 = vld.sshfl [vmem:[#allocation1 + $0x38] sm:$0xff pattern:$0x73625140]
    %613 = vst [vmem:[#allocation1] ss:$4 sm:$0xff] %v80
    %614 = vst [vmem:[%s493] ss:$4 sm:$0xff] %v81
    %v615 = vld.sshfl [vmem:[#allocation1] sm:$0xff pattern:$0x73625140]
    %v616 = vld.sshfl [vmem:[#allocation1 + $0x8] sm:$0xff pattern:$0x73625140]
    %v617 = vld.sshfl [vmem:[#allocation1 + $0x10] sm:$0xff pattern:$0x73625140]
    %v618 = vld.sshfl [vmem:[#allocation1 + $0x18] sm:$0xff pattern:$0x73625140]
    %v619 = vld.sshfl [vmem:[#allocation1 + $0x20] sm:$0xff pattern:$0x73625140]
    %v620 = vld.sshfl [vmem:[#allocation1 + $0x28] sm:$0xff pattern:$0x73625140]
    %v621 = vld.sshfl [vmem:[#allocation1 + $0x30] sm:$0xff pattern:$0x73625140]
    %v622 = vld.sshfl [vmem:[#allocation1 + $0x38] sm:$0xff pattern:$0x73625140]
    %623 = vst [vmem:[#allocation1] ss:$4 sm:$0xff] %v82
    %624 = vst [vmem:[%s493] ss:$4 sm:$0xff] %v83
    %v625 = vld.sshfl [vmem:[#allocation1] sm:$0xff pattern:$0x73625140]
    %v626 = vld.sshfl [vmem:[#allocation1 + $0x8] sm:$0xff pattern:$0x73625140]
    %v627 = vld.sshfl [vmem:[#allocation1 + $0x10] sm:$0xff pattern:$0x73625140]
    %v628 = vld.sshfl [vmem:[#allocation1 + $0x18] sm:$0xff pattern:$0x73625140]
    %v629 = vld.sshfl [vmem:[#allocation1 + $0x20] sm:$0xff pattern:$0x73625140]
    %v630 = vld.sshfl [vmem:[#allocation1 + $0x28] sm:$0xff pattern:$0x73625140]
    %v631 = vld.sshfl [vmem:[#allocation1 + $0x30] sm:$0xff pattern:$0x73625140]
    %v632 = vld.sshfl [vmem:[#allocation1 + $0x38] sm:$0xff pattern:$0x73625140]
    %633 = vst [vmem:[#allocation1] ss:$4 sm:$0xff] %v84
    %634 = vst [vmem:[%s493] ss:$4 sm:$0xff] %v85
    %v635 = vld.sshfl [vmem:[#allocation1] sm:$0xff pattern:$0x73625140]
    %v636 = vld.sshfl [vmem:[#allocation1 + $0x8] sm:$0xff pattern:$0x73625140]
    %v637 = vld.sshfl [vmem:[#allocation1 + $0x10] sm:$0xff pattern:$0x73625140]
    %v638 = vld.sshfl [vmem:[#allocation1 + $0x18] sm:$0xff pattern:$0x73625140]
    %v639 = vld.sshfl [vmem:[#allocation1 + $0x20] sm:$0xff pattern:$0x73625140]
    %v640 = vld.sshfl [vmem:[#allocation1 + $0x28] sm:$0xff pattern:$0x73625140]
    %v641 = vld.sshfl [vmem:[#allocation1 + $0x30] sm:$0xff pattern:$0x73625140]
    %v642 = vld.sshfl [vmem:[#allocation1 + $0x38] sm:$0xff pattern:$0x73625140]
    %643 = vst [vmem:[#allocation1] ss:$4 sm:$0xff] %v86
    %644 = vst [vmem:[%s493] ss:$4 sm:$0xff] %v87
    %v645 = vld.sshfl [vmem:[#allocation1] sm:$0xff pattern:$0x73625140]
    %v646 = vld.sshfl [vmem:[#allocation1 + $0x8] sm:$0xff pattern:$0x73625140]
    %v647 = vld.sshfl [vmem:[#allocation1 + $0x10] sm:$0xff pattern:$0x73625140]
    %v648 = vld.sshfl [vmem:[#allocation1 + $0x18] sm:$0xff pattern:$0x73625140]
    %v649 = vld.sshfl [vmem:[#allocation1 + $0x20] sm:$0xff pattern:$0x73625140]
    %v650 = vld.sshfl [vmem:[#allocation1 + $0x28] sm:$0xff pattern:$0x73625140]
    %v651 = vld.sshfl [vmem:[#allocation1 + $0x30] sm:$0xff pattern:$0x73625140]
    %v652 = vld.sshfl [vmem:[#allocation1 + $0x38] sm:$0xff pattern:$0x73625140]
    %653 = vst [vmem:[#allocation1] ss:$4 sm:$0xff] %v88
    %654 = vst [vmem:[%s493] ss:$4 sm:$0xff] %v89
    %v655 = vld.sshfl [vmem:[#allocation1] sm:$0xff pattern:$0x73625140]
    %v656 = vld.sshfl [vmem:[#allocation1 + $0x8] sm:$0xff pattern:$0x73625140]
    %v657 = vld.sshfl [vmem:[#allocation1 + $0x10] sm:$0xff pattern:$0x73625140]
    %v658 = vld.sshfl [vmem:[#allocation1 + $0x18] sm:$0xff pattern:$0x73625140]
    %v659 = vld.sshfl [vmem:[#allocation1 + $0x20] sm:$0xff pattern:$0x73625140]
    %v660 = vld.sshfl [vmem:[#allocation1 + $0x28] sm:$0xff pattern:$0x73625140]
    %v661 = vld.sshfl [vmem:[#allocation1 + $0x30] sm:$0xff pattern:$0x73625140]
    %v662 = vld.sshfl [vmem:[#allocation1 + $0x38] sm:$0xff pattern:$0x73625140]
    %663 = vst [vmem:[#allocation1] ss:$4 sm:$0xff] %v90
    %664 = vst [vmem:[%s493] ss:$4 sm:$0xff] %v91
    %v665 = vld.sshfl [vmem:[#allocation1] sm:$0xff pattern:$0x73625140]
    %v666 = vld.sshfl [vmem:[#allocation1 + $0x8] sm:$0xff pattern:$0x73625140]
    %v667 = vld.sshfl [vmem:[#allocation1 + $0x10] sm:$0xff pattern:$0x73625140]
    %v668 = vld.sshfl [vmem:[#allocation1 + $0x18] sm:$0xff pattern:$0x73625140]
    %v669 = vld.sshfl [vmem:[#allocation1 + $0x20] sm:$0xff pattern:$0x73625140]
    %v670 = vld.sshfl [vmem:[#allocation1 + $0x28] sm:$0xff pattern:$0x73625140]
    %v671 = vld.sshfl [vmem:[#allocation1 + $0x30] sm:$0xff pattern:$0x73625140]
    %v672 = vld.sshfl [vmem:[#allocation1 + $0x38] sm:$0xff pattern:$0x73625140]
    %673 = vst [vmem:[#allocation1] ss:$4 sm:$0xff] %v92
    %674 = vst [vmem:[%s493] ss:$4 sm:$0xff] %v93
    %v675 = vld.sshfl [vmem:[#allocation1] sm:$0xff pattern:$0x73625140]
    %v676 = vld.sshfl [vmem:[#allocation1 + $0x8] sm:$0xff pattern:$0x73625140]
    %v677 = vld.sshfl [vmem:[#allocation1 + $0x10] sm:$0xff pattern:$0x73625140]
    %v678 = vld.sshfl [vmem:[#allocation1 + $0x18] sm:$0xff pattern:$0x73625140]
    %v679 = vld.sshfl [vmem:[#allocation1 + $0x20] sm:$0xff pattern:$0x73625140]
    %v680 = vld.sshfl [vmem:[#allocation1 + $0x28] sm:$0xff pattern:$0x73625140]
    %v681 = vld.sshfl [vmem:[#allocation1 + $0x30] sm:$0xff pattern:$0x73625140]
    %v682 = vld.sshfl [vmem:[#allocation1 + $0x38] sm:$0xff pattern:$0x73625140]
    %683 = vst [vmem:[#allocation1] ss:$4 sm:$0xff] %v94
    %684 = vst [vmem:[%s493] ss:$4 sm:$0xff] %v95
    %v685 = vld.sshfl [vmem:[#allocation1] sm:$0xff pattern:$0x73625140]
    %v686 = vld.sshfl [vmem:[#allocation1 + $0x8] sm:$0xff pattern:$0x73625140]
    %v687 = vld.sshfl [vmem:[#allocation1 + $0x10] sm:$0xff pattern:$0x73625140]
    %v688 = vld.sshfl [vmem:[#allocation1 + $0x18] sm:$0xff pattern:$0x73625140]
    %v689 = vld.sshfl [vmem:[#allocation1 + $0x20] sm:$0xff pattern:$0x73625140]
    %v690 = vld.sshfl [vmem:[#allocation1 + $0x28] sm:$0xff pattern:$0x73625140]
    %v691 = vld.sshfl [vmem:[#allocation1 + $0x30] sm:$0xff pattern:$0x73625140]
    %v692 = vld.sshfl [vmem:[#allocation1 + $0x38] sm:$0xff pattern:$0x73625140]
    %693 = vst [vmem:[#allocation1] ss:$4 sm:$0xff] %v96
    %694 = vst [vmem:[%s493] ss:$4 sm:$0xff] %v97
    %v695 = vld.sshfl [vmem:[#allocation1] sm:$0xff pattern:$0x73625140]
    %v696 = vld.sshfl [vmem:[#allocation1 + $0x8] sm:$0xff pattern:$0x73625140]
    %v697 = vld.sshfl [vmem:[#allocation1 + $0x10] sm:$0xff pattern:$0x73625140]
    %v698 = vld.sshfl [vmem:[#allocation1 + $0x18] sm:$0xff pattern:$0x73625140]
    %v699 = vld.sshfl [vmem:[#allocation1 + $0x20] sm:$0xff pattern:$0x73625140]
    %v700 = vld.sshfl [vmem:[#allocation1 + $0x28] sm:$0xff pattern:$0x73625140]
    %v701 = vld.sshfl [vmem:[#allocation1 + $0x30] sm:$0xff pattern:$0x73625140]
    %v702 = vld.sshfl [vmem:[#allocation1 + $0x38] sm:$0xff pattern:$0x73625140]
    %703 = vst [vmem:[#allocation1] ss:$4 sm:$0xff] %v98
    %704 = vst [vmem:[%s493] ss:$4 sm:$0xff] %v99
    %v705 = vld.sshfl [vmem:[#allocation1] sm:$0xff pattern:$0x73625140]
    %v706 = vld.sshfl [vmem:[#allocation1 + $0x8] sm:$0xff pattern:$0x73625140]
    %v707 = vld.sshfl [vmem:[#allocation1 + $0x10] sm:$0xff pattern:$0x73625140]
    %v708 = vld.sshfl [vmem:[#allocation1 + $0x18] sm:$0xff pattern:$0x73625140]
    %v709 = vld.sshfl [vmem:[#allocation1 + $0x20] sm:$0xff pattern:$0x73625140]
    %v710 = vld.sshfl [vmem:[#allocation1 + $0x28] sm:$0xff pattern:$0x73625140]
    %v711 = vld.sshfl [vmem:[#allocation1 + $0x30] sm:$0xff pattern:$0x73625140]
    %v712 = vld.sshfl [vmem:[#allocation1 + $0x38] sm:$0xff pattern:$0x73625140]
    %713 = vst [vmem:[#allocation1] ss:$4 sm:$0xff] %v100
    %714 = vst [vmem:[%s493] ss:$4 sm:$0xff] %v101
    %v715 = vld.sshfl [vmem:[#allocation1] sm:$0xff pattern:$0x73625140]
    %v716 = vld.sshfl [vmem:[#allocation1 + $0x8] sm:$0xff pattern:$0x73625140]
    %v717 = vld.sshfl [vmem:[#allocation1 + $0x10] sm:$0xff pattern:$0x73625140]
    %v718 = vld.sshfl [vmem:[#allocation1 + $0x18] sm:$0xff pattern:$0x73625140]
    %v719 = vld.sshfl [vmem:[#allocation1 + $0x20] sm:$0xff pattern:$0x73625140]
    %v720 = vld.sshfl [vmem:[#allocation1 + $0x28] sm:$0xff pattern:$0x73625140]
    %v721 = vld.sshfl [vmem:[#allocation1 + $0x30] sm:$0xff pattern:$0x73625140]
    %v722 = vld.sshfl [vmem:[#allocation1 + $0x38] sm:$0xff pattern:$0x73625140]
    %723 = vst [vmem:[#allocation1] ss:$4 sm:$0xff] %v102
    %724 = vst [vmem:[%s493] ss:$4 sm:$0xff] %v103
    %v725 = vld.sshfl [vmem:[#allocation1] sm:$0xff pattern:$0x73625140]
    %v726 = vld.sshfl [vmem:[#allocation1 + $0x8] sm:$0xff pattern:$0x73625140]
    %v727 = vld.sshfl [vmem:[#allocation1 + $0x10] sm:$0xff pattern:$0x73625140]
    %v728 = vld.sshfl [vmem:[#allocation1 + $0x18] sm:$0xff pattern:$0x73625140]
    %v729 = vld.sshfl [vmem:[#allocation1 + $0x20] sm:$0xff pattern:$0x73625140]
    %v730 = vld.sshfl [vmem:[#allocation1 + $0x28] sm:$0xff pattern:$0x73625140]
    %v731 = vld.sshfl [vmem:[#allocation1 + $0x30] sm:$0xff pattern:$0x73625140]
    %v732 = vld.sshfl [vmem:[#allocation1 + $0x38] sm:$0xff pattern:$0x73625140]
    %733 = vst [vmem:[#allocation1] ss:$4 sm:$0xff] %v104
    %734 = vst [vmem:[%s493] ss:$4 sm:$0xff] %v105
    %v735 = vld.sshfl [vmem:[#allocation1] sm:$0xff pattern:$0x73625140]
    %v736 = vld.sshfl [vmem:[#allocation1 + $0x8] sm:$0xff pattern:$0x73625140]
    %v737 = vld.sshfl [vmem:[#allocation1 + $0x10] sm:$0xff pattern:$0x73625140]
    %v738 = vld.sshfl [vmem:[#allocation1 + $0x18] sm:$0xff pattern:$0x73625140]
    %v739 = vld.sshfl [vmem:[#allocation1 + $0x20] sm:$0xff pattern:$0x73625140]
    %v740 = vld.sshfl [vmem:[#allocation1 + $0x28] sm:$0xff pattern:$0x73625140]
    %v741 = vld.sshfl [vmem:[#allocation1 + $0x30] sm:$0xff pattern:$0x73625140]
    %v742 = vld.sshfl [vmem:[#allocation1 + $0x38] sm:$0xff pattern:$0x73625140]
    %743 = vst [vmem:[#allocation1] ss:$4 sm:$0xff] %v106
    %744 = vst [vmem:[%s493] ss:$4 sm:$0xff] %v107
    %v745 = vld.sshfl [vmem:[#allocation1] sm:$0xff pattern:$0x73625140]
    %v746 = vld.sshfl [vmem:[#allocation1 + $0x8] sm:$0xff pattern:$0x73625140]
    %v747 = vld.sshfl [vmem:[#allocation1 + $0x10] sm:$0xff pattern:$0x73625140]
    %v748 = vld.sshfl [vmem:[#allocation1 + $0x18] sm:$0xff pattern:$0x73625140]
    %v749 = vld.sshfl [vmem:[#allocation1 + $0x20] sm:$0xff pattern:$0x73625140]
    %v750 = vld.sshfl [vmem:[#allocation1 + $0x28] sm:$0xff pattern:$0x73625140]
    %v751 = vld.sshfl [vmem:[#allocation1 + $0x30] sm:$0xff pattern:$0x73625140]
    %v752 = vld.sshfl [vmem:[#allocation1 + $0x38] sm:$0xff pattern:$0x73625140]
    %753 = vst [vmem:[#allocation1] ss:$4 sm:$0xff] %v108
    %754 = vst [vmem:[%s493] ss:$4 sm:$0xff] %v109
    %v755 = vld.sshfl [vmem:[#allocation1] sm:$0xff pattern:$0x73625140]
    %v756 = vld.sshfl [vmem:[#allocation1 + $0x8] sm:$0xff pattern:$0x73625140]
    %v757 = vld.sshfl [vmem:[#allocation1 + $0x10] sm:$0xff pattern:$0x73625140]
    %v758 = vld.sshfl [vmem:[#allocation1 + $0x18] sm:$0xff pattern:$0x73625140]
    %v759 = vld.sshfl [vmem:[#allocation1 + $0x20] sm:$0xff pattern:$0x73625140]
    %v760 = vld.sshfl [vmem:[#allocation1 + $0x28] sm:$0xff pattern:$0x73625140]
    %v761 = vld.sshfl [vmem:[#allocation1 + $0x30] sm:$0xff pattern:$0x73625140]
    %v762 = vld.sshfl [vmem:[#allocation1 + $0x38] sm:$0xff pattern:$0x73625140]
    %763 = vst [vmem:[#allocation1] ss:$4 sm:$0xff] %v110
    %764 = vst [vmem:[%s493] ss:$4 sm:$0xff] %v111
    %v765 = vld.sshfl [vmem:[#allocation1] sm:$0xff pattern:$0x73625140]
    %v766 = vld.sshfl [vmem:[#allocation1 + $0x8] sm:$0xff pattern:$0x73625140]
    %v767 = vld.sshfl [vmem:[#allocation1 + $0x10] sm:$0xff pattern:$0x73625140]
    %v768 = vld.sshfl [vmem:[#allocation1 + $0x18] sm:$0xff pattern:$0x73625140]
    %v769 = vld.sshfl [vmem:[#allocation1 + $0x20] sm:$0xff pattern:$0x73625140]
    %v770 = vld.sshfl [vmem:[#allocation1 + $0x28] sm:$0xff pattern:$0x73625140]
    %v771 = vld.sshfl [vmem:[#allocation1 + $0x30] sm:$0xff pattern:$0x73625140]
    %v772 = vld.sshfl [vmem:[#allocation1 + $0x38] sm:$0xff pattern:$0x73625140]
    %773 = vst [vmem:[#allocation1] ss:$4 sm:$0xff] %v112
    %774 = vst [vmem:[%s493] ss:$4 sm:$0xff] %v113
    %v775 = vld.sshfl [vmem:[#allocation1] sm:$0xff pattern:$0x73625140]
    %v776 = vld.sshfl [vmem:[#allocation1 + $0x8] sm:$0xff pattern:$0x73625140]
    %v777 = vld.sshfl [vmem:[#allocation1 + $0x10] sm:$0xff pattern:$0x73625140]
    %v778 = vld.sshfl [vmem:[#allocation1 + $0x18] sm:$0xff pattern:$0x73625140]
    %v779 = vld.sshfl [vmem:[#allocation1 + $0x20] sm:$0xff pattern:$0x73625140]
    %v780 = vld.sshfl [vmem:[#allocation1 + $0x28] sm:$0xff pattern:$0x73625140]
    %v781 = vld.sshfl [vmem:[#allocation1 + $0x30] sm:$0xff pattern:$0x73625140]
    %v782 = vld.sshfl [vmem:[#allocation1 + $0x38] sm:$0xff pattern:$0x73625140]
    %783 = vst [vmem:[#allocation1] ss:$4 sm:$0xff] %v114
    %784 = vst [vmem:[%s493] ss:$4 sm:$0xff] %v115
    %v785 = vld.sshfl [vmem:[#allocation1] sm:$0xff pattern:$0x73625140]
    %v786 = vld.sshfl [vmem:[#allocation1 + $0x8] sm:$0xff pattern:$0x73625140]
    %v787 = vld.sshfl [vmem:[#allocation1 + $0x10] sm:$0xff pattern:$0x73625140]
    %v788 = vld.sshfl [vmem:[#allocation1 + $0x18] sm:$0xff pattern:$0x73625140]
    %v789 = vld.sshfl [vmem:[#allocation1 + $0x20] sm:$0xff pattern:$0x73625140]
    %v790 = vld.sshfl [vmem:[#allocation1 + $0x28] sm:$0xff pattern:$0x73625140]
    %v791 = vld.sshfl [vmem:[#allocation1 + $0x30] sm:$0xff pattern:$0x73625140]
    %v792 = vld.sshfl [vmem:[#allocation1 + $0x38] sm:$0xff pattern:$0x73625140]
    %793 = vst [vmem:[#allocation1] ss:$4 sm:$0xff] %v116
    %794 = vst [vmem:[%s493] ss:$4 sm:$0xff] %v117
    %v795 = vld.sshfl [vmem:[#allocation1] sm:$0xff pattern:$0x73625140]
    %v796 = vld.sshfl [vmem:[#allocation1 + $0x8] sm:$0xff pattern:$0x73625140]
    %v797 = vld.sshfl [vmem:[#allocation1 + $0x10] sm:$0xff pattern:$0x73625140]
    %v798 = vld.sshfl [vmem:[#allocation1 + $0x18] sm:$0xff pattern:$0x73625140]
    %v799 = vld.sshfl [vmem:[#allocation1 + $0x20] sm:$0xff pattern:$0x73625140]
    %v800 = vld.sshfl [vmem:[#allocation1 + $0x28] sm:$0xff pattern:$0x73625140]
    %v801 = vld.sshfl [vmem:[#allocation1 + $0x30] sm:$0xff pattern:$0x73625140]
    %v802 = vld.sshfl [vmem:[#allocation1 + $0x38] sm:$0xff pattern:$0x73625140]
    %803 = vst [vmem:[#allocation1] ss:$4 sm:$0xff] %v118
    %804 = vst [vmem:[%s493] ss:$4 sm:$0xff] %v119
    %v805 = vld.sshfl [vmem:[#allocation1] sm:$0xff pattern:$0x73625140]
    %v806 = vld.sshfl [vmem:[#allocation1 + $0x8] sm:$0xff pattern:$0x73625140]
    %v807 = vld.sshfl [vmem:[#allocation1 + $0x10] sm:$0xff pattern:$0x73625140]
    %v808 = vld.sshfl [vmem:[#allocation1 + $0x18] sm:$0xff pattern:$0x73625140]
    %v809 = vld.sshfl [vmem:[#allocation1 + $0x20] sm:$0xff pattern:$0x73625140]
    %v810 = vld.sshfl [vmem:[#allocation1 + $0x28] sm:$0xff pattern:$0x73625140]
    %v811 = vld.sshfl [vmem:[#allocation1 + $0x30] sm:$0xff pattern:$0x73625140]
    %v812 = vld.sshfl [vmem:[#allocation1 + $0x38] sm:$0xff pattern:$0x73625140]
    %813 = vst [vmem:[#allocation1] ss:$4 sm:$0xff] %v120
    %814 = vst [vmem:[%s493] ss:$4 sm:$0xff] %v121
    %v815 = vld.sshfl [vmem:[#allocation1] sm:$0xff pattern:$0x73625140]
    %v816 = vld.sshfl [vmem:[#allocation1 + $0x8] sm:$0xff pattern:$0x73625140]
    %v817 = vld.sshfl [vmem:[#allocation1 + $0x10] sm:$0xff pattern:$0x73625140]
    %v818 = vld.sshfl [vmem:[#allocation1 + $0x18] sm:$0xff pattern:$0x73625140]
    %v819 = vld.sshfl [vmem:[#allocation1 + $0x20] sm:$0xff pattern:$0x73625140]
    %v820 = vld.sshfl [vmem:[#allocation1 + $0x28] sm:$0xff pattern:$0x73625140]
    %v821 = vld.sshfl [vmem:[#allocation1 + $0x30] sm:$0xff pattern:$0x73625140]
    %v822 = vld.sshfl [vmem:[#allocation1 + $0x38] sm:$0xff pattern:$0x73625140]
    %823 = vst [vmem:[#allocation1] ss:$4 sm:$0xff] %v122
    %824 = vst [vmem:[%s493] ss:$4 sm:$0xff] %v123
    %v825 = vld.sshfl [vmem:[#allocation1] sm:$0xff pattern:$0x73625140]
    %v826 = vld.sshfl [vmem:[#allocation1 + $0x8] sm:$0xff pattern:$0x73625140]
    %v827 = vld.sshfl [vmem:[#allocation1 + $0x10] sm:$0xff pattern:$0x73625140]
    %v828 = vld.sshfl [vmem:[#allocation1 + $0x18] sm:$0xff pattern:$0x73625140]
    %v829 = vld.sshfl [vmem:[#allocation1 + $0x20] sm:$0xff pattern:$0x73625140]
    %v830 = vld.sshfl [vmem:[#allocation1 + $0x28] sm:$0xff pattern:$0x73625140]
    %v831 = vld.sshfl [vmem:[#allocation1 + $0x30] sm:$0xff pattern:$0x73625140]
    %v832 = vld.sshfl [vmem:[#allocation1 + $0x38] sm:$0xff pattern:$0x73625140]
    %833 = vst [vmem:[#allocation1] ss:$4 sm:$0xff] %v124
    %834 = vst [vmem:[%s493] ss:$4 sm:$0xff] %v125
    %v835 = vld.sshfl [vmem:[#allocation1] sm:$0xff pattern:$0x73625140]
    %v836 = vld.sshfl [vmem:[#allocation1 + $0x8] sm:$0xff pattern:$0x73625140]
    %v837 = vld.sshfl [vmem:[#allocation1 + $0x10] sm:$0xff pattern:$0x73625140]
    %v838 = vld.sshfl [vmem:[#allocation1 + $0x18] sm:$0xff pattern:$0x73625140]
    %v839 = vld.sshfl [vmem:[#allocation1 + $0x20] sm:$0xff pattern:$0x73625140]
    %v840 = vld.sshfl [vmem:[#allocation1 + $0x28] sm:$0xff pattern:$0x73625140]
    %v841 = vld.sshfl [vmem:[#allocation1 + $0x30] sm:$0xff pattern:$0x73625140]
    %v842 = vld.sshfl [vmem:[#allocation1 + $0x38] sm:$0xff pattern:$0x73625140]
    %843 = vst [vmem:[#allocation1] ss:$4 sm:$0xff] %v126
    %844 = vst [vmem:[%s493] ss:$4 sm:$0xff] %v127
    %v845 = vld.sshfl [vmem:[#allocation1] sm:$0xff pattern:$0x73625140]
    %v846 = vld.sshfl [vmem:[#allocation1 + $0x8] sm:$0xff pattern:$0x73625140]
    %v847 = vld.sshfl [vmem:[#allocation1 + $0x10] sm:$0xff pattern:$0x73625140]
    %v848 = vld.sshfl [vmem:[#allocation1 + $0x18] sm:$0xff pattern:$0x73625140]
    %v849 = vld.sshfl [vmem:[#allocation1 + $0x20] sm:$0xff pattern:$0x73625140]
    %v850 = vld.sshfl [vmem:[#allocation1 + $0x28] sm:$0xff pattern:$0x73625140]
    %v851 = vld.sshfl [vmem:[#allocation1 + $0x30] sm:$0xff pattern:$0x73625140]
    %v852 = vld.sshfl [vmem:[#allocation1 + $0x38] sm:$0xff pattern:$0x73625140]
    %1141 = vmatpush.xpose.msra.mxu0 0.0
    %1142 = vmatpush.xpose.msra.mxu0 0.0
    %1143 = vmatpush.xpose.msra.mxu0 0.0
    %1144 = vmatpush.xpose.msra.mxu0 0.0
    %1145 = vmatpush.xpose.msra.mxu0 0.0
    %1146 = vmatpush.xpose.msra.mxu0 0.0
    %1147 = vmatpush.xpose.msra.mxu0 0.0
    %1148 = vmatpush.xpose.msra.mxu0 0.0
    %1149 = vmatpush.xpose.msra.mxu0 0.0
    %1150 = vmatpush.xpose.msra.mxu0 0.0
    %1151 = vmatpush.xpose.msra.mxu0 0.0
    %1152 = vmatpush.xpose.msra.mxu0 0.0
    %1153 = vmatpush.xpose.msra.mxu0 0.0
    %1154 = vmatpush.xpose.msra.mxu0 0.0
    %1155 = vmatpush.xpose.msra.mxu0 0.0
    %1156 = vmatpush.xpose.msra.mxu0 %v128
    %1157 = vmatmul.f32.gmra.mxu0 %v495
    %v1158 = vpop.f32.mrf.mxu0
    %v1159 = vadd.f32 %v418, %v1158
    %1160 = vdwg.mxu0
    %1161 = vmatpush.xpose.msra.mxu0 0.0
    %1162 = vmatpush.xpose.msra.mxu0 0.0
    %1163 = vmatpush.xpose.msra.mxu0 0.0
    %1164 = vmatpush.xpose.msra.mxu0 0.0
    %1165 = vmatpush.xpose.msra.mxu0 0.0
    %1166 = vmatpush.xpose.msra.mxu0 0.0
    %1167 = vmatpush.xpose.msra.mxu0 0.0
    %1168 = vmatpush.xpose.msra.mxu0 0.0
    %1169 = vmatpush.xpose.msra.mxu0 0.0
    %1170 = vmatpush.xpose.msra.mxu0 0.0
    %1171 = vmatpush.xpose.msra.mxu0 0.0
    %1172 = vmatpush.xpose.msra.mxu0 0.0
    %1173 = vmatpush.xpose.msra.mxu0 0.0
    %1174 = vmatpush.xpose.msra.mxu0 0.0
    %1175 = vmatpush.xpose.msra.mxu0 0.0
    %1176 = vmatpush.xpose.msra.mxu0 %v129
    %1177 = vmatmul.f32.gmra.mxu0 %v496
    %v1178 = vpop.f32.mrf.mxu0
    %v1179 = vadd.f32 %v1159, %v1178
    %1180 = vdwg.mxu0
    %1181 = vmatpush.xpose.msra.mxu0 0.0
    %1182 = vmatpush.xpose.msra.mxu0 0.0
    %1183 = vmatpush.xpose.msra.mxu0 0.0
    %1184 = vmatpush.xpose.msra.mxu0 0.0
    %1185 = vmatpush.xpose.msra.mxu0 0.0
    %1186 = vmatpush.xpose.msra.mxu0 0.0
    %1187 = vmatpush.xpose.msra.mxu0 0.0
    %1188 = vmatpush.xpose.msra.mxu0 0.0
    %1189 = vmatpush.xpose.msra.mxu0 0.0
    %1190 = vmatpush.xpose.msra.mxu0 0.0
    %1191 = vmatpush.xpose.msra.mxu0 0.0
    %1192 = vmatpush.xpose.msra.mxu0 0.0
    %1193 = vmatpush.xpose.msra.mxu0 0.0
    %1194 = vmatpush.xpose.msra.mxu0 0.0
    %1195 = vmatpush.xpose.msra.mxu0 0.0
    %1196 = vmatpush.xpose.msra.mxu0 %v130
    %1197 = vmatmul.f32.gmra.mxu0 %v497
    %v1198 = vpop.f32.mrf.mxu0
    %v1199 = vadd.f32 %v1179, %v1198
    %1200 = vdwg.mxu0
    %1201 = vmatpush.xpose.msra.mxu0 0.0
    %1202 = vmatpush.xpose.msra.mxu0 0.0
    %1203 = vmatpush.xpose.msra.mxu0 0.0
    %1204 = vmatpush.xpose.msra.mxu0 0.0
    %1205 = vmatpush.xpose.msra.mxu0 0.0
    %1206 = vmatpush.xpose.msra.mxu0 0.0
    %1207 = vmatpush.xpose.msra.mxu0 0.0
    %1208 = vmatpush.xpose.msra.mxu0 0.0
    %1209 = vmatpush.xpose.msra.mxu0 0.0
    %1210 = vmatpush.xpose.msra.mxu0 0.0
    %1211 = vmatpush.xpose.msra.mxu0 0.0
    %1212 = vmatpush.xpose.msra.mxu0 0.0
    %1213 = vmatpush.xpose.msra.mxu0 0.0
    %1214 = vmatpush.xpose.msra.mxu0 0.0
    %1215 = vmatpush.xpose.msra.mxu0 0.0
    %1216 = vmatpush.xpose.msra.mxu0 %v131
    %1217 = vmatmul.f32.gmra.mxu0 %v498
    %v1218 = vpop.f32.mrf.mxu0
    %v1219 = vadd.f32 %v1199, %v1218
    %1220 = vdwg.mxu0
    %1221 = vmatpush.xpose.msra.mxu0 0.0
    %1222 = vmatpush.xpose.msra.mxu0 0.0
    %1223 = vmatpush.xpose.msra.mxu0 0.0
    %1224 = vmatpush.xpose.msra.mxu0 0.0
    %1225 = vmatpush.xpose.msra.mxu0 0.0
    %1226 = vmatpush.xpose.msra.mxu0 0.0
    %1227 = vmatpush.xpose.msra.mxu0 0.0
    %1228 = vmatpush.xpose.msra.mxu0 0.0
    %1229 = vmatpush.xpose.msra.mxu0 0.0
    %1230 = vmatpush.xpose.msra.mxu0 0.0
    %1231 = vmatpush.xpose.msra.mxu0 0.0
    %1232 = vmatpush.xpose.msra.mxu0 0.0
    %1233 = vmatpush.xpose.msra.mxu0 0.0
    %1234 = vmatpush.xpose.msra.mxu0 0.0
    %1235 = vmatpush.xpose.msra.mxu0 0.0
    %1236 = vmatpush.xpose.msra.mxu0 %v132
    %1237 = vmatmul.f32.gmra.mxu0 %v499
    %v1238 = vpop.f32.mrf.mxu0
    %v1239 = vadd.f32 %v1219, %v1238
    %1240 = vdwg.mxu0
    %1241 = vmatpush.xpose.msra.mxu0 0.0
    %1242 = vmatpush.xpose.msra.mxu0 0.0
    %1243 = vmatpush.xpose.msra.mxu0 0.0
    %1244 = vmatpush.xpose.msra.mxu0 0.0
    %1245 = vmatpush.xpose.msra.mxu0 0.0
    %1246 = vmatpush.xpose.msra.mxu0 0.0
    %1247 = vmatpush.xpose.msra.mxu0 0.0
    %1248 = vmatpush.xpose.msra.mxu0 0.0
    %1249 = vmatpush.xpose.msra.mxu0 0.0
    %1250 = vmatpush.xpose.msra.mxu0 0.0
    %1251 = vmatpush.xpose.msra.mxu0 0.0
    %1252 = vmatpush.xpose.msra.mxu0 0.0
    %1253 = vmatpush.xpose.msra.mxu0 0.0
    %1254 = vmatpush.xpose.msra.mxu0 0.0
    %1255 = vmatpush.xpose.msra.mxu0 0.0
    %1256 = vmatpush.xpose.msra.mxu0 %v133
    %1257 = vmatmul.f32.gmra.mxu0 %v500
    %v1258 = vpop.f32.mrf.mxu0
    %v1259 = vadd.f32 %v1239, %v1258
    %1260 = vdwg.mxu0
    %1261 = vmatpush.xpose.msra.mxu0 0.0
    %1262 = vmatpush.xpose.msra.mxu0 0.0
    %1263 = vmatpush.xpose.msra.mxu0 0.0
    %1264 = vmatpush.xpose.msra.mxu0 0.0
    %1265 = vmatpush.xpose.msra.mxu0 0.0
    %1266 = vmatpush.xpose.msra.mxu0 0.0
    %1267 = vmatpush.xpose.msra.mxu0 0.0
    %1268 = vmatpush.xpose.msra.mxu0 0.0
    %1269 = vmatpush.xpose.msra.mxu0 0.0
    %1270 = vmatpush.xpose.msra.mxu0 0.0
    %1271 = vmatpush.xpose.msra.mxu0 0.0
    %1272 = vmatpush.xpose.msra.mxu0 0.0
    %1273 = vmatpush.xpose.msra.mxu0 0.0
    %1274 = vmatpush.xpose.msra.mxu0 0.0
    %1275 = vmatpush.xpose.msra.mxu0 0.0
    %1276 = vmatpush.xpose.msra.mxu0 %v134
    %1277 = vmatmul.f32.gmra.mxu0 %v501
    %v1278 = vpop.f32.mrf.mxu0
    %v1279 = vadd.f32 %v1259, %v1278
    %1280 = vdwg.mxu0
    %1281 = vmatpush.xpose.msra.mxu0 0.0
    %1282 = vmatpush.xpose.msra.mxu0 0.0
    %1283 = vmatpush.xpose.msra.mxu0 0.0
    %1284 = vmatpush.xpose.msra.mxu0 0.0
    %1285 = vmatpush.xpose.msra.mxu0 0.0
    %1286 = vmatpush.xpose.msra.mxu0 0.0
    %1287 = vmatpush.xpose.msra.mxu0 0.0
    %1288 = vmatpush.xpose.msra.mxu0 0.0
    %1289 = vmatpush.xpose.msra.mxu0 0.0
    %1290 = vmatpush.xpose.msra.mxu0 0.0
    %1291 = vmatpush.xpose.msra.mxu0 0.0
    %1292 = vmatpush.xpose.msra.mxu0 0.0
    %1293 = vmatpush.xpose.msra.mxu0 0.0
    %1294 = vmatpush.xpose.msra.mxu0 0.0
    %1295 = vmatpush.xpose.msra.mxu0 0.0
    %1296 = vmatpush.xpose.msra.mxu0 %v135
    %1297 = vmatmul.f32.gmra.mxu0 %v502
    %v1298 = vpop.f32.mrf.mxu0
    %v1299 = vadd.f32 %v1279, %v1298
    %1300 = vdwg.mxu0
    %1301 = vmatpush.xpose.msra.mxu0 0.0
    %1302 = vmatpush.xpose.msra.mxu0 0.0
    %1303 = vmatpush.xpose.msra.mxu0 0.0
    %1304 = vmatpush.xpose.msra.mxu0 0.0
    %1305 = vmatpush.xpose.msra.mxu0 0.0
    %1306 = vmatpush.xpose.msra.mxu0 0.0
    %1307 = vmatpush.xpose.msra.mxu0 0.0
    %1308 = vmatpush.xpose.msra.mxu0 0.0
    %1309 = vmatpush.xpose.msra.mxu0 0.0
    %1310 = vmatpush.xpose.msra.mxu0 0.0
    %1311 = vmatpush.xpose.msra.mxu0 0.0
    %1312 = vmatpush.xpose.msra.mxu0 0.0
    %1313 = vmatpush.xpose.msra.mxu0 0.0
    %1314 = vmatpush.xpose.msra.mxu0 0.0
    %1315 = vmatpush.xpose.msra.mxu0 0.0
    %1316 = vmatpush.xpose.msra.mxu0 %v136
    %1317 = vmatmul.f32.gmra.mxu0 %v505
    %v1318 = vpop.f32.mrf.mxu0
    %v1319 = vadd.f32 %v1299, %v1318
    %1320 = vdwg.mxu0
    %1321 = vmatpush.xpose.msra.mxu0 0.0
    %1322 = vmatpush.xpose.msra.mxu0 0.0
    %1323 = vmatpush.xpose.msra.mxu0 0.0
    %1324 = vmatpush.xpose.msra.mxu0 0.0
    %1325 = vmatpush.xpose.msra.mxu0 0.0
    %1326 = vmatpush.xpose.msra.mxu0 0.0
    %1327 = vmatpush.xpose.msra.mxu0 0.0
    %1328 = vmatpush.xpose.msra.mxu0 0.0
    %1329 = vmatpush.xpose.msra.mxu0 0.0
    %1330 = vmatpush.xpose.msra.mxu0 0.0
    %1331 = vmatpush.xpose.msra.mxu0 0.0
    %1332 = vmatpush.xpose.msra.mxu0 0.0
    %1333 = vmatpush.xpose.msra.mxu0 0.0
    %1334 = vmatpush.xpose.msra.mxu0 0.0
    %1335 = vmatpush.xpose.msra.mxu0 0.0
    %1336 = vmatpush.xpose.msra.mxu0 %v137
    %1337 = vmatmul.f32.gmra.mxu0 %v506
    %v1338 = vpop.f32.mrf.mxu0
    %v1339 = vadd.f32 %v1319, %v1338
    %1340 = vdwg.mxu0
    %1341 = vmatpush.xpose.msra.mxu0 0.0
    %1342 = vmatpush.xpose.msra.mxu0 0.0
    %1343 = vmatpush.xpose.msra.mxu0 0.0
    %1344 = vmatpush.xpose.msra.mxu0 0.0
    %1345 = vmatpush.xpose.msra.mxu0 0.0
    %1346 = vmatpush.xpose.msra.mxu0 0.0
    %1347 = vmatpush.xpose.msra.mxu0 0.0
    %1348 = vmatpush.xpose.msra.mxu0 0.0
    %1349 = vmatpush.xpose.msra.mxu0 0.0
    %1350 = vmatpush.xpose.msra.mxu0 0.0
    %1351 = vmatpush.xpose.msra.mxu0 0.0
    %1352 = vmatpush.xpose.msra.mxu0 0.0
    %1353 = vmatpush.xpose.msra.mxu0 0.0
    %1354 = vmatpush.xpose.msra.mxu0 0.0
    %1355 = vmatpush.xpose.msra.mxu0 0.0
    %1356 = vmatpush.xpose.msra.mxu0 %v138
    %1357 = vmatmul.f32.gmra.mxu0 %v507
    %v1358 = vpop.f32.mrf.mxu0
    %v1359 = vadd.f32 %v1339, %v1358
    %1360 = vdwg.mxu0
    %1361 = vmatpush.xpose.msra.mxu0 0.0
    %1362 = vmatpush.xpose.msra.mxu0 0.0
    %1363 = vmatpush.xpose.msra.mxu0 0.0
    %1364 = vmatpush.xpose.msra.mxu0 0.0
    %1365 = vmatpush.xpose.msra.mxu0 0.0
    %1366 = vmatpush.xpose.msra.mxu0 0.0
    %1367 = vmatpush.xpose.msra.mxu0 0.0
    %1368 = vmatpush.xpose.msra.mxu0 0.0
    %1369 = vmatpush.xpose.msra.mxu0 0.0
    %1370 = vmatpush.xpose.msra.mxu0 0.0
    %1371 = vmatpush.xpose.msra.mxu0 0.0
    %1372 = vmatpush.xpose.msra.mxu0 0.0
    %1373 = vmatpush.xpose.msra.mxu0 0.0
    %1374 = vmatpush.xpose.msra.mxu0 0.0
    %1375 = vmatpush.xpose.msra.mxu0 0.0
    %1376 = vmatpush.xpose.msra.mxu0 %v139
    %1377 = vmatmul.f32.gmra.mxu0 %v508
    %v1378 = vpop.f32.mrf.mxu0
    %v1379 = vadd.f32 %v1359, %v1378
    %1380 = vdwg.mxu0
    %1381 = vmatpush.xpose.msra.mxu0 0.0
    %1382 = vmatpush.xpose.msra.mxu0 0.0
    %1383 = vmatpush.xpose.msra.mxu0 0.0
    %1384 = vmatpush.xpose.msra.mxu0 0.0
    %1385 = vmatpush.xpose.msra.mxu0 0.0
    %1386 = vmatpush.xpose.msra.mxu0 0.0
    %1387 = vmatpush.xpose.msra.mxu0 0.0
    %1388 = vmatpush.xpose.msra.mxu0 0.0
    %1389 = vmatpush.xpose.msra.mxu0 0.0
    %1390 = vmatpush.xpose.msra.mxu0 0.0
    %1391 = vmatpush.xpose.msra.mxu0 0.0
    %1392 = vmatpush.xpose.msra.mxu0 0.0
    %1393 = vmatpush.xpose.msra.mxu0 0.0
    %1394 = vmatpush.xpose.msra.mxu0 0.0
    %1395 = vmatpush.xpose.msra.mxu0 0.0
    %1396 = vmatpush.xpose.msra.mxu0 %v140
    %1397 = vmatmul.f32.gmra.mxu0 %v509
    %v1398 = vpop.f32.mrf.mxu0
    %v1399 = vadd.f32 %v1379, %v1398
    %1400 = vdwg.mxu0
    %1401 = vmatpush.xpose.msra.mxu0 0.0
    %1402 = vmatpush.xpose.msra.mxu0 0.0
    %1403 = vmatpush.xpose.msra.mxu0 0.0
    %1404 = vmatpush.xpose.msra.mxu0 0.0
    %1405 = vmatpush.xpose.msra.mxu0 0.0
    %1406 = vmatpush.xpose.msra.mxu0 0.0
    %1407 = vmatpush.xpose.msra.mxu0 0.0
    %1408 = vmatpush.xpose.msra.mxu0 0.0
    %1409 = vmatpush.xpose.msra.mxu0 0.0
    %1410 = vmatpush.xpose.msra.mxu0 0.0
    %1411 = vmatpush.xpose.msra.mxu0 0.0
    %1412 = vmatpush.xpose.msra.mxu0 0.0
    %1413 = vmatpush.xpose.msra.mxu0 0.0
    %1414 = vmatpush.xpose.msra.mxu0 0.0
    %1415 = vmatpush.xpose.msra.mxu0 0.0
    %1416 = vmatpush.xpose.msra.mxu0 %v141
    %1417 = vmatmul.f32.gmra.mxu0 %v510
    %v1418 = vpop.f32.mrf.mxu0
    %v1419 = vadd.f32 %v1399, %v1418
    %1420 = vdwg.mxu0
    %1421 = vmatpush.xpose.msra.mxu0 0.0
    %1422 = vmatpush.xpose.msra.mxu0 0.0
    %1423 = vmatpush.xpose.msra.mxu0 0.0
    %1424 = vmatpush.xpose.msra.mxu0 0.0
    %1425 = vmatpush.xpose.msra.mxu0 0.0
    %1426 = vmatpush.xpose.msra.mxu0 0.0
    %1427 = vmatpush.xpose.msra.mxu0 0.0
    %1428 = vmatpush.xpose.msra.mxu0 0.0
    %1429 = vmatpush.xpose.msra.mxu0 0.0
    %1430 = vmatpush.xpose.msra.mxu0 0.0
    %1431 = vmatpush.xpose.msra.mxu0 0.0
    %1432 = vmatpush.xpose.msra.mxu0 0.0
    %1433 = vmatpush.xpose.msra.mxu0 0.0
    %1434 = vmatpush.xpose.msra.mxu0 0.0
    %1435 = vmatpush.xpose.msra.mxu0 0.0
    %1436 = vmatpush.xpose.msra.mxu0 %v142
    %1437 = vmatmul.f32.gmra.mxu0 %v511
    %v1438 = vpop.f32.mrf.mxu0
    %v1439 = vadd.f32 %v1419, %v1438
    %1440 = vdwg.mxu0
    %1441 = vmatpush.xpose.msra.mxu0 0.0
    %1442 = vmatpush.xpose.msra.mxu0 0.0
    %1443 = vmatpush.xpose.msra.mxu0 0.0
    %1444 = vmatpush.xpose.msra.mxu0 0.0
    %1445 = vmatpush.xpose.msra.mxu0 0.0
    %1446 = vmatpush.xpose.msra.mxu0 0.0
    %1447 = vmatpush.xpose.msra.mxu0 0.0
    %1448 = vmatpush.xpose.msra.mxu0 0.0
    %1449 = vmatpush.xpose.msra.mxu0 0.0
    %1450 = vmatpush.xpose.msra.mxu0 0.0
    %1451 = vmatpush.xpose.msra.mxu0 0.0
    %1452 = vmatpush.xpose.msra.mxu0 0.0
    %1453 = vmatpush.xpose.msra.mxu0 0.0
    %1454 = vmatpush.xpose.msra.mxu0 0.0
    %1455 = vmatpush.xpose.msra.mxu0 0.0
    %1456 = vmatpush.xpose.msra.mxu0 %v143
    %1457 = vmatmul.f32.gmra.mxu0 %v512
    %v1458 = vpop.f32.mrf.mxu0
    %v1459 = vadd.f32 %v1439, %v1458
    %1460 = vdwg.mxu0
    %1461 = vmatpush.xpose.msra.mxu0 0.0
    %1462 = vmatpush.xpose.msra.mxu0 0.0
    %1463 = vmatpush.xpose.msra.mxu0 0.0
    %1464 = vmatpush.xpose.msra.mxu0 0.0
    %1465 = vmatpush.xpose.msra.mxu0 0.0
    %1466 = vmatpush.xpose.msra.mxu0 0.0
    %1467 = vmatpush.xpose.msra.mxu0 0.0
    %1468 = vmatpush.xpose.msra.mxu0 0.0
    %1469 = vmatpush.xpose.msra.mxu0 0.0
    %1470 = vmatpush.xpose.msra.mxu0 0.0
    %1471 = vmatpush.xpose.msra.mxu0 0.0
    %1472 = vmatpush.xpose.msra.mxu0 0.0
    %1473 = vmatpush.xpose.msra.mxu0 0.0
    %1474 = vmatpush.xpose.msra.mxu0 0.0
    %1475 = vmatpush.xpose.msra.mxu0 0.0
    %1476 = vmatpush.xpose.msra.mxu0 %v144
    %1477 = vmatmul.f32.gmra.mxu0 %v515
    %v1478 = vpop.f32.mrf.mxu0
    %v1479 = vadd.f32 %v1459, %v1478
    %1480 = vdwg.mxu0
    %1481 = vmatpush.xpose.msra.mxu0 0.0
    %1482 = vmatpush.xpose.msra.mxu0 0.0
    %1483 = vmatpush.xpose.msra.mxu0 0.0
    %1484 = vmatpush.xpose.msra.mxu0 0.0
    %1485 = vmatpush.xpose.msra.mxu0 0.0
    %1486 = vmatpush.xpose.msra.mxu0 0.0
    %1487 = vmatpush.xpose.msra.mxu0 0.0
    %1488 = vmatpush.xpose.msra.mxu0 0.0
    %1489 = vmatpush.xpose.msra.mxu0 0.0
    %1490 = vmatpush.xpose.msra.mxu0 0.0
    %1491 = vmatpush.xpose.msra.mxu0 0.0
    %1492 = vmatpush.xpose.msra.mxu0 0.0
    %1493 = vmatpush.xpose.msra.mxu0 0.0
    %1494 = vmatpush.xpose.msra.mxu0 0.0
    %1495 = vmatpush.xpose.msra.mxu0 0.0
    %1496 = vmatpush.xpose.msra.mxu0 %v145
    %1497 = vmatmul.f32.gmra.mxu0 %v516
    %v1498 = vpop.f32.mrf.mxu0
    %v1499 = vadd.f32 %v1479, %v1498
    %1500 = vdwg.mxu0
    %1501 = vmatpush.xpose.msra.mxu0 0.0
    %1502 = vmatpush.xpose.msra.mxu0 0.0
    %1503 = vmatpush.xpose.msra.mxu0 0.0
    %1504 = vmatpush.xpose.msra.mxu0 0.0
    %1505 = vmatpush.xpose.msra.mxu0 0.0
    %1506 = vmatpush.xpose.msra.mxu0 0.0
    %1507 = vmatpush.xpose.msra.mxu0 0.0
    %1508 = vmatpush.xpose.msra.mxu0 0.0
    %1509 = vmatpush.xpose.msra.mxu0 0.0
    %1510 = vmatpush.xpose.msra.mxu0 0.0
    %1511 = vmatpush.xpose.msra.mxu0 0.0
    %1512 = vmatpush.xpose.msra.mxu0 0.0
    %1513 = vmatpush.xpose.msra.mxu0 0.0
    %1514 = vmatpush.xpose.msra.mxu0 0.0
    %1515 = vmatpush.xpose.msra.mxu0 0.0
    %1516 = vmatpush.xpose.msra.mxu0 %v146
    %1517 = vmatmul.f32.gmra.mxu0 %v517
    %v1518 = vpop.f32.mrf.mxu0
    %v1519 = vadd.f32 %v1499, %v1518
    %1520 = vdwg.mxu0
    %1521 = vmatpush.xpose.msra.mxu0 0.0
    %1522 = vmatpush.xpose.msra.mxu0 0.0
    %1523 = vmatpush.xpose.msra.mxu0 0.0
    %1524 = vmatpush.xpose.msra.mxu0 0.0
    %1525 = vmatpush.xpose.msra.mxu0 0.0
    %1526 = vmatpush.xpose.msra.mxu0 0.0
    %1527 = vmatpush.xpose.msra.mxu0 0.0
    %1528 = vmatpush.xpose.msra.mxu0 0.0
    %1529 = vmatpush.xpose.msra.mxu0 0.0
    %1530 = vmatpush.xpose.msra.mxu0 0.0
    %1531 = vmatpush.xpose.msra.mxu0 0.0
    %1532 = vmatpush.xpose.msra.mxu0 0.0
    %1533 = vmatpush.xpose.msra.mxu0 0.0
    %1534 = vmatpush.xpose.msra.mxu0 0.0
    %1535 = vmatpush.xpose.msra.mxu0 0.0
    %1536 = vmatpush.xpose.msra.mxu0 %v147
    %1537 = vmatmul.f32.gmra.mxu0 %v518
    %v1538 = vpop.f32.mrf.mxu0
    %v1539 = vadd.f32 %v1519, %v1538
    %1540 = vdwg.mxu0
    %1541 = vmatpush.xpose.msra.mxu0 0.0
    %1542 = vmatpush.xpose.msra.mxu0 0.0
    %1543 = vmatpush.xpose.msra.mxu0 0.0
    %1544 = vmatpush.xpose.msra.mxu0 0.0
    %1545 = vmatpush.xpose.msra.mxu0 0.0
    %1546 = vmatpush.xpose.msra.mxu0 0.0
    %1547 = vmatpush.xpose.msra.mxu0 0.0
    %1548 = vmatpush.xpose.msra.mxu0 0.0
    %1549 = vmatpush.xpose.msra.mxu0 0.0
    %1550 = vmatpush.xpose.msra.mxu0 0.0
    %1551 = vmatpush.xpose.msra.mxu0 0.0
    %1552 = vmatpush.xpose.msra.mxu0 0.0
    %1553 = vmatpush.xpose.msra.mxu0 0.0
    %1554 = vmatpush.xpose.msra.mxu0 0.0
    %1555 = vmatpush.xpose.msra.mxu0 0.0
    %1556 = vmatpush.xpose.msra.mxu0 %v148
    %1557 = vmatmul.f32.gmra.mxu0 %v519
    %v1558 = vpop.f32.mrf.mxu0
    %v1559 = vadd.f32 %v1539, %v1558
    %1560 = vdwg.mxu0
    %1561 = vmatpush.xpose.msra.mxu0 0.0
    %1562 = vmatpush.xpose.msra.mxu0 0.0
    %1563 = vmatpush.xpose.msra.mxu0 0.0
    %1564 = vmatpush.xpose.msra.mxu0 0.0
    %1565 = vmatpush.xpose.msra.mxu0 0.0
    %1566 = vmatpush.xpose.msra.mxu0 0.0
    %1567 = vmatpush.xpose.msra.mxu0 0.0
    %1568 = vmatpush.xpose.msra.mxu0 0.0
    %1569 = vmatpush.xpose.msra.mxu0 0.0
    %1570 = vmatpush.xpose.msra.mxu0 0.0
    %1571 = vmatpush.xpose.msra.mxu0 0.0
    %1572 = vmatpush.xpose.msra.mxu0 0.0
    %1573 = vmatpush.xpose.msra.mxu0 0.0
    %1574 = vmatpush.xpose.msra.mxu0 0.0
    %1575 = vmatpush.xpose.msra.mxu0 0.0
    %1576 = vmatpush.xpose.msra.mxu0 %v149
    %1577 = vmatmul.f32.gmra.mxu0 %v520
    %v1578 = vpop.f32.mrf.mxu0
    %v1579 = vadd.f32 %v1559, %v1578
    %1580 = vdwg.mxu0
    %1581 = vmatpush.xpose.msra.mxu0 0.0
    %1582 = vmatpush.xpose.msra.mxu0 0.0
    %1583 = vmatpush.xpose.msra.mxu0 0.0
    %1584 = vmatpush.xpose.msra.mxu0 0.0
    %1585 = vmatpush.xpose.msra.mxu0 0.0
    %1586 = vmatpush.xpose.msra.mxu0 0.0
    %1587 = vmatpush.xpose.msra.mxu0 0.0
    %1588 = vmatpush.xpose.msra.mxu0 0.0
    %1589 = vmatpush.xpose.msra.mxu0 0.0
    %1590 = vmatpush.xpose.msra.mxu0 0.0
    %1591 = vmatpush.xpose.msra.mxu0 0.0
    %1592 = vmatpush.xpose.msra.mxu0 0.0
    %1593 = vmatpush.xpose.msra.mxu0 0.0
    %1594 = vmatpush.xpose.msra.mxu0 0.0
    %1595 = vmatpush.xpose.msra.mxu0 0.0
    %1596 = vmatpush.xpose.msra.mxu0 %v150
    %1597 = vmatmul.f32.gmra.mxu0 %v521
    %v1598 = vpop.f32.mrf.mxu0
    %v1599 = vadd.f32 %v1579, %v1598
    %1600 = vdwg.mxu0
    %1601 = vmatpush.xpose.msra.mxu0 0.0
    %1602 = vmatpush.xpose.msra.mxu0 0.0
    %1603 = vmatpush.xpose.msra.mxu0 0.0
    %1604 = vmatpush.xpose.msra.mxu0 0.0
    %1605 = vmatpush.xpose.msra.mxu0 0.0
    %1606 = vmatpush.xpose.msra.mxu0 0.0
    %1607 = vmatpush.xpose.msra.mxu0 0.0
    %1608 = vmatpush.xpose.msra.mxu0 0.0
    %1609 = vmatpush.xpose.msra.mxu0 0.0
    %1610 = vmatpush.xpose.msra.mxu0 0.0
    %1611 = vmatpush.xpose.msra.mxu0 0.0
    %1612 = vmatpush.xpose.msra.mxu0 0.0
    %1613 = vmatpush.xpose.msra.mxu0 0.0
    %1614 = vmatpush.xpose.msra.mxu0 0.0
    %1615 = vmatpush.xpose.msra.mxu0 0.0
    %1616 = vmatpush.xpose.msra.mxu0 %v151
    %1617 = vmatmul.f32.gmra.mxu0 %v522
    %v1618 = vpop.f32.mrf.mxu0
    %v1619 = vadd.f32 %v1599, %v1618
    %1620 = vdwg.mxu0
    %1621 = vmatpush.xpose.msra.mxu0 0.0
    %1622 = vmatpush.xpose.msra.mxu0 0.0
    %1623 = vmatpush.xpose.msra.mxu0 0.0
    %1624 = vmatpush.xpose.msra.mxu0 0.0
    %1625 = vmatpush.xpose.msra.mxu0 0.0
    %1626 = vmatpush.xpose.msra.mxu0 0.0
    %1627 = vmatpush.xpose.msra.mxu0 0.0
    %1628 = vmatpush.xpose.msra.mxu0 0.0
    %1629 = vmatpush.xpose.msra.mxu0 0.0
    %1630 = vmatpush.xpose.msra.mxu0 0.0
    %1631 = vmatpush.xpose.msra.mxu0 0.0
    %1632 = vmatpush.xpose.msra.mxu0 0.0
    %1633 = vmatpush.xpose.msra.mxu0 0.0
    %1634 = vmatpush.xpose.msra.mxu0 0.0
    %1635 = vmatpush.xpose.msra.mxu0 0.0
    %1636 = vmatpush.xpose.msra.mxu0 %v152
    %1637 = vmatmul.f32.gmra.mxu0 %v525
    %v1638 = vpop.f32.mrf.mxu0
    %v1639 = vadd.f32 %v1619, %v1638
    %1640 = vdwg.mxu0
    %1641 = vmatpush.xpose.msra.mxu0 0.0
    %1642 = vmatpush.xpose.msra.mxu0 0.0
    %1643 = vmatpush.xpose.msra.mxu0 0.0
    %1644 = vmatpush.xpose.msra.mxu0 0.0
    %1645 = vmatpush.xpose.msra.mxu0 0.0
    %1646 = vmatpush.xpose.msra.mxu0 0.0
    %1647 = vmatpush.xpose.msra.mxu0 0.0
    %1648 = vmatpush.xpose.msra.mxu0 0.0
    %1649 = vmatpush.xpose.msra.mxu0 0.0
    %1650 = vmatpush.xpose.msra.mxu0 0.0
    %1651 = vmatpush.xpose.msra.mxu0 0.0
    %1652 = vmatpush.xpose.msra.mxu0 0.0
    %1653 = vmatpush.xpose.msra.mxu0 0.0
    %1654 = vmatpush.xpose.msra.mxu0 0.0
    %1655 = vmatpush.xpose.msra.mxu0 0.0
    %1656 = vmatpush.xpose.msra.mxu0 %v153
    %1657 = vmatmul.f32.gmra.mxu0 %v526
    %v1658 = vpop.f32.mrf.mxu0
    %v1659 = vadd.f32 %v1639, %v1658
    %1660 = vdwg.mxu0
    %1661 = vmatpush.xpose.msra.mxu0 0.0
    %1662 = vmatpush.xpose.msra.mxu0 0.0
    %1663 = vmatpush.xpose.msra.mxu0 0.0
    %1664 = vmatpush.xpose.msra.mxu0 0.0
    %1665 = vmatpush.xpose.msra.mxu0 0.0
    %1666 = vmatpush.xpose.msra.mxu0 0.0
    %1667 = vmatpush.xpose.msra.mxu0 0.0
    %1668 = vmatpush.xpose.msra.mxu0 0.0
    %1669 = vmatpush.xpose.msra.mxu0 0.0
    %1670 = vmatpush.xpose.msra.mxu0 0.0
    %1671 = vmatpush.xpose.msra.mxu0 0.0
    %1672 = vmatpush.xpose.msra.mxu0 0.0
    %1673 = vmatpush.xpose.msra.mxu0 0.0
    %1674 = vmatpush.xpose.msra.mxu0 0.0
    %1675 = vmatpush.xpose.msra.mxu0 0.0
    %1676 = vmatpush.xpose.msra.mxu0 %v154
    %1677 = vmatmul.f32.gmra.mxu0 %v527
    %v1678 = vpop.f32.mrf.mxu0
    %v1679 = vadd.f32 %v1659, %v1678
    %1680 = vdwg.mxu0
    %1681 = vmatpush.xpose.msra.mxu0 0.0
    %1682 = vmatpush.xpose.msra.mxu0 0.0
    %1683 = vmatpush.xpose.msra.mxu0 0.0
    %1684 = vmatpush.xpose.msra.mxu0 0.0
    %1685 = vmatpush.xpose.msra.mxu0 0.0
    %1686 = vmatpush.xpose.msra.mxu0 0.0
    %1687 = vmatpush.xpose.msra.mxu0 0.0
    %1688 = vmatpush.xpose.msra.mxu0 0.0
    %1689 = vmatpush.xpose.msra.mxu0 0.0
    %1690 = vmatpush.xpose.msra.mxu0 0.0
    %1691 = vmatpush.xpose.msra.mxu0 0.0
    %1692 = vmatpush.xpose.msra.mxu0 0.0
    %1693 = vmatpush.xpose.msra.mxu0 0.0
    %1694 = vmatpush.xpose.msra.mxu0 0.0
    %1695 = vmatpush.xpose.msra.mxu0 0.0
    %1696 = vmatpush.xpose.msra.mxu0 %v155
    %1697 = vmatmul.f32.gmra.mxu0 %v528
    %v1698 = vpop.f32.mrf.mxu0
    %v1699 = vadd.f32 %v1679, %v1698
    %1700 = vdwg.mxu0
    %1701 = vmatpush.xpose.msra.mxu0 0.0
    %1702 = vmatpush.xpose.msra.mxu0 0.0
    %1703 = vmatpush.xpose.msra.mxu0 0.0
    %1704 = vmatpush.xpose.msra.mxu0 0.0
    %1705 = vmatpush.xpose.msra.mxu0 0.0
    %1706 = vmatpush.xpose.msra.mxu0 0.0
    %1707 = vmatpush.xpose.msra.mxu0 0.0
    %1708 = vmatpush.xpose.msra.mxu0 0.0
    %1709 = vmatpush.xpose.msra.mxu0 0.0
    %1710 = vmatpush.xpose.msra.mxu0 0.0
    %1711 = vmatpush.xpose.msra.mxu0 0.0
    %1712 = vmatpush.xpose.msra.mxu0 0.0
    %1713 = vmatpush.xpose.msra.mxu0 0.0
    %1714 = vmatpush.xpose.msra.mxu0 0.0
    %1715 = vmatpush.xpose.msra.mxu0 0.0
    %1716 = vmatpush.xpose.msra.mxu0 %v156
    %1717 = vmatmul.f32.gmra.mxu0 %v529
    %v1718 = vpop.f32.mrf.mxu0
    %v1719 = vadd.f32 %v1699, %v1718
    %1720 = vdwg.mxu0
    %1721 = vmatpush.xpose.msra.mxu0 0.0
    %1722 = vmatpush.xpose.msra.mxu0 0.0
    %1723 = vmatpush.xpose.msra.mxu0 0.0
    %1724 = vmatpush.xpose.msra.mxu0 0.0
    %1725 = vmatpush.xpose.msra.mxu0 0.0
    %1726 = vmatpush.xpose.msra.mxu0 0.0
    %1727 = vmatpush.xpose.msra.mxu0 0.0
    %1728 = vmatpush.xpose.msra.mxu0 0.0
    %1729 = vmatpush.xpose.msra.mxu0 0.0
    %1730 = vmatpush.xpose.msra.mxu0 0.0
    %1731 = vmatpush.xpose.msra.mxu0 0.0
    %1732 = vmatpush.xpose.msra.mxu0 0.0
    %1733 = vmatpush.xpose.msra.mxu0 0.0
    %1734 = vmatpush.xpose.msra.mxu0 0.0
    %1735 = vmatpush.xpose.msra.mxu0 0.0
    %1736 = vmatpush.xpose.msra.mxu0 %v157
    %1737 = vmatmul.f32.gmra.mxu0 %v530
    %v1738 = vpop.f32.mrf.mxu0
    %v1739 = vadd.f32 %v1719, %v1738
    %1740 = vdwg.mxu0
    %1741 = vmatpush.xpose.msra.mxu0 0.0
    %1742 = vmatpush.xpose.msra.mxu0 0.0
    %1743 = vmatpush.xpose.msra.mxu0 0.0
    %1744 = vmatpush.xpose.msra.mxu0 0.0
    %1745 = vmatpush.xpose.msra.mxu0 0.0
    %1746 = vmatpush.xpose.msra.mxu0 0.0
    %1747 = vmatpush.xpose.msra.mxu0 0.0
    %1748 = vmatpush.xpose.msra.mxu0 0.0
    %1749 = vmatpush.xpose.msra.mxu0 0.0
    %1750 = vmatpush.xpose.msra.mxu0 0.0
    %1751 = vmatpush.xpose.msra.mxu0 0.0
    %1752 = vmatpush.xpose.msra.mxu0 0.0
    %1753 = vmatpush.xpose.msra.mxu0 0.0
    %1754 = vmatpush.xpose.msra.mxu0 0.0
    %1755 = vmatpush.xpose.msra.mxu0 0.0
    %1756 = vmatpush.xpose.msra.mxu0 %v158
    %1757 = vmatmul.f32.gmra.mxu0 %v531
    %v1758 = vpop.f32.mrf.mxu0
    %v1759 = vadd.f32 %v1739, %v1758
    %1760 = vdwg.mxu0
    %1761 = vmatpush.xpose.msra.mxu0 0.0
    %1762 = vmatpush.xpose.msra.mxu0 0.0
    %1763 = vmatpush.xpose.msra.mxu0 0.0
    %1764 = vmatpush.xpose.msra.mxu0 0.0
    %1765 = vmatpush.xpose.msra.mxu0 0.0
    %1766 = vmatpush.xpose.msra.mxu0 0.0
    %1767 = vmatpush.xpose.msra.mxu0 0.0
    %1768 = vmatpush.xpose.msra.mxu0 0.0
    %1769 = vmatpush.xpose.msra.mxu0 0.0
    %1770 = vmatpush.xpose.msra.mxu0 0.0
    %1771 = vmatpush.xpose.msra.mxu0 0.0
    %1772 = vmatpush.xpose.msra.mxu0 0.0
    %1773 = vmatpush.xpose.msra.mxu0 0.0
    %1774 = vmatpush.xpose.msra.mxu0 0.0
    %1775 = vmatpush.xpose.msra.mxu0 0.0
    %1776 = vmatpush.xpose.msra.mxu0 %v159
    %1777 = vmatmul.f32.gmra.mxu0 %v532
    %v1778 = vpop.f32.mrf.mxu0
    %v1779 = vadd.f32 %v1759, %v1778
    %1780 = vdwg.mxu0
    %1781 = vmatpush.xpose.msra.mxu0 0.0
    %1782 = vmatpush.xpose.msra.mxu0 0.0
    %1783 = vmatpush.xpose.msra.mxu0 0.0
    %1784 = vmatpush.xpose.msra.mxu0 0.0
    %1785 = vmatpush.xpose.msra.mxu0 0.0
    %1786 = vmatpush.xpose.msra.mxu0 0.0
    %1787 = vmatpush.xpose.msra.mxu0 0.0
    %1788 = vmatpush.xpose.msra.mxu0 0.0
    %1789 = vmatpush.xpose.msra.mxu0 0.0
    %1790 = vmatpush.xpose.msra.mxu0 0.0
    %1791 = vmatpush.xpose.msra.mxu0 0.0
    %1792 = vmatpush.xpose.msra.mxu0 0.0
    %1793 = vmatpush.xpose.msra.mxu0 0.0
    %1794 = vmatpush.xpose.msra.mxu0 0.0
    %1795 = vmatpush.xpose.msra.mxu0 0.0
    %1796 = vmatpush.xpose.msra.mxu0 %v160
    %1797 = vmatmul.f32.gmra.mxu0 %v535
    %v1798 = vpop.f32.mrf.mxu0
    %v1799 = vadd.f32 %v1779, %v1798
    %1800 = vdwg.mxu0
    %1801 = vmatpush.xpose.msra.mxu0 0.0
    %1802 = vmatpush.xpose.msra.mxu0 0.0
    %1803 = vmatpush.xpose.msra.mxu0 0.0
    %1804 = vmatpush.xpose.msra.mxu0 0.0
    %1805 = vmatpush.xpose.msra.mxu0 0.0
    %1806 = vmatpush.xpose.msra.mxu0 0.0
    %1807 = vmatpush.xpose.msra.mxu0 0.0
    %1808 = vmatpush.xpose.msra.mxu0 0.0
    %1809 = vmatpush.xpose.msra.mxu0 0.0
    %1810 = vmatpush.xpose.msra.mxu0 0.0
    %1811 = vmatpush.xpose.msra.mxu0 0.0
    %1812 = vmatpush.xpose.msra.mxu0 0.0
    %1813 = vmatpush.xpose.msra.mxu0 0.0
    %1814 = vmatpush.xpose.msra.mxu0 0.0
    %1815 = vmatpush.xpose.msra.mxu0 0.0
    %1816 = vmatpush.xpose.msra.mxu0 %v161
    %1817 = vmatmul.f32.gmra.mxu0 %v536
    %v1818 = vpop.f32.mrf.mxu0
    %v1819 = vadd.f32 %v1799, %v1818
    %1820 = vdwg.mxu0
    %1821 = vmatpush.xpose.msra.mxu0 0.0
    %1822 = vmatpush.xpose.msra.mxu0 0.0
    %1823 = vmatpush.xpose.msra.mxu0 0.0
    %1824 = vmatpush.xpose.msra.mxu0 0.0
    %1825 = vmatpush.xpose.msra.mxu0 0.0
    %1826 = vmatpush.xpose.msra.mxu0 0.0
    %1827 = vmatpush.xpose.msra.mxu0 0.0
    %1828 = vmatpush.xpose.msra.mxu0 0.0
    %1829 = vmatpush.xpose.msra.mxu0 0.0
    %1830 = vmatpush.xpose.msra.mxu0 0.0
    %1831 = vmatpush.xpose.msra.mxu0 0.0
    %1832 = vmatpush.xpose.msra.mxu0 0.0
    %1833 = vmatpush.xpose.msra.mxu0 0.0
    %1834 = vmatpush.xpose.msra.mxu0 0.0
    %1835 = vmatpush.xpose.msra.mxu0 0.0
    %1836 = vmatpush.xpose.msra.mxu0 %v162
    %1837 = vmatmul.f32.gmra.mxu0 %v537
    %v1838 = vpop.f32.mrf.mxu0
    %v1839 = vadd.f32 %v1819, %v1838
    %1840 = vdwg.mxu0
    %1841 = vmatpush.xpose.msra.mxu0 0.0
    %1842 = vmatpush.xpose.msra.mxu0 0.0
    %1843 = vmatpush.xpose.msra.mxu0 0.0
    %1844 = vmatpush.xpose.msra.mxu0 0.0
    %1845 = vmatpush.xpose.msra.mxu0 0.0
    %1846 = vmatpush.xpose.msra.mxu0 0.0
    %1847 = vmatpush.xpose.msra.mxu0 0.0
    %1848 = vmatpush.xpose.msra.mxu0 0.0
    %1849 = vmatpush.xpose.msra.mxu0 0.0
    %1850 = vmatpush.xpose.msra.mxu0 0.0
    %1851 = vmatpush.xpose.msra.mxu0 0.0
    %1852 = vmatpush.xpose.msra.mxu0 0.0
    %1853 = vmatpush.xpose.msra.mxu0 0.0
    %1854 = vmatpush.xpose.msra.mxu0 0.0
    %1855 = vmatpush.xpose.msra.mxu0 0.0
    %1856 = vmatpush.xpose.msra.mxu0 %v163
    %1857 = vmatmul.f32.gmra.mxu0 %v538
    %v1858 = vpop.f32.mrf.mxu0
    %v1859 = vadd.f32 %v1839, %v1858
    %1860 = vdwg.mxu0
    %1861 = vmatpush.xpose.msra.mxu0 0.0
    %1862 = vmatpush.xpose.msra.mxu0 0.0
    %1863 = vmatpush.xpose.msra.mxu0 0.0
    %1864 = vmatpush.xpose.msra.mxu0 0.0
    %1865 = vmatpush.xpose.msra.mxu0 0.0
    %1866 = vmatpush.xpose.msra.mxu0 0.0
    %1867 = vmatpush.xpose.msra.mxu0 0.0
    %1868 = vmatpush.xpose.msra.mxu0 0.0
    %1869 = vmatpush.xpose.msra.mxu0 0.0
    %1870 = vmatpush.xpose.msra.mxu0 0.0
    %1871 = vmatpush.xpose.msra.mxu0 0.0
    %1872 = vmatpush.xpose.msra.mxu0 0.0
    %1873 = vmatpush.xpose.msra.mxu0 0.0
    %1874 = vmatpush.xpose.msra.mxu0 0.0
    %1875 = vmatpush.xpose.msra.mxu0 0.0
    %1876 = vmatpush.xpose.msra.mxu0 %v164
    %1877 = vmatmul.f32.gmra.mxu0 %v539
    %v1878 = vpop.f32.mrf.mxu0
    %v1879 = vadd.f32 %v1859, %v1878
    %1880 = vdwg.mxu0
    %1881 = vmatpush.xpose.msra.mxu0 0.0
    %1882 = vmatpush.xpose.msra.mxu0 0.0
    %1883 = vmatpush.xpose.msra.mxu0 0.0
    %1884 = vmatpush.xpose.msra.mxu0 0.0
    %1885 = vmatpush.xpose.msra.mxu0 0.0
    %1886 = vmatpush.xpose.msra.mxu0 0.0
    %1887 = vmatpush.xpose.msra.mxu0 0.0
    %1888 = vmatpush.xpose.msra.mxu0 0.0
    %1889 = vmatpush.xpose.msra.mxu0 0.0
    %1890 = vmatpush.xpose.msra.mxu0 0.0
    %1891 = vmatpush.xpose.msra.mxu0 0.0
    %1892 = vmatpush.xpose.msra.mxu0 0.0
    %1893 = vmatpush.xpose.msra.mxu0 0.0
    %1894 = vmatpush.xpose.msra.mxu0 0.0
    %1895 = vmatpush.xpose.msra.mxu0 0.0
    %1896 = vmatpush.xpose.msra.mxu0 %v165
    %1897 = vmatmul.f32.gmra.mxu0 %v540
    %v1898 = vpop.f32.mrf.mxu0
    %v1899 = vadd.f32 %v1879, %v1898
    %1900 = vdwg.mxu0
    %1901 = vmatpush.xpose.msra.mxu0 0.0
    %1902 = vmatpush.xpose.msra.mxu0 0.0
    %1903 = vmatpush.xpose.msra.mxu0 0.0
    %1904 = vmatpush.xpose.msra.mxu0 0.0
    %1905 = vmatpush.xpose.msra.mxu0 0.0
    %1906 = vmatpush.xpose.msra.mxu0 0.0
    %1907 = vmatpush.xpose.msra.mxu0 0.0
    %1908 = vmatpush.xpose.msra.mxu0 0.0
    %1909 = vmatpush.xpose.msra.mxu0 0.0
    %1910 = vmatpush.xpose.msra.mxu0 0.0
    %1911 = vmatpush.xpose.msra.mxu0 0.0
    %1912 = vmatpush.xpose.msra.mxu0 0.0
    %1913 = vmatpush.xpose.msra.mxu0 0.0
    %1914 = vmatpush.xpose.msra.mxu0 0.0
    %1915 = vmatpush.xpose.msra.mxu0 0.0
    %1916 = vmatpush.xpose.msra.mxu0 %v166
    %1917 = vmatmul.f32.gmra.mxu0 %v541
    %v1918 = vpop.f32.mrf.mxu0
    %v1919 = vadd.f32 %v1899, %v1918
    %1920 = vdwg.mxu0
    %1921 = vmatpush.xpose.msra.mxu0 0.0
    %1922 = vmatpush.xpose.msra.mxu0 0.0
    %1923 = vmatpush.xpose.msra.mxu0 0.0
    %1924 = vmatpush.xpose.msra.mxu0 0.0
    %1925 = vmatpush.xpose.msra.mxu0 0.0
    %1926 = vmatpush.xpose.msra.mxu0 0.0
    %1927 = vmatpush.xpose.msra.mxu0 0.0
    %1928 = vmatpush.xpose.msra.mxu0 0.0
    %1929 = vmatpush.xpose.msra.mxu0 0.0
    %1930 = vmatpush.xpose.msra.mxu0 0.0
    %1931 = vmatpush.xpose.msra.mxu0 0.0
    %1932 = vmatpush.xpose.msra.mxu0 0.0
    %1933 = vmatpush.xpose.msra.mxu0 0.0
    %1934 = vmatpush.xpose.msra.mxu0 0.0
    %1935 = vmatpush.xpose.msra.mxu0 0.0
    %1936 = vmatpush.xpose.msra.mxu0 %v167
    %1937 = vmatmul.f32.gmra.mxu0 %v542
    %v1938 = vpop.f32.mrf.mxu0
    %v1939 = vadd.f32 %v1919, %v1938
    %1940 = vdwg.mxu0
    %1941 = vmatpush.xpose.msra.mxu0 0.0
    %1942 = vmatpush.xpose.msra.mxu0 0.0
    %1943 = vmatpush.xpose.msra.mxu0 0.0
    %1944 = vmatpush.xpose.msra.mxu0 0.0
    %1945 = vmatpush.xpose.msra.mxu0 0.0
    %1946 = vmatpush.xpose.msra.mxu0 0.0
    %1947 = vmatpush.xpose.msra.mxu0 0.0
    %1948 = vmatpush.xpose.msra.mxu0 0.0
    %1949 = vmatpush.xpose.msra.mxu0 0.0
    %1950 = vmatpush.xpose.msra.mxu0 0.0
    %1951 = vmatpush.xpose.msra.mxu0 0.0
    %1952 = vmatpush.xpose.msra.mxu0 0.0
    %1953 = vmatpush.xpose.msra.mxu0 0.0
    %1954 = vmatpush.xpose.msra.mxu0 0.0
    %1955 = vmatpush.xpose.msra.mxu0 0.0
    %1956 = vmatpush.xpose.msra.mxu0 %v168
    %1957 = vmatmul.f32.gmra.mxu0 %v545
    %v1958 = vpop.f32.mrf.mxu0
    %v1959 = vadd.f32 %v1939, %v1958
    %1960 = vdwg.mxu0
    %1961 = vmatpush.xpose.msra.mxu0 0.0
    %1962 = vmatpush.xpose.msra.mxu0 0.0
    %1963 = vmatpush.xpose.msra.mxu0 0.0
    %1964 = vmatpush.xpose.msra.mxu0 0.0
    %1965 = vmatpush.xpose.msra.mxu0 0.0
    %1966 = vmatpush.xpose.msra.mxu0 0.0
    %1967 = vmatpush.xpose.msra.mxu0 0.0
    %1968 = vmatpush.xpose.msra.mxu0 0.0
    %1969 = vmatpush.xpose.msra.mxu0 0.0
    %1970 = vmatpush.xpose.msra.mxu0 0.0
    %1971 = vmatpush.xpose.msra.mxu0 0.0
    %1972 = vmatpush.xpose.msra.mxu0 0.0
    %1973 = vmatpush.xpose.msra.mxu0 0.0
    %1974 = vmatpush.xpose.msra.mxu0 0.0
    %1975 = vmatpush.xpose.msra.mxu0 0.0
    %1976 = vmatpush.xpose.msra.mxu0 %v169
    %1977 = vmatmul.f32.gmra.mxu0 %v546
    %v1978 = vpop.f32.mrf.mxu0
    %v1979 = vadd.f32 %v1959, %v1978
    %1980 = vdwg.mxu0
    %1981 = vmatpush.xpose.msra.mxu0 0.0
    %1982 = vmatpush.xpose.msra.mxu0 0.0
    %1983 = vmatpush.xpose.msra.mxu0 0.0
    %1984 = vmatpush.xpose.msra.mxu0 0.0
    %1985 = vmatpush.xpose.msra.mxu0 0.0
    %1986 = vmatpush.xpose.msra.mxu0 0.0
    %1987 = vmatpush.xpose.msra.mxu0 0.0
    %1988 = vmatpush.xpose.msra.mxu0 0.0
    %1989 = vmatpush.xpose.msra.mxu0 0.0
    %1990 = vmatpush.xpose.msra.mxu0 0.0
    %1991 = vmatpush.xpose.msra.mxu0 0.0
    %1992 = vmatpush.xpose.msra.mxu0 0.0
    %1993 = vmatpush.xpose.msra.mxu0 0.0
    %1994 = vmatpush.xpose.msra.mxu0 0.0
    %1995 = vmatpush.xpose.msra.mxu0 0.0
    %1996 = vmatpush.xpose.msra.mxu0 %v170
    %1997 = vmatmul.f32.gmra.mxu0 %v547
    %v1998 = vpop.f32.mrf.mxu0
    %v1999 = vadd.f32 %v1979, %v1998
    %2000 = vdwg.mxu0
    %2001 = vmatpush.xpose.msra.mxu0 0.0
    %2002 = vmatpush.xpose.msra.mxu0 0.0
    %2003 = vmatpush.xpose.msra.mxu0 0.0
    %2004 = vmatpush.xpose.msra.mxu0 0.0
    %2005 = vmatpush.xpose.msra.mxu0 0.0
    %2006 = vmatpush.xpose.msra.mxu0 0.0
    %2007 = vmatpush.xpose.msra.mxu0 0.0
    %2008 = vmatpush.xpose.msra.mxu0 0.0
    %2009 = vmatpush.xpose.msra.mxu0 0.0
    %2010 = vmatpush.xpose.msra.mxu0 0.0
    %2011 = vmatpush.xpose.msra.mxu0 0.0
    %2012 = vmatpush.xpose.msra.mxu0 0.0
    %2013 = vmatpush.xpose.msra.mxu0 0.0
    %2014 = vmatpush.xpose.msra.mxu0 0.0
    %2015 = vmatpush.xpose.msra.mxu0 0.0
    %2016 = vmatpush.xpose.msra.mxu0 %v171
    %2017 = vmatmul.f32.gmra.mxu0 %v548
    %v2018 = vpop.f32.mrf.mxu0
    %v2019 = vadd.f32 %v1999, %v2018
    %2020 = vdwg.mxu0
    %2021 = vmatpush.xpose.msra.mxu0 0.0
    %2022 = vmatpush.xpose.msra.mxu0 0.0
    %2023 = vmatpush.xpose.msra.mxu0 0.0
    %2024 = vmatpush.xpose.msra.mxu0 0.0
    %2025 = vmatpush.xpose.msra.mxu0 0.0
    %2026 = vmatpush.xpose.msra.mxu0 0.0
    %2027 = vmatpush.xpose.msra.mxu0 0.0
    %2028 = vmatpush.xpose.msra.mxu0 0.0
    %2029 = vmatpush.xpose.msra.mxu0 0.0
    %2030 = vmatpush.xpose.msra.mxu0 0.0
    %2031 = vmatpush.xpose.msra.mxu0 0.0
    %2032 = vmatpush.xpose.msra.mxu0 0.0
    %2033 = vmatpush.xpose.msra.mxu0 0.0
    %2034 = vmatpush.xpose.msra.mxu0 0.0
    %2035 = vmatpush.xpose.msra.mxu0 0.0
    %2036 = vmatpush.xpose.msra.mxu0 %v172
    %2037 = vmatmul.f32.gmra.mxu0 %v549
    %v2038 = vpop.f32.mrf.mxu0
    %v2039 = vadd.f32 %v2019, %v2038
    %2040 = vdwg.mxu0
    %2041 = vmatpush.xpose.msra.mxu0 0.0
    %2042 = vmatpush.xpose.msra.mxu0 0.0
    %2043 = vmatpush.xpose.msra.mxu0 0.0
    %2044 = vmatpush.xpose.msra.mxu0 0.0
    %2045 = vmatpush.xpose.msra.mxu0 0.0
    %2046 = vmatpush.xpose.msra.mxu0 0.0
    %2047 = vmatpush.xpose.msra.mxu0 0.0
    %2048 = vmatpush.xpose.msra.mxu0 0.0
    %2049 = vmatpush.xpose.msra.mxu0 0.0
    %2050 = vmatpush.xpose.msra.mxu0 0.0
    %2051 = vmatpush.xpose.msra.mxu0 0.0
    %2052 = vmatpush.xpose.msra.mxu0 0.0
    %2053 = vmatpush.xpose.msra.mxu0 0.0
    %2054 = vmatpush.xpose.msra.mxu0 0.0
    %2055 = vmatpush.xpose.msra.mxu0 0.0
    %2056 = vmatpush.xpose.msra.mxu0 %v173
    %2057 = vmatmul.f32.gmra.mxu0 %v550
    %v2058 = vpop.f32.mrf.mxu0
    %v2059 = vadd.f32 %v2039, %v2058
    %2060 = vdwg.mxu0
    %2061 = vmatpush.xpose.msra.mxu0 0.0
    %2062 = vmatpush.xpose.msra.mxu0 0.0
    %2063 = vmatpush.xpose.msra.mxu0 0.0
    %2064 = vmatpush.xpose.msra.mxu0 0.0
    %2065 = vmatpush.xpose.msra.mxu0 0.0
    %2066 = vmatpush.xpose.msra.mxu0 0.0
    %2067 = vmatpush.xpose.msra.mxu0 0.0
    %2068 = vmatpush.xpose.msra.mxu0 0.0
    %2069 = vmatpush.xpose.msra.mxu0 0.0
    %2070 = vmatpush.xpose.msra.mxu0 0.0
    %2071 = vmatpush.xpose.msra.mxu0 0.0
    %2072 = vmatpush.xpose.msra.mxu0 0.0
    %2073 = vmatpush.xpose.msra.mxu0 0.0
    %2074 = vmatpush.xpose.msra.mxu0 0.0
    %2075 = vmatpush.xpose.msra.mxu0 0.0
    %2076 = vmatpush.xpose.msra.mxu0 %v174
    %2077 = vmatmul.f32.gmra.mxu0 %v551
    %v2078 = vpop.f32.mrf.mxu0
    %v2079 = vadd.f32 %v2059, %v2078
    %2080 = vdwg.mxu0
    %2081 = vmatpush.xpose.msra.mxu0 0.0
    %2082 = vmatpush.xpose.msra.mxu0 0.0
    %2083 = vmatpush.xpose.msra.mxu0 0.0
    %2084 = vmatpush.xpose.msra.mxu0 0.0
    %2085 = vmatpush.xpose.msra.mxu0 0.0
    %2086 = vmatpush.xpose.msra.mxu0 0.0
    %2087 = vmatpush.xpose.msra.mxu0 0.0
    %2088 = vmatpush.xpose.msra.mxu0 0.0
    %2089 = vmatpush.xpose.msra.mxu0 0.0
    %2090 = vmatpush.xpose.msra.mxu0 0.0
    %2091 = vmatpush.xpose.msra.mxu0 0.0
    %2092 = vmatpush.xpose.msra.mxu0 0.0
    %2093 = vmatpush.xpose.msra.mxu0 0.0
    %2094 = vmatpush.xpose.msra.mxu0 0.0
    %2095 = vmatpush.xpose.msra.mxu0 0.0
    %2096 = vmatpush.xpose.msra.mxu0 %v175
    %2097 = vmatmul.f32.gmra.mxu0 %v552
    %v2098 = vpop.f32.mrf.mxu0
    %v2099 = vadd.f32 %v2079, %v2098
    %2100 = vdwg.mxu0
    %2101 = vmatpush.xpose.msra.mxu0 0.0
    %2102 = vmatpush.xpose.msra.mxu0 0.0
    %2103 = vmatpush.xpose.msra.mxu0 0.0
    %2104 = vmatpush.xpose.msra.mxu0 0.0
    %2105 = vmatpush.xpose.msra.mxu0 0.0
    %2106 = vmatpush.xpose.msra.mxu0 0.0
    %2107 = vmatpush.xpose.msra.mxu0 0.0
    %2108 = vmatpush.xpose.msra.mxu0 0.0
    %2109 = vmatpush.xpose.msra.mxu0 0.0
    %2110 = vmatpush.xpose.msra.mxu0 0.0
    %2111 = vmatpush.xpose.msra.mxu0 0.0
    %2112 = vmatpush.xpose.msra.mxu0 0.0
    %2113 = vmatpush.xpose.msra.mxu0 0.0
    %2114 = vmatpush.xpose.msra.mxu0 0.0
    %2115 = vmatpush.xpose.msra.mxu0 0.0
    %2116 = vmatpush.xpose.msra.mxu0 %v176
    %2117 = vmatmul.f32.gmra.mxu0 %v555
    %v2118 = vpop.f32.mrf.mxu0
    %v2119 = vadd.f32 %v2099, %v2118
    %2120 = vdwg.mxu0
    %2121 = vmatpush.xpose.msra.mxu0 0.0
    %2122 = vmatpush.xpose.msra.mxu0 0.0
    %2123 = vmatpush.xpose.msra.mxu0 0.0
    %2124 = vmatpush.xpose.msra.mxu0 0.0
    %2125 = vmatpush.xpose.msra.mxu0 0.0
    %2126 = vmatpush.xpose.msra.mxu0 0.0
    %2127 = vmatpush.xpose.msra.mxu0 0.0
    %2128 = vmatpush.xpose.msra.mxu0 0.0
    %2129 = vmatpush.xpose.msra.mxu0 0.0
    %2130 = vmatpush.xpose.msra.mxu0 0.0
    %2131 = vmatpush.xpose.msra.mxu0 0.0
    %2132 = vmatpush.xpose.msra.mxu0 0.0
    %2133 = vmatpush.xpose.msra.mxu0 0.0
    %2134 = vmatpush.xpose.msra.mxu0 0.0
    %2135 = vmatpush.xpose.msra.mxu0 0.0
    %2136 = vmatpush.xpose.msra.mxu0 %v177
    %2137 = vmatmul.f32.gmra.mxu0 %v556
    %v2138 = vpop.f32.mrf.mxu0
    %v2139 = vadd.f32 %v2119, %v2138
    %2140 = vdwg.mxu0
    %2141 = vmatpush.xpose.msra.mxu0 0.0
    %2142 = vmatpush.xpose.msra.mxu0 0.0
    %2143 = vmatpush.xpose.msra.mxu0 0.0
    %2144 = vmatpush.xpose.msra.mxu0 0.0
    %2145 = vmatpush.xpose.msra.mxu0 0.0
    %2146 = vmatpush.xpose.msra.mxu0 0.0
    %2147 = vmatpush.xpose.msra.mxu0 0.0
    %2148 = vmatpush.xpose.msra.mxu0 0.0
    %2149 = vmatpush.xpose.msra.mxu0 0.0
    %2150 = vmatpush.xpose.msra.mxu0 0.0
    %2151 = vmatpush.xpose.msra.mxu0 0.0
    %2152 = vmatpush.xpose.msra.mxu0 0.0
    %2153 = vmatpush.xpose.msra.mxu0 0.0
    %2154 = vmatpush.xpose.msra.mxu0 0.0
    %2155 = vmatpush.xpose.msra.mxu0 0.0
    %2156 = vmatpush.xpose.msra.mxu0 %v178
    %2157 = vmatmul.f32.gmra.mxu0 %v557
    %v2158 = vpop.f32.mrf.mxu0
    %v2159 = vadd.f32 %v2139, %v2158
    %2160 = vdwg.mxu0
    %2161 = vmatpush.xpose.msra.mxu0 0.0
    %2162 = vmatpush.xpose.msra.mxu0 0.0
    %2163 = vmatpush.xpose.msra.mxu0 0.0
    %2164 = vmatpush.xpose.msra.mxu0 0.0
    %2165 = vmatpush.xpose.msra.mxu0 0.0
    %2166 = vmatpush.xpose.msra.mxu0 0.0
    %2167 = vmatpush.xpose.msra.mxu0 0.0
    %2168 = vmatpush.xpose.msra.mxu0 0.0
    %2169 = vmatpush.xpose.msra.mxu0 0.0
    %2170 = vmatpush.xpose.msra.mxu0 0.0
    %2171 = vmatpush.xpose.msra.mxu0 0.0
    %2172 = vmatpush.xpose.msra.mxu0 0.0
    %2173 = vmatpush.xpose.msra.mxu0 0.0
    %2174 = vmatpush.xpose.msra.mxu0 0.0
    %2175 = vmatpush.xpose.msra.mxu0 0.0
    %2176 = vmatpush.xpose.msra.mxu0 %v179
    %2177 = vmatmul.f32.gmra.mxu0 %v558
    %v2178 = vpop.f32.mrf.mxu0
    %v2179 = vadd.f32 %v2159, %v2178
    %2180 = vdwg.mxu0
    %2181 = vmatpush.xpose.msra.mxu0 0.0
    %2182 = vmatpush.xpose.msra.mxu0 0.0
    %2183 = vmatpush.xpose.msra.mxu0 0.0
    %2184 = vmatpush.xpose.msra.mxu0 0.0
    %2185 = vmatpush.xpose.msra.mxu0 0.0
    %2186 = vmatpush.xpose.msra.mxu0 0.0
    %2187 = vmatpush.xpose.msra.mxu0 0.0
    %2188 = vmatpush.xpose.msra.mxu0 0.0
    %2189 = vmatpush.xpose.msra.mxu0 0.0
    %2190 = vmatpush.xpose.msra.mxu0 0.0
    %2191 = vmatpush.xpose.msra.mxu0 0.0
    %2192 = vmatpush.xpose.msra.mxu0 0.0
    %2193 = vmatpush.xpose.msra.mxu0 0.0
    %2194 = vmatpush.xpose.msra.mxu0 0.0
    %2195 = vmatpush.xpose.msra.mxu0 0.0
    %2196 = vmatpush.xpose.msra.mxu0 %v180
    %2197 = vmatmul.f32.gmra.mxu0 %v559
    %v2198 = vpop.f32.mrf.mxu0
    %v2199 = vadd.f32 %v2179, %v2198
    %2200 = vdwg.mxu0
    %2201 = vmatpush.xpose.msra.mxu0 0.0
    %2202 = vmatpush.xpose.msra.mxu0 0.0
    %2203 = vmatpush.xpose.msra.mxu0 0.0
    %2204 = vmatpush.xpose.msra.mxu0 0.0
    %2205 = vmatpush.xpose.msra.mxu0 0.0
    %2206 = vmatpush.xpose.msra.mxu0 0.0
    %2207 = vmatpush.xpose.msra.mxu0 0.0
    %2208 = vmatpush.xpose.msra.mxu0 0.0
    %2209 = vmatpush.xpose.msra.mxu0 0.0
    %2210 = vmatpush.xpose.msra.mxu0 0.0
    %2211 = vmatpush.xpose.msra.mxu0 0.0
    %2212 = vmatpush.xpose.msra.mxu0 0.0
    %2213 = vmatpush.xpose.msra.mxu0 0.0
    %2214 = vmatpush.xpose.msra.mxu0 0.0
    %2215 = vmatpush.xpose.msra.mxu0 0.0
    %2216 = vmatpush.xpose.msra.mxu0 %v181
    %2217 = vmatmul.f32.gmra.mxu0 %v560
    %v2218 = vpop.f32.mrf.mxu0
    %v2219 = vadd.f32 %v2199, %v2218
    %2220 = vdwg.mxu0
    %2221 = vmatpush.xpose.msra.mxu0 0.0
    %2222 = vmatpush.xpose.msra.mxu0 0.0
    %2223 = vmatpush.xpose.msra.mxu0 0.0
    %2224 = vmatpush.xpose.msra.mxu0 0.0
    %2225 = vmatpush.xpose.msra.mxu0 0.0
    %2226 = vmatpush.xpose.msra.mxu0 0.0
    %2227 = vmatpush.xpose.msra.mxu0 0.0
    %2228 = vmatpush.xpose.msra.mxu0 0.0
    %2229 = vmatpush.xpose.msra.mxu0 0.0
    %2230 = vmatpush.xpose.msra.mxu0 0.0
    %2231 = vmatpush.xpose.msra.mxu0 0.0
    %2232 = vmatpush.xpose.msra.mxu0 0.0
    %2233 = vmatpush.xpose.msra.mxu0 0.0
    %2234 = vmatpush.xpose.msra.mxu0 0.0
    %2235 = vmatpush.xpose.msra.mxu0 0.0
    %2236 = vmatpush.xpose.msra.mxu0 %v182
    %2237 = vmatmul.f32.gmra.mxu0 %v561
    %v2238 = vpop.f32.mrf.mxu0
    %v2239 = vadd.f32 %v2219, %v2238
    %2240 = vdwg.mxu0
    %2241 = vmatpush.xpose.msra.mxu0 0.0
    %2242 = vmatpush.xpose.msra.mxu0 0.0
    %2243 = vmatpush.xpose.msra.mxu0 0.0
    %2244 = vmatpush.xpose.msra.mxu0 0.0
    %2245 = vmatpush.xpose.msra.mxu0 0.0
    %2246 = vmatpush.xpose.msra.mxu0 0.0
    %2247 = vmatpush.xpose.msra.mxu0 0.0
    %2248 = vmatpush.xpose.msra.mxu0 0.0
    %2249 = vmatpush.xpose.msra.mxu0 0.0
    %2250 = vmatpush.xpose.msra.mxu0 0.0
    %2251 = vmatpush.xpose.msra.mxu0 0.0
    %2252 = vmatpush.xpose.msra.mxu0 0.0
    %2253 = vmatpush.xpose.msra.mxu0 0.0
    %2254 = vmatpush.xpose.msra.mxu0 0.0
    %2255 = vmatpush.xpose.msra.mxu0 0.0
    %2256 = vmatpush.xpose.msra.mxu0 %v183
    %2257 = vmatmul.f32.gmra.mxu0 %v562
    %v2258 = vpop.f32.mrf.mxu0
    %v2259 = vadd.f32 %v2239, %v2258
    %2260 = vdwg.mxu0
    %2261 = vmatpush.xpose.msra.mxu0 0.0
    %2262 = vmatpush.xpose.msra.mxu0 0.0
    %2263 = vmatpush.xpose.msra.mxu0 0.0
    %2264 = vmatpush.xpose.msra.mxu0 0.0
    %2265 = vmatpush.xpose.msra.mxu0 0.0
    %2266 = vmatpush.xpose.msra.mxu0 0.0
    %2267 = vmatpush.xpose.msra.mxu0 0.0
    %2268 = vmatpush.xpose.msra.mxu0 0.0
    %2269 = vmatpush.xpose.msra.mxu0 0.0
    %2270 = vmatpush.xpose.msra.mxu0 0.0
    %2271 = vmatpush.xpose.msra.mxu0 0.0
    %2272 = vmatpush.xpose.msra.mxu0 0.0
    %2273 = vmatpush.xpose.msra.mxu0 0.0
    %2274 = vmatpush.xpose.msra.mxu0 0.0
    %2275 = vmatpush.xpose.msra.mxu0 0.0
    %2276 = vmatpush.xpose.msra.mxu0 %v184
    %2277 = vmatmul.f32.gmra.mxu0 %v565
    %v2278 = vpop.f32.mrf.mxu0
    %v2279 = vadd.f32 %v2259, %v2278
    %2280 = vdwg.mxu0
    %2281 = vmatpush.xpose.msra.mxu0 0.0
    %2282 = vmatpush.xpose.msra.mxu0 0.0
    %2283 = vmatpush.xpose.msra.mxu0 0.0
    %2284 = vmatpush.xpose.msra.mxu0 0.0
    %2285 = vmatpush.xpose.msra.mxu0 0.0
    %2286 = vmatpush.xpose.msra.mxu0 0.0
    %2287 = vmatpush.xpose.msra.mxu0 0.0
    %2288 = vmatpush.xpose.msra.mxu0 0.0
    %2289 = vmatpush.xpose.msra.mxu0 0.0
    %2290 = vmatpush.xpose.msra.mxu0 0.0
    %2291 = vmatpush.xpose.msra.mxu0 0.0
    %2292 = vmatpush.xpose.msra.mxu0 0.0
    %2293 = vmatpush.xpose.msra.mxu0 0.0
    %2294 = vmatpush.xpose.msra.mxu0 0.0
    %2295 = vmatpush.xpose.msra.mxu0 0.0
    %2296 = vmatpush.xpose.msra.mxu0 %v185
    %2297 = vmatmul.f32.gmra.mxu0 %v566
    %v2298 = vpop.f32.mrf.mxu0
    %v2299 = vadd.f32 %v2279, %v2298
    %2300 = vdwg.mxu0
    %2301 = vmatpush.xpose.msra.mxu0 0.0
    %2302 = vmatpush.xpose.msra.mxu0 0.0
    %2303 = vmatpush.xpose.msra.mxu0 0.0
    %2304 = vmatpush.xpose.msra.mxu0 0.0
    %2305 = vmatpush.xpose.msra.mxu0 0.0
    %2306 = vmatpush.xpose.msra.mxu0 0.0
    %2307 = vmatpush.xpose.msra.mxu0 0.0
    %2308 = vmatpush.xpose.msra.mxu0 0.0
    %2309 = vmatpush.xpose.msra.mxu0 0.0
    %2310 = vmatpush.xpose.msra.mxu0 0.0
    %2311 = vmatpush.xpose.msra.mxu0 0.0
    %2312 = vmatpush.xpose.msra.mxu0 0.0
    %2313 = vmatpush.xpose.msra.mxu0 0.0
    %2314 = vmatpush.xpose.msra.mxu0 0.0
    %2315 = vmatpush.xpose.msra.mxu0 0.0
    %2316 = vmatpush.xpose.msra.mxu0 %v186
    %2317 = vmatmul.f32.gmra.mxu0 %v567
    %v2318 = vpop.f32.mrf.mxu0
    %v2319 = vadd.f32 %v2299, %v2318
    %2320 = vdwg.mxu0
    %2321 = vmatpush.xpose.msra.mxu0 0.0
    %2322 = vmatpush.xpose.msra.mxu0 0.0
    %2323 = vmatpush.xpose.msra.mxu0 0.0
    %2324 = vmatpush.xpose.msra.mxu0 0.0
    %2325 = vmatpush.xpose.msra.mxu0 0.0
    %2326 = vmatpush.xpose.msra.mxu0 0.0
    %2327 = vmatpush.xpose.msra.mxu0 0.0
    %2328 = vmatpush.xpose.msra.mxu0 0.0
    %2329 = vmatpush.xpose.msra.mxu0 0.0
    %2330 = vmatpush.xpose.msra.mxu0 0.0
    %2331 = vmatpush.xpose.msra.mxu0 0.0
    %2332 = vmatpush.xpose.msra.mxu0 0.0
    %2333 = vmatpush.xpose.msra.mxu0 0.0
    %2334 = vmatpush.xpose.msra.mxu0 0.0
    %2335 = vmatpush.xpose.msra.mxu0 0.0
    %2336 = vmatpush.xpose.msra.mxu0 %v187
    %2337 = vmatmul.f32.gmra.mxu0 %v568
    %v2338 = vpop.f32.mrf.mxu0
    %v2339 = vadd.f32 %v2319, %v2338
    %2340 = vdwg.mxu0
    %2341 = vmatpush.xpose.msra.mxu0 0.0
    %2342 = vmatpush.xpose.msra.mxu0 0.0
    %2343 = vmatpush.xpose.msra.mxu0 0.0
    %2344 = vmatpush.xpose.msra.mxu0 0.0
    %2345 = vmatpush.xpose.msra.mxu0 0.0
    %2346 = vmatpush.xpose.msra.mxu0 0.0
    %2347 = vmatpush.xpose.msra.mxu0 0.0
    %2348 = vmatpush.xpose.msra.mxu0 0.0
    %2349 = vmatpush.xpose.msra.mxu0 0.0
    %2350 = vmatpush.xpose.msra.mxu0 0.0
    %2351 = vmatpush.xpose.msra.mxu0 0.0
    %2352 = vmatpush.xpose.msra.mxu0 0.0
    %2353 = vmatpush.xpose.msra.mxu0 0.0
    %2354 = vmatpush.xpose.msra.mxu0 0.0
    %2355 = vmatpush.xpose.msra.mxu0 0.0
    %2356 = vmatpush.xpose.msra.mxu0 %v188
    %2357 = vmatmul.f32.gmra.mxu0 %v569
    %v2358 = vpop.f32.mrf.mxu0
    %v2359 = vadd.f32 %v2339, %v2358
    %2360 = vdwg.mxu0
    %2361 = vmatpush.xpose.msra.mxu0 0.0
    %2362 = vmatpush.xpose.msra.mxu0 0.0
    %2363 = vmatpush.xpose.msra.mxu0 0.0
    %2364 = vmatpush.xpose.msra.mxu0 0.0
    %2365 = vmatpush.xpose.msra.mxu0 0.0
    %2366 = vmatpush.xpose.msra.mxu0 0.0
    %2367 = vmatpush.xpose.msra.mxu0 0.0
    %2368 = vmatpush.xpose.msra.mxu0 0.0
    %2369 = vmatpush.xpose.msra.mxu0 0.0
    %2370 = vmatpush.xpose.msra.mxu0 0.0
    %2371 = vmatpush.xpose.msra.mxu0 0.0
    %2372 = vmatpush.xpose.msra.mxu0 0.0
    %2373 = vmatpush.xpose.msra.mxu0 0.0
    %2374 = vmatpush.xpose.msra.mxu0 0.0
    %2375 = vmatpush.xpose.msra.mxu0 0.0
    %2376 = vmatpush.xpose.msra.mxu0 %v189
    %2377 = vmatmul.f32.gmra.mxu0 %v570
    %v2378 = vpop.f32.mrf.mxu0
    %v2379 = vadd.f32 %v2359, %v2378
    %2380 = vdwg.mxu0
    %2381 = vmatpush.xpose.msra.mxu0 0.0
    %2382 = vmatpush.xpose.msra.mxu0 0.0
    %2383 = vmatpush.xpose.msra.mxu0 0.0
    %2384 = vmatpush.xpose.msra.mxu0 0.0
    %2385 = vmatpush.xpose.msra.mxu0 0.0
    %2386 = vmatpush.xpose.msra.mxu0 0.0
    %2387 = vmatpush.xpose.msra.mxu0 0.0
    %2388 = vmatpush.xpose.msra.mxu0 0.0
    %2389 = vmatpush.xpose.msra.mxu0 0.0
    %2390 = vmatpush.xpose.msra.mxu0 0.0
    %2391 = vmatpush.xpose.msra.mxu0 0.0
    %2392 = vmatpush.xpose.msra.mxu0 0.0
    %2393 = vmatpush.xpose.msra.mxu0 0.0
    %2394 = vmatpush.xpose.msra.mxu0 0.0
    %2395 = vmatpush.xpose.msra.mxu0 0.0
    %2396 = vmatpush.xpose.msra.mxu0 %v190
    %2397 = vmatmul.f32.gmra.mxu0 %v571
    %v2398 = vpop.f32.mrf.mxu0
    %v2399 = vadd.f32 %v2379, %v2398
    %2400 = vdwg.mxu0
    %2401 = vmatpush.xpose.msra.mxu0 0.0
    %2402 = vmatpush.xpose.msra.mxu0 0.0
    %2403 = vmatpush.xpose.msra.mxu0 0.0
    %2404 = vmatpush.xpose.msra.mxu0 0.0
    %2405 = vmatpush.xpose.msra.mxu0 0.0
    %2406 = vmatpush.xpose.msra.mxu0 0.0
    %2407 = vmatpush.xpose.msra.mxu0 0.0
    %2408 = vmatpush.xpose.msra.mxu0 0.0
    %2409 = vmatpush.xpose.msra.mxu0 0.0
    %2410 = vmatpush.xpose.msra.mxu0 0.0
    %2411 = vmatpush.xpose.msra.mxu0 0.0
    %2412 = vmatpush.xpose.msra.mxu0 0.0
    %2413 = vmatpush.xpose.msra.mxu0 0.0
    %2414 = vmatpush.xpose.msra.mxu0 0.0
    %2415 = vmatpush.xpose.msra.mxu0 0.0
    %2416 = vmatpush.xpose.msra.mxu0 %v191
    %2417 = vmatmul.f32.gmra.mxu0 %v572
    %v2418 = vpop.f32.mrf.mxu0
    %v2419 = vadd.f32 %v2399, %v2418
    %2420 = vdwg.mxu0
    %2421 = vmatpush.xpose.msra.mxu0 0.0
    %2422 = vmatpush.xpose.msra.mxu0 0.0
    %2423 = vmatpush.xpose.msra.mxu0 0.0
    %2424 = vmatpush.xpose.msra.mxu0 0.0
    %2425 = vmatpush.xpose.msra.mxu0 0.0
    %2426 = vmatpush.xpose.msra.mxu0 0.0
    %2427 = vmatpush.xpose.msra.mxu0 0.0
    %2428 = vmatpush.xpose.msra.mxu0 0.0
    %2429 = vmatpush.xpose.msra.mxu0 0.0
    %2430 = vmatpush.xpose.msra.mxu0 0.0
    %2431 = vmatpush.xpose.msra.mxu0 0.0
    %2432 = vmatpush.xpose.msra.mxu0 0.0
    %2433 = vmatpush.xpose.msra.mxu0 0.0
    %2434 = vmatpush.xpose.msra.mxu0 0.0
    %2435 = vmatpush.xpose.msra.mxu0 0.0
    %2436 = vmatpush.xpose.msra.mxu0 %v192
    %2437 = vmatmul.f32.gmra.mxu0 %v575
    %v2438 = vpop.f32.mrf.mxu0
    %v2439 = vadd.f32 %v2419, %v2438
    %2440 = vdwg.mxu0
    %2441 = vmatpush.xpose.msra.mxu0 0.0
    %2442 = vmatpush.xpose.msra.mxu0 0.0
    %2443 = vmatpush.xpose.msra.mxu0 0.0
    %2444 = vmatpush.xpose.msra.mxu0 0.0
    %2445 = vmatpush.xpose.msra.mxu0 0.0
    %2446 = vmatpush.xpose.msra.mxu0 0.0
    %2447 = vmatpush.xpose.msra.mxu0 0.0
    %2448 = vmatpush.xpose.msra.mxu0 0.0
    %2449 = vmatpush.xpose.msra.mxu0 0.0
    %2450 = vmatpush.xpose.msra.mxu0 0.0
    %2451 = vmatpush.xpose.msra.mxu0 0.0
    %2452 = vmatpush.xpose.msra.mxu0 0.0
    %2453 = vmatpush.xpose.msra.mxu0 0.0
    %2454 = vmatpush.xpose.msra.mxu0 0.0
    %2455 = vmatpush.xpose.msra.mxu0 0.0
    %2456 = vmatpush.xpose.msra.mxu0 %v193
    %2457 = vmatmul.f32.gmra.mxu0 %v576
    %v2458 = vpop.f32.mrf.mxu0
    %v2459 = vadd.f32 %v2439, %v2458
    %2460 = vdwg.mxu0
    %2461 = vmatpush.xpose.msra.mxu0 0.0
    %2462 = vmatpush.xpose.msra.mxu0 0.0
    %2463 = vmatpush.xpose.msra.mxu0 0.0
    %2464 = vmatpush.xpose.msra.mxu0 0.0
    %2465 = vmatpush.xpose.msra.mxu0 0.0
    %2466 = vmatpush.xpose.msra.mxu0 0.0
    %2467 = vmatpush.xpose.msra.mxu0 0.0
    %2468 = vmatpush.xpose.msra.mxu0 0.0
    %2469 = vmatpush.xpose.msra.mxu0 0.0
    %2470 = vmatpush.xpose.msra.mxu0 0.0
    %2471 = vmatpush.xpose.msra.mxu0 0.0
    %2472 = vmatpush.xpose.msra.mxu0 0.0
    %2473 = vmatpush.xpose.msra.mxu0 0.0
    %2474 = vmatpush.xpose.msra.mxu0 0.0
    %2475 = vmatpush.xpose.msra.mxu0 0.0
    %2476 = vmatpush.xpose.msra.mxu0 %v194
    %2477 = vmatmul.f32.gmra.mxu0 %v577
    %v2478 = vpop.f32.mrf.mxu0
    %v2479 = vadd.f32 %v2459, %v2478
    %2480 = vdwg.mxu0
    %2481 = vmatpush.xpose.msra.mxu0 0.0
    %2482 = vmatpush.xpose.msra.mxu0 0.0
    %2483 = vmatpush.xpose.msra.mxu0 0.0
    %2484 = vmatpush.xpose.msra.mxu0 0.0
    %2485 = vmatpush.xpose.msra.mxu0 0.0
    %2486 = vmatpush.xpose.msra.mxu0 0.0
    %2487 = vmatpush.xpose.msra.mxu0 0.0
    %2488 = vmatpush.xpose.msra.mxu0 0.0
    %2489 = vmatpush.xpose.msra.mxu0 0.0
    %2490 = vmatpush.xpose.msra.mxu0 0.0
    %2491 = vmatpush.xpose.msra.mxu0 0.0
    %2492 = vmatpush.xpose.msra.mxu0 0.0
    %2493 = vmatpush.xpose.msra.mxu0 0.0
    %2494 = vmatpush.xpose.msra.mxu0 0.0
    %2495 = vmatpush.xpose.msra.mxu0 0.0
    %2496 = vmatpush.xpose.msra.mxu0 %v195
    %2497 = vmatmul.f32.gmra.mxu0 %v578
    %v2498 = vpop.f32.mrf.mxu0
    %v2499 = vadd.f32 %v2479, %v2498
    %2500 = vdwg.mxu0
    %2501 = vmatpush.xpose.msra.mxu0 0.0
    %2502 = vmatpush.xpose.msra.mxu0 0.0
    %2503 = vmatpush.xpose.msra.mxu0 0.0
    %2504 = vmatpush.xpose.msra.mxu0 0.0
    %2505 = vmatpush.xpose.msra.mxu0 0.0
    %2506 = vmatpush.xpose.msra.mxu0 0.0
    %2507 = vmatpush.xpose.msra.mxu0 0.0
    %2508 = vmatpush.xpose.msra.mxu0 0.0
    %2509 = vmatpush.xpose.msra.mxu0 0.0
    %2510 = vmatpush.xpose.msra.mxu0 0.0
    %2511 = vmatpush.xpose.msra.mxu0 0.0
    %2512 = vmatpush.xpose.msra.mxu0 0.0
    %2513 = vmatpush.xpose.msra.mxu0 0.0
    %2514 = vmatpush.xpose.msra.mxu0 0.0
    %2515 = vmatpush.xpose.msra.mxu0 0.0
    %2516 = vmatpush.xpose.msra.mxu0 %v196
    %2517 = vmatmul.f32.gmra.mxu0 %v579
    %v2518 = vpop.f32.mrf.mxu0
    %v2519 = vadd.f32 %v2499, %v2518
    %2520 = vdwg.mxu0
    %2521 = vmatpush.xpose.msra.mxu0 0.0
    %2522 = vmatpush.xpose.msra.mxu0 0.0
    %2523 = vmatpush.xpose.msra.mxu0 0.0
    %2524 = vmatpush.xpose.msra.mxu0 0.0
    %2525 = vmatpush.xpose.msra.mxu0 0.0
    %2526 = vmatpush.xpose.msra.mxu0 0.0
    %2527 = vmatpush.xpose.msra.mxu0 0.0
    %2528 = vmatpush.xpose.msra.mxu0 0.0
    %2529 = vmatpush.xpose.msra.mxu0 0.0
    %2530 = vmatpush.xpose.msra.mxu0 0.0
    %2531 = vmatpush.xpose.msra.mxu0 0.0
    %2532 = vmatpush.xpose.msra.mxu0 0.0
    %2533 = vmatpush.xpose.msra.mxu0 0.0
    %2534 = vmatpush.xpose.msra.mxu0 0.0
    %2535 = vmatpush.xpose.msra.mxu0 0.0
    %2536 = vmatpush.xpose.msra.mxu0 %v197
    %2537 = vmatmul.f32.gmra.mxu0 %v580
    %v2538 = vpop.f32.mrf.mxu0
    %v2539 = vadd.f32 %v2519, %v2538
    %2540 = vdwg.mxu0
    %2541 = vmatpush.xpose.msra.mxu0 0.0
    %2542 = vmatpush.xpose.msra.mxu0 0.0
    %2543 = vmatpush.xpose.msra.mxu0 0.0
    %2544 = vmatpush.xpose.msra.mxu0 0.0
    %2545 = vmatpush.xpose.msra.mxu0 0.0
    %2546 = vmatpush.xpose.msra.mxu0 0.0
    %2547 = vmatpush.xpose.msra.mxu0 0.0
    %2548 = vmatpush.xpose.msra.mxu0 0.0
    %2549 = vmatpush.xpose.msra.mxu0 0.0
    %2550 = vmatpush.xpose.msra.mxu0 0.0
    %2551 = vmatpush.xpose.msra.mxu0 0.0
    %2552 = vmatpush.xpose.msra.mxu0 0.0
    %2553 = vmatpush.xpose.msra.mxu0 0.0
    %2554 = vmatpush.xpose.msra.mxu0 0.0
    %2555 = vmatpush.xpose.msra.mxu0 0.0
    %2556 = vmatpush.xpose.msra.mxu0 %v198
    %2557 = vmatmul.f32.gmra.mxu0 %v581
    %v2558 = vpop.f32.mrf.mxu0
    %v2559 = vadd.f32 %v2539, %v2558
    %2560 = vdwg.mxu0
    %2561 = vmatpush.xpose.msra.mxu0 0.0
    %2562 = vmatpush.xpose.msra.mxu0 0.0
    %2563 = vmatpush.xpose.msra.mxu0 0.0
    %2564 = vmatpush.xpose.msra.mxu0 0.0
    %2565 = vmatpush.xpose.msra.mxu0 0.0
    %2566 = vmatpush.xpose.msra.mxu0 0.0
    %2567 = vmatpush.xpose.msra.mxu0 0.0
    %2568 = vmatpush.xpose.msra.mxu0 0.0
    %2569 = vmatpush.xpose.msra.mxu0 0.0
    %2570 = vmatpush.xpose.msra.mxu0 0.0
    %2571 = vmatpush.xpose.msra.mxu0 0.0
    %2572 = vmatpush.xpose.msra.mxu0 0.0
    %2573 = vmatpush.xpose.msra.mxu0 0.0
    %2574 = vmatpush.xpose.msra.mxu0 0.0
    %2575 = vmatpush.xpose.msra.mxu0 0.0
    %2576 = vmatpush.xpose.msra.mxu0 %v199
    %2577 = vmatmul.f32.gmra.mxu0 %v582
    %v2578 = vpop.f32.mrf.mxu0
    %v2579 = vadd.f32 %v2559, %v2578
    %2580 = vdwg.mxu0
    %2581 = vmatpush.xpose.msra.mxu0 0.0
    %2582 = vmatpush.xpose.msra.mxu0 0.0
    %2583 = vmatpush.xpose.msra.mxu0 0.0
    %2584 = vmatpush.xpose.msra.mxu0 0.0
    %2585 = vmatpush.xpose.msra.mxu0 0.0
    %2586 = vmatpush.xpose.msra.mxu0 0.0
    %2587 = vmatpush.xpose.msra.mxu0 0.0
    %2588 = vmatpush.xpose.msra.mxu0 0.0
    %2589 = vmatpush.xpose.msra.mxu0 0.0
    %2590 = vmatpush.xpose.msra.mxu0 0.0
    %2591 = vmatpush.xpose.msra.mxu0 0.0
    %2592 = vmatpush.xpose.msra.mxu0 0.0
    %2593 = vmatpush.xpose.msra.mxu0 0.0
    %2594 = vmatpush.xpose.msra.mxu0 0.0
    %2595 = vmatpush.xpose.msra.mxu0 0.0
    %2596 = vmatpush.xpose.msra.mxu0 %v200
    %2597 = vmatmul.f32.gmra.mxu0 %v585
    %v2598 = vpop.f32.mrf.mxu0
    %v2599 = vadd.f32 %v2579, %v2598
    %2600 = vdwg.mxu0
    %2601 = vmatpush.xpose.msra.mxu0 0.0
    %2602 = vmatpush.xpose.msra.mxu0 0.0
    %2603 = vmatpush.xpose.msra.mxu0 0.0
    %2604 = vmatpush.xpose.msra.mxu0 0.0
    %2605 = vmatpush.xpose.msra.mxu0 0.0
    %2606 = vmatpush.xpose.msra.mxu0 0.0
    %2607 = vmatpush.xpose.msra.mxu0 0.0
    %2608 = vmatpush.xpose.msra.mxu0 0.0
    %2609 = vmatpush.xpose.msra.mxu0 0.0
    %2610 = vmatpush.xpose.msra.mxu0 0.0
    %2611 = vmatpush.xpose.msra.mxu0 0.0
    %2612 = vmatpush.xpose.msra.mxu0 0.0
    %2613 = vmatpush.xpose.msra.mxu0 0.0
    %2614 = vmatpush.xpose.msra.mxu0 0.0
    %2615 = vmatpush.xpose.msra.mxu0 0.0
    %2616 = vmatpush.xpose.msra.mxu0 %v201
    %2617 = vmatmul.f32.gmra.mxu0 %v586
    %v2618 = vpop.f32.mrf.mxu0
    %v2619 = vadd.f32 %v2599, %v2618
    %2620 = vdwg.mxu0
    %2621 = vmatpush.xpose.msra.mxu0 0.0
    %2622 = vmatpush.xpose.msra.mxu0 0.0
    %2623 = vmatpush.xpose.msra.mxu0 0.0
    %2624 = vmatpush.xpose.msra.mxu0 0.0
    %2625 = vmatpush.xpose.msra.mxu0 0.0
    %2626 = vmatpush.xpose.msra.mxu0 0.0
    %2627 = vmatpush.xpose.msra.mxu0 0.0
    %2628 = vmatpush.xpose.msra.mxu0 0.0
    %2629 = vmatpush.xpose.msra.mxu0 0.0
    %2630 = vmatpush.xpose.msra.mxu0 0.0
    %2631 = vmatpush.xpose.msra.mxu0 0.0
    %2632 = vmatpush.xpose.msra.mxu0 0.0
    %2633 = vmatpush.xpose.msra.mxu0 0.0
    %2634 = vmatpush.xpose.msra.mxu0 0.0
    %2635 = vmatpush.xpose.msra.mxu0 0.0
    %2636 = vmatpush.xpose.msra.mxu0 %v202
    %2637 = vmatmul.f32.gmra.mxu0 %v587
    %v2638 = vpop.f32.mrf.mxu0
    %v2639 = vadd.f32 %v2619, %v2638
    %2640 = vdwg.mxu0
    %2641 = vmatpush.xpose.msra.mxu0 0.0
    %2642 = vmatpush.xpose.msra.mxu0 0.0
    %2643 = vmatpush.xpose.msra.mxu0 0.0
    %2644 = vmatpush.xpose.msra.mxu0 0.0
    %2645 = vmatpush.xpose.msra.mxu0 0.0
    %2646 = vmatpush.xpose.msra.mxu0 0.0
    %2647 = vmatpush.xpose.msra.mxu0 0.0
    %2648 = vmatpush.xpose.msra.mxu0 0.0
    %2649 = vmatpush.xpose.msra.mxu0 0.0
    %2650 = vmatpush.xpose.msra.mxu0 0.0
    %2651 = vmatpush.xpose.msra.mxu0 0.0
    %2652 = vmatpush.xpose.msra.mxu0 0.0
    %2653 = vmatpush.xpose.msra.mxu0 0.0
    %2654 = vmatpush.xpose.msra.mxu0 0.0
    %2655 = vmatpush.xpose.msra.mxu0 0.0
    %2656 = vmatpush.xpose.msra.mxu0 %v203
    %2657 = vmatmul.f32.gmra.mxu0 %v588
    %v2658 = vpop.f32.mrf.mxu0
    %v2659 = vadd.f32 %v2639, %v2658
    %2660 = vdwg.mxu0
    %2661 = vmatpush.xpose.msra.mxu0 0.0
    %2662 = vmatpush.xpose.msra.mxu0 0.0
    %2663 = vmatpush.xpose.msra.mxu0 0.0
    %2664 = vmatpush.xpose.msra.mxu0 0.0
    %2665 = vmatpush.xpose.msra.mxu0 0.0
    %2666 = vmatpush.xpose.msra.mxu0 0.0
    %2667 = vmatpush.xpose.msra.mxu0 0.0
    %2668 = vmatpush.xpose.msra.mxu0 0.0
    %2669 = vmatpush.xpose.msra.mxu0 0.0
    %2670 = vmatpush.xpose.msra.mxu0 0.0
    %2671 = vmatpush.xpose.msra.mxu0 0.0
    %2672 = vmatpush.xpose.msra.mxu0 0.0
    %2673 = vmatpush.xpose.msra.mxu0 0.0
    %2674 = vmatpush.xpose.msra.mxu0 0.0
    %2675 = vmatpush.xpose.msra.mxu0 0.0
    %2676 = vmatpush.xpose.msra.mxu0 %v204
    %2677 = vmatmul.f32.gmra.mxu0 %v589
    %v2678 = vpop.f32.mrf.mxu0
    %v2679 = vadd.f32 %v2659, %v2678
    %2680 = vdwg.mxu0
    %2681 = vmatpush.xpose.msra.mxu0 0.0
    %2682 = vmatpush.xpose.msra.mxu0 0.0
    %2683 = vmatpush.xpose.msra.mxu0 0.0
    %2684 = vmatpush.xpose.msra.mxu0 0.0
    %2685 = vmatpush.xpose.msra.mxu0 0.0
    %2686 = vmatpush.xpose.msra.mxu0 0.0
    %2687 = vmatpush.xpose.msra.mxu0 0.0
    %2688 = vmatpush.xpose.msra.mxu0 0.0
    %2689 = vmatpush.xpose.msra.mxu0 0.0
    %2690 = vmatpush.xpose.msra.mxu0 0.0
    %2691 = vmatpush.xpose.msra.mxu0 0.0
    %2692 = vmatpush.xpose.msra.mxu0 0.0
    %2693 = vmatpush.xpose.msra.mxu0 0.0
    %2694 = vmatpush.xpose.msra.mxu0 0.0
    %2695 = vmatpush.xpose.msra.mxu0 0.0
    %2696 = vmatpush.xpose.msra.mxu0 %v205
    %2697 = vmatmul.f32.gmra.mxu0 %v590
    %v2698 = vpop.f32.mrf.mxu0
    %v2699 = vadd.f32 %v2679, %v2698
    %2700 = vdwg.mxu0
    %2701 = vmatpush.xpose.msra.mxu0 0.0
    %2702 = vmatpush.xpose.msra.mxu0 0.0
    %2703 = vmatpush.xpose.msra.mxu0 0.0
    %2704 = vmatpush.xpose.msra.mxu0 0.0
    %2705 = vmatpush.xpose.msra.mxu0 0.0
    %2706 = vmatpush.xpose.msra.mxu0 0.0
    %2707 = vmatpush.xpose.msra.mxu0 0.0
    %2708 = vmatpush.xpose.msra.mxu0 0.0
    %2709 = vmatpush.xpose.msra.mxu0 0.0
    %2710 = vmatpush.xpose.msra.mxu0 0.0
    %2711 = vmatpush.xpose.msra.mxu0 0.0
    %2712 = vmatpush.xpose.msra.mxu0 0.0
    %2713 = vmatpush.xpose.msra.mxu0 0.0
    %2714 = vmatpush.xpose.msra.mxu0 0.0
    %2715 = vmatpush.xpose.msra.mxu0 0.0
    %2716 = vmatpush.xpose.msra.mxu0 %v206
    %2717 = vmatmul.f32.gmra.mxu0 %v591
    %v2718 = vpop.f32.mrf.mxu0
    %v2719 = vadd.f32 %v2699, %v2718
    %2720 = vdwg.mxu0
    %2721 = vmatpush.xpose.msra.mxu0 0.0
    %2722 = vmatpush.xpose.msra.mxu0 0.0
    %2723 = vmatpush.xpose.msra.mxu0 0.0
    %2724 = vmatpush.xpose.msra.mxu0 0.0
    %2725 = vmatpush.xpose.msra.mxu0 0.0
    %2726 = vmatpush.xpose.msra.mxu0 0.0
    %2727 = vmatpush.xpose.msra.mxu0 0.0
    %2728 = vmatpush.xpose.msra.mxu0 0.0
    %2729 = vmatpush.xpose.msra.mxu0 0.0
    %2730 = vmatpush.xpose.msra.mxu0 0.0
    %2731 = vmatpush.xpose.msra.mxu0 0.0
    %2732 = vmatpush.xpose.msra.mxu0 0.0
    %2733 = vmatpush.xpose.msra.mxu0 0.0
    %2734 = vmatpush.xpose.msra.mxu0 0.0
    %2735 = vmatpush.xpose.msra.mxu0 0.0
    %2736 = vmatpush.xpose.msra.mxu0 %v207
    %2737 = vmatmul.f32.gmra.mxu0 %v592
    %v2738 = vpop.f32.mrf.mxu0
    %v2739 = vadd.f32 %v2719, %v2738
    %2740 = vdwg.mxu0
    %2741 = vmatpush.xpose.msra.mxu0 0.0
    %2742 = vmatpush.xpose.msra.mxu0 0.0
    %2743 = vmatpush.xpose.msra.mxu0 0.0
    %2744 = vmatpush.xpose.msra.mxu0 0.0
    %2745 = vmatpush.xpose.msra.mxu0 0.0
    %2746 = vmatpush.xpose.msra.mxu0 0.0
    %2747 = vmatpush.xpose.msra.mxu0 0.0
    %2748 = vmatpush.xpose.msra.mxu0 0.0
    %2749 = vmatpush.xpose.msra.mxu0 0.0
    %2750 = vmatpush.xpose.msra.mxu0 0.0
    %2751 = vmatpush.xpose.msra.mxu0 0.0
    %2752 = vmatpush.xpose.msra.mxu0 0.0
    %2753 = vmatpush.xpose.msra.mxu0 0.0
    %2754 = vmatpush.xpose.msra.mxu0 0.0
    %2755 = vmatpush.xpose.msra.mxu0 0.0
    %2756 = vmatpush.xpose.msra.mxu0 %v208
    %2757 = vmatmul.f32.gmra.mxu0 %v595
    %v2758 = vpop.f32.mrf.mxu0
    %v2759 = vadd.f32 %v2739, %v2758
    %2760 = vdwg.mxu0
    %2761 = vmatpush.xpose.msra.mxu0 0.0
    %2762 = vmatpush.xpose.msra.mxu0 0.0
    %2763 = vmatpush.xpose.msra.mxu0 0.0
    %2764 = vmatpush.xpose.msra.mxu0 0.0
    %2765 = vmatpush.xpose.msra.mxu0 0.0
    %2766 = vmatpush.xpose.msra.mxu0 0.0
    %2767 = vmatpush.xpose.msra.mxu0 0.0
    %2768 = vmatpush.xpose.msra.mxu0 0.0
    %2769 = vmatpush.xpose.msra.mxu0 0.0
    %2770 = vmatpush.xpose.msra.mxu0 0.0
    %2771 = vmatpush.xpose.msra.mxu0 0.0
    %2772 = vmatpush.xpose.msra.mxu0 0.0
    %2773 = vmatpush.xpose.msra.mxu0 0.0
    %2774 = vmatpush.xpose.msra.mxu0 0.0
    %2775 = vmatpush.xpose.msra.mxu0 0.0
    %2776 = vmatpush.xpose.msra.mxu0 %v209
    %2777 = vmatmul.f32.gmra.mxu0 %v596
    %v2778 = vpop.f32.mrf.mxu0
    %v2779 = vadd.f32 %v2759, %v2778
    %2780 = vdwg.mxu0
    %2781 = vmatpush.xpose.msra.mxu0 0.0
    %2782 = vmatpush.xpose.msra.mxu0 0.0
    %2783 = vmatpush.xpose.msra.mxu0 0.0
    %2784 = vmatpush.xpose.msra.mxu0 0.0
    %2785 = vmatpush.xpose.msra.mxu0 0.0
    %2786 = vmatpush.xpose.msra.mxu0 0.0
    %2787 = vmatpush.xpose.msra.mxu0 0.0
    %2788 = vmatpush.xpose.msra.mxu0 0.0
    %2789 = vmatpush.xpose.msra.mxu0 0.0
    %2790 = vmatpush.xpose.msra.mxu0 0.0
    %2791 = vmatpush.xpose.msra.mxu0 0.0
    %2792 = vmatpush.xpose.msra.mxu0 0.0
    %2793 = vmatpush.xpose.msra.mxu0 0.0
    %2794 = vmatpush.xpose.msra.mxu0 0.0
    %2795 = vmatpush.xpose.msra.mxu0 0.0
    %2796 = vmatpush.xpose.msra.mxu0 %v210
    %2797 = vmatmul.f32.gmra.mxu0 %v597
    %v2798 = vpop.f32.mrf.mxu0
    %v2799 = vadd.f32 %v2779, %v2798
    %2800 = vdwg.mxu0
    %2801 = vmatpush.xpose.msra.mxu0 0.0
    %2802 = vmatpush.xpose.msra.mxu0 0.0
    %2803 = vmatpush.xpose.msra.mxu0 0.0
    %2804 = vmatpush.xpose.msra.mxu0 0.0
    %2805 = vmatpush.xpose.msra.mxu0 0.0
    %2806 = vmatpush.xpose.msra.mxu0 0.0
    %2807 = vmatpush.xpose.msra.mxu0 0.0
    %2808 = vmatpush.xpose.msra.mxu0 0.0
    %2809 = vmatpush.xpose.msra.mxu0 0.0
    %2810 = vmatpush.xpose.msra.mxu0 0.0
    %2811 = vmatpush.xpose.msra.mxu0 0.0
    %2812 = vmatpush.xpose.msra.mxu0 0.0
    %2813 = vmatpush.xpose.msra.mxu0 0.0
    %2814 = vmatpush.xpose.msra.mxu0 0.0
    %2815 = vmatpush.xpose.msra.mxu0 0.0
    %2816 = vmatpush.xpose.msra.mxu0 %v211
    %2817 = vmatmul.f32.gmra.mxu0 %v598
    %v2818 = vpop.f32.mrf.mxu0
    %v2819 = vadd.f32 %v2799, %v2818
    %2820 = vdwg.mxu0
    %2821 = vmatpush.xpose.msra.mxu0 0.0
    %2822 = vmatpush.xpose.msra.mxu0 0.0
    %2823 = vmatpush.xpose.msra.mxu0 0.0
    %2824 = vmatpush.xpose.msra.mxu0 0.0
    %2825 = vmatpush.xpose.msra.mxu0 0.0
    %2826 = vmatpush.xpose.msra.mxu0 0.0
    %2827 = vmatpush.xpose.msra.mxu0 0.0
    %2828 = vmatpush.xpose.msra.mxu0 0.0
    %2829 = vmatpush.xpose.msra.mxu0 0.0
    %2830 = vmatpush.xpose.msra.mxu0 0.0
    %2831 = vmatpush.xpose.msra.mxu0 0.0
    %2832 = vmatpush.xpose.msra.mxu0 0.0
    %2833 = vmatpush.xpose.msra.mxu0 0.0
    %2834 = vmatpush.xpose.msra.mxu0 0.0
    %2835 = vmatpush.xpose.msra.mxu0 0.0
    %2836 = vmatpush.xpose.msra.mxu0 %v212
    %2837 = vmatmul.f32.gmra.mxu0 %v599
    %v2838 = vpop.f32.mrf.mxu0
    %v2839 = vadd.f32 %v2819, %v2838
    %2840 = vdwg.mxu0
    %2841 = vmatpush.xpose.msra.mxu0 0.0
    %2842 = vmatpush.xpose.msra.mxu0 0.0
    %2843 = vmatpush.xpose.msra.mxu0 0.0
    %2844 = vmatpush.xpose.msra.mxu0 0.0
    %2845 = vmatpush.xpose.msra.mxu0 0.0
    %2846 = vmatpush.xpose.msra.mxu0 0.0
    %2847 = vmatpush.xpose.msra.mxu0 0.0
    %2848 = vmatpush.xpose.msra.mxu0 0.0
    %2849 = vmatpush.xpose.msra.mxu0 0.0
    %2850 = vmatpush.xpose.msra.mxu0 0.0
    %2851 = vmatpush.xpose.msra.mxu0 0.0
    %2852 = vmatpush.xpose.msra.mxu0 0.0
    %2853 = vmatpush.xpose.msra.mxu0 0.0
    %2854 = vmatpush.xpose.msra.mxu0 0.0
    %2855 = vmatpush.xpose.msra.mxu0 0.0
    %2856 = vmatpush.xpose.msra.mxu0 %v213
    %2857 = vmatmul.f32.gmra.mxu0 %v600
    %v2858 = vpop.f32.mrf.mxu0
    %v2859 = vadd.f32 %v2839, %v2858
    %2860 = vdwg.mxu0
    %2861 = vmatpush.xpose.msra.mxu0 0.0
    %2862 = vmatpush.xpose.msra.mxu0 0.0
    %2863 = vmatpush.xpose.msra.mxu0 0.0
    %2864 = vmatpush.xpose.msra.mxu0 0.0
    %2865 = vmatpush.xpose.msra.mxu0 0.0
    %2866 = vmatpush.xpose.msra.mxu0 0.0
    %2867 = vmatpush.xpose.msra.mxu0 0.0
    %2868 = vmatpush.xpose.msra.mxu0 0.0
    %2869 = vmatpush.xpose.msra.mxu0 0.0
    %2870 = vmatpush.xpose.msra.mxu0 0.0
    %2871 = vmatpush.xpose.msra.mxu0 0.0
    %2872 = vmatpush.xpose.msra.mxu0 0.0
    %2873 = vmatpush.xpose.msra.mxu0 0.0
    %2874 = vmatpush.xpose.msra.mxu0 0.0
    %2875 = vmatpush.xpose.msra.mxu0 0.0
    %2876 = vmatpush.xpose.msra.mxu0 %v214
    %2877 = vmatmul.f32.gmra.mxu0 %v601
    %v2878 = vpop.f32.mrf.mxu0
    %v2879 = vadd.f32 %v2859, %v2878
    %2880 = vdwg.mxu0
    %2881 = vmatpush.xpose.msra.mxu0 0.0
    %2882 = vmatpush.xpose.msra.mxu0 0.0
    %2883 = vmatpush.xpose.msra.mxu0 0.0
    %2884 = vmatpush.xpose.msra.mxu0 0.0
    %2885 = vmatpush.xpose.msra.mxu0 0.0
    %2886 = vmatpush.xpose.msra.mxu0 0.0
    %2887 = vmatpush.xpose.msra.mxu0 0.0
    %2888 = vmatpush.xpose.msra.mxu0 0.0
    %2889 = vmatpush.xpose.msra.mxu0 0.0
    %2890 = vmatpush.xpose.msra.mxu0 0.0
    %2891 = vmatpush.xpose.msra.mxu0 0.0
    %2892 = vmatpush.xpose.msra.mxu0 0.0
    %2893 = vmatpush.xpose.msra.mxu0 0.0
    %2894 = vmatpush.xpose.msra.mxu0 0.0
    %2895 = vmatpush.xpose.msra.mxu0 0.0
    %2896 = vmatpush.xpose.msra.mxu0 %v215
    %2897 = vmatmul.f32.gmra.mxu0 %v602
    %v2898 = vpop.f32.mrf.mxu0
    %v2899 = vadd.f32 %v2879, %v2898
    %2900 = vdwg.mxu0
    %2901 = vmatpush.xpose.msra.mxu0 0.0
    %2902 = vmatpush.xpose.msra.mxu0 0.0
    %2903 = vmatpush.xpose.msra.mxu0 0.0
    %2904 = vmatpush.xpose.msra.mxu0 0.0
    %2905 = vmatpush.xpose.msra.mxu0 0.0
    %2906 = vmatpush.xpose.msra.mxu0 0.0
    %2907 = vmatpush.xpose.msra.mxu0 0.0
    %2908 = vmatpush.xpose.msra.mxu0 0.0
    %2909 = vmatpush.xpose.msra.mxu0 0.0
    %2910 = vmatpush.xpose.msra.mxu0 0.0
    %2911 = vmatpush.xpose.msra.mxu0 0.0
    %2912 = vmatpush.xpose.msra.mxu0 0.0
    %2913 = vmatpush.xpose.msra.mxu0 0.0
    %2914 = vmatpush.xpose.msra.mxu0 0.0
    %2915 = vmatpush.xpose.msra.mxu0 0.0
    %2916 = vmatpush.xpose.msra.mxu0 %v216
    %2917 = vmatmul.f32.gmra.mxu0 %v605
    %v2918 = vpop.f32.mrf.mxu0
    %v2919 = vadd.f32 %v2899, %v2918
    %2920 = vdwg.mxu0
    %2921 = vmatpush.xpose.msra.mxu0 0.0
    %2922 = vmatpush.xpose.msra.mxu0 0.0
    %2923 = vmatpush.xpose.msra.mxu0 0.0
    %2924 = vmatpush.xpose.msra.mxu0 0.0
    %2925 = vmatpush.xpose.msra.mxu0 0.0
    %2926 = vmatpush.xpose.msra.mxu0 0.0
    %2927 = vmatpush.xpose.msra.mxu0 0.0
    %2928 = vmatpush.xpose.msra.mxu0 0.0
    %2929 = vmatpush.xpose.msra.mxu0 0.0
    %2930 = vmatpush.xpose.msra.mxu0 0.0
    %2931 = vmatpush.xpose.msra.mxu0 0.0
    %2932 = vmatpush.xpose.msra.mxu0 0.0
    %2933 = vmatpush.xpose.msra.mxu0 0.0
    %2934 = vmatpush.xpose.msra.mxu0 0.0
    %2935 = vmatpush.xpose.msra.mxu0 0.0
    %2936 = vmatpush.xpose.msra.mxu0 %v217
    %2937 = vmatmul.f32.gmra.mxu0 %v606
    %v2938 = vpop.f32.mrf.mxu0
    %v2939 = vadd.f32 %v2919, %v2938
    %2940 = vdwg.mxu0
    %2941 = vmatpush.xpose.msra.mxu0 0.0
    %2942 = vmatpush.xpose.msra.mxu0 0.0
    %2943 = vmatpush.xpose.msra.mxu0 0.0
    %2944 = vmatpush.xpose.msra.mxu0 0.0
    %2945 = vmatpush.xpose.msra.mxu0 0.0
    %2946 = vmatpush.xpose.msra.mxu0 0.0
    %2947 = vmatpush.xpose.msra.mxu0 0.0
    %2948 = vmatpush.xpose.msra.mxu0 0.0
    %2949 = vmatpush.xpose.msra.mxu0 0.0
    %2950 = vmatpush.xpose.msra.mxu0 0.0
    %2951 = vmatpush.xpose.msra.mxu0 0.0
    %2952 = vmatpush.xpose.msra.mxu0 0.0
    %2953 = vmatpush.xpose.msra.mxu0 0.0
    %2954 = vmatpush.xpose.msra.mxu0 0.0
    %2955 = vmatpush.xpose.msra.mxu0 0.0
    %2956 = vmatpush.xpose.msra.mxu0 %v218
    %2957 = vmatmul.f32.gmra.mxu0 %v607
    %v2958 = vpop.f32.mrf.mxu0
    %v2959 = vadd.f32 %v2939, %v2958
    %2960 = vdwg.mxu0
    %2961 = vmatpush.xpose.msra.mxu0 0.0
    %2962 = vmatpush.xpose.msra.mxu0 0.0
    %2963 = vmatpush.xpose.msra.mxu0 0.0
    %2964 = vmatpush.xpose.msra.mxu0 0.0
    %2965 = vmatpush.xpose.msra.mxu0 0.0
    %2966 = vmatpush.xpose.msra.mxu0 0.0
    %2967 = vmatpush.xpose.msra.mxu0 0.0
    %2968 = vmatpush.xpose.msra.mxu0 0.0
    %2969 = vmatpush.xpose.msra.mxu0 0.0
    %2970 = vmatpush.xpose.msra.mxu0 0.0
    %2971 = vmatpush.xpose.msra.mxu0 0.0
    %2972 = vmatpush.xpose.msra.mxu0 0.0
    %2973 = vmatpush.xpose.msra.mxu0 0.0
    %2974 = vmatpush.xpose.msra.mxu0 0.0
    %2975 = vmatpush.xpose.msra.mxu0 0.0
    %2976 = vmatpush.xpose.msra.mxu0 %v219
    %2977 = vmatmul.f32.gmra.mxu0 %v608
    %v2978 = vpop.f32.mrf.mxu0
    %v2979 = vadd.f32 %v2959, %v2978
    %2980 = vdwg.mxu0
    %2981 = vmatpush.xpose.msra.mxu0 0.0
    %2982 = vmatpush.xpose.msra.mxu0 0.0
    %2983 = vmatpush.xpose.msra.mxu0 0.0
    %2984 = vmatpush.xpose.msra.mxu0 0.0
    %2985 = vmatpush.xpose.msra.mxu0 0.0
    %2986 = vmatpush.xpose.msra.mxu0 0.0
    %2987 = vmatpush.xpose.msra.mxu0 0.0
    %2988 = vmatpush.xpose.msra.mxu0 0.0
    %2989 = vmatpush.xpose.msra.mxu0 0.0
    %2990 = vmatpush.xpose.msra.mxu0 0.0
    %2991 = vmatpush.xpose.msra.mxu0 0.0
    %2992 = vmatpush.xpose.msra.mxu0 0.0
    %2993 = vmatpush.xpose.msra.mxu0 0.0
    %2994 = vmatpush.xpose.msra.mxu0 0.0
    %2995 = vmatpush.xpose.msra.mxu0 0.0
    %2996 = vmatpush.xpose.msra.mxu0 %v220
    %2997 = vmatmul.f32.gmra.mxu0 %v609
    %v2998 = vpop.f32.mrf.mxu0
    %v2999 = vadd.f32 %v2979, %v2998
    %3000 = vdwg.mxu0
    %3001 = vmatpush.xpose.msra.mxu0 0.0
    %3002 = vmatpush.xpose.msra.mxu0 0.0
    %3003 = vmatpush.xpose.msra.mxu0 0.0
    %3004 = vmatpush.xpose.msra.mxu0 0.0
    %3005 = vmatpush.xpose.msra.mxu0 0.0
    %3006 = vmatpush.xpose.msra.mxu0 0.0
    %3007 = vmatpush.xpose.msra.mxu0 0.0
    %3008 = vmatpush.xpose.msra.mxu0 0.0
    %3009 = vmatpush.xpose.msra.mxu0 0.0
    %3010 = vmatpush.xpose.msra.mxu0 0.0
    %3011 = vmatpush.xpose.msra.mxu0 0.0
    %3012 = vmatpush.xpose.msra.mxu0 0.0
    %3013 = vmatpush.xpose.msra.mxu0 0.0
    %3014 = vmatpush.xpose.msra.mxu0 0.0
    %3015 = vmatpush.xpose.msra.mxu0 0.0
    %3016 = vmatpush.xpose.msra.mxu0 %v221
    %3017 = vmatmul.f32.gmra.mxu0 %v610
    %v3018 = vpop.f32.mrf.mxu0
    %v3019 = vadd.f32 %v2999, %v3018
    %3020 = vdwg.mxu0
    %3021 = vmatpush.xpose.msra.mxu0 0.0
    %3022 = vmatpush.xpose.msra.mxu0 0.0
    %3023 = vmatpush.xpose.msra.mxu0 0.0
    %3024 = vmatpush.xpose.msra.mxu0 0.0
    %3025 = vmatpush.xpose.msra.mxu0 0.0
    %3026 = vmatpush.xpose.msra.mxu0 0.0
    %3027 = vmatpush.xpose.msra.mxu0 0.0
    %3028 = vmatpush.xpose.msra.mxu0 0.0
    %3029 = vmatpush.xpose.msra.mxu0 0.0
    %3030 = vmatpush.xpose.msra.mxu0 0.0
    %3031 = vmatpush.xpose.msra.mxu0 0.0
    %3032 = vmatpush.xpose.msra.mxu0 0.0
    %3033 = vmatpush.xpose.msra.mxu0 0.0
    %3034 = vmatpush.xpose.msra.mxu0 0.0
    %3035 = vmatpush.xpose.msra.mxu0 0.0
    %3036 = vmatpush.xpose.msra.mxu0 %v222
    %3037 = vmatmul.f32.gmra.mxu0 %v611
    %v3038 = vpop.f32.mrf.mxu0
    %v3039 = vadd.f32 %v3019, %v3038
    %3040 = vdwg.mxu0
    %3041 = vmatpush.xpose.msra.mxu0 0.0
    %3042 = vmatpush.xpose.msra.mxu0 0.0
    %3043 = vmatpush.xpose.msra.mxu0 0.0
    %3044 = vmatpush.xpose.msra.mxu0 0.0
    %3045 = vmatpush.xpose.msra.mxu0 0.0
    %3046 = vmatpush.xpose.msra.mxu0 0.0
    %3047 = vmatpush.xpose.msra.mxu0 0.0
    %3048 = vmatpush.xpose.msra.mxu0 0.0
    %3049 = vmatpush.xpose.msra.mxu0 0.0
    %3050 = vmatpush.xpose.msra.mxu0 0.0
    %3051 = vmatpush.xpose.msra.mxu0 0.0
    %3052 = vmatpush.xpose.msra.mxu0 0.0
    %3053 = vmatpush.xpose.msra.mxu0 0.0
    %3054 = vmatpush.xpose.msra.mxu0 0.0
    %3055 = vmatpush.xpose.msra.mxu0 0.0
    %3056 = vmatpush.xpose.msra.mxu0 %v223
    %3057 = vmatmul.f32.gmra.mxu0 %v612
    %v3058 = vpop.f32.mrf.mxu0
    %v3059 = vadd.f32 %v3039, %v3058
    %3060 = vdwg.mxu0
    %3061 = vmatpush.xpose.msra.mxu0 0.0
    %3062 = vmatpush.xpose.msra.mxu0 0.0
    %3063 = vmatpush.xpose.msra.mxu0 0.0
    %3064 = vmatpush.xpose.msra.mxu0 0.0
    %3065 = vmatpush.xpose.msra.mxu0 0.0
    %3066 = vmatpush.xpose.msra.mxu0 0.0
    %3067 = vmatpush.xpose.msra.mxu0 0.0
    %3068 = vmatpush.xpose.msra.mxu0 0.0
    %3069 = vmatpush.xpose.msra.mxu0 0.0
    %3070 = vmatpush.xpose.msra.mxu0 0.0
    %3071 = vmatpush.xpose.msra.mxu0 0.0
    %3072 = vmatpush.xpose.msra.mxu0 0.0
    %3073 = vmatpush.xpose.msra.mxu0 0.0
    %3074 = vmatpush.xpose.msra.mxu0 0.0
    %3075 = vmatpush.xpose.msra.mxu0 0.0
    %3076 = vmatpush.xpose.msra.mxu0 %v224
    %3077 = vmatmul.f32.gmra.mxu0 %v615
    %v3078 = vpop.f32.mrf.mxu0
    %v3079 = vadd.f32 %v3059, %v3078
    %3080 = vdwg.mxu0
    %3081 = vmatpush.xpose.msra.mxu0 0.0
    %3082 = vmatpush.xpose.msra.mxu0 0.0
    %3083 = vmatpush.xpose.msra.mxu0 0.0
    %3084 = vmatpush.xpose.msra.mxu0 0.0
    %3085 = vmatpush.xpose.msra.mxu0 0.0
    %3086 = vmatpush.xpose.msra.mxu0 0.0
    %3087 = vmatpush.xpose.msra.mxu0 0.0
    %3088 = vmatpush.xpose.msra.mxu0 0.0
    %3089 = vmatpush.xpose.msra.mxu0 0.0
    %3090 = vmatpush.xpose.msra.mxu0 0.0
    %3091 = vmatpush.xpose.msra.mxu0 0.0
    %3092 = vmatpush.xpose.msra.mxu0 0.0
    %3093 = vmatpush.xpose.msra.mxu0 0.0
    %3094 = vmatpush.xpose.msra.mxu0 0.0
    %3095 = vmatpush.xpose.msra.mxu0 0.0
    %3096 = vmatpush.xpose.msra.mxu0 %v225
    %3097 = vmatmul.f32.gmra.mxu0 %v616
    %v3098 = vpop.f32.mrf.mxu0
    %v3099 = vadd.f32 %v3079, %v3098
    %3100 = vdwg.mxu0
    %3101 = vmatpush.xpose.msra.mxu0 0.0
    %3102 = vmatpush.xpose.msra.mxu0 0.0
    %3103 = vmatpush.xpose.msra.mxu0 0.0
    %3104 = vmatpush.xpose.msra.mxu0 0.0
    %3105 = vmatpush.xpose.msra.mxu0 0.0
    %3106 = vmatpush.xpose.msra.mxu0 0.0
    %3107 = vmatpush.xpose.msra.mxu0 0.0
    %3108 = vmatpush.xpose.msra.mxu0 0.0
    %3109 = vmatpush.xpose.msra.mxu0 0.0
    %3110 = vmatpush.xpose.msra.mxu0 0.0
    %3111 = vmatpush.xpose.msra.mxu0 0.0
    %3112 = vmatpush.xpose.msra.mxu0 0.0
    %3113 = vmatpush.xpose.msra.mxu0 0.0
    %3114 = vmatpush.xpose.msra.mxu0 0.0
    %3115 = vmatpush.xpose.msra.mxu0 0.0
    %3116 = vmatpush.xpose.msra.mxu0 %v226
    %3117 = vmatmul.f32.gmra.mxu0 %v617
    %v3118 = vpop.f32.mrf.mxu0
    %v3119 = vadd.f32 %v3099, %v3118
    %3120 = vdwg.mxu0
    %3121 = vmatpush.xpose.msra.mxu0 0.0
    %3122 = vmatpush.xpose.msra.mxu0 0.0
    %3123 = vmatpush.xpose.msra.mxu0 0.0
    %3124 = vmatpush.xpose.msra.mxu0 0.0
    %3125 = vmatpush.xpose.msra.mxu0 0.0
    %3126 = vmatpush.xpose.msra.mxu0 0.0
    %3127 = vmatpush.xpose.msra.mxu0 0.0
    %3128 = vmatpush.xpose.msra.mxu0 0.0
    %3129 = vmatpush.xpose.msra.mxu0 0.0
    %3130 = vmatpush.xpose.msra.mxu0 0.0
    %3131 = vmatpush.xpose.msra.mxu0 0.0
    %3132 = vmatpush.xpose.msra.mxu0 0.0
    %3133 = vmatpush.xpose.msra.mxu0 0.0
    %3134 = vmatpush.xpose.msra.mxu0 0.0
    %3135 = vmatpush.xpose.msra.mxu0 0.0
    %3136 = vmatpush.xpose.msra.mxu0 %v227
    %3137 = vmatmul.f32.gmra.mxu0 %v618
    %v3138 = vpop.f32.mrf.mxu0
    %v3139 = vadd.f32 %v3119, %v3138
    %3140 = vdwg.mxu0
    %3141 = vmatpush.xpose.msra.mxu0 0.0
    %3142 = vmatpush.xpose.msra.mxu0 0.0
    %3143 = vmatpush.xpose.msra.mxu0 0.0
    %3144 = vmatpush.xpose.msra.mxu0 0.0
    %3145 = vmatpush.xpose.msra.mxu0 0.0
    %3146 = vmatpush.xpose.msra.mxu0 0.0
    %3147 = vmatpush.xpose.msra.mxu0 0.0
    %3148 = vmatpush.xpose.msra.mxu0 0.0
    %3149 = vmatpush.xpose.msra.mxu0 0.0
    %3150 = vmatpush.xpose.msra.mxu0 0.0
    %3151 = vmatpush.xpose.msra.mxu0 0.0
    %3152 = vmatpush.xpose.msra.mxu0 0.0
    %3153 = vmatpush.xpose.msra.mxu0 0.0
    %3154 = vmatpush.xpose.msra.mxu0 0.0
    %3155 = vmatpush.xpose.msra.mxu0 0.0
    %3156 = vmatpush.xpose.msra.mxu0 %v228
    %3157 = vmatmul.f32.gmra.mxu0 %v619
    %v3158 = vpop.f32.mrf.mxu0
    %v3159 = vadd.f32 %v3139, %v3158
    %3160 = vdwg.mxu0
    %3161 = vmatpush.xpose.msra.mxu0 0.0
    %3162 = vmatpush.xpose.msra.mxu0 0.0
    %3163 = vmatpush.xpose.msra.mxu0 0.0
    %3164 = vmatpush.xpose.msra.mxu0 0.0
    %3165 = vmatpush.xpose.msra.mxu0 0.0
    %3166 = vmatpush.xpose.msra.mxu0 0.0
    %3167 = vmatpush.xpose.msra.mxu0 0.0
    %3168 = vmatpush.xpose.msra.mxu0 0.0
    %3169 = vmatpush.xpose.msra.mxu0 0.0
    %3170 = vmatpush.xpose.msra.mxu0 0.0
    %3171 = vmatpush.xpose.msra.mxu0 0.0
    %3172 = vmatpush.xpose.msra.mxu0 0.0
    %3173 = vmatpush.xpose.msra.mxu0 0.0
    %3174 = vmatpush.xpose.msra.mxu0 0.0
    %3175 = vmatpush.xpose.msra.mxu0 0.0
    %3176 = vmatpush.xpose.msra.mxu0 %v229
    %3177 = vmatmul.f32.gmra.mxu0 %v620
    %v3178 = vpop.f32.mrf.mxu0
    %v3179 = vadd.f32 %v3159, %v3178
    %3180 = vdwg.mxu0
    %3181 = vmatpush.xpose.msra.mxu0 0.0
    %3182 = vmatpush.xpose.msra.mxu0 0.0
    %3183 = vmatpush.xpose.msra.mxu0 0.0
    %3184 = vmatpush.xpose.msra.mxu0 0.0
    %3185 = vmatpush.xpose.msra.mxu0 0.0
    %3186 = vmatpush.xpose.msra.mxu0 0.0
    %3187 = vmatpush.xpose.msra.mxu0 0.0
    %3188 = vmatpush.xpose.msra.mxu0 0.0
    %3189 = vmatpush.xpose.msra.mxu0 0.0
    %3190 = vmatpush.xpose.msra.mxu0 0.0
    %3191 = vmatpush.xpose.msra.mxu0 0.0
    %3192 = vmatpush.xpose.msra.mxu0 0.0
    %3193 = vmatpush.xpose.msra.mxu0 0.0
    %3194 = vmatpush.xpose.msra.mxu0 0.0
    %3195 = vmatpush.xpose.msra.mxu0 0.0
    %3196 = vmatpush.xpose.msra.mxu0 %v230
    %3197 = vmatmul.f32.gmra.mxu0 %v621
    %v3198 = vpop.f32.mrf.mxu0
    %v3199 = vadd.f32 %v3179, %v3198
    %3200 = vdwg.mxu0
    %3201 = vmatpush.xpose.msra.mxu0 0.0
    %3202 = vmatpush.xpose.msra.mxu0 0.0
    %3203 = vmatpush.xpose.msra.mxu0 0.0
    %3204 = vmatpush.xpose.msra.mxu0 0.0
    %3205 = vmatpush.xpose.msra.mxu0 0.0
    %3206 = vmatpush.xpose.msra.mxu0 0.0
    %3207 = vmatpush.xpose.msra.mxu0 0.0
    %3208 = vmatpush.xpose.msra.mxu0 0.0
    %3209 = vmatpush.xpose.msra.mxu0 0.0
    %3210 = vmatpush.xpose.msra.mxu0 0.0
    %3211 = vmatpush.xpose.msra.mxu0 0.0
    %3212 = vmatpush.xpose.msra.mxu0 0.0
    %3213 = vmatpush.xpose.msra.mxu0 0.0
    %3214 = vmatpush.xpose.msra.mxu0 0.0
    %3215 = vmatpush.xpose.msra.mxu0 0.0
    %3216 = vmatpush.xpose.msra.mxu0 %v231
    %3217 = vmatmul.f32.gmra.mxu0 %v622
    %v3218 = vpop.f32.mrf.mxu0
    %v3219 = vadd.f32 %v3199, %v3218
    %3220 = vdwg.mxu0
    %3221 = vmatpush.xpose.msra.mxu0 0.0
    %3222 = vmatpush.xpose.msra.mxu0 0.0
    %3223 = vmatpush.xpose.msra.mxu0 0.0
    %3224 = vmatpush.xpose.msra.mxu0 0.0
    %3225 = vmatpush.xpose.msra.mxu0 0.0
    %3226 = vmatpush.xpose.msra.mxu0 0.0
    %3227 = vmatpush.xpose.msra.mxu0 0.0
    %3228 = vmatpush.xpose.msra.mxu0 0.0
    %3229 = vmatpush.xpose.msra.mxu0 0.0
    %3230 = vmatpush.xpose.msra.mxu0 0.0
    %3231 = vmatpush.xpose.msra.mxu0 0.0
    %3232 = vmatpush.xpose.msra.mxu0 0.0
    %3233 = vmatpush.xpose.msra.mxu0 0.0
    %3234 = vmatpush.xpose.msra.mxu0 0.0
    %3235 = vmatpush.xpose.msra.mxu0 0.0
    %3236 = vmatpush.xpose.msra.mxu0 %v232
    %3237 = vmatmul.f32.gmra.mxu0 %v625
    %v3238 = vpop.f32.mrf.mxu0
    %v3239 = vadd.f32 %v3219, %v3238
    %3240 = vdwg.mxu0
    %3241 = vmatpush.xpose.msra.mxu0 0.0
    %3242 = vmatpush.xpose.msra.mxu0 0.0
    %3243 = vmatpush.xpose.msra.mxu0 0.0
    %3244 = vmatpush.xpose.msra.mxu0 0.0
    %3245 = vmatpush.xpose.msra.mxu0 0.0
    %3246 = vmatpush.xpose.msra.mxu0 0.0
    %3247 = vmatpush.xpose.msra.mxu0 0.0
    %3248 = vmatpush.xpose.msra.mxu0 0.0
    %3249 = vmatpush.xpose.msra.mxu0 0.0
    %3250 = vmatpush.xpose.msra.mxu0 0.0
    %3251 = vmatpush.xpose.msra.mxu0 0.0
    %3252 = vmatpush.xpose.msra.mxu0 0.0
    %3253 = vmatpush.xpose.msra.mxu0 0.0
    %3254 = vmatpush.xpose.msra.mxu0 0.0
    %3255 = vmatpush.xpose.msra.mxu0 0.0
    %3256 = vmatpush.xpose.msra.mxu0 %v233
    %3257 = vmatmul.f32.gmra.mxu0 %v626
    %v3258 = vpop.f32.mrf.mxu0
    %v3259 = vadd.f32 %v3239, %v3258
    %3260 = vdwg.mxu0
    %3261 = vmatpush.xpose.msra.mxu0 0.0
    %3262 = vmatpush.xpose.msra.mxu0 0.0
    %3263 = vmatpush.xpose.msra.mxu0 0.0
    %3264 = vmatpush.xpose.msra.mxu0 0.0
    %3265 = vmatpush.xpose.msra.mxu0 0.0
    %3266 = vmatpush.xpose.msra.mxu0 0.0
    %3267 = vmatpush.xpose.msra.mxu0 0.0
    %3268 = vmatpush.xpose.msra.mxu0 0.0
    %3269 = vmatpush.xpose.msra.mxu0 0.0
    %3270 = vmatpush.xpose.msra.mxu0 0.0
    %3271 = vmatpush.xpose.msra.mxu0 0.0
    %3272 = vmatpush.xpose.msra.mxu0 0.0
    %3273 = vmatpush.xpose.msra.mxu0 0.0
    %3274 = vmatpush.xpose.msra.mxu0 0.0
    %3275 = vmatpush.xpose.msra.mxu0 0.0
    %3276 = vmatpush.xpose.msra.mxu0 %v234
    %3277 = vmatmul.f32.gmra.mxu0 %v627
    %v3278 = vpop.f32.mrf.mxu0
    %v3279 = vadd.f32 %v3259, %v3278
    %3280 = vdwg.mxu0
    %3281 = vmatpush.xpose.msra.mxu0 0.0
    %3282 = vmatpush.xpose.msra.mxu0 0.0
    %3283 = vmatpush.xpose.msra.mxu0 0.0
    %3284 = vmatpush.xpose.msra.mxu0 0.0
    %3285 = vmatpush.xpose.msra.mxu0 0.0
    %3286 = vmatpush.xpose.msra.mxu0 0.0
    %3287 = vmatpush.xpose.msra.mxu0 0.0
    %3288 = vmatpush.xpose.msra.mxu0 0.0
    %3289 = vmatpush.xpose.msra.mxu0 0.0
    %3290 = vmatpush.xpose.msra.mxu0 0.0
    %3291 = vmatpush.xpose.msra.mxu0 0.0
    %3292 = vmatpush.xpose.msra.mxu0 0.0
    %3293 = vmatpush.xpose.msra.mxu0 0.0
    %3294 = vmatpush.xpose.msra.mxu0 0.0
    %3295 = vmatpush.xpose.msra.mxu0 0.0
    %3296 = vmatpush.xpose.msra.mxu0 %v235
    %3297 = vmatmul.f32.gmra.mxu0 %v628
    %v3298 = vpop.f32.mrf.mxu0
    %v3299 = vadd.f32 %v3279, %v3298
    %3300 = vdwg.mxu0
    %3301 = vmatpush.xpose.msra.mxu0 0.0
    %3302 = vmatpush.xpose.msra.mxu0 0.0
    %3303 = vmatpush.xpose.msra.mxu0 0.0
    %3304 = vmatpush.xpose.msra.mxu0 0.0
    %3305 = vmatpush.xpose.msra.mxu0 0.0
    %3306 = vmatpush.xpose.msra.mxu0 0.0
    %3307 = vmatpush.xpose.msra.mxu0 0.0
    %3308 = vmatpush.xpose.msra.mxu0 0.0
    %3309 = vmatpush.xpose.msra.mxu0 0.0
    %3310 = vmatpush.xpose.msra.mxu0 0.0
    %3311 = vmatpush.xpose.msra.mxu0 0.0
    %3312 = vmatpush.xpose.msra.mxu0 0.0
    %3313 = vmatpush.xpose.msra.mxu0 0.0
    %3314 = vmatpush.xpose.msra.mxu0 0.0
    %3315 = vmatpush.xpose.msra.mxu0 0.0
    %3316 = vmatpush.xpose.msra.mxu0 %v236
    %3317 = vmatmul.f32.gmra.mxu0 %v629
    %v3318 = vpop.f32.mrf.mxu0
    %v3319 = vadd.f32 %v3299, %v3318
    %3320 = vdwg.mxu0
    %3321 = vmatpush.xpose.msra.mxu0 0.0
    %3322 = vmatpush.xpose.msra.mxu0 0.0
    %3323 = vmatpush.xpose.msra.mxu0 0.0
    %3324 = vmatpush.xpose.msra.mxu0 0.0
    %3325 = vmatpush.xpose.msra.mxu0 0.0
    %3326 = vmatpush.xpose.msra.mxu0 0.0
    %3327 = vmatpush.xpose.msra.mxu0 0.0
    %3328 = vmatpush.xpose.msra.mxu0 0.0
    %3329 = vmatpush.xpose.msra.mxu0 0.0
    %3330 = vmatpush.xpose.msra.mxu0 0.0
    %3331 = vmatpush.xpose.msra.mxu0 0.0
    %3332 = vmatpush.xpose.msra.mxu0 0.0
    %3333 = vmatpush.xpose.msra.mxu0 0.0
    %3334 = vmatpush.xpose.msra.mxu0 0.0
    %3335 = vmatpush.xpose.msra.mxu0 0.0
    %3336 = vmatpush.xpose.msra.mxu0 %v237
    %3337 = vmatmul.f32.gmra.mxu0 %v630
    %v3338 = vpop.f32.mrf.mxu0
    %v3339 = vadd.f32 %v3319, %v3338
    %3340 = vdwg.mxu0
    %3341 = vmatpush.xpose.msra.mxu0 0.0
    %3342 = vmatpush.xpose.msra.mxu0 0.0
    %3343 = vmatpush.xpose.msra.mxu0 0.0
    %3344 = vmatpush.xpose.msra.mxu0 0.0
    %3345 = vmatpush.xpose.msra.mxu0 0.0
    %3346 = vmatpush.xpose.msra.mxu0 0.0
    %3347 = vmatpush.xpose.msra.mxu0 0.0
    %3348 = vmatpush.xpose.msra.mxu0 0.0
    %3349 = vmatpush.xpose.msra.mxu0 0.0
    %3350 = vmatpush.xpose.msra.mxu0 0.0
    %3351 = vmatpush.xpose.msra.mxu0 0.0
    %3352 = vmatpush.xpose.msra.mxu0 0.0
    %3353 = vmatpush.xpose.msra.mxu0 0.0
    %3354 = vmatpush.xpose.msra.mxu0 0.0
    %3355 = vmatpush.xpose.msra.mxu0 0.0
    %3356 = vmatpush.xpose.msra.mxu0 %v238
    %3357 = vmatmul.f32.gmra.mxu0 %v631
    %v3358 = vpop.f32.mrf.mxu0
    %v3359 = vadd.f32 %v3339, %v3358
    %3360 = vdwg.mxu0
    %3361 = vmatpush.xpose.msra.mxu0 0.0
    %3362 = vmatpush.xpose.msra.mxu0 0.0
    %3363 = vmatpush.xpose.msra.mxu0 0.0
    %3364 = vmatpush.xpose.msra.mxu0 0.0
    %3365 = vmatpush.xpose.msra.mxu0 0.0
    %3366 = vmatpush.xpose.msra.mxu0 0.0
    %3367 = vmatpush.xpose.msra.mxu0 0.0
    %3368 = vmatpush.xpose.msra.mxu0 0.0
    %3369 = vmatpush.xpose.msra.mxu0 0.0
    %3370 = vmatpush.xpose.msra.mxu0 0.0
    %3371 = vmatpush.xpose.msra.mxu0 0.0
    %3372 = vmatpush.xpose.msra.mxu0 0.0
    %3373 = vmatpush.xpose.msra.mxu0 0.0
    %3374 = vmatpush.xpose.msra.mxu0 0.0
    %3375 = vmatpush.xpose.msra.mxu0 0.0
    %3376 = vmatpush.xpose.msra.mxu0 %v239
    %3377 = vmatmul.f32.gmra.mxu0 %v632
    %v3378 = vpop.f32.mrf.mxu0
    %v3379 = vadd.f32 %v3359, %v3378
    %3380 = vdwg.mxu0
    %3381 = vmatpush.xpose.msra.mxu0 0.0
    %3382 = vmatpush.xpose.msra.mxu0 0.0
    %3383 = vmatpush.xpose.msra.mxu0 0.0
    %3384 = vmatpush.xpose.msra.mxu0 0.0
    %3385 = vmatpush.xpose.msra.mxu0 0.0
    %3386 = vmatpush.xpose.msra.mxu0 0.0
    %3387 = vmatpush.xpose.msra.mxu0 0.0
    %3388 = vmatpush.xpose.msra.mxu0 0.0
    %3389 = vmatpush.xpose.msra.mxu0 0.0
    %3390 = vmatpush.xpose.msra.mxu0 0.0
    %3391 = vmatpush.xpose.msra.mxu0 0.0
    %3392 = vmatpush.xpose.msra.mxu0 0.0
    %3393 = vmatpush.xpose.msra.mxu0 0.0
    %3394 = vmatpush.xpose.msra.mxu0 0.0
    %3395 = vmatpush.xpose.msra.mxu0 0.0
    %3396 = vmatpush.xpose.msra.mxu0 %v240
    %3397 = vmatmul.f32.gmra.mxu0 %v635
    %v3398 = vpop.f32.mrf.mxu0
    %v3399 = vadd.f32 %v3379, %v3398
    %3400 = vdwg.mxu0
    %3401 = vmatpush.xpose.msra.mxu0 0.0
    %3402 = vmatpush.xpose.msra.mxu0 0.0
    %3403 = vmatpush.xpose.msra.mxu0 0.0
    %3404 = vmatpush.xpose.msra.mxu0 0.0
    %3405 = vmatpush.xpose.msra.mxu0 0.0
    %3406 = vmatpush.xpose.msra.mxu0 0.0
    %3407 = vmatpush.xpose.msra.mxu0 0.0
    %3408 = vmatpush.xpose.msra.mxu0 0.0
    %3409 = vmatpush.xpose.msra.mxu0 0.0
    %3410 = vmatpush.xpose.msra.mxu0 0.0
    %3411 = vmatpush.xpose.msra.mxu0 0.0
    %3412 = vmatpush.xpose.msra.mxu0 0.0
    %3413 = vmatpush.xpose.msra.mxu0 0.0
    %3414 = vmatpush.xpose.msra.mxu0 0.0
    %3415 = vmatpush.xpose.msra.mxu0 0.0
    %3416 = vmatpush.xpose.msra.mxu0 %v241
    %3417 = vmatmul.f32.gmra.mxu0 %v636
    %v3418 = vpop.f32.mrf.mxu0
    %v3419 = vadd.f32 %v3399, %v3418
    %3420 = vdwg.mxu0
    %3421 = vmatpush.xpose.msra.mxu0 0.0
    %3422 = vmatpush.xpose.msra.mxu0 0.0
    %3423 = vmatpush.xpose.msra.mxu0 0.0
    %3424 = vmatpush.xpose.msra.mxu0 0.0
    %3425 = vmatpush.xpose.msra.mxu0 0.0
    %3426 = vmatpush.xpose.msra.mxu0 0.0
    %3427 = vmatpush.xpose.msra.mxu0 0.0
    %3428 = vmatpush.xpose.msra.mxu0 0.0
    %3429 = vmatpush.xpose.msra.mxu0 0.0
    %3430 = vmatpush.xpose.msra.mxu0 0.0
    %3431 = vmatpush.xpose.msra.mxu0 0.0
    %3432 = vmatpush.xpose.msra.mxu0 0.0
    %3433 = vmatpush.xpose.msra.mxu0 0.0
    %3434 = vmatpush.xpose.msra.mxu0 0.0
    %3435 = vmatpush.xpose.msra.mxu0 0.0
    %3436 = vmatpush.xpose.msra.mxu0 %v242
    %3437 = vmatmul.f32.gmra.mxu0 %v637
    %v3438 = vpop.f32.mrf.mxu0
    %v3439 = vadd.f32 %v3419, %v3438
    %3440 = vdwg.mxu0
    %3441 = vmatpush.xpose.msra.mxu0 0.0
    %3442 = vmatpush.xpose.msra.mxu0 0.0
    %3443 = vmatpush.xpose.msra.mxu0 0.0
    %3444 = vmatpush.xpose.msra.mxu0 0.0
    %3445 = vmatpush.xpose.msra.mxu0 0.0
    %3446 = vmatpush.xpose.msra.mxu0 0.0
    %3447 = vmatpush.xpose.msra.mxu0 0.0
    %3448 = vmatpush.xpose.msra.mxu0 0.0
    %3449 = vmatpush.xpose.msra.mxu0 0.0
    %3450 = vmatpush.xpose.msra.mxu0 0.0
    %3451 = vmatpush.xpose.msra.mxu0 0.0
    %3452 = vmatpush.xpose.msra.mxu0 0.0
    %3453 = vmatpush.xpose.msra.mxu0 0.0
    %3454 = vmatpush.xpose.msra.mxu0 0.0
    %3455 = vmatpush.xpose.msra.mxu0 0.0
    %3456 = vmatpush.xpose.msra.mxu0 %v243
    %3457 = vmatmul.f32.gmra.mxu0 %v638
    %v3458 = vpop.f32.mrf.mxu0
    %v3459 = vadd.f32 %v3439, %v3458
    %3460 = vdwg.mxu0
    %3461 = vmatpush.xpose.msra.mxu0 0.0
    %3462 = vmatpush.xpose.msra.mxu0 0.0
    %3463 = vmatpush.xpose.msra.mxu0 0.0
    %3464 = vmatpush.xpose.msra.mxu0 0.0
    %3465 = vmatpush.xpose.msra.mxu0 0.0
    %3466 = vmatpush.xpose.msra.mxu0 0.0
    %3467 = vmatpush.xpose.msra.mxu0 0.0
    %3468 = vmatpush.xpose.msra.mxu0 0.0
    %3469 = vmatpush.xpose.msra.mxu0 0.0
    %3470 = vmatpush.xpose.msra.mxu0 0.0
    %3471 = vmatpush.xpose.msra.mxu0 0.0
    %3472 = vmatpush.xpose.msra.mxu0 0.0
    %3473 = vmatpush.xpose.msra.mxu0 0.0
    %3474 = vmatpush.xpose.msra.mxu0 0.0
    %3475 = vmatpush.xpose.msra.mxu0 0.0
    %3476 = vmatpush.xpose.msra.mxu0 %v244
    %3477 = vmatmul.f32.gmra.mxu0 %v639
    %v3478 = vpop.f32.mrf.mxu0
    %v3479 = vadd.f32 %v3459, %v3478
    %3480 = vdwg.mxu0
    %3481 = vmatpush.xpose.msra.mxu0 0.0
    %3482 = vmatpush.xpose.msra.mxu0 0.0
    %3483 = vmatpush.xpose.msra.mxu0 0.0
    %3484 = vmatpush.xpose.msra.mxu0 0.0
    %3485 = vmatpush.xpose.msra.mxu0 0.0
    %3486 = vmatpush.xpose.msra.mxu0 0.0
    %3487 = vmatpush.xpose.msra.mxu0 0.0
    %3488 = vmatpush.xpose.msra.mxu0 0.0
    %3489 = vmatpush.xpose.msra.mxu0 0.0
    %3490 = vmatpush.xpose.msra.mxu0 0.0
    %3491 = vmatpush.xpose.msra.mxu0 0.0
    %3492 = vmatpush.xpose.msra.mxu0 0.0
    %3493 = vmatpush.xpose.msra.mxu0 0.0
    %3494 = vmatpush.xpose.msra.mxu0 0.0
    %3495 = vmatpush.xpose.msra.mxu0 0.0
    %3496 = vmatpush.xpose.msra.mxu0 %v245
    %3497 = vmatmul.f32.gmra.mxu0 %v640
    %v3498 = vpop.f32.mrf.mxu0
    %v3499 = vadd.f32 %v3479, %v3498
    %3500 = vdwg.mxu0
    %3501 = vmatpush.xpose.msra.mxu0 0.0
    %3502 = vmatpush.xpose.msra.mxu0 0.0
    %3503 = vmatpush.xpose.msra.mxu0 0.0
    %3504 = vmatpush.xpose.msra.mxu0 0.0
    %3505 = vmatpush.xpose.msra.mxu0 0.0
    %3506 = vmatpush.xpose.msra.mxu0 0.0
    %3507 = vmatpush.xpose.msra.mxu0 0.0
    %3508 = vmatpush.xpose.msra.mxu0 0.0
    %3509 = vmatpush.xpose.msra.mxu0 0.0
    %3510 = vmatpush.xpose.msra.mxu0 0.0
    %3511 = vmatpush.xpose.msra.mxu0 0.0
    %3512 = vmatpush.xpose.msra.mxu0 0.0
    %3513 = vmatpush.xpose.msra.mxu0 0.0
    %3514 = vmatpush.xpose.msra.mxu0 0.0
    %3515 = vmatpush.xpose.msra.mxu0 0.0
    %3516 = vmatpush.xpose.msra.mxu0 %v246
    %3517 = vmatmul.f32.gmra.mxu0 %v641
    %v3518 = vpop.f32.mrf.mxu0
    %v3519 = vadd.f32 %v3499, %v3518
    %3520 = vdwg.mxu0
    %3521 = vmatpush.xpose.msra.mxu0 0.0
    %3522 = vmatpush.xpose.msra.mxu0 0.0
    %3523 = vmatpush.xpose.msra.mxu0 0.0
    %3524 = vmatpush.xpose.msra.mxu0 0.0
    %3525 = vmatpush.xpose.msra.mxu0 0.0
    %3526 = vmatpush.xpose.msra.mxu0 0.0
    %3527 = vmatpush.xpose.msra.mxu0 0.0
    %3528 = vmatpush.xpose.msra.mxu0 0.0
    %3529 = vmatpush.xpose.msra.mxu0 0.0
    %3530 = vmatpush.xpose.msra.mxu0 0.0
    %3531 = vmatpush.xpose.msra.mxu0 0.0
    %3532 = vmatpush.xpose.msra.mxu0 0.0
    %3533 = vmatpush.xpose.msra.mxu0 0.0
    %3534 = vmatpush.xpose.msra.mxu0 0.0
    %3535 = vmatpush.xpose.msra.mxu0 0.0
    %3536 = vmatpush.xpose.msra.mxu0 %v247
    %3537 = vmatmul.f32.gmra.mxu0 %v642
    %v3538 = vpop.f32.mrf.mxu0
    %v3539 = vadd.f32 %v3519, %v3538
    %3540 = vdwg.mxu0
    %3541 = vmatpush.xpose.msra.mxu0 0.0
    %3542 = vmatpush.xpose.msra.mxu0 0.0
    %3543 = vmatpush.xpose.msra.mxu0 0.0
    %3544 = vmatpush.xpose.msra.mxu0 0.0
    %3545 = vmatpush.xpose.msra.mxu0 0.0
    %3546 = vmatpush.xpose.msra.mxu0 0.0
    %3547 = vmatpush.xpose.msra.mxu0 0.0
    %3548 = vmatpush.xpose.msra.mxu0 0.0
    %3549 = vmatpush.xpose.msra.mxu0 0.0
    %3550 = vmatpush.xpose.msra.mxu0 0.0
    %3551 = vmatpush.xpose.msra.mxu0 0.0
    %3552 = vmatpush.xpose.msra.mxu0 0.0
    %3553 = vmatpush.xpose.msra.mxu0 0.0
    %3554 = vmatpush.xpose.msra.mxu0 0.0
    %3555 = vmatpush.xpose.msra.mxu0 0.0
    %3556 = vmatpush.xpose.msra.mxu0 %v248
    %3557 = vmatmul.f32.gmra.mxu0 %v645
    %v3558 = vpop.f32.mrf.mxu0
    %v3559 = vadd.f32 %v3539, %v3558
    %3560 = vdwg.mxu0
    %3561 = vmatpush.xpose.msra.mxu0 0.0
    %3562 = vmatpush.xpose.msra.mxu0 0.0
    %3563 = vmatpush.xpose.msra.mxu0 0.0
    %3564 = vmatpush.xpose.msra.mxu0 0.0
    %3565 = vmatpush.xpose.msra.mxu0 0.0
    %3566 = vmatpush.xpose.msra.mxu0 0.0
    %3567 = vmatpush.xpose.msra.mxu0 0.0
    %3568 = vmatpush.xpose.msra.mxu0 0.0
    %3569 = vmatpush.xpose.msra.mxu0 0.0
    %3570 = vmatpush.xpose.msra.mxu0 0.0
    %3571 = vmatpush.xpose.msra.mxu0 0.0
    %3572 = vmatpush.xpose.msra.mxu0 0.0
    %3573 = vmatpush.xpose.msra.mxu0 0.0
    %3574 = vmatpush.xpose.msra.mxu0 0.0
    %3575 = vmatpush.xpose.msra.mxu0 0.0
    %3576 = vmatpush.xpose.msra.mxu0 %v249
    %3577 = vmatmul.f32.gmra.mxu0 %v646
    %v3578 = vpop.f32.mrf.mxu0
    %v3579 = vadd.f32 %v3559, %v3578
    %3580 = vdwg.mxu0
    %3581 = vmatpush.xpose.msra.mxu0 0.0
    %3582 = vmatpush.xpose.msra.mxu0 0.0
    %3583 = vmatpush.xpose.msra.mxu0 0.0
    %3584 = vmatpush.xpose.msra.mxu0 0.0
    %3585 = vmatpush.xpose.msra.mxu0 0.0
    %3586 = vmatpush.xpose.msra.mxu0 0.0
    %3587 = vmatpush.xpose.msra.mxu0 0.0
    %3588 = vmatpush.xpose.msra.mxu0 0.0
    %3589 = vmatpush.xpose.msra.mxu0 0.0
    %3590 = vmatpush.xpose.msra.mxu0 0.0
    %3591 = vmatpush.xpose.msra.mxu0 0.0
    %3592 = vmatpush.xpose.msra.mxu0 0.0
    %3593 = vmatpush.xpose.msra.mxu0 0.0
    %3594 = vmatpush.xpose.msra.mxu0 0.0
    %3595 = vmatpush.xpose.msra.mxu0 0.0
    %3596 = vmatpush.xpose.msra.mxu0 %v250
    %3597 = vmatmul.f32.gmra.mxu0 %v647
    %v3598 = vpop.f32.mrf.mxu0
    %v3599 = vadd.f32 %v3579, %v3598
    %3600 = vdwg.mxu0
    %3601 = vmatpush.xpose.msra.mxu0 0.0
    %3602 = vmatpush.xpose.msra.mxu0 0.0
    %3603 = vmatpush.xpose.msra.mxu0 0.0
    %3604 = vmatpush.xpose.msra.mxu0 0.0
    %3605 = vmatpush.xpose.msra.mxu0 0.0
    %3606 = vmatpush.xpose.msra.mxu0 0.0
    %3607 = vmatpush.xpose.msra.mxu0 0.0
    %3608 = vmatpush.xpose.msra.mxu0 0.0
    %3609 = vmatpush.xpose.msra.mxu0 0.0
    %3610 = vmatpush.xpose.msra.mxu0 0.0
    %3611 = vmatpush.xpose.msra.mxu0 0.0
    %3612 = vmatpush.xpose.msra.mxu0 0.0
    %3613 = vmatpush.xpose.msra.mxu0 0.0
    %3614 = vmatpush.xpose.msra.mxu0 0.0
    %3615 = vmatpush.xpose.msra.mxu0 0.0
    %3616 = vmatpush.xpose.msra.mxu0 %v251
    %3617 = vmatmul.f32.gmra.mxu0 %v648
    %v3618 = vpop.f32.mrf.mxu0
    %v3619 = vadd.f32 %v3599, %v3618
    %3620 = vdwg.mxu0
    %3621 = vmatpush.xpose.msra.mxu0 0.0
    %3622 = vmatpush.xpose.msra.mxu0 0.0
    %3623 = vmatpush.xpose.msra.mxu0 0.0
    %3624 = vmatpush.xpose.msra.mxu0 0.0
    %3625 = vmatpush.xpose.msra.mxu0 0.0
    %3626 = vmatpush.xpose.msra.mxu0 0.0
    %3627 = vmatpush.xpose.msra.mxu0 0.0
    %3628 = vmatpush.xpose.msra.mxu0 0.0
    %3629 = vmatpush.xpose.msra.mxu0 0.0
    %3630 = vmatpush.xpose.msra.mxu0 0.0
    %3631 = vmatpush.xpose.msra.mxu0 0.0
    %3632 = vmatpush.xpose.msra.mxu0 0.0
    %3633 = vmatpush.xpose.msra.mxu0 0.0
    %3634 = vmatpush.xpose.msra.mxu0 0.0
    %3635 = vmatpush.xpose.msra.mxu0 0.0
    %3636 = vmatpush.xpose.msra.mxu0 %v252
    %3637 = vmatmul.f32.gmra.mxu0 %v649
    %v3638 = vpop.f32.mrf.mxu0
    %v3639 = vadd.f32 %v3619, %v3638
    %3640 = vdwg.mxu0
    %3641 = vmatpush.xpose.msra.mxu0 0.0
    %3642 = vmatpush.xpose.msra.mxu0 0.0
    %3643 = vmatpush.xpose.msra.mxu0 0.0
    %3644 = vmatpush.xpose.msra.mxu0 0.0
    %3645 = vmatpush.xpose.msra.mxu0 0.0
    %3646 = vmatpush.xpose.msra.mxu0 0.0
    %3647 = vmatpush.xpose.msra.mxu0 0.0
    %3648 = vmatpush.xpose.msra.mxu0 0.0
    %3649 = vmatpush.xpose.msra.mxu0 0.0
    %3650 = vmatpush.xpose.msra.mxu0 0.0
    %3651 = vmatpush.xpose.msra.mxu0 0.0
    %3652 = vmatpush.xpose.msra.mxu0 0.0
    %3653 = vmatpush.xpose.msra.mxu0 0.0
    %3654 = vmatpush.xpose.msra.mxu0 0.0
    %3655 = vmatpush.xpose.msra.mxu0 0.0
    %3656 = vmatpush.xpose.msra.mxu0 %v253
    %3657 = vmatmul.f32.gmra.mxu0 %v650
    %v3658 = vpop.f32.mrf.mxu0
    %v3659 = vadd.f32 %v3639, %v3658
    %3660 = vdwg.mxu0
    %3661 = vmatpush.xpose.msra.mxu0 0.0
    %3662 = vmatpush.xpose.msra.mxu0 0.0
    %3663 = vmatpush.xpose.msra.mxu0 0.0
    %3664 = vmatpush.xpose.msra.mxu0 0.0
    %3665 = vmatpush.xpose.msra.mxu0 0.0
    %3666 = vmatpush.xpose.msra.mxu0 0.0
    %3667 = vmatpush.xpose.msra.mxu0 0.0
    %3668 = vmatpush.xpose.msra.mxu0 0.0
    %3669 = vmatpush.xpose.msra.mxu0 0.0
    %3670 = vmatpush.xpose.msra.mxu0 0.0
    %3671 = vmatpush.xpose.msra.mxu0 0.0
    %3672 = vmatpush.xpose.msra.mxu0 0.0
    %3673 = vmatpush.xpose.msra.mxu0 0.0
    %3674 = vmatpush.xpose.msra.mxu0 0.0
    %3675 = vmatpush.xpose.msra.mxu0 0.0
    %3676 = vmatpush.xpose.msra.mxu0 %v254
    %3677 = vmatmul.f32.gmra.mxu0 %v651
    %v3678 = vpop.f32.mrf.mxu0
    %v3679 = vadd.f32 %v3659, %v3678
    %3680 = vdwg.mxu0
    %3681 = vmatpush.xpose.msra.mxu0 0.0
    %3682 = vmatpush.xpose.msra.mxu0 0.0
    %3683 = vmatpush.xpose.msra.mxu0 0.0
    %3684 = vmatpush.xpose.msra.mxu0 0.0
    %3685 = vmatpush.xpose.msra.mxu0 0.0
    %3686 = vmatpush.xpose.msra.mxu0 0.0
    %3687 = vmatpush.xpose.msra.mxu0 0.0
    %3688 = vmatpush.xpose.msra.mxu0 0.0
    %3689 = vmatpush.xpose.msra.mxu0 0.0
    %3690 = vmatpush.xpose.msra.mxu0 0.0
    %3691 = vmatpush.xpose.msra.mxu0 0.0
    %3692 = vmatpush.xpose.msra.mxu0 0.0
    %3693 = vmatpush.xpose.msra.mxu0 0.0
    %3694 = vmatpush.xpose.msra.mxu0 0.0
    %3695 = vmatpush.xpose.msra.mxu0 0.0
    %3696 = vmatpush.xpose.msra.mxu0 %v255
    %3697 = vmatmul.f32.gmra.mxu0 %v652
    %v3698 = vpop.f32.mrf.mxu0
    %v3699 = vadd.f32 %v3679, %v3698
    %3700 = vdwg.mxu0
    %3701 = vmatpush.xpose.msra.mxu0 0.0
    %3702 = vmatpush.xpose.msra.mxu0 0.0
    %3703 = vmatpush.xpose.msra.mxu0 0.0
    %3704 = vmatpush.xpose.msra.mxu0 0.0
    %3705 = vmatpush.xpose.msra.mxu0 0.0
    %3706 = vmatpush.xpose.msra.mxu0 0.0
    %3707 = vmatpush.xpose.msra.mxu0 0.0
    %3708 = vmatpush.xpose.msra.mxu0 0.0
    %3709 = vmatpush.xpose.msra.mxu0 0.0
    %3710 = vmatpush.xpose.msra.mxu0 0.0
    %3711 = vmatpush.xpose.msra.mxu0 0.0
    %3712 = vmatpush.xpose.msra.mxu0 0.0
    %3713 = vmatpush.xpose.msra.mxu0 0.0
    %3714 = vmatpush.xpose.msra.mxu0 0.0
    %3715 = vmatpush.xpose.msra.mxu0 0.0
    %3716 = vmatpush.xpose.msra.mxu0 %v256
    %3717 = vmatmul.f32.gmra.mxu0 %v655
    %v3718 = vpop.f32.mrf.mxu0
    %v3719 = vadd.f32 %v3699, %v3718
    %3720 = vdwg.mxu0
    %3721 = vmatpush.xpose.msra.mxu0 0.0
    %3722 = vmatpush.xpose.msra.mxu0 0.0
    %3723 = vmatpush.xpose.msra.mxu0 0.0
    %3724 = vmatpush.xpose.msra.mxu0 0.0
    %3725 = vmatpush.xpose.msra.mxu0 0.0
    %3726 = vmatpush.xpose.msra.mxu0 0.0
    %3727 = vmatpush.xpose.msra.mxu0 0.0
    %3728 = vmatpush.xpose.msra.mxu0 0.0
    %3729 = vmatpush.xpose.msra.mxu0 0.0
    %3730 = vmatpush.xpose.msra.mxu0 0.0
    %3731 = vmatpush.xpose.msra.mxu0 0.0
    %3732 = vmatpush.xpose.msra.mxu0 0.0
    %3733 = vmatpush.xpose.msra.mxu0 0.0
    %3734 = vmatpush.xpose.msra.mxu0 0.0
    %3735 = vmatpush.xpose.msra.mxu0 0.0
    %3736 = vmatpush.xpose.msra.mxu0 %v257
    %3737 = vmatmul.f32.gmra.mxu0 %v656
    %v3738 = vpop.f32.mrf.mxu0
    %v3739 = vadd.f32 %v3719, %v3738
    %3740 = vdwg.mxu0
    %3741 = vmatpush.xpose.msra.mxu0 0.0
    %3742 = vmatpush.xpose.msra.mxu0 0.0
    %3743 = vmatpush.xpose.msra.mxu0 0.0
    %3744 = vmatpush.xpose.msra.mxu0 0.0
    %3745 = vmatpush.xpose.msra.mxu0 0.0
    %3746 = vmatpush.xpose.msra.mxu0 0.0
    %3747 = vmatpush.xpose.msra.mxu0 0.0
    %3748 = vmatpush.xpose.msra.mxu0 0.0
    %3749 = vmatpush.xpose.msra.mxu0 0.0
    %3750 = vmatpush.xpose.msra.mxu0 0.0
    %3751 = vmatpush.xpose.msra.mxu0 0.0
    %3752 = vmatpush.xpose.msra.mxu0 0.0
    %3753 = vmatpush.xpose.msra.mxu0 0.0
    %3754 = vmatpush.xpose.msra.mxu0 0.0
    %3755 = vmatpush.xpose.msra.mxu0 0.0
    %3756 = vmatpush.xpose.msra.mxu0 %v258
    %3757 = vmatmul.f32.gmra.mxu0 %v657
    %v3758 = vpop.f32.mrf.mxu0
    %v3759 = vadd.f32 %v3739, %v3758
    %3760 = vdwg.mxu0
    %3761 = vmatpush.xpose.msra.mxu0 0.0
    %3762 = vmatpush.xpose.msra.mxu0 0.0
    %3763 = vmatpush.xpose.msra.mxu0 0.0
    %3764 = vmatpush.xpose.msra.mxu0 0.0
    %3765 = vmatpush.xpose.msra.mxu0 0.0
    %3766 = vmatpush.xpose.msra.mxu0 0.0
    %3767 = vmatpush.xpose.msra.mxu0 0.0
    %3768 = vmatpush.xpose.msra.mxu0 0.0
    %3769 = vmatpush.xpose.msra.mxu0 0.0
    %3770 = vmatpush.xpose.msra.mxu0 0.0
    %3771 = vmatpush.xpose.msra.mxu0 0.0
    %3772 = vmatpush.xpose.msra.mxu0 0.0
    %3773 = vmatpush.xpose.msra.mxu0 0.0
    %3774 = vmatpush.xpose.msra.mxu0 0.0
    %3775 = vmatpush.xpose.msra.mxu0 0.0
    %3776 = vmatpush.xpose.msra.mxu0 %v259
    %3777 = vmatmul.f32.gmra.mxu0 %v658
    %v3778 = vpop.f32.mrf.mxu0
    %v3779 = vadd.f32 %v3759, %v3778
    %3780 = vdwg.mxu0
    %3781 = vmatpush.xpose.msra.mxu0 0.0
    %3782 = vmatpush.xpose.msra.mxu0 0.0
    %3783 = vmatpush.xpose.msra.mxu0 0.0
    %3784 = vmatpush.xpose.msra.mxu0 0.0
    %3785 = vmatpush.xpose.msra.mxu0 0.0
    %3786 = vmatpush.xpose.msra.mxu0 0.0
    %3787 = vmatpush.xpose.msra.mxu0 0.0
    %3788 = vmatpush.xpose.msra.mxu0 0.0
    %3789 = vmatpush.xpose.msra.mxu0 0.0
    %3790 = vmatpush.xpose.msra.mxu0 0.0
    %3791 = vmatpush.xpose.msra.mxu0 0.0
    %3792 = vmatpush.xpose.msra.mxu0 0.0
    %3793 = vmatpush.xpose.msra.mxu0 0.0
    %3794 = vmatpush.xpose.msra.mxu0 0.0
    %3795 = vmatpush.xpose.msra.mxu0 0.0
    %3796 = vmatpush.xpose.msra.mxu0 %v260
    %3797 = vmatmul.f32.gmra.mxu0 %v659
    %v3798 = vpop.f32.mrf.mxu0
    %v3799 = vadd.f32 %v3779, %v3798
    %3800 = vdwg.mxu0
    %3801 = vmatpush.xpose.msra.mxu0 0.0
    %3802 = vmatpush.xpose.msra.mxu0 0.0
    %3803 = vmatpush.xpose.msra.mxu0 0.0
    %3804 = vmatpush.xpose.msra.mxu0 0.0
    %3805 = vmatpush.xpose.msra.mxu0 0.0
    %3806 = vmatpush.xpose.msra.mxu0 0.0
    %3807 = vmatpush.xpose.msra.mxu0 0.0
    %3808 = vmatpush.xpose.msra.mxu0 0.0
    %3809 = vmatpush.xpose.msra.mxu0 0.0
    %3810 = vmatpush.xpose.msra.mxu0 0.0
    %3811 = vmatpush.xpose.msra.mxu0 0.0
    %3812 = vmatpush.xpose.msra.mxu0 0.0
    %3813 = vmatpush.xpose.msra.mxu0 0.0
    %3814 = vmatpush.xpose.msra.mxu0 0.0
    %3815 = vmatpush.xpose.msra.mxu0 0.0
    %3816 = vmatpush.xpose.msra.mxu0 %v261
    %3817 = vmatmul.f32.gmra.mxu0 %v660
    %v3818 = vpop.f32.mrf.mxu0
    %v3819 = vadd.f32 %v3799, %v3818
    %3820 = vdwg.mxu0
    %3821 = vmatpush.xpose.msra.mxu0 0.0
    %3822 = vmatpush.xpose.msra.mxu0 0.0
    %3823 = vmatpush.xpose.msra.mxu0 0.0
    %3824 = vmatpush.xpose.msra.mxu0 0.0
    %3825 = vmatpush.xpose.msra.mxu0 0.0
    %3826 = vmatpush.xpose.msra.mxu0 0.0
    %3827 = vmatpush.xpose.msra.mxu0 0.0
    %3828 = vmatpush.xpose.msra.mxu0 0.0
    %3829 = vmatpush.xpose.msra.mxu0 0.0
    %3830 = vmatpush.xpose.msra.mxu0 0.0
    %3831 = vmatpush.xpose.msra.mxu0 0.0
    %3832 = vmatpush.xpose.msra.mxu0 0.0
    %3833 = vmatpush.xpose.msra.mxu0 0.0
    %3834 = vmatpush.xpose.msra.mxu0 0.0
    %3835 = vmatpush.xpose.msra.mxu0 0.0
    %3836 = vmatpush.xpose.msra.mxu0 %v262
    %3837 = vmatmul.f32.gmra.mxu0 %v661
    %v3838 = vpop.f32.mrf.mxu0
    %v3839 = vadd.f32 %v3819, %v3838
    %3840 = vdwg.mxu0
    %3841 = vmatpush.xpose.msra.mxu0 0.0
    %3842 = vmatpush.xpose.msra.mxu0 0.0
    %3843 = vmatpush.xpose.msra.mxu0 0.0
    %3844 = vmatpush.xpose.msra.mxu0 0.0
    %3845 = vmatpush.xpose.msra.mxu0 0.0
    %3846 = vmatpush.xpose.msra.mxu0 0.0
    %3847 = vmatpush.xpose.msra.mxu0 0.0
    %3848 = vmatpush.xpose.msra.mxu0 0.0
    %3849 = vmatpush.xpose.msra.mxu0 0.0
    %3850 = vmatpush.xpose.msra.mxu0 0.0
    %3851 = vmatpush.xpose.msra.mxu0 0.0
    %3852 = vmatpush.xpose.msra.mxu0 0.0
    %3853 = vmatpush.xpose.msra.mxu0 0.0
    %3854 = vmatpush.xpose.msra.mxu0 0.0
    %3855 = vmatpush.xpose.msra.mxu0 0.0
    %3856 = vmatpush.xpose.msra.mxu0 %v263
    %3857 = vmatmul.f32.gmra.mxu0 %v662
    %v3858 = vpop.f32.mrf.mxu0
    %v3859 = vadd.f32 %v3839, %v3858
    %3860 = vdwg.mxu0
    %3861 = vmatpush.xpose.msra.mxu0 0.0
    %3862 = vmatpush.xpose.msra.mxu0 0.0
    %3863 = vmatpush.xpose.msra.mxu0 0.0
    %3864 = vmatpush.xpose.msra.mxu0 0.0
    %3865 = vmatpush.xpose.msra.mxu0 0.0
    %3866 = vmatpush.xpose.msra.mxu0 0.0
    %3867 = vmatpush.xpose.msra.mxu0 0.0
    %3868 = vmatpush.xpose.msra.mxu0 0.0
    %3869 = vmatpush.xpose.msra.mxu0 0.0
    %3870 = vmatpush.xpose.msra.mxu0 0.0
    %3871 = vmatpush.xpose.msra.mxu0 0.0
    %3872 = vmatpush.xpose.msra.mxu0 0.0
    %3873 = vmatpush.xpose.msra.mxu0 0.0
    %3874 = vmatpush.xpose.msra.mxu0 0.0
    %3875 = vmatpush.xpose.msra.mxu0 0.0
    %3876 = vmatpush.xpose.msra.mxu0 %v264
    %3877 = vmatmul.f32.gmra.mxu0 %v665
    %v3878 = vpop.f32.mrf.mxu0
    %v3879 = vadd.f32 %v3859, %v3878
    %3880 = vdwg.mxu0
    %3881 = vmatpush.xpose.msra.mxu0 0.0
    %3882 = vmatpush.xpose.msra.mxu0 0.0
    %3883 = vmatpush.xpose.msra.mxu0 0.0
    %3884 = vmatpush.xpose.msra.mxu0 0.0
    %3885 = vmatpush.xpose.msra.mxu0 0.0
    %3886 = vmatpush.xpose.msra.mxu0 0.0
    %3887 = vmatpush.xpose.msra.mxu0 0.0
    %3888 = vmatpush.xpose.msra.mxu0 0.0
    %3889 = vmatpush.xpose.msra.mxu0 0.0
    %3890 = vmatpush.xpose.msra.mxu0 0.0
    %3891 = vmatpush.xpose.msra.mxu0 0.0
    %3892 = vmatpush.xpose.msra.mxu0 0.0
    %3893 = vmatpush.xpose.msra.mxu0 0.0
    %3894 = vmatpush.xpose.msra.mxu0 0.0
    %3895 = vmatpush.xpose.msra.mxu0 0.0
    %3896 = vmatpush.xpose.msra.mxu0 %v265
    %3897 = vmatmul.f32.gmra.mxu0 %v666
    %v3898 = vpop.f32.mrf.mxu0
    %v3899 = vadd.f32 %v3879, %v3898
    %3900 = vdwg.mxu0
    %3901 = vmatpush.xpose.msra.mxu0 0.0
    %3902 = vmatpush.xpose.msra.mxu0 0.0
    %3903 = vmatpush.xpose.msra.mxu0 0.0
    %3904 = vmatpush.xpose.msra.mxu0 0.0
    %3905 = vmatpush.xpose.msra.mxu0 0.0
    %3906 = vmatpush.xpose.msra.mxu0 0.0
    %3907 = vmatpush.xpose.msra.mxu0 0.0
    %3908 = vmatpush.xpose.msra.mxu0 0.0
    %3909 = vmatpush.xpose.msra.mxu0 0.0
    %3910 = vmatpush.xpose.msra.mxu0 0.0
    %3911 = vmatpush.xpose.msra.mxu0 0.0
    %3912 = vmatpush.xpose.msra.mxu0 0.0
    %3913 = vmatpush.xpose.msra.mxu0 0.0
    %3914 = vmatpush.xpose.msra.mxu0 0.0
    %3915 = vmatpush.xpose.msra.mxu0 0.0
    %3916 = vmatpush.xpose.msra.mxu0 %v266
    %3917 = vmatmul.f32.gmra.mxu0 %v667
    %v3918 = vpop.f32.mrf.mxu0
    %v3919 = vadd.f32 %v3899, %v3918
    %3920 = vdwg.mxu0
    %3921 = vmatpush.xpose.msra.mxu0 0.0
    %3922 = vmatpush.xpose.msra.mxu0 0.0
    %3923 = vmatpush.xpose.msra.mxu0 0.0
    %3924 = vmatpush.xpose.msra.mxu0 0.0
    %3925 = vmatpush.xpose.msra.mxu0 0.0
    %3926 = vmatpush.xpose.msra.mxu0 0.0
    %3927 = vmatpush.xpose.msra.mxu0 0.0
    %3928 = vmatpush.xpose.msra.mxu0 0.0
    %3929 = vmatpush.xpose.msra.mxu0 0.0
    %3930 = vmatpush.xpose.msra.mxu0 0.0
    %3931 = vmatpush.xpose.msra.mxu0 0.0
    %3932 = vmatpush.xpose.msra.mxu0 0.0
    %3933 = vmatpush.xpose.msra.mxu0 0.0
    %3934 = vmatpush.xpose.msra.mxu0 0.0
    %3935 = vmatpush.xpose.msra.mxu0 0.0
    %3936 = vmatpush.xpose.msra.mxu0 %v267
    %3937 = vmatmul.f32.gmra.mxu0 %v668
    %v3938 = vpop.f32.mrf.mxu0
    %v3939 = vadd.f32 %v3919, %v3938
    %3940 = vdwg.mxu0
    %3941 = vmatpush.xpose.msra.mxu0 0.0
    %3942 = vmatpush.xpose.msra.mxu0 0.0
    %3943 = vmatpush.xpose.msra.mxu0 0.0
    %3944 = vmatpush.xpose.msra.mxu0 0.0
    %3945 = vmatpush.xpose.msra.mxu0 0.0
    %3946 = vmatpush.xpose.msra.mxu0 0.0
    %3947 = vmatpush.xpose.msra.mxu0 0.0
    %3948 = vmatpush.xpose.msra.mxu0 0.0
    %3949 = vmatpush.xpose.msra.mxu0 0.0
    %3950 = vmatpush.xpose.msra.mxu0 0.0
    %3951 = vmatpush.xpose.msra.mxu0 0.0
    %3952 = vmatpush.xpose.msra.mxu0 0.0
    %3953 = vmatpush.xpose.msra.mxu0 0.0
    %3954 = vmatpush.xpose.msra.mxu0 0.0
    %3955 = vmatpush.xpose.msra.mxu0 0.0
    %3956 = vmatpush.xpose.msra.mxu0 %v268
    %3957 = vmatmul.f32.gmra.mxu0 %v669
    %v3958 = vpop.f32.mrf.mxu0
    %v3959 = vadd.f32 %v3939, %v3958
    %3960 = vdwg.mxu0
    %3961 = vmatpush.xpose.msra.mxu0 0.0
    %3962 = vmatpush.xpose.msra.mxu0 0.0
    %3963 = vmatpush.xpose.msra.mxu0 0.0
    %3964 = vmatpush.xpose.msra.mxu0 0.0
    %3965 = vmatpush.xpose.msra.mxu0 0.0
    %3966 = vmatpush.xpose.msra.mxu0 0.0
    %3967 = vmatpush.xpose.msra.mxu0 0.0
    %3968 = vmatpush.xpose.msra.mxu0 0.0
    %3969 = vmatpush.xpose.msra.mxu0 0.0
    %3970 = vmatpush.xpose.msra.mxu0 0.0
    %3971 = vmatpush.xpose.msra.mxu0 0.0
    %3972 = vmatpush.xpose.msra.mxu0 0.0
    %3973 = vmatpush.xpose.msra.mxu0 0.0
    %3974 = vmatpush.xpose.msra.mxu0 0.0
    %3975 = vmatpush.xpose.msra.mxu0 0.0
    %3976 = vmatpush.xpose.msra.mxu0 %v269
    %3977 = vmatmul.f32.gmra.mxu0 %v670
    %v3978 = vpop.f32.mrf.mxu0
    %v3979 = vadd.f32 %v3959, %v3978
    %3980 = vdwg.mxu0
    %3981 = vmatpush.xpose.msra.mxu0 0.0
    %3982 = vmatpush.xpose.msra.mxu0 0.0
    %3983 = vmatpush.xpose.msra.mxu0 0.0
    %3984 = vmatpush.xpose.msra.mxu0 0.0
    %3985 = vmatpush.xpose.msra.mxu0 0.0
    %3986 = vmatpush.xpose.msra.mxu0 0.0
    %3987 = vmatpush.xpose.msra.mxu0 0.0
    %3988 = vmatpush.xpose.msra.mxu0 0.0
    %3989 = vmatpush.xpose.msra.mxu0 0.0
    %3990 = vmatpush.xpose.msra.mxu0 0.0
    %3991 = vmatpush.xpose.msra.mxu0 0.0
    %3992 = vmatpush.xpose.msra.mxu0 0.0
    %3993 = vmatpush.xpose.msra.mxu0 0.0
    %3994 = vmatpush.xpose.msra.mxu0 0.0
    %3995 = vmatpush.xpose.msra.mxu0 0.0
    %3996 = vmatpush.xpose.msra.mxu0 %v270
    %3997 = vmatmul.f32.gmra.mxu0 %v671
    %v3998 = vpop.f32.mrf.mxu0
    %v3999 = vadd.f32 %v3979, %v3998
    %4000 = vdwg.mxu0
    %4001 = vmatpush.xpose.msra.mxu0 0.0
    %4002 = vmatpush.xpose.msra.mxu0 0.0
    %4003 = vmatpush.xpose.msra.mxu0 0.0
    %4004 = vmatpush.xpose.msra.mxu0 0.0
    %4005 = vmatpush.xpose.msra.mxu0 0.0
    %4006 = vmatpush.xpose.msra.mxu0 0.0
    %4007 = vmatpush.xpose.msra.mxu0 0.0
    %4008 = vmatpush.xpose.msra.mxu0 0.0
    %4009 = vmatpush.xpose.msra.mxu0 0.0
    %4010 = vmatpush.xpose.msra.mxu0 0.0
    %4011 = vmatpush.xpose.msra.mxu0 0.0
    %4012 = vmatpush.xpose.msra.mxu0 0.0
    %4013 = vmatpush.xpose.msra.mxu0 0.0
    %4014 = vmatpush.xpose.msra.mxu0 0.0
    %4015 = vmatpush.xpose.msra.mxu0 0.0
    %4016 = vmatpush.xpose.msra.mxu0 %v271
    %4017 = vmatmul.f32.gmra.mxu0 %v672
    %v4018 = vpop.f32.mrf.mxu0
    %v4019 = vadd.f32 %v3999, %v4018
    %4020 = vdwg.mxu0
    %4021 = vmatpush.xpose.msra.mxu0 0.0
    %4022 = vmatpush.xpose.msra.mxu0 0.0
    %4023 = vmatpush.xpose.msra.mxu0 0.0
    %4024 = vmatpush.xpose.msra.mxu0 0.0
    %4025 = vmatpush.xpose.msra.mxu0 0.0
    %4026 = vmatpush.xpose.msra.mxu0 0.0
    %4027 = vmatpush.xpose.msra.mxu0 0.0
    %4028 = vmatpush.xpose.msra.mxu0 0.0
    %4029 = vmatpush.xpose.msra.mxu0 0.0
    %4030 = vmatpush.xpose.msra.mxu0 0.0
    %4031 = vmatpush.xpose.msra.mxu0 0.0
    %4032 = vmatpush.xpose.msra.mxu0 0.0
    %4033 = vmatpush.xpose.msra.mxu0 0.0
    %4034 = vmatpush.xpose.msra.mxu0 0.0
    %4035 = vmatpush.xpose.msra.mxu0 0.0
    %4036 = vmatpush.xpose.msra.mxu0 %v272
    %4037 = vmatmul.f32.gmra.mxu0 %v675
    %v4038 = vpop.f32.mrf.mxu0
    %v4039 = vadd.f32 %v4019, %v4038
    %4040 = vdwg.mxu0
    %4041 = vmatpush.xpose.msra.mxu0 0.0
    %4042 = vmatpush.xpose.msra.mxu0 0.0
    %4043 = vmatpush.xpose.msra.mxu0 0.0
    %4044 = vmatpush.xpose.msra.mxu0 0.0
    %4045 = vmatpush.xpose.msra.mxu0 0.0
    %4046 = vmatpush.xpose.msra.mxu0 0.0
    %4047 = vmatpush.xpose.msra.mxu0 0.0
    %4048 = vmatpush.xpose.msra.mxu0 0.0
    %4049 = vmatpush.xpose.msra.mxu0 0.0
    %4050 = vmatpush.xpose.msra.mxu0 0.0
    %4051 = vmatpush.xpose.msra.mxu0 0.0
    %4052 = vmatpush.xpose.msra.mxu0 0.0
    %4053 = vmatpush.xpose.msra.mxu0 0.0
    %4054 = vmatpush.xpose.msra.mxu0 0.0
    %4055 = vmatpush.xpose.msra.mxu0 0.0
    %4056 = vmatpush.xpose.msra.mxu0 %v273
    %4057 = vmatmul.f32.gmra.mxu0 %v676
    %v4058 = vpop.f32.mrf.mxu0
    %v4059 = vadd.f32 %v4039, %v4058
    %4060 = vdwg.mxu0
    %4061 = vmatpush.xpose.msra.mxu0 0.0
    %4062 = vmatpush.xpose.msra.mxu0 0.0
    %4063 = vmatpush.xpose.msra.mxu0 0.0
    %4064 = vmatpush.xpose.msra.mxu0 0.0
    %4065 = vmatpush.xpose.msra.mxu0 0.0
    %4066 = vmatpush.xpose.msra.mxu0 0.0
    %4067 = vmatpush.xpose.msra.mxu0 0.0
    %4068 = vmatpush.xpose.msra.mxu0 0.0
    %4069 = vmatpush.xpose.msra.mxu0 0.0
    %4070 = vmatpush.xpose.msra.mxu0 0.0
    %4071 = vmatpush.xpose.msra.mxu0 0.0
    %4072 = vmatpush.xpose.msra.mxu0 0.0
    %4073 = vmatpush.xpose.msra.mxu0 0.0
    %4074 = vmatpush.xpose.msra.mxu0 0.0
    %4075 = vmatpush.xpose.msra.mxu0 0.0
    %4076 = vmatpush.xpose.msra.mxu0 %v274
    %4077 = vmatmul.f32.gmra.mxu0 %v677
    %v4078 = vpop.f32.mrf.mxu0
    %v4079 = vadd.f32 %v4059, %v4078
    %4080 = vdwg.mxu0
    %4081 = vmatpush.xpose.msra.mxu0 0.0
    %4082 = vmatpush.xpose.msra.mxu0 0.0
    %4083 = vmatpush.xpose.msra.mxu0 0.0
    %4084 = vmatpush.xpose.msra.mxu0 0.0
    %4085 = vmatpush.xpose.msra.mxu0 0.0
    %4086 = vmatpush.xpose.msra.mxu0 0.0
    %4087 = vmatpush.xpose.msra.mxu0 0.0
    %4088 = vmatpush.xpose.msra.mxu0 0.0
    %4089 = vmatpush.xpose.msra.mxu0 0.0
    %4090 = vmatpush.xpose.msra.mxu0 0.0
    %4091 = vmatpush.xpose.msra.mxu0 0.0
    %4092 = vmatpush.xpose.msra.mxu0 0.0
    %4093 = vmatpush.xpose.msra.mxu0 0.0
    %4094 = vmatpush.xpose.msra.mxu0 0.0
    %4095 = vmatpush.xpose.msra.mxu0 0.0
    %4096 = vmatpush.xpose.msra.mxu0 %v275
    %4097 = vmatmul.f32.gmra.mxu0 %v678
    %v4098 = vpop.f32.mrf.mxu0
    %v4099 = vadd.f32 %v4079, %v4098
    %4100 = vdwg.mxu0
    %4101 = vmatpush.xpose.msra.mxu0 0.0
    %4102 = vmatpush.xpose.msra.mxu0 0.0
    %4103 = vmatpush.xpose.msra.mxu0 0.0
    %4104 = vmatpush.xpose.msra.mxu0 0.0
    %4105 = vmatpush.xpose.msra.mxu0 0.0
    %4106 = vmatpush.xpose.msra.mxu0 0.0
    %4107 = vmatpush.xpose.msra.mxu0 0.0
    %4108 = vmatpush.xpose.msra.mxu0 0.0
    %4109 = vmatpush.xpose.msra.mxu0 0.0
    %4110 = vmatpush.xpose.msra.mxu0 0.0
    %4111 = vmatpush.xpose.msra.mxu0 0.0
    %4112 = vmatpush.xpose.msra.mxu0 0.0
    %4113 = vmatpush.xpose.msra.mxu0 0.0
    %4114 = vmatpush.xpose.msra.mxu0 0.0
    %4115 = vmatpush.xpose.msra.mxu0 0.0
    %4116 = vmatpush.xpose.msra.mxu0 %v276
    %4117 = vmatmul.f32.gmra.mxu0 %v679
    %v4118 = vpop.f32.mrf.mxu0
    %v4119 = vadd.f32 %v4099, %v4118
    %4120 = vdwg.mxu0
    %4121 = vmatpush.xpose.msra.mxu0 0.0
    %4122 = vmatpush.xpose.msra.mxu0 0.0
    %4123 = vmatpush.xpose.msra.mxu0 0.0
    %4124 = vmatpush.xpose.msra.mxu0 0.0
    %4125 = vmatpush.xpose.msra.mxu0 0.0
    %4126 = vmatpush.xpose.msra.mxu0 0.0
    %4127 = vmatpush.xpose.msra.mxu0 0.0
    %4128 = vmatpush.xpose.msra.mxu0 0.0
    %4129 = vmatpush.xpose.msra.mxu0 0.0
    %4130 = vmatpush.xpose.msra.mxu0 0.0
    %4131 = vmatpush.xpose.msra.mxu0 0.0
    %4132 = vmatpush.xpose.msra.mxu0 0.0
    %4133 = vmatpush.xpose.msra.mxu0 0.0
    %4134 = vmatpush.xpose.msra.mxu0 0.0
    %4135 = vmatpush.xpose.msra.mxu0 0.0
    %4136 = vmatpush.xpose.msra.mxu0 %v277
    %4137 = vmatmul.f32.gmra.mxu0 %v680
    %v4138 = vpop.f32.mrf.mxu0
    %v4139 = vadd.f32 %v4119, %v4138
    %4140 = vdwg.mxu0
    %4141 = vmatpush.xpose.msra.mxu0 0.0
    %4142 = vmatpush.xpose.msra.mxu0 0.0
    %4143 = vmatpush.xpose.msra.mxu0 0.0
    %4144 = vmatpush.xpose.msra.mxu0 0.0
    %4145 = vmatpush.xpose.msra.mxu0 0.0
    %4146 = vmatpush.xpose.msra.mxu0 0.0
    %4147 = vmatpush.xpose.msra.mxu0 0.0
    %4148 = vmatpush.xpose.msra.mxu0 0.0
    %4149 = vmatpush.xpose.msra.mxu0 0.0
    %4150 = vmatpush.xpose.msra.mxu0 0.0
    %4151 = vmatpush.xpose.msra.mxu0 0.0
    %4152 = vmatpush.xpose.msra.mxu0 0.0
    %4153 = vmatpush.xpose.msra.mxu0 0.0
    %4154 = vmatpush.xpose.msra.mxu0 0.0
    %4155 = vmatpush.xpose.msra.mxu0 0.0
    %4156 = vmatpush.xpose.msra.mxu0 %v278
    %4157 = vmatmul.f32.gmra.mxu0 %v681
    %v4158 = vpop.f32.mrf.mxu0
    %v4159 = vadd.f32 %v4139, %v4158
    %4160 = vdwg.mxu0
    %4161 = vmatpush.xpose.msra.mxu0 0.0
    %4162 = vmatpush.xpose.msra.mxu0 0.0
    %4163 = vmatpush.xpose.msra.mxu0 0.0
    %4164 = vmatpush.xpose.msra.mxu0 0.0
    %4165 = vmatpush.xpose.msra.mxu0 0.0
    %4166 = vmatpush.xpose.msra.mxu0 0.0
    %4167 = vmatpush.xpose.msra.mxu0 0.0
    %4168 = vmatpush.xpose.msra.mxu0 0.0
    %4169 = vmatpush.xpose.msra.mxu0 0.0
    %4170 = vmatpush.xpose.msra.mxu0 0.0
    %4171 = vmatpush.xpose.msra.mxu0 0.0
    %4172 = vmatpush.xpose.msra.mxu0 0.0
    %4173 = vmatpush.xpose.msra.mxu0 0.0
    %4174 = vmatpush.xpose.msra.mxu0 0.0
    %4175 = vmatpush.xpose.msra.mxu0 0.0
    %4176 = vmatpush.xpose.msra.mxu0 %v279
    %4177 = vmatmul.f32.gmra.mxu0 %v682
    %v4178 = vpop.f32.mrf.mxu0
    %v4179 = vadd.f32 %v4159, %v4178
    %4180 = vdwg.mxu0
    %4181 = vmatpush.xpose.msra.mxu0 0.0
    %4182 = vmatpush.xpose.msra.mxu0 0.0
    %4183 = vmatpush.xpose.msra.mxu0 0.0
    %4184 = vmatpush.xpose.msra.mxu0 0.0
    %4185 = vmatpush.xpose.msra.mxu0 0.0
    %4186 = vmatpush.xpose.msra.mxu0 0.0
    %4187 = vmatpush.xpose.msra.mxu0 0.0
    %4188 = vmatpush.xpose.msra.mxu0 0.0
    %4189 = vmatpush.xpose.msra.mxu0 0.0
    %4190 = vmatpush.xpose.msra.mxu0 0.0
    %4191 = vmatpush.xpose.msra.mxu0 0.0
    %4192 = vmatpush.xpose.msra.mxu0 0.0
    %4193 = vmatpush.xpose.msra.mxu0 0.0
    %4194 = vmatpush.xpose.msra.mxu0 0.0
    %4195 = vmatpush.xpose.msra.mxu0 0.0
    %4196 = vmatpush.xpose.msra.mxu0 %v280
    %4197 = vmatmul.f32.gmra.mxu0 %v685
    %v4198 = vpop.f32.mrf.mxu0
    %v4199 = vadd.f32 %v4179, %v4198
    %4200 = vdwg.mxu0
    %4201 = vmatpush.xpose.msra.mxu0 0.0
    %4202 = vmatpush.xpose.msra.mxu0 0.0
    %4203 = vmatpush.xpose.msra.mxu0 0.0
    %4204 = vmatpush.xpose.msra.mxu0 0.0
    %4205 = vmatpush.xpose.msra.mxu0 0.0
    %4206 = vmatpush.xpose.msra.mxu0 0.0
    %4207 = vmatpush.xpose.msra.mxu0 0.0
    %4208 = vmatpush.xpose.msra.mxu0 0.0
    %4209 = vmatpush.xpose.msra.mxu0 0.0
    %4210 = vmatpush.xpose.msra.mxu0 0.0
    %4211 = vmatpush.xpose.msra.mxu0 0.0
    %4212 = vmatpush.xpose.msra.mxu0 0.0
    %4213 = vmatpush.xpose.msra.mxu0 0.0
    %4214 = vmatpush.xpose.msra.mxu0 0.0
    %4215 = vmatpush.xpose.msra.mxu0 0.0
    %4216 = vmatpush.xpose.msra.mxu0 %v281
    %4217 = vmatmul.f32.gmra.mxu0 %v686
    %v4218 = vpop.f32.mrf.mxu0
    %v4219 = vadd.f32 %v4199, %v4218
    %4220 = vdwg.mxu0
    %4221 = vmatpush.xpose.msra.mxu0 0.0
    %4222 = vmatpush.xpose.msra.mxu0 0.0
    %4223 = vmatpush.xpose.msra.mxu0 0.0
    %4224 = vmatpush.xpose.msra.mxu0 0.0
    %4225 = vmatpush.xpose.msra.mxu0 0.0
    %4226 = vmatpush.xpose.msra.mxu0 0.0
    %4227 = vmatpush.xpose.msra.mxu0 0.0
    %4228 = vmatpush.xpose.msra.mxu0 0.0
    %4229 = vmatpush.xpose.msra.mxu0 0.0
    %4230 = vmatpush.xpose.msra.mxu0 0.0
    %4231 = vmatpush.xpose.msra.mxu0 0.0
    %4232 = vmatpush.xpose.msra.mxu0 0.0
    %4233 = vmatpush.xpose.msra.mxu0 0.0
    %4234 = vmatpush.xpose.msra.mxu0 0.0
    %4235 = vmatpush.xpose.msra.mxu0 0.0
    %4236 = vmatpush.xpose.msra.mxu0 %v282
    %4237 = vmatmul.f32.gmra.mxu0 %v687
    %v4238 = vpop.f32.mrf.mxu0
    %v4239 = vadd.f32 %v4219, %v4238
    %4240 = vdwg.mxu0
    %4241 = vmatpush.xpose.msra.mxu0 0.0
    %4242 = vmatpush.xpose.msra.mxu0 0.0
    %4243 = vmatpush.xpose.msra.mxu0 0.0
    %4244 = vmatpush.xpose.msra.mxu0 0.0
    %4245 = vmatpush.xpose.msra.mxu0 0.0
    %4246 = vmatpush.xpose.msra.mxu0 0.0
    %4247 = vmatpush.xpose.msra.mxu0 0.0
    %4248 = vmatpush.xpose.msra.mxu0 0.0
    %4249 = vmatpush.xpose.msra.mxu0 0.0
    %4250 = vmatpush.xpose.msra.mxu0 0.0
    %4251 = vmatpush.xpose.msra.mxu0 0.0
    %4252 = vmatpush.xpose.msra.mxu0 0.0
    %4253 = vmatpush.xpose.msra.mxu0 0.0
    %4254 = vmatpush.xpose.msra.mxu0 0.0
    %4255 = vmatpush.xpose.msra.mxu0 0.0
    %4256 = vmatpush.xpose.msra.mxu0 %v283
    %4257 = vmatmul.f32.gmra.mxu0 %v688
    %v4258 = vpop.f32.mrf.mxu0
    %v4259 = vadd.f32 %v4239, %v4258
    %4260 = vdwg.mxu0
    %4261 = vmatpush.xpose.msra.mxu0 0.0
    %4262 = vmatpush.xpose.msra.mxu0 0.0
    %4263 = vmatpush.xpose.msra.mxu0 0.0
    %4264 = vmatpush.xpose.msra.mxu0 0.0
    %4265 = vmatpush.xpose.msra.mxu0 0.0
    %4266 = vmatpush.xpose.msra.mxu0 0.0
    %4267 = vmatpush.xpose.msra.mxu0 0.0
    %4268 = vmatpush.xpose.msra.mxu0 0.0
    %4269 = vmatpush.xpose.msra.mxu0 0.0
    %4270 = vmatpush.xpose.msra.mxu0 0.0
    %4271 = vmatpush.xpose.msra.mxu0 0.0
    %4272 = vmatpush.xpose.msra.mxu0 0.0
    %4273 = vmatpush.xpose.msra.mxu0 0.0
    %4274 = vmatpush.xpose.msra.mxu0 0.0
    %4275 = vmatpush.xpose.msra.mxu0 0.0
    %4276 = vmatpush.xpose.msra.mxu0 %v284
    %4277 = vmatmul.f32.gmra.mxu0 %v689
    %v4278 = vpop.f32.mrf.mxu0
    %v4279 = vadd.f32 %v4259, %v4278
    %4280 = vdwg.mxu0
    %4281 = vmatpush.xpose.msra.mxu0 0.0
    %4282 = vmatpush.xpose.msra.mxu0 0.0
    %4283 = vmatpush.xpose.msra.mxu0 0.0
    %4284 = vmatpush.xpose.msra.mxu0 0.0
    %4285 = vmatpush.xpose.msra.mxu0 0.0
    %4286 = vmatpush.xpose.msra.mxu0 0.0
    %4287 = vmatpush.xpose.msra.mxu0 0.0
    %4288 = vmatpush.xpose.msra.mxu0 0.0
    %4289 = vmatpush.xpose.msra.mxu0 0.0
    %4290 = vmatpush.xpose.msra.mxu0 0.0
    %4291 = vmatpush.xpose.msra.mxu0 0.0
    %4292 = vmatpush.xpose.msra.mxu0 0.0
    %4293 = vmatpush.xpose.msra.mxu0 0.0
    %4294 = vmatpush.xpose.msra.mxu0 0.0
    %4295 = vmatpush.xpose.msra.mxu0 0.0
    %4296 = vmatpush.xpose.msra.mxu0 %v285
    %4297 = vmatmul.f32.gmra.mxu0 %v690
    %v4298 = vpop.f32.mrf.mxu0
    %v4299 = vadd.f32 %v4279, %v4298
    %4300 = vdwg.mxu0
    %4301 = vmatpush.xpose.msra.mxu0 0.0
    %4302 = vmatpush.xpose.msra.mxu0 0.0
    %4303 = vmatpush.xpose.msra.mxu0 0.0
    %4304 = vmatpush.xpose.msra.mxu0 0.0
    %4305 = vmatpush.xpose.msra.mxu0 0.0
    %4306 = vmatpush.xpose.msra.mxu0 0.0
    %4307 = vmatpush.xpose.msra.mxu0 0.0
    %4308 = vmatpush.xpose.msra.mxu0 0.0
    %4309 = vmatpush.xpose.msra.mxu0 0.0
    %4310 = vmatpush.xpose.msra.mxu0 0.0
    %4311 = vmatpush.xpose.msra.mxu0 0.0
    %4312 = vmatpush.xpose.msra.mxu0 0.0
    %4313 = vmatpush.xpose.msra.mxu0 0.0
    %4314 = vmatpush.xpose.msra.mxu0 0.0
    %4315 = vmatpush.xpose.msra.mxu0 0.0
    %4316 = vmatpush.xpose.msra.mxu0 %v286
    %4317 = vmatmul.f32.gmra.mxu0 %v691
    %v4318 = vpop.f32.mrf.mxu0
    %v4319 = vadd.f32 %v4299, %v4318
    %4320 = vdwg.mxu0
    %4321 = vmatpush.xpose.msra.mxu0 0.0
    %4322 = vmatpush.xpose.msra.mxu0 0.0
    %4323 = vmatpush.xpose.msra.mxu0 0.0
    %4324 = vmatpush.xpose.msra.mxu0 0.0
    %4325 = vmatpush.xpose.msra.mxu0 0.0
    %4326 = vmatpush.xpose.msra.mxu0 0.0
    %4327 = vmatpush.xpose.msra.mxu0 0.0
    %4328 = vmatpush.xpose.msra.mxu0 0.0
    %4329 = vmatpush.xpose.msra.mxu0 0.0
    %4330 = vmatpush.xpose.msra.mxu0 0.0
    %4331 = vmatpush.xpose.msra.mxu0 0.0
    %4332 = vmatpush.xpose.msra.mxu0 0.0
    %4333 = vmatpush.xpose.msra.mxu0 0.0
    %4334 = vmatpush.xpose.msra.mxu0 0.0
    %4335 = vmatpush.xpose.msra.mxu0 0.0
    %4336 = vmatpush.xpose.msra.mxu0 %v287
    %4337 = vmatmul.f32.gmra.mxu0 %v692
    %v4338 = vpop.f32.mrf.mxu0
    %v4339 = vadd.f32 %v4319, %v4338
    %4340 = vdwg.mxu0
    %4341 = vmatpush.xpose.msra.mxu0 0.0
    %4342 = vmatpush.xpose.msra.mxu0 0.0
    %4343 = vmatpush.xpose.msra.mxu0 0.0
    %4344 = vmatpush.xpose.msra.mxu0 0.0
    %4345 = vmatpush.xpose.msra.mxu0 0.0
    %4346 = vmatpush.xpose.msra.mxu0 0.0
    %4347 = vmatpush.xpose.msra.mxu0 0.0
    %4348 = vmatpush.xpose.msra.mxu0 0.0
    %4349 = vmatpush.xpose.msra.mxu0 0.0
    %4350 = vmatpush.xpose.msra.mxu0 0.0
    %4351 = vmatpush.xpose.msra.mxu0 0.0
    %4352 = vmatpush.xpose.msra.mxu0 0.0
    %4353 = vmatpush.xpose.msra.mxu0 0.0
    %4354 = vmatpush.xpose.msra.mxu0 0.0
    %4355 = vmatpush.xpose.msra.mxu0 0.0
    %4356 = vmatpush.xpose.msra.mxu0 %v288
    %4357 = vmatmul.f32.gmra.mxu0 %v695
    %v4358 = vpop.f32.mrf.mxu0
    %v4359 = vadd.f32 %v4339, %v4358
    %4360 = vdwg.mxu0
    %4361 = vmatpush.xpose.msra.mxu0 0.0
    %4362 = vmatpush.xpose.msra.mxu0 0.0
    %4363 = vmatpush.xpose.msra.mxu0 0.0
    %4364 = vmatpush.xpose.msra.mxu0 0.0
    %4365 = vmatpush.xpose.msra.mxu0 0.0
    %4366 = vmatpush.xpose.msra.mxu0 0.0
    %4367 = vmatpush.xpose.msra.mxu0 0.0
    %4368 = vmatpush.xpose.msra.mxu0 0.0
    %4369 = vmatpush.xpose.msra.mxu0 0.0
    %4370 = vmatpush.xpose.msra.mxu0 0.0
    %4371 = vmatpush.xpose.msra.mxu0 0.0
    %4372 = vmatpush.xpose.msra.mxu0 0.0
    %4373 = vmatpush.xpose.msra.mxu0 0.0
    %4374 = vmatpush.xpose.msra.mxu0 0.0
    %4375 = vmatpush.xpose.msra.mxu0 0.0
    %4376 = vmatpush.xpose.msra.mxu0 %v289
    %4377 = vmatmul.f32.gmra.mxu0 %v696
    %v4378 = vpop.f32.mrf.mxu0
    %v4379 = vadd.f32 %v4359, %v4378
    %4380 = vdwg.mxu0
    %4381 = vmatpush.xpose.msra.mxu0 0.0
    %4382 = vmatpush.xpose.msra.mxu0 0.0
    %4383 = vmatpush.xpose.msra.mxu0 0.0
    %4384 = vmatpush.xpose.msra.mxu0 0.0
    %4385 = vmatpush.xpose.msra.mxu0 0.0
    %4386 = vmatpush.xpose.msra.mxu0 0.0
    %4387 = vmatpush.xpose.msra.mxu0 0.0
    %4388 = vmatpush.xpose.msra.mxu0 0.0
    %4389 = vmatpush.xpose.msra.mxu0 0.0
    %4390 = vmatpush.xpose.msra.mxu0 0.0
    %4391 = vmatpush.xpose.msra.mxu0 0.0
    %4392 = vmatpush.xpose.msra.mxu0 0.0
    %4393 = vmatpush.xpose.msra.mxu0 0.0
    %4394 = vmatpush.xpose.msra.mxu0 0.0
    %4395 = vmatpush.xpose.msra.mxu0 0.0
    %4396 = vmatpush.xpose.msra.mxu0 %v290
    %4397 = vmatmul.f32.gmra.mxu0 %v697
    %v4398 = vpop.f32.mrf.mxu0
    %v4399 = vadd.f32 %v4379, %v4398
    %4400 = vdwg.mxu0
    %4401 = vmatpush.xpose.msra.mxu0 0.0
    %4402 = vmatpush.xpose.msra.mxu0 0.0
    %4403 = vmatpush.xpose.msra.mxu0 0.0
    %4404 = vmatpush.xpose.msra.mxu0 0.0
    %4405 = vmatpush.xpose.msra.mxu0 0.0
    %4406 = vmatpush.xpose.msra.mxu0 0.0
    %4407 = vmatpush.xpose.msra.mxu0 0.0
    %4408 = vmatpush.xpose.msra.mxu0 0.0
    %4409 = vmatpush.xpose.msra.mxu0 0.0
    %4410 = vmatpush.xpose.msra.mxu0 0.0
    %4411 = vmatpush.xpose.msra.mxu0 0.0
    %4412 = vmatpush.xpose.msra.mxu0 0.0
    %4413 = vmatpush.xpose.msra.mxu0 0.0
    %4414 = vmatpush.xpose.msra.mxu0 0.0
    %4415 = vmatpush.xpose.msra.mxu0 0.0
    %4416 = vmatpush.xpose.msra.mxu0 %v291
    %4417 = vmatmul.f32.gmra.mxu0 %v698
    %v4418 = vpop.f32.mrf.mxu0
    %v4419 = vadd.f32 %v4399, %v4418
    %4420 = vdwg.mxu0
    %4421 = vmatpush.xpose.msra.mxu0 0.0
    %4422 = vmatpush.xpose.msra.mxu0 0.0
    %4423 = vmatpush.xpose.msra.mxu0 0.0
    %4424 = vmatpush.xpose.msra.mxu0 0.0
    %4425 = vmatpush.xpose.msra.mxu0 0.0
    %4426 = vmatpush.xpose.msra.mxu0 0.0
    %4427 = vmatpush.xpose.msra.mxu0 0.0
    %4428 = vmatpush.xpose.msra.mxu0 0.0
    %4429 = vmatpush.xpose.msra.mxu0 0.0
    %4430 = vmatpush.xpose.msra.mxu0 0.0
    %4431 = vmatpush.xpose.msra.mxu0 0.0
    %4432 = vmatpush.xpose.msra.mxu0 0.0
    %4433 = vmatpush.xpose.msra.mxu0 0.0
    %4434 = vmatpush.xpose.msra.mxu0 0.0
    %4435 = vmatpush.xpose.msra.mxu0 0.0
    %4436 = vmatpush.xpose.msra.mxu0 %v292
    %4437 = vmatmul.f32.gmra.mxu0 %v699
    %v4438 = vpop.f32.mrf.mxu0
    %v4439 = vadd.f32 %v4419, %v4438
    %4440 = vdwg.mxu0
    %4441 = vmatpush.xpose.msra.mxu0 0.0
    %4442 = vmatpush.xpose.msra.mxu0 0.0
    %4443 = vmatpush.xpose.msra.mxu0 0.0
    %4444 = vmatpush.xpose.msra.mxu0 0.0
    %4445 = vmatpush.xpose.msra.mxu0 0.0
    %4446 = vmatpush.xpose.msra.mxu0 0.0
    %4447 = vmatpush.xpose.msra.mxu0 0.0
    %4448 = vmatpush.xpose.msra.mxu0 0.0
    %4449 = vmatpush.xpose.msra.mxu0 0.0
    %4450 = vmatpush.xpose.msra.mxu0 0.0
    %4451 = vmatpush.xpose.msra.mxu0 0.0
    %4452 = vmatpush.xpose.msra.mxu0 0.0
    %4453 = vmatpush.xpose.msra.mxu0 0.0
    %4454 = vmatpush.xpose.msra.mxu0 0.0
    %4455 = vmatpush.xpose.msra.mxu0 0.0
    %4456 = vmatpush.xpose.msra.mxu0 %v293
    %4457 = vmatmul.f32.gmra.mxu0 %v700
    %v4458 = vpop.f32.mrf.mxu0
    %v4459 = vadd.f32 %v4439, %v4458
    %4460 = vdwg.mxu0
    %4461 = vmatpush.xpose.msra.mxu0 0.0
    %4462 = vmatpush.xpose.msra.mxu0 0.0
    %4463 = vmatpush.xpose.msra.mxu0 0.0
    %4464 = vmatpush.xpose.msra.mxu0 0.0
    %4465 = vmatpush.xpose.msra.mxu0 0.0
    %4466 = vmatpush.xpose.msra.mxu0 0.0
    %4467 = vmatpush.xpose.msra.mxu0 0.0
    %4468 = vmatpush.xpose.msra.mxu0 0.0
    %4469 = vmatpush.xpose.msra.mxu0 0.0
    %4470 = vmatpush.xpose.msra.mxu0 0.0
    %4471 = vmatpush.xpose.msra.mxu0 0.0
    %4472 = vmatpush.xpose.msra.mxu0 0.0
    %4473 = vmatpush.xpose.msra.mxu0 0.0
    %4474 = vmatpush.xpose.msra.mxu0 0.0
    %4475 = vmatpush.xpose.msra.mxu0 0.0
    %4476 = vmatpush.xpose.msra.mxu0 %v294
    %4477 = vmatmul.f32.gmra.mxu0 %v701
    %v4478 = vpop.f32.mrf.mxu0
    %v4479 = vadd.f32 %v4459, %v4478
    %4480 = vdwg.mxu0
    %4481 = vmatpush.xpose.msra.mxu0 0.0
    %4482 = vmatpush.xpose.msra.mxu0 0.0
    %4483 = vmatpush.xpose.msra.mxu0 0.0
    %4484 = vmatpush.xpose.msra.mxu0 0.0
    %4485 = vmatpush.xpose.msra.mxu0 0.0
    %4486 = vmatpush.xpose.msra.mxu0 0.0
    %4487 = vmatpush.xpose.msra.mxu0 0.0
    %4488 = vmatpush.xpose.msra.mxu0 0.0
    %4489 = vmatpush.xpose.msra.mxu0 0.0
    %4490 = vmatpush.xpose.msra.mxu0 0.0
    %4491 = vmatpush.xpose.msra.mxu0 0.0
    %4492 = vmatpush.xpose.msra.mxu0 0.0
    %4493 = vmatpush.xpose.msra.mxu0 0.0
    %4494 = vmatpush.xpose.msra.mxu0 0.0
    %4495 = vmatpush.xpose.msra.mxu0 0.0
    %4496 = vmatpush.xpose.msra.mxu0 %v295
    %4497 = vmatmul.f32.gmra.mxu0 %v702
    %v4498 = vpop.f32.mrf.mxu0
    %v4499 = vadd.f32 %v4479, %v4498
    %4500 = vdwg.mxu0
    %4501 = vmatpush.xpose.msra.mxu0 0.0
    %4502 = vmatpush.xpose.msra.mxu0 0.0
    %4503 = vmatpush.xpose.msra.mxu0 0.0
    %4504 = vmatpush.xpose.msra.mxu0 0.0
    %4505 = vmatpush.xpose.msra.mxu0 0.0
    %4506 = vmatpush.xpose.msra.mxu0 0.0
    %4507 = vmatpush.xpose.msra.mxu0 0.0
    %4508 = vmatpush.xpose.msra.mxu0 0.0
    %4509 = vmatpush.xpose.msra.mxu0 0.0
    %4510 = vmatpush.xpose.msra.mxu0 0.0
    %4511 = vmatpush.xpose.msra.mxu0 0.0
    %4512 = vmatpush.xpose.msra.mxu0 0.0
    %4513 = vmatpush.xpose.msra.mxu0 0.0
    %4514 = vmatpush.xpose.msra.mxu0 0.0
    %4515 = vmatpush.xpose.msra.mxu0 0.0
    %4516 = vmatpush.xpose.msra.mxu0 %v296
    %4517 = vmatmul.f32.gmra.mxu0 %v705
    %v4518 = vpop.f32.mrf.mxu0
    %v4519 = vadd.f32 %v4499, %v4518
    %4520 = vdwg.mxu0
    %4521 = vmatpush.xpose.msra.mxu0 0.0
    %4522 = vmatpush.xpose.msra.mxu0 0.0
    %4523 = vmatpush.xpose.msra.mxu0 0.0
    %4524 = vmatpush.xpose.msra.mxu0 0.0
    %4525 = vmatpush.xpose.msra.mxu0 0.0
    %4526 = vmatpush.xpose.msra.mxu0 0.0
    %4527 = vmatpush.xpose.msra.mxu0 0.0
    %4528 = vmatpush.xpose.msra.mxu0 0.0
    %4529 = vmatpush.xpose.msra.mxu0 0.0
    %4530 = vmatpush.xpose.msra.mxu0 0.0
    %4531 = vmatpush.xpose.msra.mxu0 0.0
    %4532 = vmatpush.xpose.msra.mxu0 0.0
    %4533 = vmatpush.xpose.msra.mxu0 0.0
    %4534 = vmatpush.xpose.msra.mxu0 0.0
    %4535 = vmatpush.xpose.msra.mxu0 0.0
    %4536 = vmatpush.xpose.msra.mxu0 %v297
    %4537 = vmatmul.f32.gmra.mxu0 %v706
    %v4538 = vpop.f32.mrf.mxu0
    %v4539 = vadd.f32 %v4519, %v4538
    %4540 = vdwg.mxu0
    %4541 = vmatpush.xpose.msra.mxu0 0.0
    %4542 = vmatpush.xpose.msra.mxu0 0.0
    %4543 = vmatpush.xpose.msra.mxu0 0.0
    %4544 = vmatpush.xpose.msra.mxu0 0.0
    %4545 = vmatpush.xpose.msra.mxu0 0.0
    %4546 = vmatpush.xpose.msra.mxu0 0.0
    %4547 = vmatpush.xpose.msra.mxu0 0.0
    %4548 = vmatpush.xpose.msra.mxu0 0.0
    %4549 = vmatpush.xpose.msra.mxu0 0.0
    %4550 = vmatpush.xpose.msra.mxu0 0.0
    %4551 = vmatpush.xpose.msra.mxu0 0.0
    %4552 = vmatpush.xpose.msra.mxu0 0.0
    %4553 = vmatpush.xpose.msra.mxu0 0.0
    %4554 = vmatpush.xpose.msra.mxu0 0.0
    %4555 = vmatpush.xpose.msra.mxu0 0.0
    %4556 = vmatpush.xpose.msra.mxu0 %v298
    %4557 = vmatmul.f32.gmra.mxu0 %v707
    %v4558 = vpop.f32.mrf.mxu0
    %v4559 = vadd.f32 %v4539, %v4558
    %4560 = vdwg.mxu0
    %4561 = vmatpush.xpose.msra.mxu0 0.0
    %4562 = vmatpush.xpose.msra.mxu0 0.0
    %4563 = vmatpush.xpose.msra.mxu0 0.0
    %4564 = vmatpush.xpose.msra.mxu0 0.0
    %4565 = vmatpush.xpose.msra.mxu0 0.0
    %4566 = vmatpush.xpose.msra.mxu0 0.0
    %4567 = vmatpush.xpose.msra.mxu0 0.0
    %4568 = vmatpush.xpose.msra.mxu0 0.0
    %4569 = vmatpush.xpose.msra.mxu0 0.0
    %4570 = vmatpush.xpose.msra.mxu0 0.0
    %4571 = vmatpush.xpose.msra.mxu0 0.0
    %4572 = vmatpush.xpose.msra.mxu0 0.0
    %4573 = vmatpush.xpose.msra.mxu0 0.0
    %4574 = vmatpush.xpose.msra.mxu0 0.0
    %4575 = vmatpush.xpose.msra.mxu0 0.0
    %4576 = vmatpush.xpose.msra.mxu0 %v299
    %4577 = vmatmul.f32.gmra.mxu0 %v708
    %v4578 = vpop.f32.mrf.mxu0
    %v4579 = vadd.f32 %v4559, %v4578
    %4580 = vdwg.mxu0
    %4581 = vmatpush.xpose.msra.mxu0 0.0
    %4582 = vmatpush.xpose.msra.mxu0 0.0
    %4583 = vmatpush.xpose.msra.mxu0 0.0
    %4584 = vmatpush.xpose.msra.mxu0 0.0
    %4585 = vmatpush.xpose.msra.mxu0 0.0
    %4586 = vmatpush.xpose.msra.mxu0 0.0
    %4587 = vmatpush.xpose.msra.mxu0 0.0
    %4588 = vmatpush.xpose.msra.mxu0 0.0
    %4589 = vmatpush.xpose.msra.mxu0 0.0
    %4590 = vmatpush.xpose.msra.mxu0 0.0
    %4591 = vmatpush.xpose.msra.mxu0 0.0
    %4592 = vmatpush.xpose.msra.mxu0 0.0
    %4593 = vmatpush.xpose.msra.mxu0 0.0
    %4594 = vmatpush.xpose.msra.mxu0 0.0
    %4595 = vmatpush.xpose.msra.mxu0 0.0
    %4596 = vmatpush.xpose.msra.mxu0 %v300
    %4597 = vmatmul.f32.gmra.mxu0 %v709
    %v4598 = vpop.f32.mrf.mxu0
    %v4599 = vadd.f32 %v4579, %v4598
    %4600 = vdwg.mxu0
    %4601 = vmatpush.xpose.msra.mxu0 0.0
    %4602 = vmatpush.xpose.msra.mxu0 0.0
    %4603 = vmatpush.xpose.msra.mxu0 0.0
    %4604 = vmatpush.xpose.msra.mxu0 0.0
    %4605 = vmatpush.xpose.msra.mxu0 0.0
    %4606 = vmatpush.xpose.msra.mxu0 0.0
    %4607 = vmatpush.xpose.msra.mxu0 0.0
    %4608 = vmatpush.xpose.msra.mxu0 0.0
    %4609 = vmatpush.xpose.msra.mxu0 0.0
    %4610 = vmatpush.xpose.msra.mxu0 0.0
    %4611 = vmatpush.xpose.msra.mxu0 0.0
    %4612 = vmatpush.xpose.msra.mxu0 0.0
    %4613 = vmatpush.xpose.msra.mxu0 0.0
    %4614 = vmatpush.xpose.msra.mxu0 0.0
    %4615 = vmatpush.xpose.msra.mxu0 0.0
    %4616 = vmatpush.xpose.msra.mxu0 %v301
    %4617 = vmatmul.f32.gmra.mxu0 %v710
    %v4618 = vpop.f32.mrf.mxu0
    %v4619 = vadd.f32 %v4599, %v4618
    %4620 = vdwg.mxu0
    %4621 = vmatpush.xpose.msra.mxu0 0.0
    %4622 = vmatpush.xpose.msra.mxu0 0.0
    %4623 = vmatpush.xpose.msra.mxu0 0.0
    %4624 = vmatpush.xpose.msra.mxu0 0.0
    %4625 = vmatpush.xpose.msra.mxu0 0.0
    %4626 = vmatpush.xpose.msra.mxu0 0.0
    %4627 = vmatpush.xpose.msra.mxu0 0.0
    %4628 = vmatpush.xpose.msra.mxu0 0.0
    %4629 = vmatpush.xpose.msra.mxu0 0.0
    %4630 = vmatpush.xpose.msra.mxu0 0.0
    %4631 = vmatpush.xpose.msra.mxu0 0.0
    %4632 = vmatpush.xpose.msra.mxu0 0.0
    %4633 = vmatpush.xpose.msra.mxu0 0.0
    %4634 = vmatpush.xpose.msra.mxu0 0.0
    %4635 = vmatpush.xpose.msra.mxu0 0.0
    %4636 = vmatpush.xpose.msra.mxu0 %v302
    %4637 = vmatmul.f32.gmra.mxu0 %v711
    %v4638 = vpop.f32.mrf.mxu0
    %v4639 = vadd.f32 %v4619, %v4638
    %4640 = vdwg.mxu0
    %4641 = vmatpush.xpose.msra.mxu0 0.0
    %4642 = vmatpush.xpose.msra.mxu0 0.0
    %4643 = vmatpush.xpose.msra.mxu0 0.0
    %4644 = vmatpush.xpose.msra.mxu0 0.0
    %4645 = vmatpush.xpose.msra.mxu0 0.0
    %4646 = vmatpush.xpose.msra.mxu0 0.0
    %4647 = vmatpush.xpose.msra.mxu0 0.0
    %4648 = vmatpush.xpose.msra.mxu0 0.0
    %4649 = vmatpush.xpose.msra.mxu0 0.0
    %4650 = vmatpush.xpose.msra.mxu0 0.0
    %4651 = vmatpush.xpose.msra.mxu0 0.0
    %4652 = vmatpush.xpose.msra.mxu0 0.0
    %4653 = vmatpush.xpose.msra.mxu0 0.0
    %4654 = vmatpush.xpose.msra.mxu0 0.0
    %4655 = vmatpush.xpose.msra.mxu0 0.0
    %4656 = vmatpush.xpose.msra.mxu0 %v303
    %4657 = vmatmul.f32.gmra.mxu0 %v712
    %v4658 = vpop.f32.mrf.mxu0
    %v4659 = vadd.f32 %v4639, %v4658
    %4660 = vdwg.mxu0
    %4661 = vmatpush.xpose.msra.mxu0 0.0
    %4662 = vmatpush.xpose.msra.mxu0 0.0
    %4663 = vmatpush.xpose.msra.mxu0 0.0
    %4664 = vmatpush.xpose.msra.mxu0 0.0
    %4665 = vmatpush.xpose.msra.mxu0 0.0
    %4666 = vmatpush.xpose.msra.mxu0 0.0
    %4667 = vmatpush.xpose.msra.mxu0 0.0
    %4668 = vmatpush.xpose.msra.mxu0 0.0
    %4669 = vmatpush.xpose.msra.mxu0 0.0
    %4670 = vmatpush.xpose.msra.mxu0 0.0
    %4671 = vmatpush.xpose.msra.mxu0 0.0
    %4672 = vmatpush.xpose.msra.mxu0 0.0
    %4673 = vmatpush.xpose.msra.mxu0 0.0
    %4674 = vmatpush.xpose.msra.mxu0 0.0
    %4675 = vmatpush.xpose.msra.mxu0 0.0
    %4676 = vmatpush.xpose.msra.mxu0 %v304
    %4677 = vmatmul.f32.gmra.mxu0 %v715
    %v4678 = vpop.f32.mrf.mxu0
    %v4679 = vadd.f32 %v4659, %v4678
    %4680 = vdwg.mxu0
    %4681 = vmatpush.xpose.msra.mxu0 0.0
    %4682 = vmatpush.xpose.msra.mxu0 0.0
    %4683 = vmatpush.xpose.msra.mxu0 0.0
    %4684 = vmatpush.xpose.msra.mxu0 0.0
    %4685 = vmatpush.xpose.msra.mxu0 0.0
    %4686 = vmatpush.xpose.msra.mxu0 0.0
    %4687 = vmatpush.xpose.msra.mxu0 0.0
    %4688 = vmatpush.xpose.msra.mxu0 0.0
    %4689 = vmatpush.xpose.msra.mxu0 0.0
    %4690 = vmatpush.xpose.msra.mxu0 0.0
    %4691 = vmatpush.xpose.msra.mxu0 0.0
    %4692 = vmatpush.xpose.msra.mxu0 0.0
    %4693 = vmatpush.xpose.msra.mxu0 0.0
    %4694 = vmatpush.xpose.msra.mxu0 0.0
    %4695 = vmatpush.xpose.msra.mxu0 0.0
    %4696 = vmatpush.xpose.msra.mxu0 %v305
    %4697 = vmatmul.f32.gmra.mxu0 %v716
    %v4698 = vpop.f32.mrf.mxu0
    %v4699 = vadd.f32 %v4679, %v4698
    %4700 = vdwg.mxu0
    %4701 = vmatpush.xpose.msra.mxu0 0.0
    %4702 = vmatpush.xpose.msra.mxu0 0.0
    %4703 = vmatpush.xpose.msra.mxu0 0.0
    %4704 = vmatpush.xpose.msra.mxu0 0.0
    %4705 = vmatpush.xpose.msra.mxu0 0.0
    %4706 = vmatpush.xpose.msra.mxu0 0.0
    %4707 = vmatpush.xpose.msra.mxu0 0.0
    %4708 = vmatpush.xpose.msra.mxu0 0.0
    %4709 = vmatpush.xpose.msra.mxu0 0.0
    %4710 = vmatpush.xpose.msra.mxu0 0.0
    %4711 = vmatpush.xpose.msra.mxu0 0.0
    %4712 = vmatpush.xpose.msra.mxu0 0.0
    %4713 = vmatpush.xpose.msra.mxu0 0.0
    %4714 = vmatpush.xpose.msra.mxu0 0.0
    %4715 = vmatpush.xpose.msra.mxu0 0.0
    %4716 = vmatpush.xpose.msra.mxu0 %v306
    %4717 = vmatmul.f32.gmra.mxu0 %v717
    %v4718 = vpop.f32.mrf.mxu0
    %v4719 = vadd.f32 %v4699, %v4718
    %4720 = vdwg.mxu0
    %4721 = vmatpush.xpose.msra.mxu0 0.0
    %4722 = vmatpush.xpose.msra.mxu0 0.0
    %4723 = vmatpush.xpose.msra.mxu0 0.0
    %4724 = vmatpush.xpose.msra.mxu0 0.0
    %4725 = vmatpush.xpose.msra.mxu0 0.0
    %4726 = vmatpush.xpose.msra.mxu0 0.0
    %4727 = vmatpush.xpose.msra.mxu0 0.0
    %4728 = vmatpush.xpose.msra.mxu0 0.0
    %4729 = vmatpush.xpose.msra.mxu0 0.0
    %4730 = vmatpush.xpose.msra.mxu0 0.0
    %4731 = vmatpush.xpose.msra.mxu0 0.0
    %4732 = vmatpush.xpose.msra.mxu0 0.0
    %4733 = vmatpush.xpose.msra.mxu0 0.0
    %4734 = vmatpush.xpose.msra.mxu0 0.0
    %4735 = vmatpush.xpose.msra.mxu0 0.0
    %4736 = vmatpush.xpose.msra.mxu0 %v307
    %4737 = vmatmul.f32.gmra.mxu0 %v718
    %v4738 = vpop.f32.mrf.mxu0
    %v4739 = vadd.f32 %v4719, %v4738
    %4740 = vdwg.mxu0
    %4741 = vmatpush.xpose.msra.mxu0 0.0
    %4742 = vmatpush.xpose.msra.mxu0 0.0
    %4743 = vmatpush.xpose.msra.mxu0 0.0
    %4744 = vmatpush.xpose.msra.mxu0 0.0
    %4745 = vmatpush.xpose.msra.mxu0 0.0
    %4746 = vmatpush.xpose.msra.mxu0 0.0
    %4747 = vmatpush.xpose.msra.mxu0 0.0
    %4748 = vmatpush.xpose.msra.mxu0 0.0
    %4749 = vmatpush.xpose.msra.mxu0 0.0
    %4750 = vmatpush.xpose.msra.mxu0 0.0
    %4751 = vmatpush.xpose.msra.mxu0 0.0
    %4752 = vmatpush.xpose.msra.mxu0 0.0
    %4753 = vmatpush.xpose.msra.mxu0 0.0
    %4754 = vmatpush.xpose.msra.mxu0 0.0
    %4755 = vmatpush.xpose.msra.mxu0 0.0
    %4756 = vmatpush.xpose.msra.mxu0 %v308
    %4757 = vmatmul.f32.gmra.mxu0 %v719
    %v4758 = vpop.f32.mrf.mxu0
    %v4759 = vadd.f32 %v4739, %v4758
    %4760 = vdwg.mxu0
    %4761 = vmatpush.xpose.msra.mxu0 0.0
    %4762 = vmatpush.xpose.msra.mxu0 0.0
    %4763 = vmatpush.xpose.msra.mxu0 0.0
    %4764 = vmatpush.xpose.msra.mxu0 0.0
    %4765 = vmatpush.xpose.msra.mxu0 0.0
    %4766 = vmatpush.xpose.msra.mxu0 0.0
    %4767 = vmatpush.xpose.msra.mxu0 0.0
    %4768 = vmatpush.xpose.msra.mxu0 0.0
    %4769 = vmatpush.xpose.msra.mxu0 0.0
    %4770 = vmatpush.xpose.msra.mxu0 0.0
    %4771 = vmatpush.xpose.msra.mxu0 0.0
    %4772 = vmatpush.xpose.msra.mxu0 0.0
    %4773 = vmatpush.xpose.msra.mxu0 0.0
    %4774 = vmatpush.xpose.msra.mxu0 0.0
    %4775 = vmatpush.xpose.msra.mxu0 0.0
    %4776 = vmatpush.xpose.msra.mxu0 %v309
    %4777 = vmatmul.f32.gmra.mxu0 %v720
    %v4778 = vpop.f32.mrf.mxu0
    %v4779 = vadd.f32 %v4759, %v4778
    %4780 = vdwg.mxu0
    %4781 = vmatpush.xpose.msra.mxu0 0.0
    %4782 = vmatpush.xpose.msra.mxu0 0.0
    %4783 = vmatpush.xpose.msra.mxu0 0.0
    %4784 = vmatpush.xpose.msra.mxu0 0.0
    %4785 = vmatpush.xpose.msra.mxu0 0.0
    %4786 = vmatpush.xpose.msra.mxu0 0.0
    %4787 = vmatpush.xpose.msra.mxu0 0.0
    %4788 = vmatpush.xpose.msra.mxu0 0.0
    %4789 = vmatpush.xpose.msra.mxu0 0.0
    %4790 = vmatpush.xpose.msra.mxu0 0.0
    %4791 = vmatpush.xpose.msra.mxu0 0.0
    %4792 = vmatpush.xpose.msra.mxu0 0.0
    %4793 = vmatpush.xpose.msra.mxu0 0.0
    %4794 = vmatpush.xpose.msra.mxu0 0.0
    %4795 = vmatpush.xpose.msra.mxu0 0.0
    %4796 = vmatpush.xpose.msra.mxu0 %v310
    %4797 = vmatmul.f32.gmra.mxu0 %v721
    %v4798 = vpop.f32.mrf.mxu0
    %v4799 = vadd.f32 %v4779, %v4798
    %4800 = vdwg.mxu0
    %4801 = vmatpush.xpose.msra.mxu0 0.0
    %4802 = vmatpush.xpose.msra.mxu0 0.0
    %4803 = vmatpush.xpose.msra.mxu0 0.0
    %4804 = vmatpush.xpose.msra.mxu0 0.0
    %4805 = vmatpush.xpose.msra.mxu0 0.0
    %4806 = vmatpush.xpose.msra.mxu0 0.0
    %4807 = vmatpush.xpose.msra.mxu0 0.0
    %4808 = vmatpush.xpose.msra.mxu0 0.0
    %4809 = vmatpush.xpose.msra.mxu0 0.0
    %4810 = vmatpush.xpose.msra.mxu0 0.0
    %4811 = vmatpush.xpose.msra.mxu0 0.0
    %4812 = vmatpush.xpose.msra.mxu0 0.0
    %4813 = vmatpush.xpose.msra.mxu0 0.0
    %4814 = vmatpush.xpose.msra.mxu0 0.0
    %4815 = vmatpush.xpose.msra.mxu0 0.0
    %4816 = vmatpush.xpose.msra.mxu0 %v311
    %4817 = vmatmul.f32.gmra.mxu0 %v722
    %v4818 = vpop.f32.mrf.mxu0
    %v4819 = vadd.f32 %v4799, %v4818
    %4820 = vdwg.mxu0
    %4821 = vmatpush.xpose.msra.mxu0 0.0
    %4822 = vmatpush.xpose.msra.mxu0 0.0
    %4823 = vmatpush.xpose.msra.mxu0 0.0
    %4824 = vmatpush.xpose.msra.mxu0 0.0
    %4825 = vmatpush.xpose.msra.mxu0 0.0
    %4826 = vmatpush.xpose.msra.mxu0 0.0
    %4827 = vmatpush.xpose.msra.mxu0 0.0
    %4828 = vmatpush.xpose.msra.mxu0 0.0
    %4829 = vmatpush.xpose.msra.mxu0 0.0
    %4830 = vmatpush.xpose.msra.mxu0 0.0
    %4831 = vmatpush.xpose.msra.mxu0 0.0
    %4832 = vmatpush.xpose.msra.mxu0 0.0
    %4833 = vmatpush.xpose.msra.mxu0 0.0
    %4834 = vmatpush.xpose.msra.mxu0 0.0
    %4835 = vmatpush.xpose.msra.mxu0 0.0
    %4836 = vmatpush.xpose.msra.mxu0 %v312
    %4837 = vmatmul.f32.gmra.mxu0 %v725
    %v4838 = vpop.f32.mrf.mxu0
    %v4839 = vadd.f32 %v4819, %v4838
    %4840 = vdwg.mxu0
    %4841 = vmatpush.xpose.msra.mxu0 0.0
    %4842 = vmatpush.xpose.msra.mxu0 0.0
    %4843 = vmatpush.xpose.msra.mxu0 0.0
    %4844 = vmatpush.xpose.msra.mxu0 0.0
    %4845 = vmatpush.xpose.msra.mxu0 0.0
    %4846 = vmatpush.xpose.msra.mxu0 0.0
    %4847 = vmatpush.xpose.msra.mxu0 0.0
    %4848 = vmatpush.xpose.msra.mxu0 0.0
    %4849 = vmatpush.xpose.msra.mxu0 0.0
    %4850 = vmatpush.xpose.msra.mxu0 0.0
    %4851 = vmatpush.xpose.msra.mxu0 0.0
    %4852 = vmatpush.xpose.msra.mxu0 0.0
    %4853 = vmatpush.xpose.msra.mxu0 0.0
    %4854 = vmatpush.xpose.msra.mxu0 0.0
    %4855 = vmatpush.xpose.msra.mxu0 0.0
    %4856 = vmatpush.xpose.msra.mxu0 %v313
    %4857 = vmatmul.f32.gmra.mxu0 %v726
    %v4858 = vpop.f32.mrf.mxu0
    %v4859 = vadd.f32 %v4839, %v4858
    %4860 = vdwg.mxu0
    %4861 = vmatpush.xpose.msra.mxu0 0.0
    %4862 = vmatpush.xpose.msra.mxu0 0.0
    %4863 = vmatpush.xpose.msra.mxu0 0.0
    %4864 = vmatpush.xpose.msra.mxu0 0.0
    %4865 = vmatpush.xpose.msra.mxu0 0.0
    %4866 = vmatpush.xpose.msra.mxu0 0.0
    %4867 = vmatpush.xpose.msra.mxu0 0.0
    %4868 = vmatpush.xpose.msra.mxu0 0.0
    %4869 = vmatpush.xpose.msra.mxu0 0.0
    %4870 = vmatpush.xpose.msra.mxu0 0.0
    %4871 = vmatpush.xpose.msra.mxu0 0.0
    %4872 = vmatpush.xpose.msra.mxu0 0.0
    %4873 = vmatpush.xpose.msra.mxu0 0.0
    %4874 = vmatpush.xpose.msra.mxu0 0.0
    %4875 = vmatpush.xpose.msra.mxu0 0.0
    %4876 = vmatpush.xpose.msra.mxu0 %v314
    %4877 = vmatmul.f32.gmra.mxu0 %v727
    %v4878 = vpop.f32.mrf.mxu0
    %v4879 = vadd.f32 %v4859, %v4878
    %4880 = vdwg.mxu0
    %4881 = vmatpush.xpose.msra.mxu0 0.0
    %4882 = vmatpush.xpose.msra.mxu0 0.0
    %4883 = vmatpush.xpose.msra.mxu0 0.0
    %4884 = vmatpush.xpose.msra.mxu0 0.0
    %4885 = vmatpush.xpose.msra.mxu0 0.0
    %4886 = vmatpush.xpose.msra.mxu0 0.0
    %4887 = vmatpush.xpose.msra.mxu0 0.0
    %4888 = vmatpush.xpose.msra.mxu0 0.0
    %4889 = vmatpush.xpose.msra.mxu0 0.0
    %4890 = vmatpush.xpose.msra.mxu0 0.0
    %4891 = vmatpush.xpose.msra.mxu0 0.0
    %4892 = vmatpush.xpose.msra.mxu0 0.0
    %4893 = vmatpush.xpose.msra.mxu0 0.0
    %4894 = vmatpush.xpose.msra.mxu0 0.0
    %4895 = vmatpush.xpose.msra.mxu0 0.0
    %4896 = vmatpush.xpose.msra.mxu0 %v315
    %4897 = vmatmul.f32.gmra.mxu0 %v728
    %v4898 = vpop.f32.mrf.mxu0
    %v4899 = vadd.f32 %v4879, %v4898
    %4900 = vdwg.mxu0
    %4901 = vmatpush.xpose.msra.mxu0 0.0
    %4902 = vmatpush.xpose.msra.mxu0 0.0
    %4903 = vmatpush.xpose.msra.mxu0 0.0
    %4904 = vmatpush.xpose.msra.mxu0 0.0
    %4905 = vmatpush.xpose.msra.mxu0 0.0
    %4906 = vmatpush.xpose.msra.mxu0 0.0
    %4907 = vmatpush.xpose.msra.mxu0 0.0
    %4908 = vmatpush.xpose.msra.mxu0 0.0
    %4909 = vmatpush.xpose.msra.mxu0 0.0
    %4910 = vmatpush.xpose.msra.mxu0 0.0
    %4911 = vmatpush.xpose.msra.mxu0 0.0
    %4912 = vmatpush.xpose.msra.mxu0 0.0
    %4913 = vmatpush.xpose.msra.mxu0 0.0
    %4914 = vmatpush.xpose.msra.mxu0 0.0
    %4915 = vmatpush.xpose.msra.mxu0 0.0
    %4916 = vmatpush.xpose.msra.mxu0 %v316
    %4917 = vmatmul.f32.gmra.mxu0 %v729
    %v4918 = vpop.f32.mrf.mxu0
    %v4919 = vadd.f32 %v4899, %v4918
    %4920 = vdwg.mxu0
    %4921 = vmatpush.xpose.msra.mxu0 0.0
    %4922 = vmatpush.xpose.msra.mxu0 0.0
    %4923 = vmatpush.xpose.msra.mxu0 0.0
    %4924 = vmatpush.xpose.msra.mxu0 0.0
    %4925 = vmatpush.xpose.msra.mxu0 0.0
    %4926 = vmatpush.xpose.msra.mxu0 0.0
    %4927 = vmatpush.xpose.msra.mxu0 0.0
    %4928 = vmatpush.xpose.msra.mxu0 0.0
    %4929 = vmatpush.xpose.msra.mxu0 0.0
    %4930 = vmatpush.xpose.msra.mxu0 0.0
    %4931 = vmatpush.xpose.msra.mxu0 0.0
    %4932 = vmatpush.xpose.msra.mxu0 0.0
    %4933 = vmatpush.xpose.msra.mxu0 0.0
    %4934 = vmatpush.xpose.msra.mxu0 0.0
    %4935 = vmatpush.xpose.msra.mxu0 0.0
    %4936 = vmatpush.xpose.msra.mxu0 %v317
    %4937 = vmatmul.f32.gmra.mxu0 %v730
    %v4938 = vpop.f32.mrf.mxu0
    %v4939 = vadd.f32 %v4919, %v4938
    %4940 = vdwg.mxu0
    %4941 = vmatpush.xpose.msra.mxu0 0.0
    %4942 = vmatpush.xpose.msra.mxu0 0.0
    %4943 = vmatpush.xpose.msra.mxu0 0.0
    %4944 = vmatpush.xpose.msra.mxu0 0.0
    %4945 = vmatpush.xpose.msra.mxu0 0.0
    %4946 = vmatpush.xpose.msra.mxu0 0.0
    %4947 = vmatpush.xpose.msra.mxu0 0.0
    %4948 = vmatpush.xpose.msra.mxu0 0.0
    %4949 = vmatpush.xpose.msra.mxu0 0.0
    %4950 = vmatpush.xpose.msra.mxu0 0.0
    %4951 = vmatpush.xpose.msra.mxu0 0.0
    %4952 = vmatpush.xpose.msra.mxu0 0.0
    %4953 = vmatpush.xpose.msra.mxu0 0.0
    %4954 = vmatpush.xpose.msra.mxu0 0.0
    %4955 = vmatpush.xpose.msra.mxu0 0.0
    %4956 = vmatpush.xpose.msra.mxu0 %v318
    %4957 = vmatmul.f32.gmra.mxu0 %v731
    %v4958 = vpop.f32.mrf.mxu0
    %v4959 = vadd.f32 %v4939, %v4958
    %4960 = vdwg.mxu0
    %4961 = vmatpush.xpose.msra.mxu0 0.0
    %4962 = vmatpush.xpose.msra.mxu0 0.0
    %4963 = vmatpush.xpose.msra.mxu0 0.0
    %4964 = vmatpush.xpose.msra.mxu0 0.0
    %4965 = vmatpush.xpose.msra.mxu0 0.0
    %4966 = vmatpush.xpose.msra.mxu0 0.0
    %4967 = vmatpush.xpose.msra.mxu0 0.0
    %4968 = vmatpush.xpose.msra.mxu0 0.0
    %4969 = vmatpush.xpose.msra.mxu0 0.0
    %4970 = vmatpush.xpose.msra.mxu0 0.0
    %4971 = vmatpush.xpose.msra.mxu0 0.0
    %4972 = vmatpush.xpose.msra.mxu0 0.0
    %4973 = vmatpush.xpose.msra.mxu0 0.0
    %4974 = vmatpush.xpose.msra.mxu0 0.0
    %4975 = vmatpush.xpose.msra.mxu0 0.0
    %4976 = vmatpush.xpose.msra.mxu0 %v319
    %4977 = vmatmul.f32.gmra.mxu0 %v732
    %v4978 = vpop.f32.mrf.mxu0
    %v4979 = vadd.f32 %v4959, %v4978
    %4980 = vdwg.mxu0
    %4981 = vmatpush.xpose.msra.mxu0 0.0
    %4982 = vmatpush.xpose.msra.mxu0 0.0
    %4983 = vmatpush.xpose.msra.mxu0 0.0
    %4984 = vmatpush.xpose.msra.mxu0 0.0
    %4985 = vmatpush.xpose.msra.mxu0 0.0
    %4986 = vmatpush.xpose.msra.mxu0 0.0
    %4987 = vmatpush.xpose.msra.mxu0 0.0
    %4988 = vmatpush.xpose.msra.mxu0 0.0
    %4989 = vmatpush.xpose.msra.mxu0 0.0
    %4990 = vmatpush.xpose.msra.mxu0 0.0
    %4991 = vmatpush.xpose.msra.mxu0 0.0
    %4992 = vmatpush.xpose.msra.mxu0 0.0
    %4993 = vmatpush.xpose.msra.mxu0 0.0
    %4994 = vmatpush.xpose.msra.mxu0 0.0
    %4995 = vmatpush.xpose.msra.mxu0 0.0
    %4996 = vmatpush.xpose.msra.mxu0 %v320
    %4997 = vmatmul.f32.gmra.mxu0 %v735
    %v4998 = vpop.f32.mrf.mxu0
    %v4999 = vadd.f32 %v4979, %v4998
    %5000 = vdwg.mxu0
    %5001 = vmatpush.xpose.msra.mxu0 0.0
    %5002 = vmatpush.xpose.msra.mxu0 0.0
    %5003 = vmatpush.xpose.msra.mxu0 0.0
    %5004 = vmatpush.xpose.msra.mxu0 0.0
    %5005 = vmatpush.xpose.msra.mxu0 0.0
    %5006 = vmatpush.xpose.msra.mxu0 0.0
    %5007 = vmatpush.xpose.msra.mxu0 0.0
    %5008 = vmatpush.xpose.msra.mxu0 0.0
    %5009 = vmatpush.xpose.msra.mxu0 0.0
    %5010 = vmatpush.xpose.msra.mxu0 0.0
    %5011 = vmatpush.xpose.msra.mxu0 0.0
    %5012 = vmatpush.xpose.msra.mxu0 0.0
    %5013 = vmatpush.xpose.msra.mxu0 0.0
    %5014 = vmatpush.xpose.msra.mxu0 0.0
    %5015 = vmatpush.xpose.msra.mxu0 0.0
    %5016 = vmatpush.xpose.msra.mxu0 %v321
    %5017 = vmatmul.f32.gmra.mxu0 %v736
    %v5018 = vpop.f32.mrf.mxu0
    %v5019 = vadd.f32 %v4999, %v5018
    %5020 = vdwg.mxu0
    %5021 = vmatpush.xpose.msra.mxu0 0.0
    %5022 = vmatpush.xpose.msra.mxu0 0.0
    %5023 = vmatpush.xpose.msra.mxu0 0.0
    %5024 = vmatpush.xpose.msra.mxu0 0.0
    %5025 = vmatpush.xpose.msra.mxu0 0.0
    %5026 = vmatpush.xpose.msra.mxu0 0.0
    %5027 = vmatpush.xpose.msra.mxu0 0.0
    %5028 = vmatpush.xpose.msra.mxu0 0.0
    %5029 = vmatpush.xpose.msra.mxu0 0.0
    %5030 = vmatpush.xpose.msra.mxu0 0.0
    %5031 = vmatpush.xpose.msra.mxu0 0.0
    %5032 = vmatpush.xpose.msra.mxu0 0.0
    %5033 = vmatpush.xpose.msra.mxu0 0.0
    %5034 = vmatpush.xpose.msra.mxu0 0.0
    %5035 = vmatpush.xpose.msra.mxu0 0.0
    %5036 = vmatpush.xpose.msra.mxu0 %v322
    %5037 = vmatmul.f32.gmra.mxu0 %v737
    %v5038 = vpop.f32.mrf.mxu0
    %v5039 = vadd.f32 %v5019, %v5038
    %5040 = vdwg.mxu0
    %5041 = vmatpush.xpose.msra.mxu0 0.0
    %5042 = vmatpush.xpose.msra.mxu0 0.0
    %5043 = vmatpush.xpose.msra.mxu0 0.0
    %5044 = vmatpush.xpose.msra.mxu0 0.0
    %5045 = vmatpush.xpose.msra.mxu0 0.0
    %5046 = vmatpush.xpose.msra.mxu0 0.0
    %5047 = vmatpush.xpose.msra.mxu0 0.0
    %5048 = vmatpush.xpose.msra.mxu0 0.0
    %5049 = vmatpush.xpose.msra.mxu0 0.0
    %5050 = vmatpush.xpose.msra.mxu0 0.0
    %5051 = vmatpush.xpose.msra.mxu0 0.0
    %5052 = vmatpush.xpose.msra.mxu0 0.0
    %5053 = vmatpush.xpose.msra.mxu0 0.0
    %5054 = vmatpush.xpose.msra.mxu0 0.0
    %5055 = vmatpush.xpose.msra.mxu0 0.0
    %5056 = vmatpush.xpose.msra.mxu0 %v323
    %5057 = vmatmul.f32.gmra.mxu0 %v738
    %v5058 = vpop.f32.mrf.mxu0
    %v5059 = vadd.f32 %v5039, %v5058
    %5060 = vdwg.mxu0
    %5061 = vmatpush.xpose.msra.mxu0 0.0
    %5062 = vmatpush.xpose.msra.mxu0 0.0
    %5063 = vmatpush.xpose.msra.mxu0 0.0
    %5064 = vmatpush.xpose.msra.mxu0 0.0
    %5065 = vmatpush.xpose.msra.mxu0 0.0
    %5066 = vmatpush.xpose.msra.mxu0 0.0
    %5067 = vmatpush.xpose.msra.mxu0 0.0
    %5068 = vmatpush.xpose.msra.mxu0 0.0
    %5069 = vmatpush.xpose.msra.mxu0 0.0
    %5070 = vmatpush.xpose.msra.mxu0 0.0
    %5071 = vmatpush.xpose.msra.mxu0 0.0
    %5072 = vmatpush.xpose.msra.mxu0 0.0
    %5073 = vmatpush.xpose.msra.mxu0 0.0
    %5074 = vmatpush.xpose.msra.mxu0 0.0
    %5075 = vmatpush.xpose.msra.mxu0 0.0
    %5076 = vmatpush.xpose.msra.mxu0 %v324
    %5077 = vmatmul.f32.gmra.mxu0 %v739
    %v5078 = vpop.f32.mrf.mxu0
    %v5079 = vadd.f32 %v5059, %v5078
    %5080 = vdwg.mxu0
    %5081 = vmatpush.xpose.msra.mxu0 0.0
    %5082 = vmatpush.xpose.msra.mxu0 0.0
    %5083 = vmatpush.xpose.msra.mxu0 0.0
    %5084 = vmatpush.xpose.msra.mxu0 0.0
    %5085 = vmatpush.xpose.msra.mxu0 0.0
    %5086 = vmatpush.xpose.msra.mxu0 0.0
    %5087 = vmatpush.xpose.msra.mxu0 0.0
    %5088 = vmatpush.xpose.msra.mxu0 0.0
    %5089 = vmatpush.xpose.msra.mxu0 0.0
    %5090 = vmatpush.xpose.msra.mxu0 0.0
    %5091 = vmatpush.xpose.msra.mxu0 0.0
    %5092 = vmatpush.xpose.msra.mxu0 0.0
    %5093 = vmatpush.xpose.msra.mxu0 0.0
    %5094 = vmatpush.xpose.msra.mxu0 0.0
    %5095 = vmatpush.xpose.msra.mxu0 0.0
    %5096 = vmatpush.xpose.msra.mxu0 %v325
    %5097 = vmatmul.f32.gmra.mxu0 %v740
    %v5098 = vpop.f32.mrf.mxu0
    %v5099 = vadd.f32 %v5079, %v5098
    %5100 = vdwg.mxu0
    %5101 = vmatpush.xpose.msra.mxu0 0.0
    %5102 = vmatpush.xpose.msra.mxu0 0.0
    %5103 = vmatpush.xpose.msra.mxu0 0.0
    %5104 = vmatpush.xpose.msra.mxu0 0.0
    %5105 = vmatpush.xpose.msra.mxu0 0.0
    %5106 = vmatpush.xpose.msra.mxu0 0.0
    %5107 = vmatpush.xpose.msra.mxu0 0.0
    %5108 = vmatpush.xpose.msra.mxu0 0.0
    %5109 = vmatpush.xpose.msra.mxu0 0.0
    %5110 = vmatpush.xpose.msra.mxu0 0.0
    %5111 = vmatpush.xpose.msra.mxu0 0.0
    %5112 = vmatpush.xpose.msra.mxu0 0.0
    %5113 = vmatpush.xpose.msra.mxu0 0.0
    %5114 = vmatpush.xpose.msra.mxu0 0.0
    %5115 = vmatpush.xpose.msra.mxu0 0.0
    %5116 = vmatpush.xpose.msra.mxu0 %v326
    %5117 = vmatmul.f32.gmra.mxu0 %v741
    %v5118 = vpop.f32.mrf.mxu0
    %v5119 = vadd.f32 %v5099, %v5118
    %5120 = vdwg.mxu0
    %5121 = vmatpush.xpose.msra.mxu0 0.0
    %5122 = vmatpush.xpose.msra.mxu0 0.0
    %5123 = vmatpush.xpose.msra.mxu0 0.0
    %5124 = vmatpush.xpose.msra.mxu0 0.0
    %5125 = vmatpush.xpose.msra.mxu0 0.0
    %5126 = vmatpush.xpose.msra.mxu0 0.0
    %5127 = vmatpush.xpose.msra.mxu0 0.0
    %5128 = vmatpush.xpose.msra.mxu0 0.0
    %5129 = vmatpush.xpose.msra.mxu0 0.0
    %5130 = vmatpush.xpose.msra.mxu0 0.0
    %5131 = vmatpush.xpose.msra.mxu0 0.0
    %5132 = vmatpush.xpose.msra.mxu0 0.0
    %5133 = vmatpush.xpose.msra.mxu0 0.0
    %5134 = vmatpush.xpose.msra.mxu0 0.0
    %5135 = vmatpush.xpose.msra.mxu0 0.0
    %5136 = vmatpush.xpose.msra.mxu0 %v327
    %5137 = vmatmul.f32.gmra.mxu0 %v742
    %v5138 = vpop.f32.mrf.mxu0
    %v5139 = vadd.f32 %v5119, %v5138
    %5140 = vdwg.mxu0
    %5141 = vmatpush.xpose.msra.mxu0 0.0
    %5142 = vmatpush.xpose.msra.mxu0 0.0
    %5143 = vmatpush.xpose.msra.mxu0 0.0
    %5144 = vmatpush.xpose.msra.mxu0 0.0
    %5145 = vmatpush.xpose.msra.mxu0 0.0
    %5146 = vmatpush.xpose.msra.mxu0 0.0
    %5147 = vmatpush.xpose.msra.mxu0 0.0
    %5148 = vmatpush.xpose.msra.mxu0 0.0
    %5149 = vmatpush.xpose.msra.mxu0 0.0
    %5150 = vmatpush.xpose.msra.mxu0 0.0
    %5151 = vmatpush.xpose.msra.mxu0 0.0
    %5152 = vmatpush.xpose.msra.mxu0 0.0
    %5153 = vmatpush.xpose.msra.mxu0 0.0
    %5154 = vmatpush.xpose.msra.mxu0 0.0
    %5155 = vmatpush.xpose.msra.mxu0 0.0
    %5156 = vmatpush.xpose.msra.mxu0 %v328
    %5157 = vmatmul.f32.gmra.mxu0 %v745
    %v5158 = vpop.f32.mrf.mxu0
    %v5159 = vadd.f32 %v5139, %v5158
    %5160 = vdwg.mxu0
    %5161 = vmatpush.xpose.msra.mxu0 0.0
    %5162 = vmatpush.xpose.msra.mxu0 0.0
    %5163 = vmatpush.xpose.msra.mxu0 0.0
    %5164 = vmatpush.xpose.msra.mxu0 0.0
    %5165 = vmatpush.xpose.msra.mxu0 0.0
    %5166 = vmatpush.xpose.msra.mxu0 0.0
    %5167 = vmatpush.xpose.msra.mxu0 0.0
    %5168 = vmatpush.xpose.msra.mxu0 0.0
    %5169 = vmatpush.xpose.msra.mxu0 0.0
    %5170 = vmatpush.xpose.msra.mxu0 0.0
    %5171 = vmatpush.xpose.msra.mxu0 0.0
    %5172 = vmatpush.xpose.msra.mxu0 0.0
    %5173 = vmatpush.xpose.msra.mxu0 0.0
    %5174 = vmatpush.xpose.msra.mxu0 0.0
    %5175 = vmatpush.xpose.msra.mxu0 0.0
    %5176 = vmatpush.xpose.msra.mxu0 %v329
    %5177 = vmatmul.f32.gmra.mxu0 %v746
    %v5178 = vpop.f32.mrf.mxu0
    %v5179 = vadd.f32 %v5159, %v5178
    %5180 = vdwg.mxu0
    %5181 = vmatpush.xpose.msra.mxu0 0.0
    %5182 = vmatpush.xpose.msra.mxu0 0.0
    %5183 = vmatpush.xpose.msra.mxu0 0.0
    %5184 = vmatpush.xpose.msra.mxu0 0.0
    %5185 = vmatpush.xpose.msra.mxu0 0.0
    %5186 = vmatpush.xpose.msra.mxu0 0.0
    %5187 = vmatpush.xpose.msra.mxu0 0.0
    %5188 = vmatpush.xpose.msra.mxu0 0.0
    %5189 = vmatpush.xpose.msra.mxu0 0.0
    %5190 = vmatpush.xpose.msra.mxu0 0.0
    %5191 = vmatpush.xpose.msra.mxu0 0.0
    %5192 = vmatpush.xpose.msra.mxu0 0.0
    %5193 = vmatpush.xpose.msra.mxu0 0.0
    %5194 = vmatpush.xpose.msra.mxu0 0.0
    %5195 = vmatpush.xpose.msra.mxu0 0.0
    %5196 = vmatpush.xpose.msra.mxu0 %v330
    %5197 = vmatmul.f32.gmra.mxu0 %v747
    %v5198 = vpop.f32.mrf.mxu0
    %v5199 = vadd.f32 %v5179, %v5198
    %5200 = vdwg.mxu0
    %5201 = vmatpush.xpose.msra.mxu0 0.0
    %5202 = vmatpush.xpose.msra.mxu0 0.0
    %5203 = vmatpush.xpose.msra.mxu0 0.0
    %5204 = vmatpush.xpose.msra.mxu0 0.0
    %5205 = vmatpush.xpose.msra.mxu0 0.0
    %5206 = vmatpush.xpose.msra.mxu0 0.0
    %5207 = vmatpush.xpose.msra.mxu0 0.0
    %5208 = vmatpush.xpose.msra.mxu0 0.0
    %5209 = vmatpush.xpose.msra.mxu0 0.0
    %5210 = vmatpush.xpose.msra.mxu0 0.0
    %5211 = vmatpush.xpose.msra.mxu0 0.0
    %5212 = vmatpush.xpose.msra.mxu0 0.0
    %5213 = vmatpush.xpose.msra.mxu0 0.0
    %5214 = vmatpush.xpose.msra.mxu0 0.0
    %5215 = vmatpush.xpose.msra.mxu0 0.0
    %5216 = vmatpush.xpose.msra.mxu0 %v331
    %5217 = vmatmul.f32.gmra.mxu0 %v748
    %v5218 = vpop.f32.mrf.mxu0
    %v5219 = vadd.f32 %v5199, %v5218
    %5220 = vdwg.mxu0
    %5221 = vmatpush.xpose.msra.mxu0 0.0
    %5222 = vmatpush.xpose.msra.mxu0 0.0
    %5223 = vmatpush.xpose.msra.mxu0 0.0
    %5224 = vmatpush.xpose.msra.mxu0 0.0
    %5225 = vmatpush.xpose.msra.mxu0 0.0
    %5226 = vmatpush.xpose.msra.mxu0 0.0
    %5227 = vmatpush.xpose.msra.mxu0 0.0
    %5228 = vmatpush.xpose.msra.mxu0 0.0
    %5229 = vmatpush.xpose.msra.mxu0 0.0
    %5230 = vmatpush.xpose.msra.mxu0 0.0
    %5231 = vmatpush.xpose.msra.mxu0 0.0
    %5232 = vmatpush.xpose.msra.mxu0 0.0
    %5233 = vmatpush.xpose.msra.mxu0 0.0
    %5234 = vmatpush.xpose.msra.mxu0 0.0
    %5235 = vmatpush.xpose.msra.mxu0 0.0
    %5236 = vmatpush.xpose.msra.mxu0 %v332
    %5237 = vmatmul.f32.gmra.mxu0 %v749
    %v5238 = vpop.f32.mrf.mxu0
    %v5239 = vadd.f32 %v5219, %v5238
    %5240 = vdwg.mxu0
    %5241 = vmatpush.xpose.msra.mxu0 0.0
    %5242 = vmatpush.xpose.msra.mxu0 0.0
    %5243 = vmatpush.xpose.msra.mxu0 0.0
    %5244 = vmatpush.xpose.msra.mxu0 0.0
    %5245 = vmatpush.xpose.msra.mxu0 0.0
    %5246 = vmatpush.xpose.msra.mxu0 0.0
    %5247 = vmatpush.xpose.msra.mxu0 0.0
    %5248 = vmatpush.xpose.msra.mxu0 0.0
    %5249 = vmatpush.xpose.msra.mxu0 0.0
    %5250 = vmatpush.xpose.msra.mxu0 0.0
    %5251 = vmatpush.xpose.msra.mxu0 0.0
    %5252 = vmatpush.xpose.msra.mxu0 0.0
    %5253 = vmatpush.xpose.msra.mxu0 0.0
    %5254 = vmatpush.xpose.msra.mxu0 0.0
    %5255 = vmatpush.xpose.msra.mxu0 0.0
    %5256 = vmatpush.xpose.msra.mxu0 %v333
    %5257 = vmatmul.f32.gmra.mxu0 %v750
    %v5258 = vpop.f32.mrf.mxu0
    %v5259 = vadd.f32 %v5239, %v5258
    %5260 = vdwg.mxu0
    %5261 = vmatpush.xpose.msra.mxu0 0.0
    %5262 = vmatpush.xpose.msra.mxu0 0.0
    %5263 = vmatpush.xpose.msra.mxu0 0.0
    %5264 = vmatpush.xpose.msra.mxu0 0.0
    %5265 = vmatpush.xpose.msra.mxu0 0.0
    %5266 = vmatpush.xpose.msra.mxu0 0.0
    %5267 = vmatpush.xpose.msra.mxu0 0.0
    %5268 = vmatpush.xpose.msra.mxu0 0.0
    %5269 = vmatpush.xpose.msra.mxu0 0.0
    %5270 = vmatpush.xpose.msra.mxu0 0.0
    %5271 = vmatpush.xpose.msra.mxu0 0.0
    %5272 = vmatpush.xpose.msra.mxu0 0.0
    %5273 = vmatpush.xpose.msra.mxu0 0.0
    %5274 = vmatpush.xpose.msra.mxu0 0.0
    %5275 = vmatpush.xpose.msra.mxu0 0.0
    %5276 = vmatpush.xpose.msra.mxu0 %v334
    %5277 = vmatmul.f32.gmra.mxu0 %v751
    %v5278 = vpop.f32.mrf.mxu0
    %v5279 = vadd.f32 %v5259, %v5278
    %5280 = vdwg.mxu0
    %5281 = vmatpush.xpose.msra.mxu0 0.0
    %5282 = vmatpush.xpose.msra.mxu0 0.0
    %5283 = vmatpush.xpose.msra.mxu0 0.0
    %5284 = vmatpush.xpose.msra.mxu0 0.0
    %5285 = vmatpush.xpose.msra.mxu0 0.0
    %5286 = vmatpush.xpose.msra.mxu0 0.0
    %5287 = vmatpush.xpose.msra.mxu0 0.0
    %5288 = vmatpush.xpose.msra.mxu0 0.0
    %5289 = vmatpush.xpose.msra.mxu0 0.0
    %5290 = vmatpush.xpose.msra.mxu0 0.0
    %5291 = vmatpush.xpose.msra.mxu0 0.0
    %5292 = vmatpush.xpose.msra.mxu0 0.0
    %5293 = vmatpush.xpose.msra.mxu0 0.0
    %5294 = vmatpush.xpose.msra.mxu0 0.0
    %5295 = vmatpush.xpose.msra.mxu0 0.0
    %5296 = vmatpush.xpose.msra.mxu0 %v335
    %5297 = vmatmul.f32.gmra.mxu0 %v752
    %v5298 = vpop.f32.mrf.mxu0
    %v5299 = vadd.f32 %v5279, %v5298
    %5300 = vdwg.mxu0
    %5301 = vmatpush.xpose.msra.mxu0 0.0
    %5302 = vmatpush.xpose.msra.mxu0 0.0
    %5303 = vmatpush.xpose.msra.mxu0 0.0
    %5304 = vmatpush.xpose.msra.mxu0 0.0
    %5305 = vmatpush.xpose.msra.mxu0 0.0
    %5306 = vmatpush.xpose.msra.mxu0 0.0
    %5307 = vmatpush.xpose.msra.mxu0 0.0
    %5308 = vmatpush.xpose.msra.mxu0 0.0
    %5309 = vmatpush.xpose.msra.mxu0 0.0
    %5310 = vmatpush.xpose.msra.mxu0 0.0
    %5311 = vmatpush.xpose.msra.mxu0 0.0
    %5312 = vmatpush.xpose.msra.mxu0 0.0
    %5313 = vmatpush.xpose.msra.mxu0 0.0
    %5314 = vmatpush.xpose.msra.mxu0 0.0
    %5315 = vmatpush.xpose.msra.mxu0 0.0
    %5316 = vmatpush.xpose.msra.mxu0 %v336
    %5317 = vmatmul.f32.gmra.mxu0 %v755
    %v5318 = vpop.f32.mrf.mxu0
    %v5319 = vadd.f32 %v5299, %v5318
    %5320 = vdwg.mxu0
    %5321 = vmatpush.xpose.msra.mxu0 0.0
    %5322 = vmatpush.xpose.msra.mxu0 0.0
    %5323 = vmatpush.xpose.msra.mxu0 0.0
    %5324 = vmatpush.xpose.msra.mxu0 0.0
    %5325 = vmatpush.xpose.msra.mxu0 0.0
    %5326 = vmatpush.xpose.msra.mxu0 0.0
    %5327 = vmatpush.xpose.msra.mxu0 0.0
    %5328 = vmatpush.xpose.msra.mxu0 0.0
    %5329 = vmatpush.xpose.msra.mxu0 0.0
    %5330 = vmatpush.xpose.msra.mxu0 0.0
    %5331 = vmatpush.xpose.msra.mxu0 0.0
    %5332 = vmatpush.xpose.msra.mxu0 0.0
    %5333 = vmatpush.xpose.msra.mxu0 0.0
    %5334 = vmatpush.xpose.msra.mxu0 0.0
    %5335 = vmatpush.xpose.msra.mxu0 0.0
    %5336 = vmatpush.xpose.msra.mxu0 %v337
    %5337 = vmatmul.f32.gmra.mxu0 %v756
    %v5338 = vpop.f32.mrf.mxu0
    %v5339 = vadd.f32 %v5319, %v5338
    %5340 = vdwg.mxu0
    %5341 = vmatpush.xpose.msra.mxu0 0.0
    %5342 = vmatpush.xpose.msra.mxu0 0.0
    %5343 = vmatpush.xpose.msra.mxu0 0.0
    %5344 = vmatpush.xpose.msra.mxu0 0.0
    %5345 = vmatpush.xpose.msra.mxu0 0.0
    %5346 = vmatpush.xpose.msra.mxu0 0.0
    %5347 = vmatpush.xpose.msra.mxu0 0.0
    %5348 = vmatpush.xpose.msra.mxu0 0.0
    %5349 = vmatpush.xpose.msra.mxu0 0.0
    %5350 = vmatpush.xpose.msra.mxu0 0.0
    %5351 = vmatpush.xpose.msra.mxu0 0.0
    %5352 = vmatpush.xpose.msra.mxu0 0.0
    %5353 = vmatpush.xpose.msra.mxu0 0.0
    %5354 = vmatpush.xpose.msra.mxu0 0.0
    %5355 = vmatpush.xpose.msra.mxu0 0.0
    %5356 = vmatpush.xpose.msra.mxu0 %v338
    %5357 = vmatmul.f32.gmra.mxu0 %v757
    %v5358 = vpop.f32.mrf.mxu0
    %v5359 = vadd.f32 %v5339, %v5358
    %5360 = vdwg.mxu0
    %5361 = vmatpush.xpose.msra.mxu0 0.0
    %5362 = vmatpush.xpose.msra.mxu0 0.0
    %5363 = vmatpush.xpose.msra.mxu0 0.0
    %5364 = vmatpush.xpose.msra.mxu0 0.0
    %5365 = vmatpush.xpose.msra.mxu0 0.0
    %5366 = vmatpush.xpose.msra.mxu0 0.0
    %5367 = vmatpush.xpose.msra.mxu0 0.0
    %5368 = vmatpush.xpose.msra.mxu0 0.0
    %5369 = vmatpush.xpose.msra.mxu0 0.0
    %5370 = vmatpush.xpose.msra.mxu0 0.0
    %5371 = vmatpush.xpose.msra.mxu0 0.0
    %5372 = vmatpush.xpose.msra.mxu0 0.0
    %5373 = vmatpush.xpose.msra.mxu0 0.0
    %5374 = vmatpush.xpose.msra.mxu0 0.0
    %5375 = vmatpush.xpose.msra.mxu0 0.0
    %5376 = vmatpush.xpose.msra.mxu0 %v339
    %5377 = vmatmul.f32.gmra.mxu0 %v758
    %v5378 = vpop.f32.mrf.mxu0
    %v5379 = vadd.f32 %v5359, %v5378
    %5380 = vdwg.mxu0
    %5381 = vmatpush.xpose.msra.mxu0 0.0
    %5382 = vmatpush.xpose.msra.mxu0 0.0
    %5383 = vmatpush.xpose.msra.mxu0 0.0
    %5384 = vmatpush.xpose.msra.mxu0 0.0
    %5385 = vmatpush.xpose.msra.mxu0 0.0
    %5386 = vmatpush.xpose.msra.mxu0 0.0
    %5387 = vmatpush.xpose.msra.mxu0 0.0
    %5388 = vmatpush.xpose.msra.mxu0 0.0
    %5389 = vmatpush.xpose.msra.mxu0 0.0
    %5390 = vmatpush.xpose.msra.mxu0 0.0
    %5391 = vmatpush.xpose.msra.mxu0 0.0
    %5392 = vmatpush.xpose.msra.mxu0 0.0
    %5393 = vmatpush.xpose.msra.mxu0 0.0
    %5394 = vmatpush.xpose.msra.mxu0 0.0
    %5395 = vmatpush.xpose.msra.mxu0 0.0
    %5396 = vmatpush.xpose.msra.mxu0 %v340
    %5397 = vmatmul.f32.gmra.mxu0 %v759
    %v5398 = vpop.f32.mrf.mxu0
    %v5399 = vadd.f32 %v5379, %v5398
    %5400 = vdwg.mxu0
    %5401 = vmatpush.xpose.msra.mxu0 0.0
    %5402 = vmatpush.xpose.msra.mxu0 0.0
    %5403 = vmatpush.xpose.msra.mxu0 0.0
    %5404 = vmatpush.xpose.msra.mxu0 0.0
    %5405 = vmatpush.xpose.msra.mxu0 0.0
    %5406 = vmatpush.xpose.msra.mxu0 0.0
    %5407 = vmatpush.xpose.msra.mxu0 0.0
    %5408 = vmatpush.xpose.msra.mxu0 0.0
    %5409 = vmatpush.xpose.msra.mxu0 0.0
    %5410 = vmatpush.xpose.msra.mxu0 0.0
    %5411 = vmatpush.xpose.msra.mxu0 0.0
    %5412 = vmatpush.xpose.msra.mxu0 0.0
    %5413 = vmatpush.xpose.msra.mxu0 0.0
    %5414 = vmatpush.xpose.msra.mxu0 0.0
    %5415 = vmatpush.xpose.msra.mxu0 0.0
    %5416 = vmatpush.xpose.msra.mxu0 %v341
    %5417 = vmatmul.f32.gmra.mxu0 %v760
    %v5418 = vpop.f32.mrf.mxu0
    %v5419 = vadd.f32 %v5399, %v5418
    %5420 = vdwg.mxu0
    %5421 = vmatpush.xpose.msra.mxu0 0.0
    %5422 = vmatpush.xpose.msra.mxu0 0.0
    %5423 = vmatpush.xpose.msra.mxu0 0.0
    %5424 = vmatpush.xpose.msra.mxu0 0.0
    %5425 = vmatpush.xpose.msra.mxu0 0.0
    %5426 = vmatpush.xpose.msra.mxu0 0.0
    %5427 = vmatpush.xpose.msra.mxu0 0.0
    %5428 = vmatpush.xpose.msra.mxu0 0.0
    %5429 = vmatpush.xpose.msra.mxu0 0.0
    %5430 = vmatpush.xpose.msra.mxu0 0.0
    %5431 = vmatpush.xpose.msra.mxu0 0.0
    %5432 = vmatpush.xpose.msra.mxu0 0.0
    %5433 = vmatpush.xpose.msra.mxu0 0.0
    %5434 = vmatpush.xpose.msra.mxu0 0.0
    %5435 = vmatpush.xpose.msra.mxu0 0.0
    %5436 = vmatpush.xpose.msra.mxu0 %v342
    %5437 = vmatmul.f32.gmra.mxu0 %v761
    %v5438 = vpop.f32.mrf.mxu0
    %v5439 = vadd.f32 %v5419, %v5438
    %5440 = vdwg.mxu0
    %5441 = vmatpush.xpose.msra.mxu0 0.0
    %5442 = vmatpush.xpose.msra.mxu0 0.0
    %5443 = vmatpush.xpose.msra.mxu0 0.0
    %5444 = vmatpush.xpose.msra.mxu0 0.0
    %5445 = vmatpush.xpose.msra.mxu0 0.0
    %5446 = vmatpush.xpose.msra.mxu0 0.0
    %5447 = vmatpush.xpose.msra.mxu0 0.0
    %5448 = vmatpush.xpose.msra.mxu0 0.0
    %5449 = vmatpush.xpose.msra.mxu0 0.0
    %5450 = vmatpush.xpose.msra.mxu0 0.0
    %5451 = vmatpush.xpose.msra.mxu0 0.0
    %5452 = vmatpush.xpose.msra.mxu0 0.0
    %5453 = vmatpush.xpose.msra.mxu0 0.0
    %5454 = vmatpush.xpose.msra.mxu0 0.0
    %5455 = vmatpush.xpose.msra.mxu0 0.0
    %5456 = vmatpush.xpose.msra.mxu0 %v343
    %5457 = vmatmul.f32.gmra.mxu0 %v762
    %v5458 = vpop.f32.mrf.mxu0
    %v5459 = vadd.f32 %v5439, %v5458
    %5460 = vdwg.mxu0
    %5461 = vmatpush.xpose.msra.mxu0 0.0
    %5462 = vmatpush.xpose.msra.mxu0 0.0
    %5463 = vmatpush.xpose.msra.mxu0 0.0
    %5464 = vmatpush.xpose.msra.mxu0 0.0
    %5465 = vmatpush.xpose.msra.mxu0 0.0
    %5466 = vmatpush.xpose.msra.mxu0 0.0
    %5467 = vmatpush.xpose.msra.mxu0 0.0
    %5468 = vmatpush.xpose.msra.mxu0 0.0
    %5469 = vmatpush.xpose.msra.mxu0 0.0
    %5470 = vmatpush.xpose.msra.mxu0 0.0
    %5471 = vmatpush.xpose.msra.mxu0 0.0
    %5472 = vmatpush.xpose.msra.mxu0 0.0
    %5473 = vmatpush.xpose.msra.mxu0 0.0
    %5474 = vmatpush.xpose.msra.mxu0 0.0
    %5475 = vmatpush.xpose.msra.mxu0 0.0
    %5476 = vmatpush.xpose.msra.mxu0 %v344
    %5477 = vmatmul.f32.gmra.mxu0 %v765
    %v5478 = vpop.f32.mrf.mxu0
    %v5479 = vadd.f32 %v5459, %v5478
    %5480 = vdwg.mxu0
    %5481 = vmatpush.xpose.msra.mxu0 0.0
    %5482 = vmatpush.xpose.msra.mxu0 0.0
    %5483 = vmatpush.xpose.msra.mxu0 0.0
    %5484 = vmatpush.xpose.msra.mxu0 0.0
    %5485 = vmatpush.xpose.msra.mxu0 0.0
    %5486 = vmatpush.xpose.msra.mxu0 0.0
    %5487 = vmatpush.xpose.msra.mxu0 0.0
    %5488 = vmatpush.xpose.msra.mxu0 0.0
    %5489 = vmatpush.xpose.msra.mxu0 0.0
    %5490 = vmatpush.xpose.msra.mxu0 0.0
    %5491 = vmatpush.xpose.msra.mxu0 0.0
    %5492 = vmatpush.xpose.msra.mxu0 0.0
    %5493 = vmatpush.xpose.msra.mxu0 0.0
    %5494 = vmatpush.xpose.msra.mxu0 0.0
    %5495 = vmatpush.xpose.msra.mxu0 0.0
    %5496 = vmatpush.xpose.msra.mxu0 %v345
    %5497 = vmatmul.f32.gmra.mxu0 %v766
    %v5498 = vpop.f32.mrf.mxu0
    %v5499 = vadd.f32 %v5479, %v5498
    %5500 = vdwg.mxu0
    %5501 = vmatpush.xpose.msra.mxu0 0.0
    %5502 = vmatpush.xpose.msra.mxu0 0.0
    %5503 = vmatpush.xpose.msra.mxu0 0.0
    %5504 = vmatpush.xpose.msra.mxu0 0.0
    %5505 = vmatpush.xpose.msra.mxu0 0.0
    %5506 = vmatpush.xpose.msra.mxu0 0.0
    %5507 = vmatpush.xpose.msra.mxu0 0.0
    %5508 = vmatpush.xpose.msra.mxu0 0.0
    %5509 = vmatpush.xpose.msra.mxu0 0.0
    %5510 = vmatpush.xpose.msra.mxu0 0.0
    %5511 = vmatpush.xpose.msra.mxu0 0.0
    %5512 = vmatpush.xpose.msra.mxu0 0.0
    %5513 = vmatpush.xpose.msra.mxu0 0.0
    %5514 = vmatpush.xpose.msra.mxu0 0.0
    %5515 = vmatpush.xpose.msra.mxu0 0.0
    %5516 = vmatpush.xpose.msra.mxu0 %v346
    %5517 = vmatmul.f32.gmra.mxu0 %v767
    %v5518 = vpop.f32.mrf.mxu0
    %v5519 = vadd.f32 %v5499, %v5518
    %5520 = vdwg.mxu0
    %5521 = vmatpush.xpose.msra.mxu0 0.0
    %5522 = vmatpush.xpose.msra.mxu0 0.0
    %5523 = vmatpush.xpose.msra.mxu0 0.0
    %5524 = vmatpush.xpose.msra.mxu0 0.0
    %5525 = vmatpush.xpose.msra.mxu0 0.0
    %5526 = vmatpush.xpose.msra.mxu0 0.0
    %5527 = vmatpush.xpose.msra.mxu0 0.0
    %5528 = vmatpush.xpose.msra.mxu0 0.0
    %5529 = vmatpush.xpose.msra.mxu0 0.0
    %5530 = vmatpush.xpose.msra.mxu0 0.0
    %5531 = vmatpush.xpose.msra.mxu0 0.0
    %5532 = vmatpush.xpose.msra.mxu0 0.0
    %5533 = vmatpush.xpose.msra.mxu0 0.0
    %5534 = vmatpush.xpose.msra.mxu0 0.0
    %5535 = vmatpush.xpose.msra.mxu0 0.0
    %5536 = vmatpush.xpose.msra.mxu0 %v347
    %5537 = vmatmul.f32.gmra.mxu0 %v768
    %v5538 = vpop.f32.mrf.mxu0
    %v5539 = vadd.f32 %v5519, %v5538
    %5540 = vdwg.mxu0
    %5541 = vmatpush.xpose.msra.mxu0 0.0
    %5542 = vmatpush.xpose.msra.mxu0 0.0
    %5543 = vmatpush.xpose.msra.mxu0 0.0
    %5544 = vmatpush.xpose.msra.mxu0 0.0
    %5545 = vmatpush.xpose.msra.mxu0 0.0
    %5546 = vmatpush.xpose.msra.mxu0 0.0
    %5547 = vmatpush.xpose.msra.mxu0 0.0
    %5548 = vmatpush.xpose.msra.mxu0 0.0
    %5549 = vmatpush.xpose.msra.mxu0 0.0
    %5550 = vmatpush.xpose.msra.mxu0 0.0
    %5551 = vmatpush.xpose.msra.mxu0 0.0
    %5552 = vmatpush.xpose.msra.mxu0 0.0
    %5553 = vmatpush.xpose.msra.mxu0 0.0
    %5554 = vmatpush.xpose.msra.mxu0 0.0
    %5555 = vmatpush.xpose.msra.mxu0 0.0
    %5556 = vmatpush.xpose.msra.mxu0 %v348
    %5557 = vmatmul.f32.gmra.mxu0 %v769
    %v5558 = vpop.f32.mrf.mxu0
    %v5559 = vadd.f32 %v5539, %v5558
    %5560 = vdwg.mxu0
    %5561 = vmatpush.xpose.msra.mxu0 0.0
    %5562 = vmatpush.xpose.msra.mxu0 0.0
    %5563 = vmatpush.xpose.msra.mxu0 0.0
    %5564 = vmatpush.xpose.msra.mxu0 0.0
    %5565 = vmatpush.xpose.msra.mxu0 0.0
    %5566 = vmatpush.xpose.msra.mxu0 0.0
    %5567 = vmatpush.xpose.msra.mxu0 0.0
    %5568 = vmatpush.xpose.msra.mxu0 0.0
    %5569 = vmatpush.xpose.msra.mxu0 0.0
    %5570 = vmatpush.xpose.msra.mxu0 0.0
    %5571 = vmatpush.xpose.msra.mxu0 0.0
    %5572 = vmatpush.xpose.msra.mxu0 0.0
    %5573 = vmatpush.xpose.msra.mxu0 0.0
    %5574 = vmatpush.xpose.msra.mxu0 0.0
    %5575 = vmatpush.xpose.msra.mxu0 0.0
    %5576 = vmatpush.xpose.msra.mxu0 %v349
    %5577 = vmatmul.f32.gmra.mxu0 %v770
    %v5578 = vpop.f32.mrf.mxu0
    %v5579 = vadd.f32 %v5559, %v5578
    %5580 = vdwg.mxu0
    %5581 = vmatpush.xpose.msra.mxu0 0.0
    %5582 = vmatpush.xpose.msra.mxu0 0.0
    %5583 = vmatpush.xpose.msra.mxu0 0.0
    %5584 = vmatpush.xpose.msra.mxu0 0.0
    %5585 = vmatpush.xpose.msra.mxu0 0.0
    %5586 = vmatpush.xpose.msra.mxu0 0.0
    %5587 = vmatpush.xpose.msra.mxu0 0.0
    %5588 = vmatpush.xpose.msra.mxu0 0.0
    %5589 = vmatpush.xpose.msra.mxu0 0.0
    %5590 = vmatpush.xpose.msra.mxu0 0.0
    %5591 = vmatpush.xpose.msra.mxu0 0.0
    %5592 = vmatpush.xpose.msra.mxu0 0.0
    %5593 = vmatpush.xpose.msra.mxu0 0.0
    %5594 = vmatpush.xpose.msra.mxu0 0.0
    %5595 = vmatpush.xpose.msra.mxu0 0.0
    %5596 = vmatpush.xpose.msra.mxu0 %v350
    %5597 = vmatmul.f32.gmra.mxu0 %v771
    %v5598 = vpop.f32.mrf.mxu0
    %v5599 = vadd.f32 %v5579, %v5598
    %5600 = vdwg.mxu0
    %5601 = vmatpush.xpose.msra.mxu0 0.0
    %5602 = vmatpush.xpose.msra.mxu0 0.0
    %5603 = vmatpush.xpose.msra.mxu0 0.0
    %5604 = vmatpush.xpose.msra.mxu0 0.0
    %5605 = vmatpush.xpose.msra.mxu0 0.0
    %5606 = vmatpush.xpose.msra.mxu0 0.0
    %5607 = vmatpush.xpose.msra.mxu0 0.0
    %5608 = vmatpush.xpose.msra.mxu0 0.0
    %5609 = vmatpush.xpose.msra.mxu0 0.0
    %5610 = vmatpush.xpose.msra.mxu0 0.0
    %5611 = vmatpush.xpose.msra.mxu0 0.0
    %5612 = vmatpush.xpose.msra.mxu0 0.0
    %5613 = vmatpush.xpose.msra.mxu0 0.0
    %5614 = vmatpush.xpose.msra.mxu0 0.0
    %5615 = vmatpush.xpose.msra.mxu0 0.0
    %5616 = vmatpush.xpose.msra.mxu0 %v351
    %5617 = vmatmul.f32.gmra.mxu0 %v772
    %v5618 = vpop.f32.mrf.mxu0
    %v5619 = vadd.f32 %v5599, %v5618
    %5620 = vdwg.mxu0
    %5621 = vmatpush.xpose.msra.mxu0 0.0
    %5622 = vmatpush.xpose.msra.mxu0 0.0
    %5623 = vmatpush.xpose.msra.mxu0 0.0
    %5624 = vmatpush.xpose.msra.mxu0 0.0
    %5625 = vmatpush.xpose.msra.mxu0 0.0
    %5626 = vmatpush.xpose.msra.mxu0 0.0
    %5627 = vmatpush.xpose.msra.mxu0 0.0
    %5628 = vmatpush.xpose.msra.mxu0 0.0
    %5629 = vmatpush.xpose.msra.mxu0 0.0
    %5630 = vmatpush.xpose.msra.mxu0 0.0
    %5631 = vmatpush.xpose.msra.mxu0 0.0
    %5632 = vmatpush.xpose.msra.mxu0 0.0
    %5633 = vmatpush.xpose.msra.mxu0 0.0
    %5634 = vmatpush.xpose.msra.mxu0 0.0
    %5635 = vmatpush.xpose.msra.mxu0 0.0
    %5636 = vmatpush.xpose.msra.mxu0 %v352
    %5637 = vmatmul.f32.gmra.mxu0 %v775
    %v5638 = vpop.f32.mrf.mxu0
    %v5639 = vadd.f32 %v5619, %v5638
    %5640 = vdwg.mxu0
    %5641 = vmatpush.xpose.msra.mxu0 0.0
    %5642 = vmatpush.xpose.msra.mxu0 0.0
    %5643 = vmatpush.xpose.msra.mxu0 0.0
    %5644 = vmatpush.xpose.msra.mxu0 0.0
    %5645 = vmatpush.xpose.msra.mxu0 0.0
    %5646 = vmatpush.xpose.msra.mxu0 0.0
    %5647 = vmatpush.xpose.msra.mxu0 0.0
    %5648 = vmatpush.xpose.msra.mxu0 0.0
    %5649 = vmatpush.xpose.msra.mxu0 0.0
    %5650 = vmatpush.xpose.msra.mxu0 0.0
    %5651 = vmatpush.xpose.msra.mxu0 0.0
    %5652 = vmatpush.xpose.msra.mxu0 0.0
    %5653 = vmatpush.xpose.msra.mxu0 0.0
    %5654 = vmatpush.xpose.msra.mxu0 0.0
    %5655 = vmatpush.xpose.msra.mxu0 0.0
    %5656 = vmatpush.xpose.msra.mxu0 %v353
    %5657 = vmatmul.f32.gmra.mxu0 %v776
    %v5658 = vpop.f32.mrf.mxu0
    %v5659 = vadd.f32 %v5639, %v5658
    %5660 = vdwg.mxu0
    %5661 = vmatpush.xpose.msra.mxu0 0.0
    %5662 = vmatpush.xpose.msra.mxu0 0.0
    %5663 = vmatpush.xpose.msra.mxu0 0.0
    %5664 = vmatpush.xpose.msra.mxu0 0.0
    %5665 = vmatpush.xpose.msra.mxu0 0.0
    %5666 = vmatpush.xpose.msra.mxu0 0.0
    %5667 = vmatpush.xpose.msra.mxu0 0.0
    %5668 = vmatpush.xpose.msra.mxu0 0.0
    %5669 = vmatpush.xpose.msra.mxu0 0.0
    %5670 = vmatpush.xpose.msra.mxu0 0.0
    %5671 = vmatpush.xpose.msra.mxu0 0.0
    %5672 = vmatpush.xpose.msra.mxu0 0.0
    %5673 = vmatpush.xpose.msra.mxu0 0.0
    %5674 = vmatpush.xpose.msra.mxu0 0.0
    %5675 = vmatpush.xpose.msra.mxu0 0.0
    %5676 = vmatpush.xpose.msra.mxu0 %v354
    %5677 = vmatmul.f32.gmra.mxu0 %v777
    %v5678 = vpop.f32.mrf.mxu0
    %v5679 = vadd.f32 %v5659, %v5678
    %5680 = vdwg.mxu0
    %5681 = vmatpush.xpose.msra.mxu0 0.0
    %5682 = vmatpush.xpose.msra.mxu0 0.0
    %5683 = vmatpush.xpose.msra.mxu0 0.0
    %5684 = vmatpush.xpose.msra.mxu0 0.0
    %5685 = vmatpush.xpose.msra.mxu0 0.0
    %5686 = vmatpush.xpose.msra.mxu0 0.0
    %5687 = vmatpush.xpose.msra.mxu0 0.0
    %5688 = vmatpush.xpose.msra.mxu0 0.0
    %5689 = vmatpush.xpose.msra.mxu0 0.0
    %5690 = vmatpush.xpose.msra.mxu0 0.0
    %5691 = vmatpush.xpose.msra.mxu0 0.0
    %5692 = vmatpush.xpose.msra.mxu0 0.0
    %5693 = vmatpush.xpose.msra.mxu0 0.0
    %5694 = vmatpush.xpose.msra.mxu0 0.0
    %5695 = vmatpush.xpose.msra.mxu0 0.0
    %5696 = vmatpush.xpose.msra.mxu0 %v355
    %5697 = vmatmul.f32.gmra.mxu0 %v778
    %v5698 = vpop.f32.mrf.mxu0
    %v5699 = vadd.f32 %v5679, %v5698
    %5700 = vdwg.mxu0
    %5701 = vmatpush.xpose.msra.mxu0 0.0
    %5702 = vmatpush.xpose.msra.mxu0 0.0
    %5703 = vmatpush.xpose.msra.mxu0 0.0
    %5704 = vmatpush.xpose.msra.mxu0 0.0
    %5705 = vmatpush.xpose.msra.mxu0 0.0
    %5706 = vmatpush.xpose.msra.mxu0 0.0
    %5707 = vmatpush.xpose.msra.mxu0 0.0
    %5708 = vmatpush.xpose.msra.mxu0 0.0
    %5709 = vmatpush.xpose.msra.mxu0 0.0
    %5710 = vmatpush.xpose.msra.mxu0 0.0
    %5711 = vmatpush.xpose.msra.mxu0 0.0
    %5712 = vmatpush.xpose.msra.mxu0 0.0
    %5713 = vmatpush.xpose.msra.mxu0 0.0
    %5714 = vmatpush.xpose.msra.mxu0 0.0
    %5715 = vmatpush.xpose.msra.mxu0 0.0
    %5716 = vmatpush.xpose.msra.mxu0 %v356
    %5717 = vmatmul.f32.gmra.mxu0 %v779
    %v5718 = vpop.f32.mrf.mxu0
    %v5719 = vadd.f32 %v5699, %v5718
    %5720 = vdwg.mxu0
    %5721 = vmatpush.xpose.msra.mxu0 0.0
    %5722 = vmatpush.xpose.msra.mxu0 0.0
    %5723 = vmatpush.xpose.msra.mxu0 0.0
    %5724 = vmatpush.xpose.msra.mxu0 0.0
    %5725 = vmatpush.xpose.msra.mxu0 0.0
    %5726 = vmatpush.xpose.msra.mxu0 0.0
    %5727 = vmatpush.xpose.msra.mxu0 0.0
    %5728 = vmatpush.xpose.msra.mxu0 0.0
    %5729 = vmatpush.xpose.msra.mxu0 0.0
    %5730 = vmatpush.xpose.msra.mxu0 0.0
    %5731 = vmatpush.xpose.msra.mxu0 0.0
    %5732 = vmatpush.xpose.msra.mxu0 0.0
    %5733 = vmatpush.xpose.msra.mxu0 0.0
    %5734 = vmatpush.xpose.msra.mxu0 0.0
    %5735 = vmatpush.xpose.msra.mxu0 0.0
    %5736 = vmatpush.xpose.msra.mxu0 %v357
    %5737 = vmatmul.f32.gmra.mxu0 %v780
    %v5738 = vpop.f32.mrf.mxu0
    %v5739 = vadd.f32 %v5719, %v5738
    %5740 = vdwg.mxu0
    %5741 = vmatpush.xpose.msra.mxu0 0.0
    %5742 = vmatpush.xpose.msra.mxu0 0.0
    %5743 = vmatpush.xpose.msra.mxu0 0.0
    %5744 = vmatpush.xpose.msra.mxu0 0.0
    %5745 = vmatpush.xpose.msra.mxu0 0.0
    %5746 = vmatpush.xpose.msra.mxu0 0.0
    %5747 = vmatpush.xpose.msra.mxu0 0.0
    %5748 = vmatpush.xpose.msra.mxu0 0.0
    %5749 = vmatpush.xpose.msra.mxu0 0.0
    %5750 = vmatpush.xpose.msra.mxu0 0.0
    %5751 = vmatpush.xpose.msra.mxu0 0.0
    %5752 = vmatpush.xpose.msra.mxu0 0.0
    %5753 = vmatpush.xpose.msra.mxu0 0.0
    %5754 = vmatpush.xpose.msra.mxu0 0.0
    %5755 = vmatpush.xpose.msra.mxu0 0.0
    %5756 = vmatpush.xpose.msra.mxu0 %v358
    %5757 = vmatmul.f32.gmra.mxu0 %v781
    %v5758 = vpop.f32.mrf.mxu0
    %v5759 = vadd.f32 %v5739, %v5758
    %5760 = vdwg.mxu0
    %5761 = vmatpush.xpose.msra.mxu0 0.0
    %5762 = vmatpush.xpose.msra.mxu0 0.0
    %5763 = vmatpush.xpose.msra.mxu0 0.0
    %5764 = vmatpush.xpose.msra.mxu0 0.0
    %5765 = vmatpush.xpose.msra.mxu0 0.0
    %5766 = vmatpush.xpose.msra.mxu0 0.0
    %5767 = vmatpush.xpose.msra.mxu0 0.0
    %5768 = vmatpush.xpose.msra.mxu0 0.0
    %5769 = vmatpush.xpose.msra.mxu0 0.0
    %5770 = vmatpush.xpose.msra.mxu0 0.0
    %5771 = vmatpush.xpose.msra.mxu0 0.0
    %5772 = vmatpush.xpose.msra.mxu0 0.0
    %5773 = vmatpush.xpose.msra.mxu0 0.0
    %5774 = vmatpush.xpose.msra.mxu0 0.0
    %5775 = vmatpush.xpose.msra.mxu0 0.0
    %5776 = vmatpush.xpose.msra.mxu0 %v359
    %5777 = vmatmul.f32.gmra.mxu0 %v782
    %v5778 = vpop.f32.mrf.mxu0
    %v5779 = vadd.f32 %v5759, %v5778
    %5780 = vdwg.mxu0
    %5781 = vmatpush.xpose.msra.mxu0 0.0
    %5782 = vmatpush.xpose.msra.mxu0 0.0
    %5783 = vmatpush.xpose.msra.mxu0 0.0
    %5784 = vmatpush.xpose.msra.mxu0 0.0
    %5785 = vmatpush.xpose.msra.mxu0 0.0
    %5786 = vmatpush.xpose.msra.mxu0 0.0
    %5787 = vmatpush.xpose.msra.mxu0 0.0
    %5788 = vmatpush.xpose.msra.mxu0 0.0
    %5789 = vmatpush.xpose.msra.mxu0 0.0
    %5790 = vmatpush.xpose.msra.mxu0 0.0
    %5791 = vmatpush.xpose.msra.mxu0 0.0
    %5792 = vmatpush.xpose.msra.mxu0 0.0
    %5793 = vmatpush.xpose.msra.mxu0 0.0
    %5794 = vmatpush.xpose.msra.mxu0 0.0
    %5795 = vmatpush.xpose.msra.mxu0 0.0
    %5796 = vmatpush.xpose.msra.mxu0 %v360
    %5797 = vmatmul.f32.gmra.mxu0 %v785
    %v5798 = vpop.f32.mrf.mxu0
    %v5799 = vadd.f32 %v5779, %v5798
    %5800 = vdwg.mxu0
    %5801 = vmatpush.xpose.msra.mxu0 0.0
    %5802 = vmatpush.xpose.msra.mxu0 0.0
    %5803 = vmatpush.xpose.msra.mxu0 0.0
    %5804 = vmatpush.xpose.msra.mxu0 0.0
    %5805 = vmatpush.xpose.msra.mxu0 0.0
    %5806 = vmatpush.xpose.msra.mxu0 0.0
    %5807 = vmatpush.xpose.msra.mxu0 0.0
    %5808 = vmatpush.xpose.msra.mxu0 0.0
    %5809 = vmatpush.xpose.msra.mxu0 0.0
    %5810 = vmatpush.xpose.msra.mxu0 0.0
    %5811 = vmatpush.xpose.msra.mxu0 0.0
    %5812 = vmatpush.xpose.msra.mxu0 0.0
    %5813 = vmatpush.xpose.msra.mxu0 0.0
    %5814 = vmatpush.xpose.msra.mxu0 0.0
    %5815 = vmatpush.xpose.msra.mxu0 0.0
    %5816 = vmatpush.xpose.msra.mxu0 %v361
    %5817 = vmatmul.f32.gmra.mxu0 %v786
    %v5818 = vpop.f32.mrf.mxu0
    %v5819 = vadd.f32 %v5799, %v5818
    %5820 = vdwg.mxu0
    %5821 = vmatpush.xpose.msra.mxu0 0.0
    %5822 = vmatpush.xpose.msra.mxu0 0.0
    %5823 = vmatpush.xpose.msra.mxu0 0.0
    %5824 = vmatpush.xpose.msra.mxu0 0.0
    %5825 = vmatpush.xpose.msra.mxu0 0.0
    %5826 = vmatpush.xpose.msra.mxu0 0.0
    %5827 = vmatpush.xpose.msra.mxu0 0.0
    %5828 = vmatpush.xpose.msra.mxu0 0.0
    %5829 = vmatpush.xpose.msra.mxu0 0.0
    %5830 = vmatpush.xpose.msra.mxu0 0.0
    %5831 = vmatpush.xpose.msra.mxu0 0.0
    %5832 = vmatpush.xpose.msra.mxu0 0.0
    %5833 = vmatpush.xpose.msra.mxu0 0.0
    %5834 = vmatpush.xpose.msra.mxu0 0.0
    %5835 = vmatpush.xpose.msra.mxu0 0.0
    %5836 = vmatpush.xpose.msra.mxu0 %v362
    %5837 = vmatmul.f32.gmra.mxu0 %v787
    %v5838 = vpop.f32.mrf.mxu0
    %v5839 = vadd.f32 %v5819, %v5838
    %5840 = vdwg.mxu0
    %5841 = vmatpush.xpose.msra.mxu0 0.0
    %5842 = vmatpush.xpose.msra.mxu0 0.0
    %5843 = vmatpush.xpose.msra.mxu0 0.0
    %5844 = vmatpush.xpose.msra.mxu0 0.0
    %5845 = vmatpush.xpose.msra.mxu0 0.0
    %5846 = vmatpush.xpose.msra.mxu0 0.0
    %5847 = vmatpush.xpose.msra.mxu0 0.0
    %5848 = vmatpush.xpose.msra.mxu0 0.0
    %5849 = vmatpush.xpose.msra.mxu0 0.0
    %5850 = vmatpush.xpose.msra.mxu0 0.0
    %5851 = vmatpush.xpose.msra.mxu0 0.0
    %5852 = vmatpush.xpose.msra.mxu0 0.0
    %5853 = vmatpush.xpose.msra.mxu0 0.0
    %5854 = vmatpush.xpose.msra.mxu0 0.0
    %5855 = vmatpush.xpose.msra.mxu0 0.0
    %5856 = vmatpush.xpose.msra.mxu0 %v363
    %5857 = vmatmul.f32.gmra.mxu0 %v788
    %v5858 = vpop.f32.mrf.mxu0
    %v5859 = vadd.f32 %v5839, %v5858
    %5860 = vdwg.mxu0
    %5861 = vmatpush.xpose.msra.mxu0 0.0
    %5862 = vmatpush.xpose.msra.mxu0 0.0
    %5863 = vmatpush.xpose.msra.mxu0 0.0
    %5864 = vmatpush.xpose.msra.mxu0 0.0
    %5865 = vmatpush.xpose.msra.mxu0 0.0
    %5866 = vmatpush.xpose.msra.mxu0 0.0
    %5867 = vmatpush.xpose.msra.mxu0 0.0
    %5868 = vmatpush.xpose.msra.mxu0 0.0
    %5869 = vmatpush.xpose.msra.mxu0 0.0
    %5870 = vmatpush.xpose.msra.mxu0 0.0
    %5871 = vmatpush.xpose.msra.mxu0 0.0
    %5872 = vmatpush.xpose.msra.mxu0 0.0
    %5873 = vmatpush.xpose.msra.mxu0 0.0
    %5874 = vmatpush.xpose.msra.mxu0 0.0
    %5875 = vmatpush.xpose.msra.mxu0 0.0
    %5876 = vmatpush.xpose.msra.mxu0 %v364
    %5877 = vmatmul.f32.gmra.mxu0 %v789
    %v5878 = vpop.f32.mrf.mxu0
    %v5879 = vadd.f32 %v5859, %v5878
    %5880 = vdwg.mxu0
    %5881 = vmatpush.xpose.msra.mxu0 0.0
    %5882 = vmatpush.xpose.msra.mxu0 0.0
    %5883 = vmatpush.xpose.msra.mxu0 0.0
    %5884 = vmatpush.xpose.msra.mxu0 0.0
    %5885 = vmatpush.xpose.msra.mxu0 0.0
    %5886 = vmatpush.xpose.msra.mxu0 0.0
    %5887 = vmatpush.xpose.msra.mxu0 0.0
    %5888 = vmatpush.xpose.msra.mxu0 0.0
    %5889 = vmatpush.xpose.msra.mxu0 0.0
    %5890 = vmatpush.xpose.msra.mxu0 0.0
    %5891 = vmatpush.xpose.msra.mxu0 0.0
    %5892 = vmatpush.xpose.msra.mxu0 0.0
    %5893 = vmatpush.xpose.msra.mxu0 0.0
    %5894 = vmatpush.xpose.msra.mxu0 0.0
    %5895 = vmatpush.xpose.msra.mxu0 0.0
    %5896 = vmatpush.xpose.msra.mxu0 %v365
    %5897 = vmatmul.f32.gmra.mxu0 %v790
    %v5898 = vpop.f32.mrf.mxu0
    %v5899 = vadd.f32 %v5879, %v5898
    %5900 = vdwg.mxu0
    %5901 = vmatpush.xpose.msra.mxu0 0.0
    %5902 = vmatpush.xpose.msra.mxu0 0.0
    %5903 = vmatpush.xpose.msra.mxu0 0.0
    %5904 = vmatpush.xpose.msra.mxu0 0.0
    %5905 = vmatpush.xpose.msra.mxu0 0.0
    %5906 = vmatpush.xpose.msra.mxu0 0.0
    %5907 = vmatpush.xpose.msra.mxu0 0.0
    %5908 = vmatpush.xpose.msra.mxu0 0.0
    %5909 = vmatpush.xpose.msra.mxu0 0.0
    %5910 = vmatpush.xpose.msra.mxu0 0.0
    %5911 = vmatpush.xpose.msra.mxu0 0.0
    %5912 = vmatpush.xpose.msra.mxu0 0.0
    %5913 = vmatpush.xpose.msra.mxu0 0.0
    %5914 = vmatpush.xpose.msra.mxu0 0.0
    %5915 = vmatpush.xpose.msra.mxu0 0.0
    %5916 = vmatpush.xpose.msra.mxu0 %v366
    %5917 = vmatmul.f32.gmra.mxu0 %v791
    %v5918 = vpop.f32.mrf.mxu0
    %v5919 = vadd.f32 %v5899, %v5918
    %5920 = vdwg.mxu0
    %5921 = vmatpush.xpose.msra.mxu0 0.0
    %5922 = vmatpush.xpose.msra.mxu0 0.0
    %5923 = vmatpush.xpose.msra.mxu0 0.0
    %5924 = vmatpush.xpose.msra.mxu0 0.0
    %5925 = vmatpush.xpose.msra.mxu0 0.0
    %5926 = vmatpush.xpose.msra.mxu0 0.0
    %5927 = vmatpush.xpose.msra.mxu0 0.0
    %5928 = vmatpush.xpose.msra.mxu0 0.0
    %5929 = vmatpush.xpose.msra.mxu0 0.0
    %5930 = vmatpush.xpose.msra.mxu0 0.0
    %5931 = vmatpush.xpose.msra.mxu0 0.0
    %5932 = vmatpush.xpose.msra.mxu0 0.0
    %5933 = vmatpush.xpose.msra.mxu0 0.0
    %5934 = vmatpush.xpose.msra.mxu0 0.0
    %5935 = vmatpush.xpose.msra.mxu0 0.0
    %5936 = vmatpush.xpose.msra.mxu0 %v367
    %5937 = vmatmul.f32.gmra.mxu0 %v792
    %v5938 = vpop.f32.mrf.mxu0
    %v5939 = vadd.f32 %v5919, %v5938
    %5940 = vdwg.mxu0
    %5941 = vmatpush.xpose.msra.mxu0 0.0
    %5942 = vmatpush.xpose.msra.mxu0 0.0
    %5943 = vmatpush.xpose.msra.mxu0 0.0
    %5944 = vmatpush.xpose.msra.mxu0 0.0
    %5945 = vmatpush.xpose.msra.mxu0 0.0
    %5946 = vmatpush.xpose.msra.mxu0 0.0
    %5947 = vmatpush.xpose.msra.mxu0 0.0
    %5948 = vmatpush.xpose.msra.mxu0 0.0
    %5949 = vmatpush.xpose.msra.mxu0 0.0
    %5950 = vmatpush.xpose.msra.mxu0 0.0
    %5951 = vmatpush.xpose.msra.mxu0 0.0
    %5952 = vmatpush.xpose.msra.mxu0 0.0
    %5953 = vmatpush.xpose.msra.mxu0 0.0
    %5954 = vmatpush.xpose.msra.mxu0 0.0
    %5955 = vmatpush.xpose.msra.mxu0 0.0
    %5956 = vmatpush.xpose.msra.mxu0 %v368
    %5957 = vmatmul.f32.gmra.mxu0 %v795
    %v5958 = vpop.f32.mrf.mxu0
    %v5959 = vadd.f32 %v5939, %v5958
    %5960 = vdwg.mxu0
    %5961 = vmatpush.xpose.msra.mxu0 0.0
    %5962 = vmatpush.xpose.msra.mxu0 0.0
    %5963 = vmatpush.xpose.msra.mxu0 0.0
    %5964 = vmatpush.xpose.msra.mxu0 0.0
    %5965 = vmatpush.xpose.msra.mxu0 0.0
    %5966 = vmatpush.xpose.msra.mxu0 0.0
    %5967 = vmatpush.xpose.msra.mxu0 0.0
    %5968 = vmatpush.xpose.msra.mxu0 0.0
    %5969 = vmatpush.xpose.msra.mxu0 0.0
    %5970 = vmatpush.xpose.msra.mxu0 0.0
    %5971 = vmatpush.xpose.msra.mxu0 0.0
    %5972 = vmatpush.xpose.msra.mxu0 0.0
    %5973 = vmatpush.xpose.msra.mxu0 0.0
    %5974 = vmatpush.xpose.msra.mxu0 0.0
    %5975 = vmatpush.xpose.msra.mxu0 0.0
    %5976 = vmatpush.xpose.msra.mxu0 %v369
    %5977 = vmatmul.f32.gmra.mxu0 %v796
    %v5978 = vpop.f32.mrf.mxu0
    %v5979 = vadd.f32 %v5959, %v5978
    %5980 = vdwg.mxu0
    %5981 = vmatpush.xpose.msra.mxu0 0.0
    %5982 = vmatpush.xpose.msra.mxu0 0.0
    %5983 = vmatpush.xpose.msra.mxu0 0.0
    %5984 = vmatpush.xpose.msra.mxu0 0.0
    %5985 = vmatpush.xpose.msra.mxu0 0.0
    %5986 = vmatpush.xpose.msra.mxu0 0.0
    %5987 = vmatpush.xpose.msra.mxu0 0.0
    %5988 = vmatpush.xpose.msra.mxu0 0.0
    %5989 = vmatpush.xpose.msra.mxu0 0.0
    %5990 = vmatpush.xpose.msra.mxu0 0.0
    %5991 = vmatpush.xpose.msra.mxu0 0.0
    %5992 = vmatpush.xpose.msra.mxu0 0.0
    %5993 = vmatpush.xpose.msra.mxu0 0.0
    %5994 = vmatpush.xpose.msra.mxu0 0.0
    %5995 = vmatpush.xpose.msra.mxu0 0.0
    %5996 = vmatpush.xpose.msra.mxu0 %v370
    %5997 = vmatmul.f32.gmra.mxu0 %v797
    %v5998 = vpop.f32.mrf.mxu0
    %v5999 = vadd.f32 %v5979, %v5998
    %6000 = vdwg.mxu0
    %6001 = vmatpush.xpose.msra.mxu0 0.0
    %6002 = vmatpush.xpose.msra.mxu0 0.0
    %6003 = vmatpush.xpose.msra.mxu0 0.0
    %6004 = vmatpush.xpose.msra.mxu0 0.0
    %6005 = vmatpush.xpose.msra.mxu0 0.0
    %6006 = vmatpush.xpose.msra.mxu0 0.0
    %6007 = vmatpush.xpose.msra.mxu0 0.0
    %6008 = vmatpush.xpose.msra.mxu0 0.0
    %6009 = vmatpush.xpose.msra.mxu0 0.0
    %6010 = vmatpush.xpose.msra.mxu0 0.0
    %6011 = vmatpush.xpose.msra.mxu0 0.0
    %6012 = vmatpush.xpose.msra.mxu0 0.0
    %6013 = vmatpush.xpose.msra.mxu0 0.0
    %6014 = vmatpush.xpose.msra.mxu0 0.0
    %6015 = vmatpush.xpose.msra.mxu0 0.0
    %6016 = vmatpush.xpose.msra.mxu0 %v371
    %6017 = vmatmul.f32.gmra.mxu0 %v798
    %v6018 = vpop.f32.mrf.mxu0
    %v6019 = vadd.f32 %v5999, %v6018
    %6020 = vdwg.mxu0
    %6021 = vmatpush.xpose.msra.mxu0 0.0
    %6022 = vmatpush.xpose.msra.mxu0 0.0
    %6023 = vmatpush.xpose.msra.mxu0 0.0
    %6024 = vmatpush.xpose.msra.mxu0 0.0
    %6025 = vmatpush.xpose.msra.mxu0 0.0
    %6026 = vmatpush.xpose.msra.mxu0 0.0
    %6027 = vmatpush.xpose.msra.mxu0 0.0
    %6028 = vmatpush.xpose.msra.mxu0 0.0
    %6029 = vmatpush.xpose.msra.mxu0 0.0
    %6030 = vmatpush.xpose.msra.mxu0 0.0
    %6031 = vmatpush.xpose.msra.mxu0 0.0
    %6032 = vmatpush.xpose.msra.mxu0 0.0
    %6033 = vmatpush.xpose.msra.mxu0 0.0
    %6034 = vmatpush.xpose.msra.mxu0 0.0
    %6035 = vmatpush.xpose.msra.mxu0 0.0
    %6036 = vmatpush.xpose.msra.mxu0 %v372
    %6037 = vmatmul.f32.gmra.mxu0 %v799
    %v6038 = vpop.f32.mrf.mxu0
    %v6039 = vadd.f32 %v6019, %v6038
    %6040 = vdwg.mxu0
    %6041 = vmatpush.xpose.msra.mxu0 0.0
    %6042 = vmatpush.xpose.msra.mxu0 0.0
    %6043 = vmatpush.xpose.msra.mxu0 0.0
    %6044 = vmatpush.xpose.msra.mxu0 0.0
    %6045 = vmatpush.xpose.msra.mxu0 0.0
    %6046 = vmatpush.xpose.msra.mxu0 0.0
    %6047 = vmatpush.xpose.msra.mxu0 0.0
    %6048 = vmatpush.xpose.msra.mxu0 0.0
    %6049 = vmatpush.xpose.msra.mxu0 0.0
    %6050 = vmatpush.xpose.msra.mxu0 0.0
    %6051 = vmatpush.xpose.msra.mxu0 0.0
    %6052 = vmatpush.xpose.msra.mxu0 0.0
    %6053 = vmatpush.xpose.msra.mxu0 0.0
    %6054 = vmatpush.xpose.msra.mxu0 0.0
    %6055 = vmatpush.xpose.msra.mxu0 0.0
    %6056 = vmatpush.xpose.msra.mxu0 %v373
    %6057 = vmatmul.f32.gmra.mxu0 %v800
    %v6058 = vpop.f32.mrf.mxu0
    %v6059 = vadd.f32 %v6039, %v6058
    %6060 = vdwg.mxu0
    %6061 = vmatpush.xpose.msra.mxu0 0.0
    %6062 = vmatpush.xpose.msra.mxu0 0.0
    %6063 = vmatpush.xpose.msra.mxu0 0.0
    %6064 = vmatpush.xpose.msra.mxu0 0.0
    %6065 = vmatpush.xpose.msra.mxu0 0.0
    %6066 = vmatpush.xpose.msra.mxu0 0.0
    %6067 = vmatpush.xpose.msra.mxu0 0.0
    %6068 = vmatpush.xpose.msra.mxu0 0.0
    %6069 = vmatpush.xpose.msra.mxu0 0.0
    %6070 = vmatpush.xpose.msra.mxu0 0.0
    %6071 = vmatpush.xpose.msra.mxu0 0.0
    %6072 = vmatpush.xpose.msra.mxu0 0.0
    %6073 = vmatpush.xpose.msra.mxu0 0.0
    %6074 = vmatpush.xpose.msra.mxu0 0.0
    %6075 = vmatpush.xpose.msra.mxu0 0.0
    %6076 = vmatpush.xpose.msra.mxu0 %v374
    %6077 = vmatmul.f32.gmra.mxu0 %v801
    %v6078 = vpop.f32.mrf.mxu0
    %v6079 = vadd.f32 %v6059, %v6078
    %6080 = vdwg.mxu0
    %6081 = vmatpush.xpose.msra.mxu0 0.0
    %6082 = vmatpush.xpose.msra.mxu0 0.0
    %6083 = vmatpush.xpose.msra.mxu0 0.0
    %6084 = vmatpush.xpose.msra.mxu0 0.0
    %6085 = vmatpush.xpose.msra.mxu0 0.0
    %6086 = vmatpush.xpose.msra.mxu0 0.0
    %6087 = vmatpush.xpose.msra.mxu0 0.0
    %6088 = vmatpush.xpose.msra.mxu0 0.0
    %6089 = vmatpush.xpose.msra.mxu0 0.0
    %6090 = vmatpush.xpose.msra.mxu0 0.0
    %6091 = vmatpush.xpose.msra.mxu0 0.0
    %6092 = vmatpush.xpose.msra.mxu0 0.0
    %6093 = vmatpush.xpose.msra.mxu0 0.0
    %6094 = vmatpush.xpose.msra.mxu0 0.0
    %6095 = vmatpush.xpose.msra.mxu0 0.0
    %6096 = vmatpush.xpose.msra.mxu0 %v375
    %6097 = vmatmul.f32.gmra.mxu0 %v802
    %v6098 = vpop.f32.mrf.mxu0
    %v6099 = vadd.f32 %v6079, %v6098
    %6100 = vdwg.mxu0
    %6101 = vmatpush.xpose.msra.mxu0 0.0
    %6102 = vmatpush.xpose.msra.mxu0 0.0
    %6103 = vmatpush.xpose.msra.mxu0 0.0
    %6104 = vmatpush.xpose.msra.mxu0 0.0
    %6105 = vmatpush.xpose.msra.mxu0 0.0
    %6106 = vmatpush.xpose.msra.mxu0 0.0
    %6107 = vmatpush.xpose.msra.mxu0 0.0
    %6108 = vmatpush.xpose.msra.mxu0 0.0
    %6109 = vmatpush.xpose.msra.mxu0 0.0
    %6110 = vmatpush.xpose.msra.mxu0 0.0
    %6111 = vmatpush.xpose.msra.mxu0 0.0
    %6112 = vmatpush.xpose.msra.mxu0 0.0
    %6113 = vmatpush.xpose.msra.mxu0 0.0
    %6114 = vmatpush.xpose.msra.mxu0 0.0
    %6115 = vmatpush.xpose.msra.mxu0 0.0
    %6116 = vmatpush.xpose.msra.mxu0 %v376
    %6117 = vmatmul.f32.gmra.mxu0 %v805
    %v6118 = vpop.f32.mrf.mxu0
    %v6119 = vadd.f32 %v6099, %v6118
    %6120 = vdwg.mxu0
    %6121 = vmatpush.xpose.msra.mxu0 0.0
    %6122 = vmatpush.xpose.msra.mxu0 0.0
    %6123 = vmatpush.xpose.msra.mxu0 0.0
    %6124 = vmatpush.xpose.msra.mxu0 0.0
    %6125 = vmatpush.xpose.msra.mxu0 0.0
    %6126 = vmatpush.xpose.msra.mxu0 0.0
    %6127 = vmatpush.xpose.msra.mxu0 0.0
    %6128 = vmatpush.xpose.msra.mxu0 0.0
    %6129 = vmatpush.xpose.msra.mxu0 0.0
    %6130 = vmatpush.xpose.msra.mxu0 0.0
    %6131 = vmatpush.xpose.msra.mxu0 0.0
    %6132 = vmatpush.xpose.msra.mxu0 0.0
    %6133 = vmatpush.xpose.msra.mxu0 0.0
    %6134 = vmatpush.xpose.msra.mxu0 0.0
    %6135 = vmatpush.xpose.msra.mxu0 0.0
    %6136 = vmatpush.xpose.msra.mxu0 %v377
    %6137 = vmatmul.f32.gmra.mxu0 %v806
    %v6138 = vpop.f32.mrf.mxu0
    %v6139 = vadd.f32 %v6119, %v6138
    %6140 = vdwg.mxu0
    %6141 = vmatpush.xpose.msra.mxu0 0.0
    %6142 = vmatpush.xpose.msra.mxu0 0.0
    %6143 = vmatpush.xpose.msra.mxu0 0.0
    %6144 = vmatpush.xpose.msra.mxu0 0.0
    %6145 = vmatpush.xpose.msra.mxu0 0.0
    %6146 = vmatpush.xpose.msra.mxu0 0.0
    %6147 = vmatpush.xpose.msra.mxu0 0.0
    %6148 = vmatpush.xpose.msra.mxu0 0.0
    %6149 = vmatpush.xpose.msra.mxu0 0.0
    %6150 = vmatpush.xpose.msra.mxu0 0.0
    %6151 = vmatpush.xpose.msra.mxu0 0.0
    %6152 = vmatpush.xpose.msra.mxu0 0.0
    %6153 = vmatpush.xpose.msra.mxu0 0.0
    %6154 = vmatpush.xpose.msra.mxu0 0.0
    %6155 = vmatpush.xpose.msra.mxu0 0.0
    %6156 = vmatpush.xpose.msra.mxu0 %v378
    %6157 = vmatmul.f32.gmra.mxu0 %v807
    %v6158 = vpop.f32.mrf.mxu0
    %v6159 = vadd.f32 %v6139, %v6158
    %6160 = vdwg.mxu0
    %6161 = vmatpush.xpose.msra.mxu0 0.0
    %6162 = vmatpush.xpose.msra.mxu0 0.0
    %6163 = vmatpush.xpose.msra.mxu0 0.0
    %6164 = vmatpush.xpose.msra.mxu0 0.0
    %6165 = vmatpush.xpose.msra.mxu0 0.0
    %6166 = vmatpush.xpose.msra.mxu0 0.0
    %6167 = vmatpush.xpose.msra.mxu0 0.0
    %6168 = vmatpush.xpose.msra.mxu0 0.0
    %6169 = vmatpush.xpose.msra.mxu0 0.0
    %6170 = vmatpush.xpose.msra.mxu0 0.0
    %6171 = vmatpush.xpose.msra.mxu0 0.0
    %6172 = vmatpush.xpose.msra.mxu0 0.0
    %6173 = vmatpush.xpose.msra.mxu0 0.0
    %6174 = vmatpush.xpose.msra.mxu0 0.0
    %6175 = vmatpush.xpose.msra.mxu0 0.0
    %6176 = vmatpush.xpose.msra.mxu0 %v379
    %6177 = vmatmul.f32.gmra.mxu0 %v808
    %v6178 = vpop.f32.mrf.mxu0
    %v6179 = vadd.f32 %v6159, %v6178
    %6180 = vdwg.mxu0
    %6181 = vmatpush.xpose.msra.mxu0 0.0
    %6182 = vmatpush.xpose.msra.mxu0 0.0
    %6183 = vmatpush.xpose.msra.mxu0 0.0
    %6184 = vmatpush.xpose.msra.mxu0 0.0
    %6185 = vmatpush.xpose.msra.mxu0 0.0
    %6186 = vmatpush.xpose.msra.mxu0 0.0
    %6187 = vmatpush.xpose.msra.mxu0 0.0
    %6188 = vmatpush.xpose.msra.mxu0 0.0
    %6189 = vmatpush.xpose.msra.mxu0 0.0
    %6190 = vmatpush.xpose.msra.mxu0 0.0
    %6191 = vmatpush.xpose.msra.mxu0 0.0
    %6192 = vmatpush.xpose.msra.mxu0 0.0
    %6193 = vmatpush.xpose.msra.mxu0 0.0
    %6194 = vmatpush.xpose.msra.mxu0 0.0
    %6195 = vmatpush.xpose.msra.mxu0 0.0
    %6196 = vmatpush.xpose.msra.mxu0 %v380
    %6197 = vmatmul.f32.gmra.mxu0 %v809
    %v6198 = vpop.f32.mrf.mxu0
    %v6199 = vadd.f32 %v6179, %v6198
    %6200 = vdwg.mxu0
    %6201 = vmatpush.xpose.msra.mxu0 0.0
    %6202 = vmatpush.xpose.msra.mxu0 0.0
    %6203 = vmatpush.xpose.msra.mxu0 0.0
    %6204 = vmatpush.xpose.msra.mxu0 0.0
    %6205 = vmatpush.xpose.msra.mxu0 0.0
    %6206 = vmatpush.xpose.msra.mxu0 0.0
    %6207 = vmatpush.xpose.msra.mxu0 0.0
    %6208 = vmatpush.xpose.msra.mxu0 0.0
    %6209 = vmatpush.xpose.msra.mxu0 0.0
    %6210 = vmatpush.xpose.msra.mxu0 0.0
    %6211 = vmatpush.xpose.msra.mxu0 0.0
    %6212 = vmatpush.xpose.msra.mxu0 0.0
    %6213 = vmatpush.xpose.msra.mxu0 0.0
    %6214 = vmatpush.xpose.msra.mxu0 0.0
    %6215 = vmatpush.xpose.msra.mxu0 0.0
    %6216 = vmatpush.xpose.msra.mxu0 %v381
    %6217 = vmatmul.f32.gmra.mxu0 %v810
    %v6218 = vpop.f32.mrf.mxu0
    %v6219 = vadd.f32 %v6199, %v6218
    %6220 = vdwg.mxu0
    %6221 = vmatpush.xpose.msra.mxu0 0.0
    %6222 = vmatpush.xpose.msra.mxu0 0.0
    %6223 = vmatpush.xpose.msra.mxu0 0.0
    %6224 = vmatpush.xpose.msra.mxu0 0.0
    %6225 = vmatpush.xpose.msra.mxu0 0.0
    %6226 = vmatpush.xpose.msra.mxu0 0.0
    %6227 = vmatpush.xpose.msra.mxu0 0.0
    %6228 = vmatpush.xpose.msra.mxu0 0.0
    %6229 = vmatpush.xpose.msra.mxu0 0.0
    %6230 = vmatpush.xpose.msra.mxu0 0.0
    %6231 = vmatpush.xpose.msra.mxu0 0.0
    %6232 = vmatpush.xpose.msra.mxu0 0.0
    %6233 = vmatpush.xpose.msra.mxu0 0.0
    %6234 = vmatpush.xpose.msra.mxu0 0.0
    %6235 = vmatpush.xpose.msra.mxu0 0.0
    %6236 = vmatpush.xpose.msra.mxu0 %v382
    %6237 = vmatmul.f32.gmra.mxu0 %v811
    %v6238 = vpop.f32.mrf.mxu0
    %v6239 = vadd.f32 %v6219, %v6238
    %6240 = vdwg.mxu0
    %6241 = vmatpush.xpose.msra.mxu0 0.0
    %6242 = vmatpush.xpose.msra.mxu0 0.0
    %6243 = vmatpush.xpose.msra.mxu0 0.0
    %6244 = vmatpush.xpose.msra.mxu0 0.0
    %6245 = vmatpush.xpose.msra.mxu0 0.0
    %6246 = vmatpush.xpose.msra.mxu0 0.0
    %6247 = vmatpush.xpose.msra.mxu0 0.0
    %6248 = vmatpush.xpose.msra.mxu0 0.0
    %6249 = vmatpush.xpose.msra.mxu0 0.0
    %6250 = vmatpush.xpose.msra.mxu0 0.0
    %6251 = vmatpush.xpose.msra.mxu0 0.0
    %6252 = vmatpush.xpose.msra.mxu0 0.0
    %6253 = vmatpush.xpose.msra.mxu0 0.0
    %6254 = vmatpush.xpose.msra.mxu0 0.0
    %6255 = vmatpush.xpose.msra.mxu0 0.0
    %6256 = vmatpush.xpose.msra.mxu0 %v383
    %6257 = vmatmul.f32.gmra.mxu0 %v812
    %v6258 = vpop.f32.mrf.mxu0
    %v6259 = vadd.f32 %v6239, %v6258
    %6260 = vdwg.mxu0
    %6261 = vmatpush.xpose.msra.mxu0 0.0
    %6262 = vmatpush.xpose.msra.mxu0 0.0
    %6263 = vmatpush.xpose.msra.mxu0 0.0
    %6264 = vmatpush.xpose.msra.mxu0 0.0
    %6265 = vmatpush.xpose.msra.mxu0 0.0
    %6266 = vmatpush.xpose.msra.mxu0 0.0
    %6267 = vmatpush.xpose.msra.mxu0 0.0
    %6268 = vmatpush.xpose.msra.mxu0 0.0
    %6269 = vmatpush.xpose.msra.mxu0 0.0
    %6270 = vmatpush.xpose.msra.mxu0 0.0
    %6271 = vmatpush.xpose.msra.mxu0 0.0
    %6272 = vmatpush.xpose.msra.mxu0 0.0
    %6273 = vmatpush.xpose.msra.mxu0 0.0
    %6274 = vmatpush.xpose.msra.mxu0 0.0
    %6275 = vmatpush.xpose.msra.mxu0 0.0
    %6276 = vmatpush.xpose.msra.mxu0 %v384
    %6277 = vmatmul.f32.gmra.mxu0 %v815
    %v6278 = vpop.f32.mrf.mxu0
    %v6279 = vadd.f32 %v6259, %v6278
    %6280 = vdwg.mxu0
    %6281 = vmatpush.xpose.msra.mxu0 0.0
    %6282 = vmatpush.xpose.msra.mxu0 0.0
    %6283 = vmatpush.xpose.msra.mxu0 0.0
    %6284 = vmatpush.xpose.msra.mxu0 0.0
    %6285 = vmatpush.xpose.msra.mxu0 0.0
    %6286 = vmatpush.xpose.msra.mxu0 0.0
    %6287 = vmatpush.xpose.msra.mxu0 0.0
    %6288 = vmatpush.xpose.msra.mxu0 0.0
    %6289 = vmatpush.xpose.msra.mxu0 0.0
    %6290 = vmatpush.xpose.msra.mxu0 0.0
    %6291 = vmatpush.xpose.msra.mxu0 0.0
    %6292 = vmatpush.xpose.msra.mxu0 0.0
    %6293 = vmatpush.xpose.msra.mxu0 0.0
    %6294 = vmatpush.xpose.msra.mxu0 0.0
    %6295 = vmatpush.xpose.msra.mxu0 0.0
    %6296 = vmatpush.xpose.msra.mxu0 %v385
    %6297 = vmatmul.f32.gmra.mxu0 %v816
    %v6298 = vpop.f32.mrf.mxu0
    %v6299 = vadd.f32 %v6279, %v6298
    %6300 = vdwg.mxu0
    %6301 = vmatpush.xpose.msra.mxu0 0.0
    %6302 = vmatpush.xpose.msra.mxu0 0.0
    %6303 = vmatpush.xpose.msra.mxu0 0.0
    %6304 = vmatpush.xpose.msra.mxu0 0.0
    %6305 = vmatpush.xpose.msra.mxu0 0.0
    %6306 = vmatpush.xpose.msra.mxu0 0.0
    %6307 = vmatpush.xpose.msra.mxu0 0.0
    %6308 = vmatpush.xpose.msra.mxu0 0.0
    %6309 = vmatpush.xpose.msra.mxu0 0.0
    %6310 = vmatpush.xpose.msra.mxu0 0.0
    %6311 = vmatpush.xpose.msra.mxu0 0.0
    %6312 = vmatpush.xpose.msra.mxu0 0.0
    %6313 = vmatpush.xpose.msra.mxu0 0.0
    %6314 = vmatpush.xpose.msra.mxu0 0.0
    %6315 = vmatpush.xpose.msra.mxu0 0.0
    %6316 = vmatpush.xpose.msra.mxu0 %v386
    %6317 = vmatmul.f32.gmra.mxu0 %v817
    %v6318 = vpop.f32.mrf.mxu0
    %v6319 = vadd.f32 %v6299, %v6318
    %6320 = vdwg.mxu0
    %6321 = vmatpush.xpose.msra.mxu0 0.0
    %6322 = vmatpush.xpose.msra.mxu0 0.0
    %6323 = vmatpush.xpose.msra.mxu0 0.0
    %6324 = vmatpush.xpose.msra.mxu0 0.0
    %6325 = vmatpush.xpose.msra.mxu0 0.0
    %6326 = vmatpush.xpose.msra.mxu0 0.0
    %6327 = vmatpush.xpose.msra.mxu0 0.0
    %6328 = vmatpush.xpose.msra.mxu0 0.0
    %6329 = vmatpush.xpose.msra.mxu0 0.0
    %6330 = vmatpush.xpose.msra.mxu0 0.0
    %6331 = vmatpush.xpose.msra.mxu0 0.0
    %6332 = vmatpush.xpose.msra.mxu0 0.0
    %6333 = vmatpush.xpose.msra.mxu0 0.0
    %6334 = vmatpush.xpose.msra.mxu0 0.0
    %6335 = vmatpush.xpose.msra.mxu0 0.0
    %6336 = vmatpush.xpose.msra.mxu0 %v387
    %6337 = vmatmul.f32.gmra.mxu0 %v818
    %v6338 = vpop.f32.mrf.mxu0
    %v6339 = vadd.f32 %v6319, %v6338
    %6340 = vdwg.mxu0
    %6341 = vmatpush.xpose.msra.mxu0 0.0
    %6342 = vmatpush.xpose.msra.mxu0 0.0
    %6343 = vmatpush.xpose.msra.mxu0 0.0
    %6344 = vmatpush.xpose.msra.mxu0 0.0
    %6345 = vmatpush.xpose.msra.mxu0 0.0
    %6346 = vmatpush.xpose.msra.mxu0 0.0
    %6347 = vmatpush.xpose.msra.mxu0 0.0
    %6348 = vmatpush.xpose.msra.mxu0 0.0
    %6349 = vmatpush.xpose.msra.mxu0 0.0
    %6350 = vmatpush.xpose.msra.mxu0 0.0
    %6351 = vmatpush.xpose.msra.mxu0 0.0
    %6352 = vmatpush.xpose.msra.mxu0 0.0
    %6353 = vmatpush.xpose.msra.mxu0 0.0
    %6354 = vmatpush.xpose.msra.mxu0 0.0
    %6355 = vmatpush.xpose.msra.mxu0 0.0
    %6356 = vmatpush.xpose.msra.mxu0 %v388
    %6357 = vmatmul.f32.gmra.mxu0 %v819
    %v6358 = vpop.f32.mrf.mxu0
    %v6359 = vadd.f32 %v6339, %v6358
    %6360 = vdwg.mxu0
    %6361 = vmatpush.xpose.msra.mxu0 0.0
    %6362 = vmatpush.xpose.msra.mxu0 0.0
    %6363 = vmatpush.xpose.msra.mxu0 0.0
    %6364 = vmatpush.xpose.msra.mxu0 0.0
    %6365 = vmatpush.xpose.msra.mxu0 0.0
    %6366 = vmatpush.xpose.msra.mxu0 0.0
    %6367 = vmatpush.xpose.msra.mxu0 0.0
    %6368 = vmatpush.xpose.msra.mxu0 0.0
    %6369 = vmatpush.xpose.msra.mxu0 0.0
    %6370 = vmatpush.xpose.msra.mxu0 0.0
    %6371 = vmatpush.xpose.msra.mxu0 0.0
    %6372 = vmatpush.xpose.msra.mxu0 0.0
    %6373 = vmatpush.xpose.msra.mxu0 0.0
    %6374 = vmatpush.xpose.msra.mxu0 0.0
    %6375 = vmatpush.xpose.msra.mxu0 0.0
    %6376 = vmatpush.xpose.msra.mxu0 %v389
    %6377 = vmatmul.f32.gmra.mxu0 %v820
    %v6378 = vpop.f32.mrf.mxu0
    %v6379 = vadd.f32 %v6359, %v6378
    %6380 = vdwg.mxu0
    %6381 = vmatpush.xpose.msra.mxu0 0.0
    %6382 = vmatpush.xpose.msra.mxu0 0.0
    %6383 = vmatpush.xpose.msra.mxu0 0.0
    %6384 = vmatpush.xpose.msra.mxu0 0.0
    %6385 = vmatpush.xpose.msra.mxu0 0.0
    %6386 = vmatpush.xpose.msra.mxu0 0.0
    %6387 = vmatpush.xpose.msra.mxu0 0.0
    %6388 = vmatpush.xpose.msra.mxu0 0.0
    %6389 = vmatpush.xpose.msra.mxu0 0.0
    %6390 = vmatpush.xpose.msra.mxu0 0.0
    %6391 = vmatpush.xpose.msra.mxu0 0.0
    %6392 = vmatpush.xpose.msra.mxu0 0.0
    %6393 = vmatpush.xpose.msra.mxu0 0.0
    %6394 = vmatpush.xpose.msra.mxu0 0.0
    %6395 = vmatpush.xpose.msra.mxu0 0.0
    %6396 = vmatpush.xpose.msra.mxu0 %v390
    %6397 = vmatmul.f32.gmra.mxu0 %v821
    %v6398 = vpop.f32.mrf.mxu0
    %v6399 = vadd.f32 %v6379, %v6398
    %6400 = vdwg.mxu0
    %6401 = vmatpush.xpose.msra.mxu0 0.0
    %6402 = vmatpush.xpose.msra.mxu0 0.0
    %6403 = vmatpush.xpose.msra.mxu0 0.0
    %6404 = vmatpush.xpose.msra.mxu0 0.0
    %6405 = vmatpush.xpose.msra.mxu0 0.0
    %6406 = vmatpush.xpose.msra.mxu0 0.0
    %6407 = vmatpush.xpose.msra.mxu0 0.0
    %6408 = vmatpush.xpose.msra.mxu0 0.0
    %6409 = vmatpush.xpose.msra.mxu0 0.0
    %6410 = vmatpush.xpose.msra.mxu0 0.0
    %6411 = vmatpush.xpose.msra.mxu0 0.0
    %6412 = vmatpush.xpose.msra.mxu0 0.0
    %6413 = vmatpush.xpose.msra.mxu0 0.0
    %6414 = vmatpush.xpose.msra.mxu0 0.0
    %6415 = vmatpush.xpose.msra.mxu0 0.0
    %6416 = vmatpush.xpose.msra.mxu0 %v391
    %6417 = vmatmul.f32.gmra.mxu0 %v822
    %v6418 = vpop.f32.mrf.mxu0
    %v6419 = vadd.f32 %v6399, %v6418
    %6420 = vdwg.mxu0
    %6421 = vmatpush.xpose.msra.mxu0 0.0
    %6422 = vmatpush.xpose.msra.mxu0 0.0
    %6423 = vmatpush.xpose.msra.mxu0 0.0
    %6424 = vmatpush.xpose.msra.mxu0 0.0
    %6425 = vmatpush.xpose.msra.mxu0 0.0
    %6426 = vmatpush.xpose.msra.mxu0 0.0
    %6427 = vmatpush.xpose.msra.mxu0 0.0
    %6428 = vmatpush.xpose.msra.mxu0 0.0
    %6429 = vmatpush.xpose.msra.mxu0 0.0
    %6430 = vmatpush.xpose.msra.mxu0 0.0
    %6431 = vmatpush.xpose.msra.mxu0 0.0
    %6432 = vmatpush.xpose.msra.mxu0 0.0
    %6433 = vmatpush.xpose.msra.mxu0 0.0
    %6434 = vmatpush.xpose.msra.mxu0 0.0
    %6435 = vmatpush.xpose.msra.mxu0 0.0
    %6436 = vmatpush.xpose.msra.mxu0 %v392
    %6437 = vmatmul.f32.gmra.mxu0 %v825
    %v6438 = vpop.f32.mrf.mxu0
    %v6439 = vadd.f32 %v6419, %v6438
    %6440 = vdwg.mxu0
    %6441 = vmatpush.xpose.msra.mxu0 0.0
    %6442 = vmatpush.xpose.msra.mxu0 0.0
    %6443 = vmatpush.xpose.msra.mxu0 0.0
    %6444 = vmatpush.xpose.msra.mxu0 0.0
    %6445 = vmatpush.xpose.msra.mxu0 0.0
    %6446 = vmatpush.xpose.msra.mxu0 0.0
    %6447 = vmatpush.xpose.msra.mxu0 0.0
    %6448 = vmatpush.xpose.msra.mxu0 0.0
    %6449 = vmatpush.xpose.msra.mxu0 0.0
    %6450 = vmatpush.xpose.msra.mxu0 0.0
    %6451 = vmatpush.xpose.msra.mxu0 0.0
    %6452 = vmatpush.xpose.msra.mxu0 0.0
    %6453 = vmatpush.xpose.msra.mxu0 0.0
    %6454 = vmatpush.xpose.msra.mxu0 0.0
    %6455 = vmatpush.xpose.msra.mxu0 0.0
    %6456 = vmatpush.xpose.msra.mxu0 %v393
    %6457 = vmatmul.f32.gmra.mxu0 %v826
    %v6458 = vpop.f32.mrf.mxu0
    %v6459 = vadd.f32 %v6439, %v6458
    %6460 = vdwg.mxu0
    %6461 = vmatpush.xpose.msra.mxu0 0.0
    %6462 = vmatpush.xpose.msra.mxu0 0.0
    %6463 = vmatpush.xpose.msra.mxu0 0.0
    %6464 = vmatpush.xpose.msra.mxu0 0.0
    %6465 = vmatpush.xpose.msra.mxu0 0.0
    %6466 = vmatpush.xpose.msra.mxu0 0.0
    %6467 = vmatpush.xpose.msra.mxu0 0.0
    %6468 = vmatpush.xpose.msra.mxu0 0.0
    %6469 = vmatpush.xpose.msra.mxu0 0.0
    %6470 = vmatpush.xpose.msra.mxu0 0.0
    %6471 = vmatpush.xpose.msra.mxu0 0.0
    %6472 = vmatpush.xpose.msra.mxu0 0.0
    %6473 = vmatpush.xpose.msra.mxu0 0.0
    %6474 = vmatpush.xpose.msra.mxu0 0.0
    %6475 = vmatpush.xpose.msra.mxu0 0.0
    %6476 = vmatpush.xpose.msra.mxu0 %v394
    %6477 = vmatmul.f32.gmra.mxu0 %v827
    %v6478 = vpop.f32.mrf.mxu0
    %v6479 = vadd.f32 %v6459, %v6478
    %6480 = vdwg.mxu0
    %6481 = vmatpush.xpose.msra.mxu0 0.0
    %6482 = vmatpush.xpose.msra.mxu0 0.0
    %6483 = vmatpush.xpose.msra.mxu0 0.0
    %6484 = vmatpush.xpose.msra.mxu0 0.0
    %6485 = vmatpush.xpose.msra.mxu0 0.0
    %6486 = vmatpush.xpose.msra.mxu0 0.0
    %6487 = vmatpush.xpose.msra.mxu0 0.0
    %6488 = vmatpush.xpose.msra.mxu0 0.0
    %6489 = vmatpush.xpose.msra.mxu0 0.0
    %6490 = vmatpush.xpose.msra.mxu0 0.0
    %6491 = vmatpush.xpose.msra.mxu0 0.0
    %6492 = vmatpush.xpose.msra.mxu0 0.0
    %6493 = vmatpush.xpose.msra.mxu0 0.0
    %6494 = vmatpush.xpose.msra.mxu0 0.0
    %6495 = vmatpush.xpose.msra.mxu0 0.0
    %6496 = vmatpush.xpose.msra.mxu0 %v395
    %6497 = vmatmul.f32.gmra.mxu0 %v828
    %v6498 = vpop.f32.mrf.mxu0
    %v6499 = vadd.f32 %v6479, %v6498
    %6500 = vdwg.mxu0
    %6501 = vmatpush.xpose.msra.mxu0 0.0
    %6502 = vmatpush.xpose.msra.mxu0 0.0
    %6503 = vmatpush.xpose.msra.mxu0 0.0
    %6504 = vmatpush.xpose.msra.mxu0 0.0
    %6505 = vmatpush.xpose.msra.mxu0 0.0
    %6506 = vmatpush.xpose.msra.mxu0 0.0
    %6507 = vmatpush.xpose.msra.mxu0 0.0
    %6508 = vmatpush.xpose.msra.mxu0 0.0
    %6509 = vmatpush.xpose.msra.mxu0 0.0
    %6510 = vmatpush.xpose.msra.mxu0 0.0
    %6511 = vmatpush.xpose.msra.mxu0 0.0
    %6512 = vmatpush.xpose.msra.mxu0 0.0
    %6513 = vmatpush.xpose.msra.mxu0 0.0
    %6514 = vmatpush.xpose.msra.mxu0 0.0
    %6515 = vmatpush.xpose.msra.mxu0 0.0
    %6516 = vmatpush.xpose.msra.mxu0 %v396
    %6517 = vmatmul.f32.gmra.mxu0 %v829
    %v6518 = vpop.f32.mrf.mxu0
    %v6519 = vadd.f32 %v6499, %v6518
    %6520 = vdwg.mxu0
    %6521 = vmatpush.xpose.msra.mxu0 0.0
    %6522 = vmatpush.xpose.msra.mxu0 0.0
    %6523 = vmatpush.xpose.msra.mxu0 0.0
    %6524 = vmatpush.xpose.msra.mxu0 0.0
    %6525 = vmatpush.xpose.msra.mxu0 0.0
    %6526 = vmatpush.xpose.msra.mxu0 0.0
    %6527 = vmatpush.xpose.msra.mxu0 0.0
    %6528 = vmatpush.xpose.msra.mxu0 0.0
    %6529 = vmatpush.xpose.msra.mxu0 0.0
    %6530 = vmatpush.xpose.msra.mxu0 0.0
    %6531 = vmatpush.xpose.msra.mxu0 0.0
    %6532 = vmatpush.xpose.msra.mxu0 0.0
    %6533 = vmatpush.xpose.msra.mxu0 0.0
    %6534 = vmatpush.xpose.msra.mxu0 0.0
    %6535 = vmatpush.xpose.msra.mxu0 0.0
    %6536 = vmatpush.xpose.msra.mxu0 %v397
    %6537 = vmatmul.f32.gmra.mxu0 %v830
    %v6538 = vpop.f32.mrf.mxu0
    %v6539 = vadd.f32 %v6519, %v6538
    %6540 = vdwg.mxu0
    %6541 = vmatpush.xpose.msra.mxu0 0.0
    %6542 = vmatpush.xpose.msra.mxu0 0.0
    %6543 = vmatpush.xpose.msra.mxu0 0.0
    %6544 = vmatpush.xpose.msra.mxu0 0.0
    %6545 = vmatpush.xpose.msra.mxu0 0.0
    %6546 = vmatpush.xpose.msra.mxu0 0.0
    %6547 = vmatpush.xpose.msra.mxu0 0.0
    %6548 = vmatpush.xpose.msra.mxu0 0.0
    %6549 = vmatpush.xpose.msra.mxu0 0.0
    %6550 = vmatpush.xpose.msra.mxu0 0.0
    %6551 = vmatpush.xpose.msra.mxu0 0.0
    %6552 = vmatpush.xpose.msra.mxu0 0.0
    %6553 = vmatpush.xpose.msra.mxu0 0.0
    %6554 = vmatpush.xpose.msra.mxu0 0.0
    %6555 = vmatpush.xpose.msra.mxu0 0.0
    %6556 = vmatpush.xpose.msra.mxu0 %v398
    %6557 = vmatmul.f32.gmra.mxu0 %v831
    %v6558 = vpop.f32.mrf.mxu0
    %v6559 = vadd.f32 %v6539, %v6558
    %6560 = vdwg.mxu0
    %6561 = vmatpush.xpose.msra.mxu0 0.0
    %6562 = vmatpush.xpose.msra.mxu0 0.0
    %6563 = vmatpush.xpose.msra.mxu0 0.0
    %6564 = vmatpush.xpose.msra.mxu0 0.0
    %6565 = vmatpush.xpose.msra.mxu0 0.0
    %6566 = vmatpush.xpose.msra.mxu0 0.0
    %6567 = vmatpush.xpose.msra.mxu0 0.0
    %6568 = vmatpush.xpose.msra.mxu0 0.0
    %6569 = vmatpush.xpose.msra.mxu0 0.0
    %6570 = vmatpush.xpose.msra.mxu0 0.0
    %6571 = vmatpush.xpose.msra.mxu0 0.0
    %6572 = vmatpush.xpose.msra.mxu0 0.0
    %6573 = vmatpush.xpose.msra.mxu0 0.0
    %6574 = vmatpush.xpose.msra.mxu0 0.0
    %6575 = vmatpush.xpose.msra.mxu0 0.0
    %6576 = vmatpush.xpose.msra.mxu0 %v399
    %6577 = vmatmul.f32.gmra.mxu0 %v832
    %v6578 = vpop.f32.mrf.mxu0
    %v6579 = vadd.f32 %v6559, %v6578
    %6580 = vdwg.mxu0
    %6581 = vmatpush.xpose.msra.mxu0 0.0
    %6582 = vmatpush.xpose.msra.mxu0 0.0
    %6583 = vmatpush.xpose.msra.mxu0 0.0
    %6584 = vmatpush.xpose.msra.mxu0 0.0
    %6585 = vmatpush.xpose.msra.mxu0 0.0
    %6586 = vmatpush.xpose.msra.mxu0 0.0
    %6587 = vmatpush.xpose.msra.mxu0 0.0
    %6588 = vmatpush.xpose.msra.mxu0 0.0
    %6589 = vmatpush.xpose.msra.mxu0 0.0
    %6590 = vmatpush.xpose.msra.mxu0 0.0
    %6591 = vmatpush.xpose.msra.mxu0 0.0
    %6592 = vmatpush.xpose.msra.mxu0 0.0
    %6593 = vmatpush.xpose.msra.mxu0 0.0
    %6594 = vmatpush.xpose.msra.mxu0 0.0
    %6595 = vmatpush.xpose.msra.mxu0 0.0
    %6596 = vmatpush.xpose.msra.mxu0 %v400
    %6597 = vmatmul.f32.gmra.mxu0 %v835
    %v6598 = vpop.f32.mrf.mxu0
    %v6599 = vadd.f32 %v6579, %v6598
    %6600 = vdwg.mxu0
    %6601 = vmatpush.xpose.msra.mxu0 0.0
    %6602 = vmatpush.xpose.msra.mxu0 0.0
    %6603 = vmatpush.xpose.msra.mxu0 0.0
    %6604 = vmatpush.xpose.msra.mxu0 0.0
    %6605 = vmatpush.xpose.msra.mxu0 0.0
    %6606 = vmatpush.xpose.msra.mxu0 0.0
    %6607 = vmatpush.xpose.msra.mxu0 0.0
    %6608 = vmatpush.xpose.msra.mxu0 0.0
    %6609 = vmatpush.xpose.msra.mxu0 0.0
    %6610 = vmatpush.xpose.msra.mxu0 0.0
    %6611 = vmatpush.xpose.msra.mxu0 0.0
    %6612 = vmatpush.xpose.msra.mxu0 0.0
    %6613 = vmatpush.xpose.msra.mxu0 0.0
    %6614 = vmatpush.xpose.msra.mxu0 0.0
    %6615 = vmatpush.xpose.msra.mxu0 0.0
    %6616 = vmatpush.xpose.msra.mxu0 %v401
    %6617 = vmatmul.f32.gmra.mxu0 %v836
    %v6618 = vpop.f32.mrf.mxu0
    %v6619 = vadd.f32 %v6599, %v6618
    %6620 = vdwg.mxu0
    %6621 = vmatpush.xpose.msra.mxu0 0.0
    %6622 = vmatpush.xpose.msra.mxu0 0.0
    %6623 = vmatpush.xpose.msra.mxu0 0.0
    %6624 = vmatpush.xpose.msra.mxu0 0.0
    %6625 = vmatpush.xpose.msra.mxu0 0.0
    %6626 = vmatpush.xpose.msra.mxu0 0.0
    %6627 = vmatpush.xpose.msra.mxu0 0.0
    %6628 = vmatpush.xpose.msra.mxu0 0.0
    %6629 = vmatpush.xpose.msra.mxu0 0.0
    %6630 = vmatpush.xpose.msra.mxu0 0.0
    %6631 = vmatpush.xpose.msra.mxu0 0.0
    %6632 = vmatpush.xpose.msra.mxu0 0.0
    %6633 = vmatpush.xpose.msra.mxu0 0.0
    %6634 = vmatpush.xpose.msra.mxu0 0.0
    %6635 = vmatpush.xpose.msra.mxu0 0.0
    %6636 = vmatpush.xpose.msra.mxu0 %v402
    %6637 = vmatmul.f32.gmra.mxu0 %v837
    %v6638 = vpop.f32.mrf.mxu0
    %v6639 = vadd.f32 %v6619, %v6638
    %6640 = vdwg.mxu0
    %6641 = vmatpush.xpose.msra.mxu0 0.0
    %6642 = vmatpush.xpose.msra.mxu0 0.0
    %6643 = vmatpush.xpose.msra.mxu0 0.0
    %6644 = vmatpush.xpose.msra.mxu0 0.0
    %6645 = vmatpush.xpose.msra.mxu0 0.0
    %6646 = vmatpush.xpose.msra.mxu0 0.0
    %6647 = vmatpush.xpose.msra.mxu0 0.0
    %6648 = vmatpush.xpose.msra.mxu0 0.0
    %6649 = vmatpush.xpose.msra.mxu0 0.0
    %6650 = vmatpush.xpose.msra.mxu0 0.0
    %6651 = vmatpush.xpose.msra.mxu0 0.0
    %6652 = vmatpush.xpose.msra.mxu0 0.0
    %6653 = vmatpush.xpose.msra.mxu0 0.0
    %6654 = vmatpush.xpose.msra.mxu0 0.0
    %6655 = vmatpush.xpose.msra.mxu0 0.0
    %6656 = vmatpush.xpose.msra.mxu0 %v403
    %6657 = vmatmul.f32.gmra.mxu0 %v838
    %v6658 = vpop.f32.mrf.mxu0
    %v6659 = vadd.f32 %v6639, %v6658
    %6660 = vdwg.mxu0
    %6661 = vmatpush.xpose.msra.mxu0 0.0
    %6662 = vmatpush.xpose.msra.mxu0 0.0
    %6663 = vmatpush.xpose.msra.mxu0 0.0
    %6664 = vmatpush.xpose.msra.mxu0 0.0
    %6665 = vmatpush.xpose.msra.mxu0 0.0
    %6666 = vmatpush.xpose.msra.mxu0 0.0
    %6667 = vmatpush.xpose.msra.mxu0 0.0
    %6668 = vmatpush.xpose.msra.mxu0 0.0
    %6669 = vmatpush.xpose.msra.mxu0 0.0
    %6670 = vmatpush.xpose.msra.mxu0 0.0
    %6671 = vmatpush.xpose.msra.mxu0 0.0
    %6672 = vmatpush.xpose.msra.mxu0 0.0
    %6673 = vmatpush.xpose.msra.mxu0 0.0
    %6674 = vmatpush.xpose.msra.mxu0 0.0
    %6675 = vmatpush.xpose.msra.mxu0 0.0
    %6676 = vmatpush.xpose.msra.mxu0 %v404
    %6677 = vmatmul.f32.gmra.mxu0 %v839
    %v6678 = vpop.f32.mrf.mxu0
    %v6679 = vadd.f32 %v6659, %v6678
    %6680 = vdwg.mxu0
    %6681 = vmatpush.xpose.msra.mxu0 0.0
    %6682 = vmatpush.xpose.msra.mxu0 0.0
    %6683 = vmatpush.xpose.msra.mxu0 0.0
    %6684 = vmatpush.xpose.msra.mxu0 0.0
    %6685 = vmatpush.xpose.msra.mxu0 0.0
    %6686 = vmatpush.xpose.msra.mxu0 0.0
    %6687 = vmatpush.xpose.msra.mxu0 0.0
    %6688 = vmatpush.xpose.msra.mxu0 0.0
    %6689 = vmatpush.xpose.msra.mxu0 0.0
    %6690 = vmatpush.xpose.msra.mxu0 0.0
    %6691 = vmatpush.xpose.msra.mxu0 0.0
    %6692 = vmatpush.xpose.msra.mxu0 0.0
    %6693 = vmatpush.xpose.msra.mxu0 0.0
    %6694 = vmatpush.xpose.msra.mxu0 0.0
    %6695 = vmatpush.xpose.msra.mxu0 0.0
    %6696 = vmatpush.xpose.msra.mxu0 %v405
    %6697 = vmatmul.f32.gmra.mxu0 %v840
    %v6698 = vpop.f32.mrf.mxu0
    %v6699 = vadd.f32 %v6679, %v6698
    %6700 = vdwg.mxu0
    %6701 = vmatpush.xpose.msra.mxu0 0.0
    %6702 = vmatpush.xpose.msra.mxu0 0.0
    %6703 = vmatpush.xpose.msra.mxu0 0.0
    %6704 = vmatpush.xpose.msra.mxu0 0.0
    %6705 = vmatpush.xpose.msra.mxu0 0.0
    %6706 = vmatpush.xpose.msra.mxu0 0.0
    %6707 = vmatpush.xpose.msra.mxu0 0.0
    %6708 = vmatpush.xpose.msra.mxu0 0.0
    %6709 = vmatpush.xpose.msra.mxu0 0.0
    %6710 = vmatpush.xpose.msra.mxu0 0.0
    %6711 = vmatpush.xpose.msra.mxu0 0.0
    %6712 = vmatpush.xpose.msra.mxu0 0.0
    %6713 = vmatpush.xpose.msra.mxu0 0.0
    %6714 = vmatpush.xpose.msra.mxu0 0.0
    %6715 = vmatpush.xpose.msra.mxu0 0.0
    %6716 = vmatpush.xpose.msra.mxu0 %v406
    %6717 = vmatmul.f32.gmra.mxu0 %v841
    %v6718 = vpop.f32.mrf.mxu0
    %v6719 = vadd.f32 %v6699, %v6718
    %6720 = vdwg.mxu0
    %6721 = vmatpush.xpose.msra.mxu0 0.0
    %6722 = vmatpush.xpose.msra.mxu0 0.0
    %6723 = vmatpush.xpose.msra.mxu0 0.0
    %6724 = vmatpush.xpose.msra.mxu0 0.0
    %6725 = vmatpush.xpose.msra.mxu0 0.0
    %6726 = vmatpush.xpose.msra.mxu0 0.0
    %6727 = vmatpush.xpose.msra.mxu0 0.0
    %6728 = vmatpush.xpose.msra.mxu0 0.0
    %6729 = vmatpush.xpose.msra.mxu0 0.0
    %6730 = vmatpush.xpose.msra.mxu0 0.0
    %6731 = vmatpush.xpose.msra.mxu0 0.0
    %6732 = vmatpush.xpose.msra.mxu0 0.0
    %6733 = vmatpush.xpose.msra.mxu0 0.0
    %6734 = vmatpush.xpose.msra.mxu0 0.0
    %6735 = vmatpush.xpose.msra.mxu0 0.0
    %6736 = vmatpush.xpose.msra.mxu0 %v407
    %6737 = vmatmul.f32.gmra.mxu0 %v842
    %v6738 = vpop.f32.mrf.mxu0
    %v6739 = vadd.f32 %v6719, %v6738
    %6740 = vdwg.mxu0
    %6741 = vmatpush.xpose.msra.mxu0 0.0
    %6742 = vmatpush.xpose.msra.mxu0 0.0
    %6743 = vmatpush.xpose.msra.mxu0 0.0
    %6744 = vmatpush.xpose.msra.mxu0 0.0
    %6745 = vmatpush.xpose.msra.mxu0 0.0
    %6746 = vmatpush.xpose.msra.mxu0 0.0
    %6747 = vmatpush.xpose.msra.mxu0 0.0
    %6748 = vmatpush.xpose.msra.mxu0 0.0
    %6749 = vmatpush.xpose.msra.mxu0 0.0
    %6750 = vmatpush.xpose.msra.mxu0 0.0
    %6751 = vmatpush.xpose.msra.mxu0 0.0
    %6752 = vmatpush.xpose.msra.mxu0 0.0
    %6753 = vmatpush.xpose.msra.mxu0 0.0
    %6754 = vmatpush.xpose.msra.mxu0 0.0
    %6755 = vmatpush.xpose.msra.mxu0 0.0
    %6756 = vmatpush.xpose.msra.mxu0 %v408
    %6757 = vmatmul.f32.gmra.mxu0 %v845
    %v6758 = vpop.f32.mrf.mxu0
    %v6759 = vadd.f32 %v6739, %v6758
    %6760 = vdwg.mxu0
    %6761 = vmatpush.xpose.msra.mxu0 0.0
    %6762 = vmatpush.xpose.msra.mxu0 0.0
    %6763 = vmatpush.xpose.msra.mxu0 0.0
    %6764 = vmatpush.xpose.msra.mxu0 0.0
    %6765 = vmatpush.xpose.msra.mxu0 0.0
    %6766 = vmatpush.xpose.msra.mxu0 0.0
    %6767 = vmatpush.xpose.msra.mxu0 0.0
    %6768 = vmatpush.xpose.msra.mxu0 0.0
    %6769 = vmatpush.xpose.msra.mxu0 0.0
    %6770 = vmatpush.xpose.msra.mxu0 0.0
    %6771 = vmatpush.xpose.msra.mxu0 0.0
    %6772 = vmatpush.xpose.msra.mxu0 0.0
    %6773 = vmatpush.xpose.msra.mxu0 0.0
    %6774 = vmatpush.xpose.msra.mxu0 0.0
    %6775 = vmatpush.xpose.msra.mxu0 0.0
    %6776 = vmatpush.xpose.msra.mxu0 %v409
    %6777 = vmatmul.f32.gmra.mxu0 %v846
    %v6778 = vpop.f32.mrf.mxu0
    %v6779 = vadd.f32 %v6759, %v6778
    %6780 = vdwg.mxu0
    %6781 = vmatpush.xpose.msra.mxu0 0.0
    %6782 = vmatpush.xpose.msra.mxu0 0.0
    %6783 = vmatpush.xpose.msra.mxu0 0.0
    %6784 = vmatpush.xpose.msra.mxu0 0.0
    %6785 = vmatpush.xpose.msra.mxu0 0.0
    %6786 = vmatpush.xpose.msra.mxu0 0.0
    %6787 = vmatpush.xpose.msra.mxu0 0.0
    %6788 = vmatpush.xpose.msra.mxu0 0.0
    %6789 = vmatpush.xpose.msra.mxu0 0.0
    %6790 = vmatpush.xpose.msra.mxu0 0.0
    %6791 = vmatpush.xpose.msra.mxu0 0.0
    %6792 = vmatpush.xpose.msra.mxu0 0.0
    %6793 = vmatpush.xpose.msra.mxu0 0.0
    %6794 = vmatpush.xpose.msra.mxu0 0.0
    %6795 = vmatpush.xpose.msra.mxu0 0.0
    %6796 = vmatpush.xpose.msra.mxu0 %v410
    %6797 = vmatmul.f32.gmra.mxu0 %v847
    %v6798 = vpop.f32.mrf.mxu0
    %v6799 = vadd.f32 %v6779, %v6798
    %6800 = vdwg.mxu0
    %6801 = vmatpush.xpose.msra.mxu0 0.0
    %6802 = vmatpush.xpose.msra.mxu0 0.0
    %6803 = vmatpush.xpose.msra.mxu0 0.0
    %6804 = vmatpush.xpose.msra.mxu0 0.0
    %6805 = vmatpush.xpose.msra.mxu0 0.0
    %6806 = vmatpush.xpose.msra.mxu0 0.0
    %6807 = vmatpush.xpose.msra.mxu0 0.0
    %6808 = vmatpush.xpose.msra.mxu0 0.0
    %6809 = vmatpush.xpose.msra.mxu0 0.0
    %6810 = vmatpush.xpose.msra.mxu0 0.0
    %6811 = vmatpush.xpose.msra.mxu0 0.0
    %6812 = vmatpush.xpose.msra.mxu0 0.0
    %6813 = vmatpush.xpose.msra.mxu0 0.0
    %6814 = vmatpush.xpose.msra.mxu0 0.0
    %6815 = vmatpush.xpose.msra.mxu0 0.0
    %6816 = vmatpush.xpose.msra.mxu0 %v411
    %6817 = vmatmul.f32.gmra.mxu0 %v848
    %v6818 = vpop.f32.mrf.mxu0
    %v6819 = vadd.f32 %v6799, %v6818
    %6820 = vdwg.mxu0
    %6821 = vmatpush.xpose.msra.mxu0 0.0
    %6822 = vmatpush.xpose.msra.mxu0 0.0
    %6823 = vmatpush.xpose.msra.mxu0 0.0
    %6824 = vmatpush.xpose.msra.mxu0 0.0
    %6825 = vmatpush.xpose.msra.mxu0 0.0
    %6826 = vmatpush.xpose.msra.mxu0 0.0
    %6827 = vmatpush.xpose.msra.mxu0 0.0
    %6828 = vmatpush.xpose.msra.mxu0 0.0
    %6829 = vmatpush.xpose.msra.mxu0 0.0
    %6830 = vmatpush.xpose.msra.mxu0 0.0
    %6831 = vmatpush.xpose.msra.mxu0 0.0
    %6832 = vmatpush.xpose.msra.mxu0 0.0
    %6833 = vmatpush.xpose.msra.mxu0 0.0
    %6834 = vmatpush.xpose.msra.mxu0 0.0
    %6835 = vmatpush.xpose.msra.mxu0 0.0
    %6836 = vmatpush.xpose.msra.mxu0 %v412
    %6837 = vmatmul.f32.gmra.mxu0 %v849
    %v6838 = vpop.f32.mrf.mxu0
    %v6839 = vadd.f32 %v6819, %v6838
    %6840 = vdwg.mxu0
    %6841 = vmatpush.xpose.msra.mxu0 0.0
    %6842 = vmatpush.xpose.msra.mxu0 0.0
    %6843 = vmatpush.xpose.msra.mxu0 0.0
    %6844 = vmatpush.xpose.msra.mxu0 0.0
    %6845 = vmatpush.xpose.msra.mxu0 0.0
    %6846 = vmatpush.xpose.msra.mxu0 0.0
    %6847 = vmatpush.xpose.msra.mxu0 0.0
    %6848 = vmatpush.xpose.msra.mxu0 0.0
    %6849 = vmatpush.xpose.msra.mxu0 0.0
    %6850 = vmatpush.xpose.msra.mxu0 0.0
    %6851 = vmatpush.xpose.msra.mxu0 0.0
    %6852 = vmatpush.xpose.msra.mxu0 0.0
    %6853 = vmatpush.xpose.msra.mxu0 0.0
    %6854 = vmatpush.xpose.msra.mxu0 0.0
    %6855 = vmatpush.xpose.msra.mxu0 0.0
    %6856 = vmatpush.xpose.msra.mxu0 %v413
    %6857 = vmatmul.f32.gmra.mxu0 %v850
    %v6858 = vpop.f32.mrf.mxu0
    %v6859 = vadd.f32 %v6839, %v6858
    %6860 = vdwg.mxu0
    %6861 = vmatpush.xpose.msra.mxu0 0.0
    %6862 = vmatpush.xpose.msra.mxu0 0.0
    %6863 = vmatpush.xpose.msra.mxu0 0.0
    %6864 = vmatpush.xpose.msra.mxu0 0.0
    %6865 = vmatpush.xpose.msra.mxu0 0.0
    %6866 = vmatpush.xpose.msra.mxu0 0.0
    %6867 = vmatpush.xpose.msra.mxu0 0.0
    %6868 = vmatpush.xpose.msra.mxu0 0.0
    %6869 = vmatpush.xpose.msra.mxu0 0.0
    %6870 = vmatpush.xpose.msra.mxu0 0.0
    %6871 = vmatpush.xpose.msra.mxu0 0.0
    %6872 = vmatpush.xpose.msra.mxu0 0.0
    %6873 = vmatpush.xpose.msra.mxu0 0.0
    %6874 = vmatpush.xpose.msra.mxu0 0.0
    %6875 = vmatpush.xpose.msra.mxu0 0.0
    %6876 = vmatpush.xpose.msra.mxu0 %v414
    %6877 = vmatmul.f32.gmra.mxu0 %v851
    %v6878 = vpop.f32.mrf.mxu0
    %v6879 = vadd.f32 %v6859, %v6878
    %6880 = vdwg.mxu0
    %6881 = vmatpush.xpose.msra.mxu0 0.0
    %6882 = vmatpush.xpose.msra.mxu0 0.0
    %6883 = vmatpush.xpose.msra.mxu0 0.0
    %6884 = vmatpush.xpose.msra.mxu0 0.0
    %6885 = vmatpush.xpose.msra.mxu0 0.0
    %6886 = vmatpush.xpose.msra.mxu0 0.0
    %6887 = vmatpush.xpose.msra.mxu0 0.0
    %6888 = vmatpush.xpose.msra.mxu0 0.0
    %6889 = vmatpush.xpose.msra.mxu0 0.0
    %6890 = vmatpush.xpose.msra.mxu0 0.0
    %6891 = vmatpush.xpose.msra.mxu0 0.0
    %6892 = vmatpush.xpose.msra.mxu0 0.0
    %6893 = vmatpush.xpose.msra.mxu0 0.0
    %6894 = vmatpush.xpose.msra.mxu0 0.0
    %6895 = vmatpush.xpose.msra.mxu0 0.0
    %6896 = vmatpush.xpose.msra.mxu0 %v415
    %6897 = vmatmul.f32.gmra.mxu0 %v852
    %v6898 = vpop.f32.mrf.mxu0
    %v6899 = vadd.f32 %v6879, %v6898
    %6900 = vdwg.mxu0
    %vm6901 = vcmask 48128
    %v6902 = vsel %vm6901, %v6899, 0.0
    %6903 = vst [vmem:[#allocation8] sm:$0x3] %v6902
    // Predicated region
    $region26: #{tpu_custom_call.1} parent=1 // pred_check
      _
    $region27: #{tpu_custom_call.1} parent=1 // pred_check_branch
      %6905 = sbr.rel (0) target = $region29
    $region28: #{tpu_custom_call.1} parent=1 // pred_region
      %6907 = vsyncadd [#allocation4], 0
      %s6909 = sshll.u32 [#allocation8], 4
      %s6910 = int_to_ptr.vmem [resolvable:$true] %s6909
      %s6911 = sshll.u32 %s3, 4
      %s6912 = int_to_ptr.hbm [resolvable:$true] %s6911
      %6914 = dma.vmem_to_hbm [thread:$0]  %s6910, 32, %s6912, [#allocation4]
    $region29: #{tpu_custom_call.1} parent=1 // pred_fallthru
      _
    // Predicated region
    $region30: #{tpu_custom_call.1} parent=1 // pred_check
      _
    $region31: #{tpu_custom_call.1} parent=1 // pred_check_branch
      %6916 = sbr.rel (0) target = $region33
    $region32: #{tpu_custom_call.1} parent=1 // pred_region
      %6918 = dma.done [#allocation4], 32
    $region33: #{tpu_custom_call.1} parent=1 // pred_fallthru
      _
    %6919 = vsyncpa [#allocation3], 1
    %6920 = vsyncpa [#allocation6], 1
    %6921 = vsyncpa [#allocation4], 1

</llo_original>
